<compile_context>
chip_gen: v7x
topology: tpu7x:2x2x1
jax: 0.10.0
libtpu: 0.0.40
codegen_flags: <defaults>
</compile_context>

<pallas_src>
import jax
import jax.numpy as jnp
from jax.experimental import pallas as pl
from jax.experimental.pallas import tpu as pltpu

NUM_NODES = 8          # num_nodes in the module
FEAT_C = 2048          # ResNet50 feature channels
HIDDEN = 1024          # fc1 width
LANES = 128            # TPU lane width


def _round_up(x, m):
    return ((x + m - 1) // m) * m


def _pick_batch_tile(B, HW, feat_itemsize):
    """Rows per grid step.

    Sized against a conservative VMEM budget: the feature tile is double-buffered
    by the pipeline (2 * bm * HW * 2048 * itemsize bytes) and must coexist with the
    VMEM-resident weights, so we cap it at ~24 MiB to stay comfortably under v7x's
    64 MiB physical VMEM (v5e/v6e have 128 MiB and are trivially fine).
    """
    if B <= 8:
        return B                                  # one full block, no masking games
    per_row = HW * FEAT_C * feat_itemsize
    budget = 24 << 20                             # feat double-buffer budget
    bm = (budget // (2 * per_row)) // 8 * 8
    bm = max(8, min(256, bm, (B // 8) * 8))
    # v7x has 2 TensorCores: make sure the "parallel" batch axis yields >= 2 blocks.
    if B >= 16 and pl.cdiv(B, bm) < 2:
        bm = max(8, _round_up(pl.cdiv(B, 2), 8))
    return bm


def head_kernel(feat_ref, w1_ref, b1_ref, w2_ref, b2_ref, out_ref):
    # feat_ref: (bm, HW, C) bf16      w1_ref: (C, HIDDEN) bf16   b1_ref: (1, HIDDEN) f32
    # w2_ref:  (HIDDEN, NNp) bf16     b2_ref: (1, NNp) f32       out_ref: (bm, NNp) f32

    # AdaptiveAvgPool2d((1,1)) + flatten == mean over spatial positions (f32 accumulate).
    pooled = jnp.mean(feat_ref[...].astype(jnp.float32), axis=1)          # (bm, C)

    # fc1 + ReLU: bf16 x bf16 MXU dot, f32 accumulate.
    h = jnp.dot(pooled.astype(jnp.bfloat16), w1_ref[...],
                preferred_element_type=jnp.float32) + b1_ref[...]
    h = jnp.maximum(h, 0.0)                                               # (bm, HIDDEN)

    # fc2 + sigmoid (columns zero-padded to the lane width; sliced off in wrapper).
    logits = jnp.dot(h.astype(jnp.bfloat16), w2_ref[...],
                     preferred_element_type=jnp.float32) + b2_ref[...]
    out_ref[...] = jax.nn.sigmoid(logits)                                 # (bm, NNp)


def prepare_head_params(w1, b1, w2, b2, num_nodes=NUM_NODES):
    """One-time (model-init) weight prep.

    * fc1/fc2 weights cast to bf16 once, so the hot path never re-reads f32 weights.
    * fc2 columns zero-padded to a multiple of 128 for lane-dense output stores.
    Weight layouts are (in, out); biases are kept in f32.
    """
    NN = num_nodes * num_nodes
    NN_pad = _round_up(max(NN, LANES), LANES)
    w1_bf = w1.astype(jnp.bfloat16)                                        # (2048, 1024)
    b1_2d = b1.reshape(1, HIDDEN).astype(jnp.float32)
    w2_bf = jnp.pad(w2.astype(jnp.bfloat16), ((0, 0), (0, NN_pad - NN)))   # (1024, NNp)
    b2_2d = jnp.pad(b2.reshape(1, NN).astype(jnp.float32), ((0, 0), (0, NN_pad - NN)))
    return {"w1": w1_bf, "b1": b1_2d, "w2": w2_bf, "b2": b2_2d,
            "num_nodes": num_nodes}


def graph_analysis_head(feat_nhwc, params):
    """feat_nhwc: (B, Hf, Wf, 2048) backbone feature map (NHWC; bf16 preferred).

    params: output of prepare_head_params (bf16 weights, padded fc2 columns).
    Returns sigmoid adjacency scores of shape (B, num_nodes, num_nodes).
    """
    w1, b1, w2, b2 = params["w1"], params["b1"], params["w2"], params["b2"]
    num_nodes = params["num_nodes"]
    NN = num_nodes * num_nodes
    NN_pad = w2.shape[1]

    B, H, W, C = feat_nhwc.shape
    assert C == FEAT_C
    HW = H * W

    # Free reshape (last dim unchanged): (B, Hf, Wf, C) -> (B, HW, C).
    feat = feat_nhwc.reshape(B, HW, C)

    bm = _pick_batch_tile(B, HW, feat.dtype.itemsize)
    n_tiles = pl.cdiv(B, bm)

    out = pl.pallas_call(
        head_kernel,
        out_shape=jax.ShapeDtypeStruct((B, NN_pad), jnp.float32),
        grid_spec=pltpu.PrefetchScalarGridSpec(
            num_scalar_prefetch=0,
            grid=(n_tiles,),
            in_specs=[
                # feature tile marches over the batch (partial last block is masked;
                # garbage rows are independent and sliced off by the NN reshape).
                pl.BlockSpec((bm, HW, C), lambda i: (i, 0, 0)),
                # weights / biases: same block every step -> fetched once, VMEM-resident
                pl.BlockSpec((C, HIDDEN), lambda i: (0, 0)),
                pl.BlockSpec((1, HIDDEN), lambda i: (0, 0)),
                pl.BlockSpec((HIDDEN, NN_pad), lambda i: (0, 0)),
                pl.BlockSpec((1, NN_pad), lambda i: (0, 0)),
            ],
            out_specs=pl.BlockSpec((bm, NN_pad), lambda i: (i, 0)),
        ),
        compiler_params=pltpu.CompilerParams(
            dimension_semantics=("parallel",),
            vmem_limit_bytes=48 << 20,   # headroom under v7x's 64 MiB physical VMEM
        ),
    )(feat, w1, b1, w2, b2)

    return out[:, :NN].reshape(B, num_nodes, num_nodes)


def _reference(feat_nhwc, w1, b1, w2, b2, num_nodes=NUM_NODES):
    B = feat_nhwc.shape[0]
    pooled = jnp.mean(feat_nhwc.astype(jnp.float32), axis=(1, 2))        # (B, 2048)
    h = jnp.maximum(pooled @ w1 + b1, 0.0)
    logits = h @ w2 + b2
    return jax.nn.sigmoid(logits).reshape(B, num_nodes, num_nodes)


if __name__ == "__main__":
    key = jax.random.PRNGKey(0)
    k_feat, k_w1, k_b1, k_w2, k_b2 = jax.random.split(key, 5)

    # Small shapes: a 64x64 RGB image through ResNet50 yields a 2x2x2048 feature map.
    B, Hf, Wf = 2, 2, 2
    feat = jax.random.normal(
        k_feat, (B, Hf, Wf, FEAT_C), dtype=jnp.float32).astype(jnp.bfloat16)

    # Deterministic synthetic parameters (fc1: 2048->1024, fc2: 1024->N*N).
    w1 = jax.random.normal(k_w1, (FEAT_C, HIDDEN), dtype=jnp.float32) * 0.02
    b1 = jax.random.normal(k_b1, (HIDDEN,), dtype=jnp.float32) * 0.02
    w2 = jax.random.normal(k_w2, (FEAT_C // 2, NUM_NODES * NUM_NODES),
                           dtype=jnp.float32) * 0.02
    b2 = jax.random.normal(k_b2, (NUM_NODES * NUM_NODES,), dtype=jnp.float32) * 0.02

    # One-time "model init" weight prep (bf16 cast + lane padding) -- not per call.
    params = prepare_head_params(w1, b1, w2, b2)

    out = graph_analysis_head(feat, params)
    out = jax.block_until_ready(out)

    ref = _reference(feat, w1, b1, w2, b2)
    assert out.shape == (B, NUM_NODES, NUM_NODES), out.shape
    # bf16 weights AND bf16 activation casts into the MXU -> relaxed post-sigmoid tol.
    max_err = float(jnp.max(jnp.abs(out - ref)))
    assert max_err < 2e-2, max_err

    print("KERNEL_OK")
</pallas_src>

<mosaic_0001>
module attributes {stable_mosaic.version = 11 : i64} {
  func.func @head_kernel(%arg0: i32, %arg1: memref<2x4x2048xbf16, #tpu.memory_space<vmem>>, %arg2: memref<2048x1024xbf16, #tpu.memory_space<vmem>>, %arg3: memref<1x1024xf32, #tpu.memory_space<vmem>>, %arg4: memref<1024x128xbf16, #tpu.memory_space<vmem>>, %arg5: memref<1x128xf32, #tpu.memory_space<vmem>>, %arg6: memref<2x128xf32, #tpu.memory_space<vmem>>) attributes {dimension_semantics = [#tpu.dimension_semantics<parallel>], iteration_bounds = array<i64: 1>, scalar_prefetch = 0 : i64, scratch_operands = 0 : i64, tpu.core_type = #tpu.core_type<tc>, window_params = [{transform_indices = @transform_0, window_bounds = array<i64: 2, 4, 2048>}, {pipeline_mode = #tpu.pipeline_mode<synchronous>, transform_indices = @transform_1, window_bounds = array<i64: 2048, 1024>}, {pipeline_mode = #tpu.pipeline_mode<synchronous>, transform_indices = @transform_2, window_bounds = array<i64: 1, 1024>}, {pipeline_mode = #tpu.pipeline_mode<synchronous>, transform_indices = @transform_3, window_bounds = array<i64: 1024, 128>}, {pipeline_mode = #tpu.pipeline_mode<synchronous>, transform_indices = @transform_4, window_bounds = array<i64: 1, 128>}, {transform_indices = @transform_5, window_bounds = array<i64: 2, 128>}]} {
    %c0 = arith.constant 0 : index
    %c0_0 = arith.constant 0 : index
    %c0_1 = arith.constant 0 : index
    %0 = vector.load %arg1[%c0, %c0_0, %c0_1] : memref<2x4x2048xbf16, #tpu.memory_space<vmem>>, vector<2x4x2048xbf16>
    %1 = arith.extf %0 : vector<2x4x2048xbf16> to vector<2x4x2048xf32>
    %cst = arith.constant dense<0.000000e+00> : vector<2x2048xf32>
    %2 = vector.multi_reduction <add>, %1, %cst [1] : vector<2x4x2048xf32> to vector<2x2048xf32>
    %cst_2 = arith.constant 4.000000e+00 : f32
    %3 = vector.broadcast %cst_2 : f32 to vector<2x2048xf32>
    %4 = arith.divf %2, %3 : vector<2x2048xf32>
    %5 = arith.truncf %4 : vector<2x2048xf32> to vector<2x2048xbf16>
    %c0_3 = arith.constant 0 : index
    %c0_4 = arith.constant 0 : index
    %6 = vector.load %arg2[%c0_3, %c0_4] : memref<2048x1024xbf16, #tpu.memory_space<vmem>>, vector<2048x1024xbf16>
    %cst_5 = arith.constant dense<0.000000e+00> : vector<2x1024xf32>
    %7 = tpu.matmul %5, %6, %cst_5 {dimension_numbers = #tpu.dot_dimension_numbers<[1], [0], [0], [1], [0, 0, 1, 1], [], []>} : vector<2x2048xbf16>, vector<2048x1024xbf16>, vector<2x1024xf32> -> vector<2x1024xf32>
    %c0_6 = arith.constant 0 : index
    %c0_7 = arith.constant 0 : index
    %8 = vector.load %arg3[%c0_6, %c0_7] : memref<1x1024xf32, #tpu.memory_space<vmem>>, vector<1x1024xf32>
    %9 = vector.broadcast %8 : vector<1x1024xf32> to vector<2x1024xf32>
    %10 = arith.addf %7, %9 : vector<2x1024xf32>
    %cst_8 = arith.constant 0.000000e+00 : f32
    %11 = vector.broadcast %cst_8 : f32 to vector<2x1024xf32>
    %12 = arith.maximumf %10, %11 : vector<2x1024xf32>
    %13 = arith.truncf %12 : vector<2x1024xf32> to vector<2x1024xbf16>
    %c0_9 = arith.constant 0 : index
    %c0_10 = arith.constant 0 : index
    %14 = vector.load %arg4[%c0_9, %c0_10] : memref<1024x128xbf16, #tpu.memory_space<vmem>>, vector<1024x128xbf16>
    %cst_11 = arith.constant dense<0.000000e+00> : vector<2x128xf32>
    %15 = tpu.matmul %13, %14, %cst_11 {dimension_numbers = #tpu.dot_dimension_numbers<[1], [0], [0], [1], [0, 0, 1, 1], [], []>} : vector<2x1024xbf16>, vector<1024x128xbf16>, vector<2x128xf32> -> vector<2x128xf32>
    %c0_12 = arith.constant 0 : index
    %c0_13 = arith.constant 0 : index
    %16 = vector.load %arg5[%c0_12, %c0_13] : memref<1x128xf32, #tpu.memory_space<vmem>>, vector<1x128xf32>
    %17 = vector.broadcast %16 : vector<1x128xf32> to vector<2x128xf32>
    %18 = arith.addf %15, %17 : vector<2x128xf32>
    %19 = arith.negf %18 : vector<2x128xf32>
    %20 = math.exp %19 : vector<2x128xf32>
    %cst_14 = arith.constant 1.000000e+00 : f32
    %21 = vector.broadcast %cst_14 : f32 to vector<2x128xf32>
    %22 = arith.addf %21, %20 : vector<2x128xf32>
    %23 = arith.divf %21, %22 : vector<2x128xf32>
    %c0_15 = arith.constant 0 : index
    %c0_16 = arith.constant 0 : index
    %24 = vector.load %arg6[%c0_15, %c0_16] : memref<2x128xf32, #tpu.memory_space<vmem>>, vector<2x128xf32>
    tpu.vector_store %arg6[%c0_15, %c0_16], %23 {strides = array<i32>} : memref<2x128xf32, #tpu.memory_space<vmem>>, vector<2x128xf32>,
    return
  }
  func.func @transform_0(%arg0: i32) -> (i32, i32, i32) {
    %c0_i32 = arith.constant 0 : i32
    %c0_i32_0 = arith.constant 0 : i32
    %c0_i32_1 = arith.constant 0 : i32
    return %arg0, %c0_i32, %c0_i32_0 : i32, i32, i32
  }
  func.func @transform_1(%arg0: i32) -> (i32, i32) {
    %c0_i32 = arith.constant 0 : i32
    %c0_i32_0 = arith.constant 0 : i32
    %c0_i32_1 = arith.constant 0 : i32
    return %c0_i32, %c0_i32_0 : i32, i32
  }
  func.func @transform_2(%arg0: i32) -> (i32, i32) {
    %c0_i32 = arith.constant 0 : i32
    %c0_i32_0 = arith.constant 0 : i32
    %c0_i32_1 = arith.constant 0 : i32
    return %c0_i32, %c0_i32_0 : i32, i32
  }
  func.func @transform_3(%arg0: i32) -> (i32, i32) {
    %c0_i32 = arith.constant 0 : i32
    %c0_i32_0 = arith.constant 0 : i32
    %c0_i32_1 = arith.constant 0 : i32
    return %c0_i32, %c0_i32_0 : i32, i32
  }
  func.func @transform_4(%arg0: i32) -> (i32, i32) {
    %c0_i32 = arith.constant 0 : i32
    %c0_i32_0 = arith.constant 0 : i32
    %c0_i32_1 = arith.constant 0 : i32
    return %c0_i32, %c0_i32_0 : i32, i32
  }
  func.func @transform_5(%arg0: i32) -> (i32, i32) {
    %c0_i32 = arith.constant 0 : i32
    %c0_i32_0 = arith.constant 0 : i32
    return %arg0, %c0_i32 : i32, i32
  }
}

</mosaic_0001>

<llo_original>
// kernel: tpu_custom_call.1
$region0: #{tpu_custom_call.1}
  #allocation0 [shape = 'u32[]', space=smem, size = 0x4, offset = 0x4, fixed_abs, tag = 'smem constant byte address 0x4 - core index']
  #allocation1 [shape = 'u32[144,128]{1,0:T(1,128)}', space=vmem, size = 0x12000, scoped, tag = 'internal scratch']
  %s0 = inlined_call_operand.hbm [shape: bf16[2,4,2048], index: 0, kind: input, shape index: {}]
  %s1 = inlined_call_operand.hbm [shape: bf16[2048,1024], index: 1, kind: input, shape index: {}]
  %s2 = inlined_call_operand.hbm [shape: f32[1,1024], index: 2, kind: input, shape index: {}]
  %s3 = inlined_call_operand.hbm [shape: bf16[1024,128], index: 3, kind: input, shape index: {}]
  %s4 = inlined_call_operand.hbm [shape: f32[1,128], index: 4, kind: input, shape index: {}]
  %s5 = inlined_call_operand.hbm [shape: f32[2,128], index: 5, kind: output, shape index: {}]
  %s6 = sld [smem:[#allocation0]]
  $region50: #{tpu_custom_call.1} parent=0
    _
  %s8 = ssub.s32 1, %s6
  %s9 = scalar_select 0, %s8, %s6
  $region1: #{tpu_custom_call.1} parent=0
    #allocation2 [shape = 'u8[32768]{0}', space=vmem, size = 0x8000, scoped, tag = 'input window, operand 0, single buffered']
    #allocation3 [shape = 's32[1]{0}', space=sflag, size = 0x4, scoped, tag = 'scoped memory for tpu_custom_call.1']
    #allocation4 [shape = 's32[1]{0}', space=sflag, size = 0x4, scoped, tag = 'scoped memory for tpu_custom_call.1']
    #allocation5 [shape = 'u8[4194304]{0}', space=vmem, size = 0x400000, scoped, tag = 'input window, operand 1, single buffered']
    #allocation6 [shape = 's32[1]{0}', space=sflag, size = 0x4, scoped, tag = 'scoped memory for tpu_custom_call.1']
    #allocation7 [shape = 'u8[4096]{0}', space=vmem, size = 0x1000, scoped, tag = 'input window, operand 2, single buffered']
    #allocation8 [shape = 'u8[262144]{0}', space=vmem, size = 0x40000, scoped, tag = 'input window, operand 3, single buffered']
    #allocation9 [shape = 's32[1]{0}', space=sflag, size = 0x4, scoped, tag = 'scoped memory for tpu_custom_call.1']
    #allocation10 [shape = 'u8[512]{0}', space=vmem, size = 0x400, scoped, tag = 'input window, operand 4, single buffered']
    #allocation11 [shape = 'u8[1024]{0}', space=vmem, size = 0x400, scoped, tag = 'output window, operand 0, single buffered']
    %10 = vsyncpa [#allocation3], 0
    %11 = vsyncpa [#allocation6], 0
    %12 = vsyncpa [#allocation9], 0
    %13 = vsyncpa [#allocation4], 0
    // Predicated region
    $region2: #{tpu_custom_call.1} parent=1 // pred_check
      _
    $region3: #{tpu_custom_call.1} parent=1 // pred_check_branch
      %15 = sbr.rel (0) target = $region5
    $region4: #{tpu_custom_call.1} parent=1 // pred_region
      %s17 = ssub.s32 1024, 1024
      %18 = vsyncadd [#allocation3], %s17
      %s19 = sshll.u32 [#allocation2], 4
      %s20 = int_to_ptr.vmem [resolvable:$true] %s19
      %25 = dma.hbm_to_vmem [thread:$0]  %s0, 1024, %s20, [#allocation3], 512, 512, 32
    $region5: #{tpu_custom_call.1} parent=1 // pred_fallthru
      _
    // Predicated region
    $region6: #{tpu_custom_call.1} parent=1 // pred_check
      _
    $region7: #{tpu_custom_call.1} parent=1 // pred_check_branch
      %27 = sbr.rel (0) target = $region9
    $region8: #{tpu_custom_call.1} parent=1 // pred_region
      %s29 = ssub.s32 131072, 131072
      %30 = vsyncadd [#allocation6], %s29
      %s31 = sshll.u32 [#allocation5], 4
      %s32 = int_to_ptr.vmem [resolvable:$true] %s31
      %37 = dma.hbm_to_vmem [thread:$0]  %s1, 131072, %s32, [#allocation6], 512, 512, 32
    $region9: #{tpu_custom_call.1} parent=1 // pred_fallthru
      _
    // Predicated region
    $region10: #{tpu_custom_call.1} parent=1 // pred_check
      _
    $region11: #{tpu_custom_call.1} parent=1 // pred_check_branch
      %39 = sbr.rel (0) target = $region13
    $region12: #{tpu_custom_call.1} parent=1 // pred_region
      %s41 = ssub.s32 128, 128
      %42 = vsyncadd [#allocation6], %s41
      %s44 = sshll.u32 [#allocation7], 4
      %s45 = int_to_ptr.vmem [resolvable:$true] %s44
      %47 = dma.hbm_to_vmem [thread:$0]  %s2, 128, %s45, [#allocation6]
    $region13: #{tpu_custom_call.1} parent=1 // pred_fallthru
      _
    // Predicated region
    $region14: #{tpu_custom_call.1} parent=1 // pred_check
      _
    $region15: #{tpu_custom_call.1} parent=1 // pred_check_branch
      %49 = sbr.rel (0) target = $region17
    $region16: #{tpu_custom_call.1} parent=1 // pred_region
      %s51 = ssub.s32 8192, 8192
      %52 = vsyncadd [#allocation9], %s51
      %s53 = sshll.u32 [#allocation8], 4
      %s54 = int_to_ptr.vmem [resolvable:$true] %s53
      %59 = dma.hbm_to_vmem [thread:$0]  %s3, 8192, %s54, [#allocation9], 64, 64, 4
    $region17: #{tpu_custom_call.1} parent=1 // pred_fallthru
      _
    // Predicated region
    $region18: #{tpu_custom_call.1} parent=1 // pred_check
      _
    $region19: #{tpu_custom_call.1} parent=1 // pred_check_branch
      %61 = sbr.rel (0) target = $region21
    $region20: #{tpu_custom_call.1} parent=1 // pred_region
      %s63 = ssub.s32 16, 16
      %64 = vsyncadd [#allocation9], %s63
      %s66 = sshll.u32 [#allocation10], 4
      %s67 = int_to_ptr.vmem [resolvable:$true] %s66
      %69 = dma.hbm_to_vmem [thread:$0]  %s4, 16, %s67, [#allocation9]
    $region21: #{tpu_custom_call.1} parent=1 // pred_fallthru
      _
    // Predicated region
    $region22: #{tpu_custom_call.1} parent=1 // pred_check
      _
    $region23: #{tpu_custom_call.1} parent=1 // pred_check_branch
      %71 = sbr.rel (0) target = $region25
    $region24: #{tpu_custom_call.1} parent=1 // pred_region
      %72 = dma.done [#allocation3], 1024
    $region25: #{tpu_custom_call.1} parent=1 // pred_fallthru
      _
    // Predicated region
    $region26: #{tpu_custom_call.1} parent=1 // pred_check
      _
    $region27: #{tpu_custom_call.1} parent=1 // pred_check_branch
      %74 = sbr.rel (0) target = $region29
    $region28: #{tpu_custom_call.1} parent=1 // pred_region
      %75 = dma.done [#allocation6], 131072
    $region29: #{tpu_custom_call.1} parent=1 // pred_fallthru
      _
    // Predicated region
    $region30: #{tpu_custom_call.1} parent=1 // pred_check
      _
    $region31: #{tpu_custom_call.1} parent=1 // pred_check_branch
      %77 = sbr.rel (0) target = $region33
    $region32: #{tpu_custom_call.1} parent=1 // pred_region
      %78 = dma.done [#allocation6], 128
    $region33: #{tpu_custom_call.1} parent=1 // pred_fallthru
      _
    // Predicated region
    $region34: #{tpu_custom_call.1} parent=1 // pred_check
      _
    $region35: #{tpu_custom_call.1} parent=1 // pred_check_branch
      %80 = sbr.rel (0) target = $region37
    $region36: #{tpu_custom_call.1} parent=1 // pred_region
      %81 = dma.done [#allocation9], 8192
    $region37: #{tpu_custom_call.1} parent=1 // pred_fallthru
      _
    // Predicated region
    $region38: #{tpu_custom_call.1} parent=1 // pred_check
      _
    $region39: #{tpu_custom_call.1} parent=1 // pred_check_branch
      %83 = sbr.rel (0) target = $region41
    $region40: #{tpu_custom_call.1} parent=1 // pred_region
      %84 = dma.done [#allocation9], 16
    $region41: #{tpu_custom_call.1} parent=1 // pred_fallthru
      _
    %v86 = vld [vmem:[#allocation2] sm:$0xff]
    %v87 = vld [vmem:[#allocation2 + $0x8] sm:$0xff]
    %v88 = vld [vmem:[#allocation2 + $0x10] sm:$0xff]
    %v89 = vld [vmem:[#allocation2 + $0x18] sm:$0xff]
    %v90 = vld [vmem:[#allocation2 + $0x20] sm:$0xff]
    %v91 = vld [vmem:[#allocation2 + $0x28] sm:$0xff]
    %v92 = vld [vmem:[#allocation2 + $0x30] sm:$0xff]
    %v93 = vld [vmem:[#allocation2 + $0x38] sm:$0xff]
    %v94 = vunpack.c.l.bf16 %v86
    %v95 = vunpack.c.h.bf16 %v86
    %v96 = vunpack.c.l.bf16 %v87
    %v97 = vunpack.c.h.bf16 %v87
    %v98 = vunpack.c.l.bf16 %v88
    %v99 = vunpack.c.h.bf16 %v88
    %v100 = vunpack.c.l.bf16 %v89
    %v101 = vunpack.c.h.bf16 %v89
    %v102 = vunpack.c.l.bf16 %v90
    %v103 = vunpack.c.h.bf16 %v90
    %v104 = vunpack.c.l.bf16 %v91
    %v105 = vunpack.c.h.bf16 %v91
    %v106 = vunpack.c.l.bf16 %v92
    %v107 = vunpack.c.h.bf16 %v92
    %v108 = vunpack.c.l.bf16 %v93
    %v109 = vunpack.c.h.bf16 %v93
    %v126 = vcombine.high %v94, %v94
    %v127 = vcombine.high %v95, %v95
    %v128 = vcombine.high %v96, %v96
    %v129 = vcombine.high %v97, %v97
    %v130 = vcombine.high %v98, %v98
    %v131 = vcombine.high %v99, %v99
    %v132 = vcombine.high %v100, %v100
    %v133 = vcombine.high %v101, %v101
    %v134 = vcombine.high %v102, %v102
    %v135 = vcombine.high %v103, %v103
    %v136 = vcombine.high %v104, %v104
    %v137 = vcombine.high %v105, %v105
    %v138 = vcombine.high %v106, %v106
    %v139 = vcombine.high %v107, %v107
    %v140 = vcombine.high %v108, %v108
    %v141 = vcombine.high %v109, %v109
    %vm158 = vcmask 1043456
    %v159 = vsel %vm158, %v94, 0.0
    %v160 = vrot.slane %v159, 4
    %v161 = vadd.f32 %v159, %v160
    %v162 = vrot.slane %v161, 2
    %v163 = vadd.f32 %v161, %v162
    %v164 = vrot.slane %v163, 1
    %v165 = vadd.f32 %v163, %v164
    %v166 = vsel %vm158, %v126, 0.0
    %v167 = vrot.slane %v166, 4
    %v168 = vadd.f32 %v166, %v167
    %v169 = vrot.slane %v168, 2
    %v170 = vadd.f32 %v168, %v169
    %v171 = vrot.slane %v170, 1
    %v172 = vadd.f32 %v170, %v171
    %v173 = vsel %vm158, %v95, 0.0
    %v174 = vrot.slane %v173, 4
    %v175 = vadd.f32 %v173, %v174
    %v176 = vrot.slane %v175, 2
    %v177 = vadd.f32 %v175, %v176
    %v178 = vrot.slane %v177, 1
    %v179 = vadd.f32 %v177, %v178
    %v180 = vsel %vm158, %v127, 0.0
    %v181 = vrot.slane %v180, 4
    %v182 = vadd.f32 %v180, %v181
    %v183 = vrot.slane %v182, 2
    %v184 = vadd.f32 %v182, %v183
    %v185 = vrot.slane %v184, 1
    %v186 = vadd.f32 %v184, %v185
    %v187 = vsel %vm158, %v96, 0.0
    %v188 = vrot.slane %v187, 4
    %v189 = vadd.f32 %v187, %v188
    %v190 = vrot.slane %v189, 2
    %v191 = vadd.f32 %v189, %v190
    %v192 = vrot.slane %v191, 1
    %v193 = vadd.f32 %v191, %v192
    %v194 = vsel %vm158, %v128, 0.0
    %v195 = vrot.slane %v194, 4
    %v196 = vadd.f32 %v194, %v195
    %v197 = vrot.slane %v196, 2
    %v198 = vadd.f32 %v196, %v197
    %v199 = vrot.slane %v198, 1
    %v200 = vadd.f32 %v198, %v199
    %v201 = vsel %vm158, %v97, 0.0
    %v202 = vrot.slane %v201, 4
    %v203 = vadd.f32 %v201, %v202
    %v204 = vrot.slane %v203, 2
    %v205 = vadd.f32 %v203, %v204
    %v206 = vrot.slane %v205, 1
    %v207 = vadd.f32 %v205, %v206
    %v208 = vsel %vm158, %v129, 0.0
    %v209 = vrot.slane %v208, 4
    %v210 = vadd.f32 %v208, %v209
    %v211 = vrot.slane %v210, 2
    %v212 = vadd.f32 %v210, %v211
    %v213 = vrot.slane %v212, 1
    %v214 = vadd.f32 %v212, %v213
    %v215 = vsel %vm158, %v98, 0.0
    %v216 = vrot.slane %v215, 4
    %v217 = vadd.f32 %v215, %v216
    %v218 = vrot.slane %v217, 2
    %v219 = vadd.f32 %v217, %v218
    %v220 = vrot.slane %v219, 1
    %v221 = vadd.f32 %v219, %v220
    %v222 = vsel %vm158, %v130, 0.0
    %v223 = vrot.slane %v222, 4
    %v224 = vadd.f32 %v222, %v223
    %v225 = vrot.slane %v224, 2
    %v226 = vadd.f32 %v224, %v225
    %v227 = vrot.slane %v226, 1
    %v228 = vadd.f32 %v226, %v227
    %v229 = vsel %vm158, %v99, 0.0
    %v230 = vrot.slane %v229, 4
    %v231 = vadd.f32 %v229, %v230
    %v232 = vrot.slane %v231, 2
    %v233 = vadd.f32 %v231, %v232
    %v234 = vrot.slane %v233, 1
    %v235 = vadd.f32 %v233, %v234
    %v236 = vsel %vm158, %v131, 0.0
    %v237 = vrot.slane %v236, 4
    %v238 = vadd.f32 %v236, %v237
    %v239 = vrot.slane %v238, 2
    %v240 = vadd.f32 %v238, %v239
    %v241 = vrot.slane %v240, 1
    %v242 = vadd.f32 %v240, %v241
    %v243 = vsel %vm158, %v100, 0.0
    %v244 = vrot.slane %v243, 4
    %v245 = vadd.f32 %v243, %v244
    %v246 = vrot.slane %v245, 2
    %v247 = vadd.f32 %v245, %v246
    %v248 = vrot.slane %v247, 1
    %v249 = vadd.f32 %v247, %v248
    %v250 = vsel %vm158, %v132, 0.0
    %v251 = vrot.slane %v250, 4
    %v252 = vadd.f32 %v250, %v251
    %v253 = vrot.slane %v252, 2
    %v254 = vadd.f32 %v252, %v253
    %v255 = vrot.slane %v254, 1
    %v256 = vadd.f32 %v254, %v255
    %v257 = vsel %vm158, %v101, 0.0
    %v258 = vrot.slane %v257, 4
    %v259 = vadd.f32 %v257, %v258
    %v260 = vrot.slane %v259, 2
    %v261 = vadd.f32 %v259, %v260
    %v262 = vrot.slane %v261, 1
    %v263 = vadd.f32 %v261, %v262
    %v264 = vsel %vm158, %v133, 0.0
    %v265 = vrot.slane %v264, 4
    %v266 = vadd.f32 %v264, %v265
    %v267 = vrot.slane %v266, 2
    %v268 = vadd.f32 %v266, %v267
    %v269 = vrot.slane %v268, 1
    %v270 = vadd.f32 %v268, %v269
    %v271 = vsel %vm158, %v102, 0.0
    %v272 = vrot.slane %v271, 4
    %v273 = vadd.f32 %v271, %v272
    %v274 = vrot.slane %v273, 2
    %v275 = vadd.f32 %v273, %v274
    %v276 = vrot.slane %v275, 1
    %v277 = vadd.f32 %v275, %v276
    %v278 = vsel %vm158, %v134, 0.0
    %v279 = vrot.slane %v278, 4
    %v280 = vadd.f32 %v278, %v279
    %v281 = vrot.slane %v280, 2
    %v282 = vadd.f32 %v280, %v281
    %v283 = vrot.slane %v282, 1
    %v284 = vadd.f32 %v282, %v283
    %v285 = vsel %vm158, %v103, 0.0
    %v286 = vrot.slane %v285, 4
    %v287 = vadd.f32 %v285, %v286
    %v288 = vrot.slane %v287, 2
    %v289 = vadd.f32 %v287, %v288
    %v290 = vrot.slane %v289, 1
    %v291 = vadd.f32 %v289, %v290
    %v292 = vsel %vm158, %v135, 0.0
    %v293 = vrot.slane %v292, 4
    %v294 = vadd.f32 %v292, %v293
    %v295 = vrot.slane %v294, 2
    %v296 = vadd.f32 %v294, %v295
    %v297 = vrot.slane %v296, 1
    %v298 = vadd.f32 %v296, %v297
    %v299 = vsel %vm158, %v104, 0.0
    %v300 = vrot.slane %v299, 4
    %v301 = vadd.f32 %v299, %v300
    %v302 = vrot.slane %v301, 2
    %v303 = vadd.f32 %v301, %v302
    %v304 = vrot.slane %v303, 1
    %v305 = vadd.f32 %v303, %v304
    %v306 = vsel %vm158, %v136, 0.0
    %v307 = vrot.slane %v306, 4
    %v308 = vadd.f32 %v306, %v307
    %v309 = vrot.slane %v308, 2
    %v310 = vadd.f32 %v308, %v309
    %v311 = vrot.slane %v310, 1
    %v312 = vadd.f32 %v310, %v311
    %v313 = vsel %vm158, %v105, 0.0
    %v314 = vrot.slane %v313, 4
    %v315 = vadd.f32 %v313, %v314
    %v316 = vrot.slane %v315, 2
    %v317 = vadd.f32 %v315, %v316
    %v318 = vrot.slane %v317, 1
    %v319 = vadd.f32 %v317, %v318
    %v320 = vsel %vm158, %v137, 0.0
    %v321 = vrot.slane %v320, 4
    %v322 = vadd.f32 %v320, %v321
    %v323 = vrot.slane %v322, 2
    %v324 = vadd.f32 %v322, %v323
    %v325 = vrot.slane %v324, 1
    %v326 = vadd.f32 %v324, %v325
    %v327 = vsel %vm158, %v106, 0.0
    %v328 = vrot.slane %v327, 4
    %v329 = vadd.f32 %v327, %v328
    %v330 = vrot.slane %v329, 2
    %v331 = vadd.f32 %v329, %v330
    %v332 = vrot.slane %v331, 1
    %v333 = vadd.f32 %v331, %v332
    %v334 = vsel %vm158, %v138, 0.0
    %v335 = vrot.slane %v334, 4
    %v336 = vadd.f32 %v334, %v335
    %v337 = vrot.slane %v336, 2
    %v338 = vadd.f32 %v336, %v337
    %v339 = vrot.slane %v338, 1
    %v340 = vadd.f32 %v338, %v339
    %v341 = vsel %vm158, %v107, 0.0
    %v342 = vrot.slane %v341, 4
    %v343 = vadd.f32 %v341, %v342
    %v344 = vrot.slane %v343, 2
    %v345 = vadd.f32 %v343, %v344
    %v346 = vrot.slane %v345, 1
    %v347 = vadd.f32 %v345, %v346
    %v348 = vsel %vm158, %v139, 0.0
    %v349 = vrot.slane %v348, 4
    %v350 = vadd.f32 %v348, %v349
    %v351 = vrot.slane %v350, 2
    %v352 = vadd.f32 %v350, %v351
    %v353 = vrot.slane %v352, 1
    %v354 = vadd.f32 %v352, %v353
    %v355 = vsel %vm158, %v108, 0.0
    %v356 = vrot.slane %v355, 4
    %v357 = vadd.f32 %v355, %v356
    %v358 = vrot.slane %v357, 2
    %v359 = vadd.f32 %v357, %v358
    %v360 = vrot.slane %v359, 1
    %v361 = vadd.f32 %v359, %v360
    %v362 = vsel %vm158, %v140, 0.0
    %v363 = vrot.slane %v362, 4
    %v364 = vadd.f32 %v362, %v363
    %v365 = vrot.slane %v364, 2
    %v366 = vadd.f32 %v364, %v365
    %v367 = vrot.slane %v366, 1
    %v368 = vadd.f32 %v366, %v367
    %v369 = vsel %vm158, %v109, 0.0
    %v370 = vrot.slane %v369, 4
    %v371 = vadd.f32 %v369, %v370
    %v372 = vrot.slane %v371, 2
    %v373 = vadd.f32 %v371, %v372
    %v374 = vrot.slane %v373, 1
    %v375 = vadd.f32 %v373, %v374
    %v376 = vsel %vm158, %v141, 0.0
    %v377 = vrot.slane %v376, 4
    %v378 = vadd.f32 %v376, %v377
    %v379 = vrot.slane %v378, 2
    %v380 = vadd.f32 %v378, %v379
    %v381 = vrot.slane %v380, 1
    %v382 = vadd.f32 %v380, %v381
    %v383 = vrcp.pop 4.0
    %v384 = vmul.f32 %v165, %v383
    %v385 = vmul.f32 %v172, %v383
    %v386 = vmul.f32 %v179, %v383
    %v387 = vmul.f32 %v186, %v383
    %v388 = vmul.f32 %v193, %v383
    %v389 = vmul.f32 %v200, %v383
    %v390 = vmul.f32 %v207, %v383
    %v391 = vmul.f32 %v214, %v383
    %v392 = vmul.f32 %v221, %v383
    %v393 = vmul.f32 %v228, %v383
    %v394 = vmul.f32 %v235, %v383
    %v395 = vmul.f32 %v242, %v383
    %v396 = vmul.f32 %v249, %v383
    %v397 = vmul.f32 %v256, %v383
    %v398 = vmul.f32 %v263, %v383
    %v399 = vmul.f32 %v270, %v383
    %v400 = vmul.f32 %v277, %v383
    %v401 = vmul.f32 %v284, %v383
    %v402 = vmul.f32 %v291, %v383
    %v403 = vmul.f32 %v298, %v383
    %v404 = vmul.f32 %v305, %v383
    %v405 = vmul.f32 %v312, %v383
    %v406 = vmul.f32 %v319, %v383
    %v407 = vmul.f32 %v326, %v383
    %v408 = vmul.f32 %v333, %v383
    %v409 = vmul.f32 %v340, %v383
    %v410 = vmul.f32 %v347, %v383
    %v411 = vmul.f32 %v354, %v383
    %v412 = vmul.f32 %v361, %v383
    %v413 = vmul.f32 %v368, %v383
    %v414 = vmul.f32 %v375, %v383
    %v415 = vmul.f32 %v382, %v383
    %v416 = vpack.c.bf16 %v384, %v384
    %v417 = vpack.c.bf16 %v385, %v385
    %v418 = vpack.c.bf16 %v386, %v386
    %v419 = vpack.c.bf16 %v387, %v387
    %v420 = vpack.c.bf16 %v388, %v388
    %v421 = vpack.c.bf16 %v389, %v389
    %v422 = vpack.c.bf16 %v390, %v390
    %v423 = vpack.c.bf16 %v391, %v391
    %v424 = vpack.c.bf16 %v392, %v392
    %v425 = vpack.c.bf16 %v393, %v393
    %v426 = vpack.c.bf16 %v394, %v394
    %v427 = vpack.c.bf16 %v395, %v395
    %v428 = vpack.c.bf16 %v396, %v396
    %v429 = vpack.c.bf16 %v397, %v397
    %v430 = vpack.c.bf16 %v398, %v398
    %v431 = vpack.c.bf16 %v399, %v399
    %v432 = vpack.c.bf16 %v400, %v400
    %v433 = vpack.c.bf16 %v401, %v401
    %v434 = vpack.c.bf16 %v402, %v402
    %v435 = vpack.c.bf16 %v403, %v403
    %v436 = vpack.c.bf16 %v404, %v404
    %v437 = vpack.c.bf16 %v405, %v405
    %v438 = vpack.c.bf16 %v406, %v406
    %v439 = vpack.c.bf16 %v407, %v407
    %v440 = vpack.c.bf16 %v408, %v408
    %v441 = vpack.c.bf16 %v409, %v409
    %v442 = vpack.c.bf16 %v410, %v410
    %v443 = vpack.c.bf16 %v411, %v411
    %v444 = vpack.c.bf16 %v412, %v412
    %v445 = vpack.c.bf16 %v413, %v413
    %v446 = vpack.c.bf16 %v414, %v414
    %v447 = vpack.c.bf16 %v415, %v415
    %v448 = vld [vmem:[#allocation5] sm:$0xff]
    %v449 = vld [vmem:[#allocation5 + $0x8] sm:$0xff]
    %v450 = vld [vmem:[#allocation5 + $0x10] sm:$0xff]
    %v451 = vld [vmem:[#allocation5 + $0x18] sm:$0xff]
    %v452 = vld [vmem:[#allocation5 + $0x20] sm:$0xff]
    %v453 = vld [vmem:[#allocation5 + $0x28] sm:$0xff]
    %v454 = vld [vmem:[#allocation5 + $0x30] sm:$0xff]
    %v455 = vld [vmem:[#allocation5 + $0x38] sm:$0xff]
    %v456 = vld [vmem:[#allocation5 + $0x40] sm:$0xff]
    %v457 = vld [vmem:[#allocation5 + $0x48] sm:$0xff]
    %v458 = vld [vmem:[#allocation5 + $0x50] sm:$0xff]
    %v459 = vld [vmem:[#allocation5 + $0x58] sm:$0xff]
    %v460 = vld [vmem:[#allocation5 + $0x60] sm:$0xff]
    %v461 = vld [vmem:[#allocation5 + $0x68] sm:$0xff]
    %v462 = vld [vmem:[#allocation5 + $0x70] sm:$0xff]
    %v463 = vld [vmem:[#allocation5 + $0x78] sm:$0xff]
    %v464 = vld [vmem:[#allocation5 + $0x80] sm:$0xff]
    %v465 = vld [vmem:[#allocation5 + $0x88] sm:$0xff]
    %v466 = vld [vmem:[#allocation5 + $0x90] sm:$0xff]
    %v467 = vld [vmem:[#allocation5 + $0x98] sm:$0xff]
    %v468 = vld [vmem:[#allocation5 + $0xa0] sm:$0xff]
    %v469 = vld [vmem:[#allocation5 + $0xa8] sm:$0xff]
    %v470 = vld [vmem:[#allocation5 + $0xb0] sm:$0xff]
    %v471 = vld [vmem:[#allocation5 + $0xb8] sm:$0xff]
    %v472 = vld [vmem:[#allocation5 + $0xc0] sm:$0xff]
    %v473 = vld [vmem:[#allocation5 + $0xc8] sm:$0xff]
    %v474 = vld [vmem:[#allocation5 + $0xd0] sm:$0xff]
    %v475 = vld [vmem:[#allocation5 + $0xd8] sm:$0xff]
    %v476 = vld [vmem:[#allocation5 + $0xe0] sm:$0xff]
    %v477 = vld [vmem:[#allocation5 + $0xe8] sm:$0xff]
    %v478 = vld [vmem:[#allocation5 + $0xf0] sm:$0xff]
    %v479 = vld [vmem:[#allocation5 + $0xf8] sm:$0xff]
    %v480 = vld [vmem:[#allocation5 + $0x100] sm:$0xff]
    %v481 = vld [vmem:[#allocation5 + $0x108] sm:$0xff]
    %v482 = vld [vmem:[#allocation5 + $0x110] sm:$0xff]
    %v483 = vld [vmem:[#allocation5 + $0x118] sm:$0xff]
    %v484 = vld [vmem:[#allocation5 + $0x120] sm:$0xff]
    %v485 = vld [vmem:[#allocation5 + $0x128] sm:$0xff]
    %v486 = vld [vmem:[#allocation5 + $0x130] sm:$0xff]
    %v487 = vld [vmem:[#allocation5 + $0x138] sm:$0xff]
    %v488 = vld [vmem:[#allocation5 + $0x140] sm:$0xff]
    %v489 = vld [vmem:[#allocation5 + $0x148] sm:$0xff]
    %v490 = vld [vmem:[#allocation5 + $0x150] sm:$0xff]
    %v491 = vld [vmem:[#allocation5 + $0x158] sm:$0xff]
    %v492 = vld [vmem:[#allocation5 + $0x160] sm:$0xff]
    %v493 = vld [vmem:[#allocation5 + $0x168] sm:$0xff]
    %v494 = vld [vmem:[#allocation5 + $0x170] sm:$0xff]
    %v495 = vld [vmem:[#allocation5 + $0x178] sm:$0xff]
    %v496 = vld [vmem:[#allocation5 + $0x180] sm:$0xff]
    %v497 = vld [vmem:[#allocation5 + $0x188] sm:$0xff]
    %v498 = vld [vmem:[#allocation5 + $0x190] sm:$0xff]
    %v499 = vld [vmem:[#allocation5 + $0x198] sm:$0xff]
    %v500 = vld [vmem:[#allocation5 + $0x1a0] sm:$0xff]
    %v501 = vld [vmem:[#allocation5 + $0x1a8] sm:$0xff]
    %v502 = vld [vmem:[#allocation5 + $0x1b0] sm:$0xff]
    %v503 = vld [vmem:[#allocation5 + $0x1b8] sm:$0xff]
    %v504 = vld [vmem:[#allocation5 + $0x1c0] sm:$0xff]
    %v505 = vld [vmem:[#allocation5 + $0x1c8] sm:$0xff]
    %v506 = vld [vmem:[#allocation5 + $0x1d0] sm:$0xff]
    %v507 = vld [vmem:[#allocation5 + $0x1d8] sm:$0xff]
    %v508 = vld [vmem:[#allocation5 + $0x1e0] sm:$0xff]
    %v509 = vld [vmem:[#allocation5 + $0x1e8] sm:$0xff]
    %v510 = vld [vmem:[#allocation5 + $0x1f0] sm:$0xff]
    %v511 = vld [vmem:[#allocation5 + $0x1f8] sm:$0xff]
    %v512 = vld [vmem:[#allocation5 + $0x200] sm:$0xff]
    %v513 = vld [vmem:[#allocation5 + $0x208] sm:$0xff]
    %v514 = vld [vmem:[#allocation5 + $0x210] sm:$0xff]
    %v515 = vld [vmem:[#allocation5 + $0x218] sm:$0xff]
    %v516 = vld [vmem:[#allocation5 + $0x220] sm:$0xff]
    %v517 = vld [vmem:[#allocation5 + $0x228] sm:$0xff]
    %v518 = vld [vmem:[#allocation5 + $0x230] sm:$0xff]
    %v519 = vld [vmem:[#allocation5 + $0x238] sm:$0xff]
    %v520 = vld [vmem:[#allocation5 + $0x240] sm:$0xff]
    %v521 = vld [vmem:[#allocation5 + $0x248] sm:$0xff]
    %v522 = vld [vmem:[#allocation5 + $0x250] sm:$0xff]
    %v523 = vld [vmem:[#allocation5 + $0x258] sm:$0xff]
    %v524 = vld [vmem:[#allocation5 + $0x260] sm:$0xff]
    %v525 = vld [vmem:[#allocation5 + $0x268] sm:$0xff]
    %v526 = vld [vmem:[#allocation5 + $0x270] sm:$0xff]
    %v527 = vld [vmem:[#allocation5 + $0x278] sm:$0xff]
    %v528 = vld [vmem:[#allocation5 + $0x280] sm:$0xff]
    %v529 = vld [vmem:[#allocation5 + $0x288] sm:$0xff]
    %v530 = vld [vmem:[#allocation5 + $0x290] sm:$0xff]
    %v531 = vld [vmem:[#allocation5 + $0x298] sm:$0xff]
    %v532 = vld [vmem:[#allocation5 + $0x2a0] sm:$0xff]
    %v533 = vld [vmem:[#allocation5 + $0x2a8] sm:$0xff]
    %v534 = vld [vmem:[#allocation5 + $0x2b0] sm:$0xff]
    %v535 = vld [vmem:[#allocation5 + $0x2b8] sm:$0xff]
    %v536 = vld [vmem:[#allocation5 + $0x2c0] sm:$0xff]
    %v537 = vld [vmem:[#allocation5 + $0x2c8] sm:$0xff]
    %v538 = vld [vmem:[#allocation5 + $0x2d0] sm:$0xff]
    %v539 = vld [vmem:[#allocation5 + $0x2d8] sm:$0xff]
    %v540 = vld [vmem:[#allocation5 + $0x2e0] sm:$0xff]
    %v541 = vld [vmem:[#allocation5 + $0x2e8] sm:$0xff]
    %v542 = vld [vmem:[#allocation5 + $0x2f0] sm:$0xff]
    %v543 = vld [vmem:[#allocation5 + $0x2f8] sm:$0xff]
    %v544 = vld [vmem:[#allocation5 + $0x300] sm:$0xff]
    %v545 = vld [vmem:[#allocation5 + $0x308] sm:$0xff]
    %v546 = vld [vmem:[#allocation5 + $0x310] sm:$0xff]
    %v547 = vld [vmem:[#allocation5 + $0x318] sm:$0xff]
    %v548 = vld [vmem:[#allocation5 + $0x320] sm:$0xff]
    %v549 = vld [vmem:[#allocation5 + $0x328] sm:$0xff]
    %v550 = vld [vmem:[#allocation5 + $0x330] sm:$0xff]
    %v551 = vld [vmem:[#allocation5 + $0x338] sm:$0xff]
    %v552 = vld [vmem:[#allocation5 + $0x340] sm:$0xff]
    %v553 = vld [vmem:[#allocation5 + $0x348] sm:$0xff]
    %v554 = vld [vmem:[#allocation5 + $0x350] sm:$0xff]
    %v555 = vld [vmem:[#allocation5 + $0x358] sm:$0xff]
    %v556 = vld [vmem:[#allocation5 + $0x360] sm:$0xff]
    %v557 = vld [vmem:[#allocation5 + $0x368] sm:$0xff]
    %v558 = vld [vmem:[#allocation5 + $0x370] sm:$0xff]
    %v559 = vld [vmem:[#allocation5 + $0x378] sm:$0xff]
    %v560 = vld [vmem:[#allocation5 + $0x380] sm:$0xff]
    %v561 = vld [vmem:[#allocation5 + $0x388] sm:$0xff]
    %v562 = vld [vmem:[#allocation5 + $0x390] sm:$0xff]
    %v563 = vld [vmem:[#allocation5 + $0x398] sm:$0xff]
    %v564 = vld [vmem:[#allocation5 + $0x3a0] sm:$0xff]
    %v565 = vld [vmem:[#allocation5 + $0x3a8] sm:$0xff]
    %v566 = vld [vmem:[#allocation5 + $0x3b0] sm:$0xff]
    %v567 = vld [vmem:[#allocation5 + $0x3b8] sm:$0xff]
    %v568 = vld [vmem:[#allocation5 + $0x3c0] sm:$0xff]
    %v569 = vld [vmem:[#allocation5 + $0x3c8] sm:$0xff]
    %v570 = vld [vmem:[#allocation5 + $0x3d0] sm:$0xff]
    %v571 = vld [vmem:[#allocation5 + $0x3d8] sm:$0xff]
    %v572 = vld [vmem:[#allocation5 + $0x3e0] sm:$0xff]
    %v573 = vld [vmem:[#allocation5 + $0x3e8] sm:$0xff]
    %v574 = vld [vmem:[#allocation5 + $0x3f0] sm:$0xff]
    %v575 = vld [vmem:[#allocation5 + $0x3f8] sm:$0xff]
    %v576 = vld [vmem:[#allocation5 + $0x400] sm:$0xff]
    %v577 = vld [vmem:[#allocation5 + $0x408] sm:$0xff]
    %v578 = vld [vmem:[#allocation5 + $0x410] sm:$0xff]
    %v579 = vld [vmem:[#allocation5 + $0x418] sm:$0xff]
    %v580 = vld [vmem:[#allocation5 + $0x420] sm:$0xff]
    %v581 = vld [vmem:[#allocation5 + $0x428] sm:$0xff]
    %v582 = vld [vmem:[#allocation5 + $0x430] sm:$0xff]
    %v583 = vld [vmem:[#allocation5 + $0x438] sm:$0xff]
    %v584 = vld [vmem:[#allocation5 + $0x440] sm:$0xff]
    %v585 = vld [vmem:[#allocation5 + $0x448] sm:$0xff]
    %v586 = vld [vmem:[#allocation5 + $0x450] sm:$0xff]
    %v587 = vld [vmem:[#allocation5 + $0x458] sm:$0xff]
    %v588 = vld [vmem:[#allocation5 + $0x460] sm:$0xff]
    %v589 = vld [vmem:[#allocation5 + $0x468] sm:$0xff]
    %v590 = vld [vmem:[#allocation5 + $0x470] sm:$0xff]
    %v591 = vld [vmem:[#allocation5 + $0x478] sm:$0xff]
    %v592 = vld [vmem:[#allocation5 + $0x480] sm:$0xff]
    %v593 = vld [vmem:[#allocation5 + $0x488] sm:$0xff]
    %v594 = vld [vmem:[#allocation5 + $0x490] sm:$0xff]
    %v595 = vld [vmem:[#allocation5 + $0x498] sm:$0xff]
    %v596 = vld [vmem:[#allocation5 + $0x4a0] sm:$0xff]
    %v597 = vld [vmem:[#allocation5 + $0x4a8] sm:$0xff]
    %v598 = vld [vmem:[#allocation5 + $0x4b0] sm:$0xff]
    %v599 = vld [vmem:[#allocation5 + $0x4b8] sm:$0xff]
    %v600 = vld [vmem:[#allocation5 + $0x4c0] sm:$0xff]
    %v601 = vld [vmem:[#allocation5 + $0x4c8] sm:$0xff]
    %v602 = vld [vmem:[#allocation5 + $0x4d0] sm:$0xff]
    %v603 = vld [vmem:[#allocation5 + $0x4d8] sm:$0xff]
    %v604 = vld [vmem:[#allocation5 + $0x4e0] sm:$0xff]
    %v605 = vld [vmem:[#allocation5 + $0x4e8] sm:$0xff]
    %v606 = vld [vmem:[#allocation5 + $0x4f0] sm:$0xff]
    %v607 = vld [vmem:[#allocation5 + $0x4f8] sm:$0xff]
    %v608 = vld [vmem:[#allocation5 + $0x500] sm:$0xff]
    %v609 = vld [vmem:[#allocation5 + $0x508] sm:$0xff]
    %v610 = vld [vmem:[#allocation5 + $0x510] sm:$0xff]
    %v611 = vld [vmem:[#allocation5 + $0x518] sm:$0xff]
    %v612 = vld [vmem:[#allocation5 + $0x520] sm:$0xff]
    %v613 = vld [vmem:[#allocation5 + $0x528] sm:$0xff]
    %v614 = vld [vmem:[#allocation5 + $0x530] sm:$0xff]
    %v615 = vld [vmem:[#allocation5 + $0x538] sm:$0xff]
    %v616 = vld [vmem:[#allocation5 + $0x540] sm:$0xff]
    %v617 = vld [vmem:[#allocation5 + $0x548] sm:$0xff]
    %v618 = vld [vmem:[#allocation5 + $0x550] sm:$0xff]
    %v619 = vld [vmem:[#allocation5 + $0x558] sm:$0xff]
    %v620 = vld [vmem:[#allocation5 + $0x560] sm:$0xff]
    %v621 = vld [vmem:[#allocation5 + $0x568] sm:$0xff]
    %v622 = vld [vmem:[#allocation5 + $0x570] sm:$0xff]
    %v623 = vld [vmem:[#allocation5 + $0x578] sm:$0xff]
    %v624 = vld [vmem:[#allocation5 + $0x580] sm:$0xff]
    %v625 = vld [vmem:[#allocation5 + $0x588] sm:$0xff]
    %v626 = vld [vmem:[#allocation5 + $0x590] sm:$0xff]
    %v627 = vld [vmem:[#allocation5 + $0x598] sm:$0xff]
    %v628 = vld [vmem:[#allocation5 + $0x5a0] sm:$0xff]
    %v629 = vld [vmem:[#allocation5 + $0x5a8] sm:$0xff]
    %v630 = vld [vmem:[#allocation5 + $0x5b0] sm:$0xff]
    %v631 = vld [vmem:[#allocation5 + $0x5b8] sm:$0xff]
    %v632 = vld [vmem:[#allocation5 + $0x5c0] sm:$0xff]
    %v633 = vld [vmem:[#allocation5 + $0x5c8] sm:$0xff]
    %v634 = vld [vmem:[#allocation5 + $0x5d0] sm:$0xff]
    %v635 = vld [vmem:[#allocation5 + $0x5d8] sm:$0xff]
    %v636 = vld [vmem:[#allocation5 + $0x5e0] sm:$0xff]
    %v637 = vld [vmem:[#allocation5 + $0x5e8] sm:$0xff]
    %v638 = vld [vmem:[#allocation5 + $0x5f0] sm:$0xff]
    %v639 = vld [vmem:[#allocation5 + $0x5f8] sm:$0xff]
    %v640 = vld [vmem:[#allocation5 + $0x600] sm:$0xff]
    %v641 = vld [vmem:[#allocation5 + $0x608] sm:$0xff]
    %v642 = vld [vmem:[#allocation5 + $0x610] sm:$0xff]
    %v643 = vld [vmem:[#allocation5 + $0x618] sm:$0xff]
    %v644 = vld [vmem:[#allocation5 + $0x620] sm:$0xff]
    %v645 = vld [vmem:[#allocation5 + $0x628] sm:$0xff]
    %v646 = vld [vmem:[#allocation5 + $0x630] sm:$0xff]
    %v647 = vld [vmem:[#allocation5 + $0x638] sm:$0xff]
    %v648 = vld [vmem:[#allocation5 + $0x640] sm:$0xff]
    %v649 = vld [vmem:[#allocation5 + $0x648] sm:$0xff]
    %v650 = vld [vmem:[#allocation5 + $0x650] sm:$0xff]
    %v651 = vld [vmem:[#allocation5 + $0x658] sm:$0xff]
    %v652 = vld [vmem:[#allocation5 + $0x660] sm:$0xff]
    %v653 = vld [vmem:[#allocation5 + $0x668] sm:$0xff]
    %v654 = vld [vmem:[#allocation5 + $0x670] sm:$0xff]
    %v655 = vld [vmem:[#allocation5 + $0x678] sm:$0xff]
    %v656 = vld [vmem:[#allocation5 + $0x680] sm:$0xff]
    %v657 = vld [vmem:[#allocation5 + $0x688] sm:$0xff]
    %v658 = vld [vmem:[#allocation5 + $0x690] sm:$0xff]
    %v659 = vld [vmem:[#allocation5 + $0x698] sm:$0xff]
    %v660 = vld [vmem:[#allocation5 + $0x6a0] sm:$0xff]
    %v661 = vld [vmem:[#allocation5 + $0x6a8] sm:$0xff]
    %v662 = vld [vmem:[#allocation5 + $0x6b0] sm:$0xff]
    %v663 = vld [vmem:[#allocation5 + $0x6b8] sm:$0xff]
    %v664 = vld [vmem:[#allocation5 + $0x6c0] sm:$0xff]
    %v665 = vld [vmem:[#allocation5 + $0x6c8] sm:$0xff]
    %v666 = vld [vmem:[#allocation5 + $0x6d0] sm:$0xff]
    %v667 = vld [vmem:[#allocation5 + $0x6d8] sm:$0xff]
    %v668 = vld [vmem:[#allocation5 + $0x6e0] sm:$0xff]
    %v669 = vld [vmem:[#allocation5 + $0x6e8] sm:$0xff]
    %v670 = vld [vmem:[#allocation5 + $0x6f0] sm:$0xff]
    %v671 = vld [vmem:[#allocation5 + $0x6f8] sm:$0xff]
    %v672 = vld [vmem:[#allocation5 + $0x700] sm:$0xff]
    %v673 = vld [vmem:[#allocation5 + $0x708] sm:$0xff]
    %v674 = vld [vmem:[#allocation5 + $0x710] sm:$0xff]
    %v675 = vld [vmem:[#allocation5 + $0x718] sm:$0xff]
    %v676 = vld [vmem:[#allocation5 + $0x720] sm:$0xff]
    %v677 = vld [vmem:[#allocation5 + $0x728] sm:$0xff]
    %v678 = vld [vmem:[#allocation5 + $0x730] sm:$0xff]
    %v679 = vld [vmem:[#allocation5 + $0x738] sm:$0xff]
    %v680 = vld [vmem:[#allocation5 + $0x740] sm:$0xff]
    %v681 = vld [vmem:[#allocation5 + $0x748] sm:$0xff]
    %v682 = vld [vmem:[#allocation5 + $0x750] sm:$0xff]
    %v683 = vld [vmem:[#allocation5 + $0x758] sm:$0xff]
    %v684 = vld [vmem:[#allocation5 + $0x760] sm:$0xff]
    %v685 = vld [vmem:[#allocation5 + $0x768] sm:$0xff]
    %v686 = vld [vmem:[#allocation5 + $0x770] sm:$0xff]
    %v687 = vld [vmem:[#allocation5 + $0x778] sm:$0xff]
    %v688 = vld [vmem:[#allocation5 + $0x780] sm:$0xff]
    %v689 = vld [vmem:[#allocation5 + $0x788] sm:$0xff]
    %v690 = vld [vmem:[#allocation5 + $0x790] sm:$0xff]
    %v691 = vld [vmem:[#allocation5 + $0x798] sm:$0xff]
    %v692 = vld [vmem:[#allocation5 + $0x7a0] sm:$0xff]
    %v693 = vld [vmem:[#allocation5 + $0x7a8] sm:$0xff]
    %v694 = vld [vmem:[#allocation5 + $0x7b0] sm:$0xff]
    %v695 = vld [vmem:[#allocation5 + $0x7b8] sm:$0xff]
    %v696 = vld [vmem:[#allocation5 + $0x7c0] sm:$0xff]
    %v697 = vld [vmem:[#allocation5 + $0x7c8] sm:$0xff]
    %v698 = vld [vmem:[#allocation5 + $0x7d0] sm:$0xff]
    %v699 = vld [vmem:[#allocation5 + $0x7d8] sm:$0xff]
    %v700 = vld [vmem:[#allocation5 + $0x7e0] sm:$0xff]
    %v701 = vld [vmem:[#allocation5 + $0x7e8] sm:$0xff]
    %v702 = vld [vmem:[#allocation5 + $0x7f0] sm:$0xff]
    %v703 = vld [vmem:[#allocation5 + $0x7f8] sm:$0xff]
    %v704 = vld [vmem:[#allocation5 + $0x800] sm:$0xff]
    %v705 = vld [vmem:[#allocation5 + $0x808] sm:$0xff]
    %v706 = vld [vmem:[#allocation5 + $0x810] sm:$0xff]
    %v707 = vld [vmem:[#allocation5 + $0x818] sm:$0xff]
    %v708 = vld [vmem:[#allocation5 + $0x820] sm:$0xff]
    %v709 = vld [vmem:[#allocation5 + $0x828] sm:$0xff]
    %v710 = vld [vmem:[#allocation5 + $0x830] sm:$0xff]
    %v711 = vld [vmem:[#allocation5 + $0x838] sm:$0xff]
    %v712 = vld [vmem:[#allocation5 + $0x840] sm:$0xff]
    %v713 = vld [vmem:[#allocation5 + $0x848] sm:$0xff]
    %v714 = vld [vmem:[#allocation5 + $0x850] sm:$0xff]
    %v715 = vld [vmem:[#allocation5 + $0x858] sm:$0xff]
    %v716 = vld [vmem:[#allocation5 + $0x860] sm:$0xff]
    %v717 = vld [vmem:[#allocation5 + $0x868] sm:$0xff]
    %v718 = vld [vmem:[#allocation5 + $0x870] sm:$0xff]
    %v719 = vld [vmem:[#allocation5 + $0x878] sm:$0xff]
    %v720 = vld [vmem:[#allocation5 + $0x880] sm:$0xff]
    %v721 = vld [vmem:[#allocation5 + $0x888] sm:$0xff]
    %v722 = vld [vmem:[#allocation5 + $0x890] sm:$0xff]
    %v723 = vld [vmem:[#allocation5 + $0x898] sm:$0xff]
    %v724 = vld [vmem:[#allocation5 + $0x8a0] sm:$0xff]
    %v725 = vld [vmem:[#allocation5 + $0x8a8] sm:$0xff]
    %v726 = vld [vmem:[#allocation5 + $0x8b0] sm:$0xff]
    %v727 = vld [vmem:[#allocation5 + $0x8b8] sm:$0xff]
    %v728 = vld [vmem:[#allocation5 + $0x8c0] sm:$0xff]
    %v729 = vld [vmem:[#allocation5 + $0x8c8] sm:$0xff]
    %v730 = vld [vmem:[#allocation5 + $0x8d0] sm:$0xff]
    %v731 = vld [vmem:[#allocation5 + $0x8d8] sm:$0xff]
    %v732 = vld [vmem:[#allocation5 + $0x8e0] sm:$0xff]
    %v733 = vld [vmem:[#allocation5 + $0x8e8] sm:$0xff]
    %v734 = vld [vmem:[#allocation5 + $0x8f0] sm:$0xff]
    %v735 = vld [vmem:[#allocation5 + $0x8f8] sm:$0xff]
    %v736 = vld [vmem:[#allocation5 + $0x900] sm:$0xff]
    %v737 = vld [vmem:[#allocation5 + $0x908] sm:$0xff]
    %v738 = vld [vmem:[#allocation5 + $0x910] sm:$0xff]
    %v739 = vld [vmem:[#allocation5 + $0x918] sm:$0xff]
    %v740 = vld [vmem:[#allocation5 + $0x920] sm:$0xff]
    %v741 = vld [vmem:[#allocation5 + $0x928] sm:$0xff]
    %v742 = vld [vmem:[#allocation5 + $0x930] sm:$0xff]
    %v743 = vld [vmem:[#allocation5 + $0x938] sm:$0xff]
    %v744 = vld [vmem:[#allocation5 + $0x940] sm:$0xff]
    %v745 = vld [vmem:[#allocation5 + $0x948] sm:$0xff]
    %v746 = vld [vmem:[#allocation5 + $0x950] sm:$0xff]
    %v747 = vld [vmem:[#allocation5 + $0x958] sm:$0xff]
    %v748 = vld [vmem:[#allocation5 + $0x960] sm:$0xff]
    %v749 = vld [vmem:[#allocation5 + $0x968] sm:$0xff]
    %v750 = vld [vmem:[#allocation5 + $0x970] sm:$0xff]
    %v751 = vld [vmem:[#allocation5 + $0x978] sm:$0xff]
    %v752 = vld [vmem:[#allocation5 + $0x980] sm:$0xff]
    %v753 = vld [vmem:[#allocation5 + $0x988] sm:$0xff]
    %v754 = vld [vmem:[#allocation5 + $0x990] sm:$0xff]
    %v755 = vld [vmem:[#allocation5 + $0x998] sm:$0xff]
    %v756 = vld [vmem:[#allocation5 + $0x9a0] sm:$0xff]
    %v757 = vld [vmem:[#allocation5 + $0x9a8] sm:$0xff]
    %v758 = vld [vmem:[#allocation5 + $0x9b0] sm:$0xff]
    %v759 = vld [vmem:[#allocation5 + $0x9b8] sm:$0xff]
    %v760 = vld [vmem:[#allocation5 + $0x9c0] sm:$0xff]
    %v761 = vld [vmem:[#allocation5 + $0x9c8] sm:$0xff]
    %v762 = vld [vmem:[#allocation5 + $0x9d0] sm:$0xff]
    %v763 = vld [vmem:[#allocation5 + $0x9d8] sm:$0xff]
    %v764 = vld [vmem:[#allocation5 + $0x9e0] sm:$0xff]
    %v765 = vld [vmem:[#allocation5 + $0x9e8] sm:$0xff]
    %v766 = vld [vmem:[#allocation5 + $0x9f0] sm:$0xff]
    %v767 = vld [vmem:[#allocation5 + $0x9f8] sm:$0xff]
    %v768 = vld [vmem:[#allocation5 + $0xa00] sm:$0xff]
    %v769 = vld [vmem:[#allocation5 + $0xa08] sm:$0xff]
    %v770 = vld [vmem:[#allocation5 + $0xa10] sm:$0xff]
    %v771 = vld [vmem:[#allocation5 + $0xa18] sm:$0xff]
    %v772 = vld [vmem:[#allocation5 + $0xa20] sm:$0xff]
    %v773 = vld [vmem:[#allocation5 + $0xa28] sm:$0xff]
    %v774 = vld [vmem:[#allocation5 + $0xa30] sm:$0xff]
    %v775 = vld [vmem:[#allocation5 + $0xa38] sm:$0xff]
    %v776 = vld [vmem:[#allocation5 + $0xa40] sm:$0xff]
    %v777 = vld [vmem:[#allocation5 + $0xa48] sm:$0xff]
    %v778 = vld [vmem:[#allocation5 + $0xa50] sm:$0xff]
    %v779 = vld [vmem:[#allocation5 + $0xa58] sm:$0xff]
    %v780 = vld [vmem:[#allocation5 + $0xa60] sm:$0xff]
    %v781 = vld [vmem:[#allocation5 + $0xa68] sm:$0xff]
    %v782 = vld [vmem:[#allocation5 + $0xa70] sm:$0xff]
    %v783 = vld [vmem:[#allocation5 + $0xa78] sm:$0xff]
    %v784 = vld [vmem:[#allocation5 + $0xa80] sm:$0xff]
    %v785 = vld [vmem:[#allocation5 + $0xa88] sm:$0xff]
    %v786 = vld [vmem:[#allocation5 + $0xa90] sm:$0xff]
    %v787 = vld [vmem:[#allocation5 + $0xa98] sm:$0xff]
    %v788 = vld [vmem:[#allocation5 + $0xaa0] sm:$0xff]
    %v789 = vld [vmem:[#allocation5 + $0xaa8] sm:$0xff]
    %v790 = vld [vmem:[#allocation5 + $0xab0] sm:$0xff]
    %v791 = vld [vmem:[#allocation5 + $0xab8] sm:$0xff]
    %v792 = vld [vmem:[#allocation5 + $0xac0] sm:$0xff]
    %v793 = vld [vmem:[#allocation5 + $0xac8] sm:$0xff]
    %v794 = vld [vmem:[#allocation5 + $0xad0] sm:$0xff]
    %v795 = vld [vmem:[#allocation5 + $0xad8] sm:$0xff]
    %v796 = vld [vmem:[#allocation5 + $0xae0] sm:$0xff]
    %v797 = vld [vmem:[#allocation5 + $0xae8] sm:$0xff]
    %v798 = vld [vmem:[#allocation5 + $0xaf0] sm:$0xff]
    %v799 = vld [vmem:[#allocation5 + $0xaf8] sm:$0xff]
    %v800 = vld [vmem:[#allocation5 + $0xb00] sm:$0xff]
    %v801 = vld [vmem:[#allocation5 + $0xb08] sm:$0xff]
    %v802 = vld [vmem:[#allocation5 + $0xb10] sm:$0xff]
    %v803 = vld [vmem:[#allocation5 + $0xb18] sm:$0xff]
    %v804 = vld [vmem:[#allocation5 + $0xb20] sm:$0xff]
    %v805 = vld [vmem:[#allocation5 + $0xb28] sm:$0xff]
    %v806 = vld [vmem:[#allocation5 + $0xb30] sm:$0xff]
    %v807 = vld [vmem:[#allocation5 + $0xb38] sm:$0xff]
    %v808 = vld [vmem:[#allocation5 + $0xb40] sm:$0xff]
    %v809 = vld [vmem:[#allocation5 + $0xb48] sm:$0xff]
    %v810 = vld [vmem:[#allocation5 + $0xb50] sm:$0xff]
    %v811 = vld [vmem:[#allocation5 + $0xb58] sm:$0xff]
    %v812 = vld [vmem:[#allocation5 + $0xb60] sm:$0xff]
    %v813 = vld [vmem:[#allocation5 + $0xb68] sm:$0xff]
    %v814 = vld [vmem:[#allocation5 + $0xb70] sm:$0xff]
    %v815 = vld [vmem:[#allocation5 + $0xb78] sm:$0xff]
    %v816 = vld [vmem:[#allocation5 + $0xb80] sm:$0xff]
    %v817 = vld [vmem:[#allocation5 + $0xb88] sm:$0xff]
    %v818 = vld [vmem:[#allocation5 + $0xb90] sm:$0xff]
    %v819 = vld [vmem:[#allocation5 + $0xb98] sm:$0xff]
    %v820 = vld [vmem:[#allocation5 + $0xba0] sm:$0xff]
    %v821 = vld [vmem:[#allocation5 + $0xba8] sm:$0xff]
    %v822 = vld [vmem:[#allocation5 + $0xbb0] sm:$0xff]
    %v823 = vld [vmem:[#allocation5 + $0xbb8] sm:$0xff]
    %v824 = vld [vmem:[#allocation5 + $0xbc0] sm:$0xff]
    %v825 = vld [vmem:[#allocation5 + $0xbc8] sm:$0xff]
    %v826 = vld [vmem:[#allocation5 + $0xbd0] sm:$0xff]
    %v827 = vld [vmem:[#allocation5 + $0xbd8] sm:$0xff]
    %v828 = vld [vmem:[#allocation5 + $0xbe0] sm:$0xff]
    %v829 = vld [vmem:[#allocation5 + $0xbe8] sm:$0xff]
    %v830 = vld [vmem:[#allocation5 + $0xbf0] sm:$0xff]
    %v831 = vld [vmem:[#allocation5 + $0xbf8] sm:$0xff]
    %v832 = vld [vmem:[#allocation5 + $0xc00] sm:$0xff]
    %v833 = vld [vmem:[#allocation5 + $0xc08] sm:$0xff]
    %v834 = vld [vmem:[#allocation5 + $0xc10] sm:$0xff]
    %v835 = vld [vmem:[#allocation5 + $0xc18] sm:$0xff]
    %v836 = vld [vmem:[#allocation5 + $0xc20] sm:$0xff]
    %v837 = vld [vmem:[#allocation5 + $0xc28] sm:$0xff]
    %v838 = vld [vmem:[#allocation5 + $0xc30] sm:$0xff]
    %v839 = vld [vmem:[#allocation5 + $0xc38] sm:$0xff]
    %v840 = vld [vmem:[#allocation5 + $0xc40] sm:$0xff]
    %v841 = vld [vmem:[#allocation5 + $0xc48] sm:$0xff]
    %v842 = vld [vmem:[#allocation5 + $0xc50] sm:$0xff]
    %v843 = vld [vmem:[#allocation5 + $0xc58] sm:$0xff]
    %v844 = vld [vmem:[#allocation5 + $0xc60] sm:$0xff]
    %v845 = vld [vmem:[#allocation5 + $0xc68] sm:$0xff]
    %v846 = vld [vmem:[#allocation5 + $0xc70] sm:$0xff]
    %v847 = vld [vmem:[#allocation5 + $0xc78] sm:$0xff]
    %v848 = vld [vmem:[#allocation5 + $0xc80] sm:$0xff]
    %v849 = vld [vmem:[#allocation5 + $0xc88] sm:$0xff]
    %v850 = vld [vmem:[#allocation5 + $0xc90] sm:$0xff]
    %v851 = vld [vmem:[#allocation5 + $0xc98] sm:$0xff]
    %v852 = vld [vmem:[#allocation5 + $0xca0] sm:$0xff]
    %v853 = vld [vmem:[#allocation5 + $0xca8] sm:$0xff]
    %v854 = vld [vmem:[#allocation5 + $0xcb0] sm:$0xff]
    %v855 = vld [vmem:[#allocation5 + $0xcb8] sm:$0xff]
    %v856 = vld [vmem:[#allocation5 + $0xcc0] sm:$0xff]
    %v857 = vld [vmem:[#allocation5 + $0xcc8] sm:$0xff]
    %v858 = vld [vmem:[#allocation5 + $0xcd0] sm:$0xff]
    %v859 = vld [vmem:[#allocation5 + $0xcd8] sm:$0xff]
    %v860 = vld [vmem:[#allocation5 + $0xce0] sm:$0xff]
    %v861 = vld [vmem:[#allocation5 + $0xce8] sm:$0xff]
    %v862 = vld [vmem:[#allocation5 + $0xcf0] sm:$0xff]
    %v863 = vld [vmem:[#allocation5 + $0xcf8] sm:$0xff]
    %v864 = vld [vmem:[#allocation5 + $0xd00] sm:$0xff]
    %v865 = vld [vmem:[#allocation5 + $0xd08] sm:$0xff]
    %v866 = vld [vmem:[#allocation5 + $0xd10] sm:$0xff]
    %v867 = vld [vmem:[#allocation5 + $0xd18] sm:$0xff]
    %v868 = vld [vmem:[#allocation5 + $0xd20] sm:$0xff]
    %v869 = vld [vmem:[#allocation5 + $0xd28] sm:$0xff]
    %v870 = vld [vmem:[#allocation5 + $0xd30] sm:$0xff]
    %v871 = vld [vmem:[#allocation5 + $0xd38] sm:$0xff]
    %v872 = vld [vmem:[#allocation5 + $0xd40] sm:$0xff]
    %v873 = vld [vmem:[#allocation5 + $0xd48] sm:$0xff]
    %v874 = vld [vmem:[#allocation5 + $0xd50] sm:$0xff]
    %v875 = vld [vmem:[#allocation5 + $0xd58] sm:$0xff]
    %v876 = vld [vmem:[#allocation5 + $0xd60] sm:$0xff]
    %v877 = vld [vmem:[#allocation5 + $0xd68] sm:$0xff]
    %v878 = vld [vmem:[#allocation5 + $0xd70] sm:$0xff]
    %v879 = vld [vmem:[#allocation5 + $0xd78] sm:$0xff]
    %v880 = vld [vmem:[#allocation5 + $0xd80] sm:$0xff]
    %v881 = vld [vmem:[#allocation5 + $0xd88] sm:$0xff]
    %v882 = vld [vmem:[#allocation5 + $0xd90] sm:$0xff]
    %v883 = vld [vmem:[#allocation5 + $0xd98] sm:$0xff]
    %v884 = vld [vmem:[#allocation5 + $0xda0] sm:$0xff]
    %v885 = vld [vmem:[#allocation5 + $0xda8] sm:$0xff]
    %v886 = vld [vmem:[#allocation5 + $0xdb0] sm:$0xff]
    %v887 = vld [vmem:[#allocation5 + $0xdb8] sm:$0xff]
    %v888 = vld [vmem:[#allocation5 + $0xdc0] sm:$0xff]
    %v889 = vld [vmem:[#allocation5 + $0xdc8] sm:$0xff]
    %v890 = vld [vmem:[#allocation5 + $0xdd0] sm:$0xff]
    %v891 = vld [vmem:[#allocation5 + $0xdd8] sm:$0xff]
    %v892 = vld [vmem:[#allocation5 + $0xde0] sm:$0xff]
    %v893 = vld [vmem:[#allocation5 + $0xde8] sm:$0xff]
    %v894 = vld [vmem:[#allocation5 + $0xdf0] sm:$0xff]
    %v895 = vld [vmem:[#allocation5 + $0xdf8] sm:$0xff]
    %v896 = vld [vmem:[#allocation5 + $0xe00] sm:$0xff]
    %v897 = vld [vmem:[#allocation5 + $0xe08] sm:$0xff]
    %v898 = vld [vmem:[#allocation5 + $0xe10] sm:$0xff]
    %v899 = vld [vmem:[#allocation5 + $0xe18] sm:$0xff]
    %v900 = vld [vmem:[#allocation5 + $0xe20] sm:$0xff]
    %v901 = vld [vmem:[#allocation5 + $0xe28] sm:$0xff]
    %v902 = vld [vmem:[#allocation5 + $0xe30] sm:$0xff]
    %v903 = vld [vmem:[#allocation5 + $0xe38] sm:$0xff]
    %v904 = vld [vmem:[#allocation5 + $0xe40] sm:$0xff]
    %v905 = vld [vmem:[#allocation5 + $0xe48] sm:$0xff]
    %v906 = vld [vmem:[#allocation5 + $0xe50] sm:$0xff]
    %v907 = vld [vmem:[#allocation5 + $0xe58] sm:$0xff]
    %v908 = vld [vmem:[#allocation5 + $0xe60] sm:$0xff]
    %v909 = vld [vmem:[#allocation5 + $0xe68] sm:$0xff]
    %v910 = vld [vmem:[#allocation5 + $0xe70] sm:$0xff]
    %v911 = vld [vmem:[#allocation5 + $0xe78] sm:$0xff]
    %v912 = vld [vmem:[#allocation5 + $0xe80] sm:$0xff]
    %v913 = vld [vmem:[#allocation5 + $0xe88] sm:$0xff]
    %v914 = vld [vmem:[#allocation5 + $0xe90] sm:$0xff]
    %v915 = vld [vmem:[#allocation5 + $0xe98] sm:$0xff]
    %v916 = vld [vmem:[#allocation5 + $0xea0] sm:$0xff]
    %v917 = vld [vmem:[#allocation5 + $0xea8] sm:$0xff]
    %v918 = vld [vmem:[#allocation5 + $0xeb0] sm:$0xff]
    %v919 = vld [vmem:[#allocation5 + $0xeb8] sm:$0xff]
    %v920 = vld [vmem:[#allocation5 + $0xec0] sm:$0xff]
    %v921 = vld [vmem:[#allocation5 + $0xec8] sm:$0xff]
    %v922 = vld [vmem:[#allocation5 + $0xed0] sm:$0xff]
    %v923 = vld [vmem:[#allocation5 + $0xed8] sm:$0xff]
    %v924 = vld [vmem:[#allocation5 + $0xee0] sm:$0xff]
    %v925 = vld [vmem:[#allocation5 + $0xee8] sm:$0xff]
    %v926 = vld [vmem:[#allocation5 + $0xef0] sm:$0xff]
    %v927 = vld [vmem:[#allocation5 + $0xef8] sm:$0xff]
    %v928 = vld [vmem:[#allocation5 + $0xf00] sm:$0xff]
    %v929 = vld [vmem:[#allocation5 + $0xf08] sm:$0xff]
    %v930 = vld [vmem:[#allocation5 + $0xf10] sm:$0xff]
    %v931 = vld [vmem:[#allocation5 + $0xf18] sm:$0xff]
    %v932 = vld [vmem:[#allocation5 + $0xf20] sm:$0xff]
    %v933 = vld [vmem:[#allocation5 + $0xf28] sm:$0xff]
    %v934 = vld [vmem:[#allocation5 + $0xf30] sm:$0xff]
    %v935 = vld [vmem:[#allocation5 + $0xf38] sm:$0xff]
    %v936 = vld [vmem:[#allocation5 + $0xf40] sm:$0xff]
    %v937 = vld [vmem:[#allocation5 + $0xf48] sm:$0xff]
    %v938 = vld [vmem:[#allocation5 + $0xf50] sm:$0xff]
    %v939 = vld [vmem:[#allocation5 + $0xf58] sm:$0xff]
    %v940 = vld [vmem:[#allocation5 + $0xf60] sm:$0xff]
    %v941 = vld [vmem:[#allocation5 + $0xf68] sm:$0xff]
    %v942 = vld [vmem:[#allocation5 + $0xf70] sm:$0xff]
    %v943 = vld [vmem:[#allocation5 + $0xf78] sm:$0xff]
    %v944 = vld [vmem:[#allocation5 + $0xf80] sm:$0xff]
    %v945 = vld [vmem:[#allocation5 + $0xf88] sm:$0xff]
    %v946 = vld [vmem:[#allocation5 + $0xf90] sm:$0xff]
    %v947 = vld [vmem:[#allocation5 + $0xf98] sm:$0xff]
    %v948 = vld [vmem:[#allocation5 + $0xfa0] sm:$0xff]
    %v949 = vld [vmem:[#allocation5 + $0xfa8] sm:$0xff]
    %v950 = vld [vmem:[#allocation5 + $0xfb0] sm:$0xff]
    %v951 = vld [vmem:[#allocation5 + $0xfb8] sm:$0xff]
    %v952 = vld [vmem:[#allocation5 + $0xfc0] sm:$0xff]
    %v953 = vld [vmem:[#allocation5 + $0xfc8] sm:$0xff]
    %v954 = vld [vmem:[#allocation5 + $0xfd0] sm:$0xff]
    %v955 = vld [vmem:[#allocation5 + $0xfd8] sm:$0xff]
    %v956 = vld [vmem:[#allocation5 + $0xfe0] sm:$0xff]
    %v957 = vld [vmem:[#allocation5 + $0xfe8] sm:$0xff]
    %v958 = vld [vmem:[#allocation5 + $0xff0] sm:$0xff]
    %v959 = vld [vmem:[#allocation5 + $0xff8] sm:$0xff]
    %v960 = vld [vmem:[#allocation5 + $0x1000] sm:$0xff]
    %v961 = vld [vmem:[#allocation5 + $0x1008] sm:$0xff]
    %v962 = vld [vmem:[#allocation5 + $0x1010] sm:$0xff]
    %v963 = vld [vmem:[#allocation5 + $0x1018] sm:$0xff]
    %v964 = vld [vmem:[#allocation5 + $0x1020] sm:$0xff]
    %v965 = vld [vmem:[#allocation5 + $0x1028] sm:$0xff]
    %v966 = vld [vmem:[#allocation5 + $0x1030] sm:$0xff]
    %v967 = vld [vmem:[#allocation5 + $0x1038] sm:$0xff]
    %v968 = vld [vmem:[#allocation5 + $0x1040] sm:$0xff]
    %v969 = vld [vmem:[#allocation5 + $0x1048] sm:$0xff]
    %v970 = vld [vmem:[#allocation5 + $0x1050] sm:$0xff]
    %v971 = vld [vmem:[#allocation5 + $0x1058] sm:$0xff]
    %v972 = vld [vmem:[#allocation5 + $0x1060] sm:$0xff]
    %v973 = vld [vmem:[#allocation5 + $0x1068] sm:$0xff]
    %v974 = vld [vmem:[#allocation5 + $0x1070] sm:$0xff]
    %v975 = vld [vmem:[#allocation5 + $0x1078] sm:$0xff]
    %v976 = vld [vmem:[#allocation5 + $0x1080] sm:$0xff]
    %v977 = vld [vmem:[#allocation5 + $0x1088] sm:$0xff]
    %v978 = vld [vmem:[#allocation5 + $0x1090] sm:$0xff]
    %v979 = vld [vmem:[#allocation5 + $0x1098] sm:$0xff]
    %v980 = vld [vmem:[#allocation5 + $0x10a0] sm:$0xff]
    %v981 = vld [vmem:[#allocation5 + $0x10a8] sm:$0xff]
    %v982 = vld [vmem:[#allocation5 + $0x10b0] sm:$0xff]
    %v983 = vld [vmem:[#allocation5 + $0x10b8] sm:$0xff]
    %v984 = vld [vmem:[#allocation5 + $0x10c0] sm:$0xff]
    %v985 = vld [vmem:[#allocation5 + $0x10c8] sm:$0xff]
    %v986 = vld [vmem:[#allocation5 + $0x10d0] sm:$0xff]
    %v987 = vld [vmem:[#allocation5 + $0x10d8] sm:$0xff]
    %v988 = vld [vmem:[#allocation5 + $0x10e0] sm:$0xff]
    %v989 = vld [vmem:[#allocation5 + $0x10e8] sm:$0xff]
    %v990 = vld [vmem:[#allocation5 + $0x10f0] sm:$0xff]
    %v991 = vld [vmem:[#allocation5 + $0x10f8] sm:$0xff]
    %v992 = vld [vmem:[#allocation5 + $0x1100] sm:$0xff]
    %v993 = vld [vmem:[#allocation5 + $0x1108] sm:$0xff]
    %v994 = vld [vmem:[#allocation5 + $0x1110] sm:$0xff]
    %v995 = vld [vmem:[#allocation5 + $0x1118] sm:$0xff]
    %v996 = vld [vmem:[#allocation5 + $0x1120] sm:$0xff]
    %v997 = vld [vmem:[#allocation5 + $0x1128] sm:$0xff]
    %v998 = vld [vmem:[#allocation5 + $0x1130] sm:$0xff]
    %v999 = vld [vmem:[#allocation5 + $0x1138] sm:$0xff]
    %v1000 = vld [vmem:[#allocation5 + $0x1140] sm:$0xff]
    %v1001 = vld [vmem:[#allocation5 + $0x1148] sm:$0xff]
    %v1002 = vld [vmem:[#allocation5 + $0x1150] sm:$0xff]
    %v1003 = vld [vmem:[#allocation5 + $0x1158] sm:$0xff]
    %v1004 = vld [vmem:[#allocation5 + $0x1160] sm:$0xff]
    %v1005 = vld [vmem:[#allocation5 + $0x1168] sm:$0xff]
    %v1006 = vld [vmem:[#allocation5 + $0x1170] sm:$0xff]
    %v1007 = vld [vmem:[#allocation5 + $0x1178] sm:$0xff]
    %v1008 = vld [vmem:[#allocation5 + $0x1180] sm:$0xff]
    %v1009 = vld [vmem:[#allocation5 + $0x1188] sm:$0xff]
    %v1010 = vld [vmem:[#allocation5 + $0x1190] sm:$0xff]
    %v1011 = vld [vmem:[#allocation5 + $0x1198] sm:$0xff]
    %v1012 = vld [vmem:[#allocation5 + $0x11a0] sm:$0xff]
    %v1013 = vld [vmem:[#allocation5 + $0x11a8] sm:$0xff]
    %v1014 = vld [vmem:[#allocation5 + $0x11b0] sm:$0xff]
    %v1015 = vld [vmem:[#allocation5 + $0x11b8] sm:$0xff]
    %v1016 = vld [vmem:[#allocation5 + $0x11c0] sm:$0xff]
    %v1017 = vld [vmem:[#allocation5 + $0x11c8] sm:$0xff]
    %v1018 = vld [vmem:[#allocation5 + $0x11d0] sm:$0xff]
    %v1019 = vld [vmem:[#allocation5 + $0x11d8] sm:$0xff]
    %v1020 = vld [vmem:[#allocation5 + $0x11e0] sm:$0xff]
    %v1021 = vld [vmem:[#allocation5 + $0x11e8] sm:$0xff]
    %v1022 = vld [vmem:[#allocation5 + $0x11f0] sm:$0xff]
    %v1023 = vld [vmem:[#allocation5 + $0x11f8] sm:$0xff]
    %v1024 = vld [vmem:[#allocation5 + $0x1200] sm:$0xff]
    %v1025 = vld [vmem:[#allocation5 + $0x1208] sm:$0xff]
    %v1026 = vld [vmem:[#allocation5 + $0x1210] sm:$0xff]
    %v1027 = vld [vmem:[#allocation5 + $0x1218] sm:$0xff]
    %v1028 = vld [vmem:[#allocation5 + $0x1220] sm:$0xff]
    %v1029 = vld [vmem:[#allocation5 + $0x1228] sm:$0xff]
    %v1030 = vld [vmem:[#allocation5 + $0x1230] sm:$0xff]
    %v1031 = vld [vmem:[#allocation5 + $0x1238] sm:$0xff]
    %v1032 = vld [vmem:[#allocation5 + $0x1240] sm:$0xff]
    %v1033 = vld [vmem:[#allocation5 + $0x1248] sm:$0xff]
    %v1034 = vld [vmem:[#allocation5 + $0x1250] sm:$0xff]
    %v1035 = vld [vmem:[#allocation5 + $0x1258] sm:$0xff]
    %v1036 = vld [vmem:[#allocation5 + $0x1260] sm:$0xff]
    %v1037 = vld [vmem:[#allocation5 + $0x1268] sm:$0xff]
    %v1038 = vld [vmem:[#allocation5 + $0x1270] sm:$0xff]
    %v1039 = vld [vmem:[#allocation5 + $0x1278] sm:$0xff]
    %v1040 = vld [vmem:[#allocation5 + $0x1280] sm:$0xff]
    %v1041 = vld [vmem:[#allocation5 + $0x1288] sm:$0xff]
    %v1042 = vld [vmem:[#allocation5 + $0x1290] sm:$0xff]
    %v1043 = vld [vmem:[#allocation5 + $0x1298] sm:$0xff]
    %v1044 = vld [vmem:[#allocation5 + $0x12a0] sm:$0xff]
    %v1045 = vld [vmem:[#allocation5 + $0x12a8] sm:$0xff]
    %v1046 = vld [vmem:[#allocation5 + $0x12b0] sm:$0xff]
    %v1047 = vld [vmem:[#allocation5 + $0x12b8] sm:$0xff]
    %v1048 = vld [vmem:[#allocation5 + $0x12c0] sm:$0xff]
    %v1049 = vld [vmem:[#allocation5 + $0x12c8] sm:$0xff]
    %v1050 = vld [vmem:[#allocation5 + $0x12d0] sm:$0xff]
    %v1051 = vld [vmem:[#allocation5 + $0x12d8] sm:$0xff]
    %v1052 = vld [vmem:[#allocation5 + $0x12e0] sm:$0xff]
    %v1053 = vld [vmem:[#allocation5 + $0x12e8] sm:$0xff]
    %v1054 = vld [vmem:[#allocation5 + $0x12f0] sm:$0xff]
    %v1055 = vld [vmem:[#allocation5 + $0x12f8] sm:$0xff]
    %v1056 = vld [vmem:[#allocation5 + $0x1300] sm:$0xff]
    %v1057 = vld [vmem:[#allocation5 + $0x1308] sm:$0xff]
    %v1058 = vld [vmem:[#allocation5 + $0x1310] sm:$0xff]
    %v1059 = vld [vmem:[#allocation5 + $0x1318] sm:$0xff]
    %v1060 = vld [vmem:[#allocation5 + $0x1320] sm:$0xff]
    %v1061 = vld [vmem:[#allocation5 + $0x1328] sm:$0xff]
    %v1062 = vld [vmem:[#allocation5 + $0x1330] sm:$0xff]
    %v1063 = vld [vmem:[#allocation5 + $0x1338] sm:$0xff]
    %v1064 = vld [vmem:[#allocation5 + $0x1340] sm:$0xff]
    %v1065 = vld [vmem:[#allocation5 + $0x1348] sm:$0xff]
    %v1066 = vld [vmem:[#allocation5 + $0x1350] sm:$0xff]
    %v1067 = vld [vmem:[#allocation5 + $0x1358] sm:$0xff]
    %v1068 = vld [vmem:[#allocation5 + $0x1360] sm:$0xff]
    %v1069 = vld [vmem:[#allocation5 + $0x1368] sm:$0xff]
    %v1070 = vld [vmem:[#allocation5 + $0x1370] sm:$0xff]
    %v1071 = vld [vmem:[#allocation5 + $0x1378] sm:$0xff]
    %v1072 = vld [vmem:[#allocation5 + $0x1380] sm:$0xff]
    %v1073 = vld [vmem:[#allocation5 + $0x1388] sm:$0xff]
    %v1074 = vld [vmem:[#allocation5 + $0x1390] sm:$0xff]
    %v1075 = vld [vmem:[#allocation5 + $0x1398] sm:$0xff]
    %v1076 = vld [vmem:[#allocation5 + $0x13a0] sm:$0xff]
    %v1077 = vld [vmem:[#allocation5 + $0x13a8] sm:$0xff]
    %v1078 = vld [vmem:[#allocation5 + $0x13b0] sm:$0xff]
    %v1079 = vld [vmem:[#allocation5 + $0x13b8] sm:$0xff]
    %v1080 = vld [vmem:[#allocation5 + $0x13c0] sm:$0xff]
    %v1081 = vld [vmem:[#allocation5 + $0x13c8] sm:$0xff]
    %v1082 = vld [vmem:[#allocation5 + $0x13d0] sm:$0xff]
    %v1083 = vld [vmem:[#allocation5 + $0x13d8] sm:$0xff]
    %v1084 = vld [vmem:[#allocation5 + $0x13e0] sm:$0xff]
    %v1085 = vld [vmem:[#allocation5 + $0x13e8] sm:$0xff]
    %v1086 = vld [vmem:[#allocation5 + $0x13f0] sm:$0xff]
    %v1087 = vld [vmem:[#allocation5 + $0x13f8] sm:$0xff]
    %v1088 = vld [vmem:[#allocation5 + $0x1400] sm:$0xff]
    %v1089 = vld [vmem:[#allocation5 + $0x1408] sm:$0xff]
    %v1090 = vld [vmem:[#allocation5 + $0x1410] sm:$0xff]
    %v1091 = vld [vmem:[#allocation5 + $0x1418] sm:$0xff]
    %v1092 = vld [vmem:[#allocation5 + $0x1420] sm:$0xff]
    %v1093 = vld [vmem:[#allocation5 + $0x1428] sm:$0xff]
    %v1094 = vld [vmem:[#allocation5 + $0x1430] sm:$0xff]
    %v1095 = vld [vmem:[#allocation5 + $0x1438] sm:$0xff]
    %v1096 = vld [vmem:[#allocation5 + $0x1440] sm:$0xff]
    %v1097 = vld [vmem:[#allocation5 + $0x1448] sm:$0xff]
    %v1098 = vld [vmem:[#allocation5 + $0x1450] sm:$0xff]
    %v1099 = vld [vmem:[#allocation5 + $0x1458] sm:$0xff]
    %v1100 = vld [vmem:[#allocation5 + $0x1460] sm:$0xff]
    %v1101 = vld [vmem:[#allocation5 + $0x1468] sm:$0xff]
    %v1102 = vld [vmem:[#allocation5 + $0x1470] sm:$0xff]
    %v1103 = vld [vmem:[#allocation5 + $0x1478] sm:$0xff]
    %v1104 = vld [vmem:[#allocation5 + $0x1480] sm:$0xff]
    %v1105 = vld [vmem:[#allocation5 + $0x1488] sm:$0xff]
    %v1106 = vld [vmem:[#allocation5 + $0x1490] sm:$0xff]
    %v1107 = vld [vmem:[#allocation5 + $0x1498] sm:$0xff]
    %v1108 = vld [vmem:[#allocation5 + $0x14a0] sm:$0xff]
    %v1109 = vld [vmem:[#allocation5 + $0x14a8] sm:$0xff]
    %v1110 = vld [vmem:[#allocation5 + $0x14b0] sm:$0xff]
    %v1111 = vld [vmem:[#allocation5 + $0x14b8] sm:$0xff]
    %v1112 = vld [vmem:[#allocation5 + $0x14c0] sm:$0xff]
    %v1113 = vld [vmem:[#allocation5 + $0x14c8] sm:$0xff]
    %v1114 = vld [vmem:[#allocation5 + $0x14d0] sm:$0xff]
    %v1115 = vld [vmem:[#allocation5 + $0x14d8] sm:$0xff]
    %v1116 = vld [vmem:[#allocation5 + $0x14e0] sm:$0xff]
    %v1117 = vld [vmem:[#allocation5 + $0x14e8] sm:$0xff]
    %v1118 = vld [vmem:[#allocation5 + $0x14f0] sm:$0xff]
    %v1119 = vld [vmem:[#allocation5 + $0x14f8] sm:$0xff]
    %v1120 = vld [vmem:[#allocation5 + $0x1500] sm:$0xff]
    %v1121 = vld [vmem:[#allocation5 + $0x1508] sm:$0xff]
    %v1122 = vld [vmem:[#allocation5 + $0x1510] sm:$0xff]
    %v1123 = vld [vmem:[#allocation5 + $0x1518] sm:$0xff]
    %v1124 = vld [vmem:[#allocation5 + $0x1520] sm:$0xff]
    %v1125 = vld [vmem:[#allocation5 + $0x1528] sm:$0xff]
    %v1126 = vld [vmem:[#allocation5 + $0x1530] sm:$0xff]
    %v1127 = vld [vmem:[#allocation5 + $0x1538] sm:$0xff]
    %v1128 = vld [vmem:[#allocation5 + $0x1540] sm:$0xff]
    %v1129 = vld [vmem:[#allocation5 + $0x1548] sm:$0xff]
    %v1130 = vld [vmem:[#allocation5 + $0x1550] sm:$0xff]
    %v1131 = vld [vmem:[#allocation5 + $0x1558] sm:$0xff]
    %v1132 = vld [vmem:[#allocation5 + $0x1560] sm:$0xff]
    %v1133 = vld [vmem:[#allocation5 + $0x1568] sm:$0xff]
    %v1134 = vld [vmem:[#allocation5 + $0x1570] sm:$0xff]
    %v1135 = vld [vmem:[#allocation5 + $0x1578] sm:$0xff]
    %v1136 = vld [vmem:[#allocation5 + $0x1580] sm:$0xff]
    %v1137 = vld [vmem:[#allocation5 + $0x1588] sm:$0xff]
    %v1138 = vld [vmem:[#allocation5 + $0x1590] sm:$0xff]
    %v1139 = vld [vmem:[#allocation5 + $0x1598] sm:$0xff]
    %v1140 = vld [vmem:[#allocation5 + $0x15a0] sm:$0xff]
    %v1141 = vld [vmem:[#allocation5 + $0x15a8] sm:$0xff]
    %v1142 = vld [vmem:[#allocation5 + $0x15b0] sm:$0xff]
    %v1143 = vld [vmem:[#allocation5 + $0x15b8] sm:$0xff]
    %v1144 = vld [vmem:[#allocation5 + $0x15c0] sm:$0xff]
    %v1145 = vld [vmem:[#allocation5 + $0x15c8] sm:$0xff]
    %v1146 = vld [vmem:[#allocation5 + $0x15d0] sm:$0xff]
    %v1147 = vld [vmem:[#allocation5 + $0x15d8] sm:$0xff]
    %v1148 = vld [vmem:[#allocation5 + $0x15e0] sm:$0xff]
    %v1149 = vld [vmem:[#allocation5 + $0x15e8] sm:$0xff]
    %v1150 = vld [vmem:[#allocation5 + $0x15f0] sm:$0xff]
    %v1151 = vld [vmem:[#allocation5 + $0x15f8] sm:$0xff]
    %v1152 = vld [vmem:[#allocation5 + $0x1600] sm:$0xff]
    %v1153 = vld [vmem:[#allocation5 + $0x1608] sm:$0xff]
    %v1154 = vld [vmem:[#allocation5 + $0x1610] sm:$0xff]
    %v1155 = vld [vmem:[#allocation5 + $0x1618] sm:$0xff]
    %v1156 = vld [vmem:[#allocation5 + $0x1620] sm:$0xff]
    %v1157 = vld [vmem:[#allocation5 + $0x1628] sm:$0xff]
    %v1158 = vld [vmem:[#allocation5 + $0x1630] sm:$0xff]
    %v1159 = vld [vmem:[#allocation5 + $0x1638] sm:$0xff]
    %v1160 = vld [vmem:[#allocation5 + $0x1640] sm:$0xff]
    %v1161 = vld [vmem:[#allocation5 + $0x1648] sm:$0xff]
    %v1162 = vld [vmem:[#allocation5 + $0x1650] sm:$0xff]
    %v1163 = vld [vmem:[#allocation5 + $0x1658] sm:$0xff]
    %v1164 = vld [vmem:[#allocation5 + $0x1660] sm:$0xff]
    %v1165 = vld [vmem:[#allocation5 + $0x1668] sm:$0xff]
    %v1166 = vld [vmem:[#allocation5 + $0x1670] sm:$0xff]
    %v1167 = vld [vmem:[#allocation5 + $0x1678] sm:$0xff]
    %v1168 = vld [vmem:[#allocation5 + $0x1680] sm:$0xff]
    %v1169 = vld [vmem:[#allocation5 + $0x1688] sm:$0xff]
    %v1170 = vld [vmem:[#allocation5 + $0x1690] sm:$0xff]
    %v1171 = vld [vmem:[#allocation5 + $0x1698] sm:$0xff]
    %v1172 = vld [vmem:[#allocation5 + $0x16a0] sm:$0xff]
    %v1173 = vld [vmem:[#allocation5 + $0x16a8] sm:$0xff]
    %v1174 = vld [vmem:[#allocation5 + $0x16b0] sm:$0xff]
    %v1175 = vld [vmem:[#allocation5 + $0x16b8] sm:$0xff]
    %v1176 = vld [vmem:[#allocation5 + $0x16c0] sm:$0xff]
    %v1177 = vld [vmem:[#allocation5 + $0x16c8] sm:$0xff]
    %v1178 = vld [vmem:[#allocation5 + $0x16d0] sm:$0xff]
    %v1179 = vld [vmem:[#allocation5 + $0x16d8] sm:$0xff]
    %v1180 = vld [vmem:[#allocation5 + $0x16e0] sm:$0xff]
    %v1181 = vld [vmem:[#allocation5 + $0x16e8] sm:$0xff]
    %v1182 = vld [vmem:[#allocation5 + $0x16f0] sm:$0xff]
    %v1183 = vld [vmem:[#allocation5 + $0x16f8] sm:$0xff]
    %v1184 = vld [vmem:[#allocation5 + $0x1700] sm:$0xff]
    %v1185 = vld [vmem:[#allocation5 + $0x1708] sm:$0xff]
    %v1186 = vld [vmem:[#allocation5 + $0x1710] sm:$0xff]
    %v1187 = vld [vmem:[#allocation5 + $0x1718] sm:$0xff]
    %v1188 = vld [vmem:[#allocation5 + $0x1720] sm:$0xff]
    %v1189 = vld [vmem:[#allocation5 + $0x1728] sm:$0xff]
    %v1190 = vld [vmem:[#allocation5 + $0x1730] sm:$0xff]
    %v1191 = vld [vmem:[#allocation5 + $0x1738] sm:$0xff]
    %v1192 = vld [vmem:[#allocation5 + $0x1740] sm:$0xff]
    %v1193 = vld [vmem:[#allocation5 + $0x1748] sm:$0xff]
    %v1194 = vld [vmem:[#allocation5 + $0x1750] sm:$0xff]
    %v1195 = vld [vmem:[#allocation5 + $0x1758] sm:$0xff]
    %v1196 = vld [vmem:[#allocation5 + $0x1760] sm:$0xff]
    %v1197 = vld [vmem:[#allocation5 + $0x1768] sm:$0xff]
    %v1198 = vld [vmem:[#allocation5 + $0x1770] sm:$0xff]
    %v1199 = vld [vmem:[#allocation5 + $0x1778] sm:$0xff]
    %v1200 = vld [vmem:[#allocation5 + $0x1780] sm:$0xff]
    %v1201 = vld [vmem:[#allocation5 + $0x1788] sm:$0xff]
    %v1202 = vld [vmem:[#allocation5 + $0x1790] sm:$0xff]
    %v1203 = vld [vmem:[#allocation5 + $0x1798] sm:$0xff]
    %v1204 = vld [vmem:[#allocation5 + $0x17a0] sm:$0xff]
    %v1205 = vld [vmem:[#allocation5 + $0x17a8] sm:$0xff]
    %v1206 = vld [vmem:[#allocation5 + $0x17b0] sm:$0xff]
    %v1207 = vld [vmem:[#allocation5 + $0x17b8] sm:$0xff]
    %v1208 = vld [vmem:[#allocation5 + $0x17c0] sm:$0xff]
    %v1209 = vld [vmem:[#allocation5 + $0x17c8] sm:$0xff]
    %v1210 = vld [vmem:[#allocation5 + $0x17d0] sm:$0xff]
    %v1211 = vld [vmem:[#allocation5 + $0x17d8] sm:$0xff]
    %v1212 = vld [vmem:[#allocation5 + $0x17e0] sm:$0xff]
    %v1213 = vld [vmem:[#allocation5 + $0x17e8] sm:$0xff]
    %v1214 = vld [vmem:[#allocation5 + $0x17f0] sm:$0xff]
    %v1215 = vld [vmem:[#allocation5 + $0x17f8] sm:$0xff]
    %v1216 = vld [vmem:[#allocation5 + $0x1800] sm:$0xff]
    %v1217 = vld [vmem:[#allocation5 + $0x1808] sm:$0xff]
    %v1218 = vld [vmem:[#allocation5 + $0x1810] sm:$0xff]
    %v1219 = vld [vmem:[#allocation5 + $0x1818] sm:$0xff]
    %v1220 = vld [vmem:[#allocation5 + $0x1820] sm:$0xff]
    %v1221 = vld [vmem:[#allocation5 + $0x1828] sm:$0xff]
    %v1222 = vld [vmem:[#allocation5 + $0x1830] sm:$0xff]
    %v1223 = vld [vmem:[#allocation5 + $0x1838] sm:$0xff]
    %v1224 = vld [vmem:[#allocation5 + $0x1840] sm:$0xff]
    %v1225 = vld [vmem:[#allocation5 + $0x1848] sm:$0xff]
    %v1226 = vld [vmem:[#allocation5 + $0x1850] sm:$0xff]
    %v1227 = vld [vmem:[#allocation5 + $0x1858] sm:$0xff]
    %v1228 = vld [vmem:[#allocation5 + $0x1860] sm:$0xff]
    %v1229 = vld [vmem:[#allocation5 + $0x1868] sm:$0xff]
    %v1230 = vld [vmem:[#allocation5 + $0x1870] sm:$0xff]
    %v1231 = vld [vmem:[#allocation5 + $0x1878] sm:$0xff]
    %v1232 = vld [vmem:[#allocation5 + $0x1880] sm:$0xff]
    %v1233 = vld [vmem:[#allocation5 + $0x1888] sm:$0xff]
    %v1234 = vld [vmem:[#allocation5 + $0x1890] sm:$0xff]
    %v1235 = vld [vmem:[#allocation5 + $0x1898] sm:$0xff]
    %v1236 = vld [vmem:[#allocation5 + $0x18a0] sm:$0xff]
    %v1237 = vld [vmem:[#allocation5 + $0x18a8] sm:$0xff]
    %v1238 = vld [vmem:[#allocation5 + $0x18b0] sm:$0xff]
    %v1239 = vld [vmem:[#allocation5 + $0x18b8] sm:$0xff]
    %v1240 = vld [vmem:[#allocation5 + $0x18c0] sm:$0xff]
    %v1241 = vld [vmem:[#allocation5 + $0x18c8] sm:$0xff]
    %v1242 = vld [vmem:[#allocation5 + $0x18d0] sm:$0xff]
    %v1243 = vld [vmem:[#allocation5 + $0x18d8] sm:$0xff]
    %v1244 = vld [vmem:[#allocation5 + $0x18e0] sm:$0xff]
    %v1245 = vld [vmem:[#allocation5 + $0x18e8] sm:$0xff]
    %v1246 = vld [vmem:[#allocation5 + $0x18f0] sm:$0xff]
    %v1247 = vld [vmem:[#allocation5 + $0x18f8] sm:$0xff]
    %v1248 = vld [vmem:[#allocation5 + $0x1900] sm:$0xff]
    %v1249 = vld [vmem:[#allocation5 + $0x1908] sm:$0xff]
    %v1250 = vld [vmem:[#allocation5 + $0x1910] sm:$0xff]
    %v1251 = vld [vmem:[#allocation5 + $0x1918] sm:$0xff]
    %v1252 = vld [vmem:[#allocation5 + $0x1920] sm:$0xff]
    %v1253 = vld [vmem:[#allocation5 + $0x1928] sm:$0xff]
    %v1254 = vld [vmem:[#allocation5 + $0x1930] sm:$0xff]
    %v1255 = vld [vmem:[#allocation5 + $0x1938] sm:$0xff]
    %v1256 = vld [vmem:[#allocation5 + $0x1940] sm:$0xff]
    %v1257 = vld [vmem:[#allocation5 + $0x1948] sm:$0xff]
    %v1258 = vld [vmem:[#allocation5 + $0x1950] sm:$0xff]
    %v1259 = vld [vmem:[#allocation5 + $0x1958] sm:$0xff]
    %v1260 = vld [vmem:[#allocation5 + $0x1960] sm:$0xff]
    %v1261 = vld [vmem:[#allocation5 + $0x1968] sm:$0xff]
    %v1262 = vld [vmem:[#allocation5 + $0x1970] sm:$0xff]
    %v1263 = vld [vmem:[#allocation5 + $0x1978] sm:$0xff]
    %v1264 = vld [vmem:[#allocation5 + $0x1980] sm:$0xff]
    %v1265 = vld [vmem:[#allocation5 + $0x1988] sm:$0xff]
    %v1266 = vld [vmem:[#allocation5 + $0x1990] sm:$0xff]
    %v1267 = vld [vmem:[#allocation5 + $0x1998] sm:$0xff]
    %v1268 = vld [vmem:[#allocation5 + $0x19a0] sm:$0xff]
    %v1269 = vld [vmem:[#allocation5 + $0x19a8] sm:$0xff]
    %v1270 = vld [vmem:[#allocation5 + $0x19b0] sm:$0xff]
    %v1271 = vld [vmem:[#allocation5 + $0x19b8] sm:$0xff]
    %v1272 = vld [vmem:[#allocation5 + $0x19c0] sm:$0xff]
    %v1273 = vld [vmem:[#allocation5 + $0x19c8] sm:$0xff]
    %v1274 = vld [vmem:[#allocation5 + $0x19d0] sm:$0xff]
    %v1275 = vld [vmem:[#allocation5 + $0x19d8] sm:$0xff]
    %v1276 = vld [vmem:[#allocation5 + $0x19e0] sm:$0xff]
    %v1277 = vld [vmem:[#allocation5 + $0x19e8] sm:$0xff]
    %v1278 = vld [vmem:[#allocation5 + $0x19f0] sm:$0xff]
    %v1279 = vld [vmem:[#allocation5 + $0x19f8] sm:$0xff]
    %v1280 = vld [vmem:[#allocation5 + $0x1a00] sm:$0xff]
    %v1281 = vld [vmem:[#allocation5 + $0x1a08] sm:$0xff]
    %v1282 = vld [vmem:[#allocation5 + $0x1a10] sm:$0xff]
    %v1283 = vld [vmem:[#allocation5 + $0x1a18] sm:$0xff]
    %v1284 = vld [vmem:[#allocation5 + $0x1a20] sm:$0xff]
    %v1285 = vld [vmem:[#allocation5 + $0x1a28] sm:$0xff]
    %v1286 = vld [vmem:[#allocation5 + $0x1a30] sm:$0xff]
    %v1287 = vld [vmem:[#allocation5 + $0x1a38] sm:$0xff]
    %v1288 = vld [vmem:[#allocation5 + $0x1a40] sm:$0xff]
    %v1289 = vld [vmem:[#allocation5 + $0x1a48] sm:$0xff]
    %v1290 = vld [vmem:[#allocation5 + $0x1a50] sm:$0xff]
    %v1291 = vld [vmem:[#allocation5 + $0x1a58] sm:$0xff]
    %v1292 = vld [vmem:[#allocation5 + $0x1a60] sm:$0xff]
    %v1293 = vld [vmem:[#allocation5 + $0x1a68] sm:$0xff]
    %v1294 = vld [vmem:[#allocation5 + $0x1a70] sm:$0xff]
    %v1295 = vld [vmem:[#allocation5 + $0x1a78] sm:$0xff]
    %v1296 = vld [vmem:[#allocation5 + $0x1a80] sm:$0xff]
    %v1297 = vld [vmem:[#allocation5 + $0x1a88] sm:$0xff]
    %v1298 = vld [vmem:[#allocation5 + $0x1a90] sm:$0xff]
    %v1299 = vld [vmem:[#allocation5 + $0x1a98] sm:$0xff]
    %v1300 = vld [vmem:[#allocation5 + $0x1aa0] sm:$0xff]
    %v1301 = vld [vmem:[#allocation5 + $0x1aa8] sm:$0xff]
    %v1302 = vld [vmem:[#allocation5 + $0x1ab0] sm:$0xff]
    %v1303 = vld [vmem:[#allocation5 + $0x1ab8] sm:$0xff]
    %v1304 = vld [vmem:[#allocation5 + $0x1ac0] sm:$0xff]
    %v1305 = vld [vmem:[#allocation5 + $0x1ac8] sm:$0xff]
    %v1306 = vld [vmem:[#allocation5 + $0x1ad0] sm:$0xff]
    %v1307 = vld [vmem:[#allocation5 + $0x1ad8] sm:$0xff]
    %v1308 = vld [vmem:[#allocation5 + $0x1ae0] sm:$0xff]
    %v1309 = vld [vmem:[#allocation5 + $0x1ae8] sm:$0xff]
    %v1310 = vld [vmem:[#allocation5 + $0x1af0] sm:$0xff]
    %v1311 = vld [vmem:[#allocation5 + $0x1af8] sm:$0xff]
    %v1312 = vld [vmem:[#allocation5 + $0x1b00] sm:$0xff]
    %v1313 = vld [vmem:[#allocation5 + $0x1b08] sm:$0xff]
    %v1314 = vld [vmem:[#allocation5 + $0x1b10] sm:$0xff]
    %v1315 = vld [vmem:[#allocation5 + $0x1b18] sm:$0xff]
    %v1316 = vld [vmem:[#allocation5 + $0x1b20] sm:$0xff]
    %v1317 = vld [vmem:[#allocation5 + $0x1b28] sm:$0xff]
    %v1318 = vld [vmem:[#allocation5 + $0x1b30] sm:$0xff]
    %v1319 = vld [vmem:[#allocation5 + $0x1b38] sm:$0xff]
    %v1320 = vld [vmem:[#allocation5 + $0x1b40] sm:$0xff]
    %v1321 = vld [vmem:[#allocation5 + $0x1b48] sm:$0xff]
    %v1322 = vld [vmem:[#allocation5 + $0x1b50] sm:$0xff]
    %v1323 = vld [vmem:[#allocation5 + $0x1b58] sm:$0xff]
    %v1324 = vld [vmem:[#allocation5 + $0x1b60] sm:$0xff]
    %v1325 = vld [vmem:[#allocation5 + $0x1b68] sm:$0xff]
    %v1326 = vld [vmem:[#allocation5 + $0x1b70] sm:$0xff]
    %v1327 = vld [vmem:[#allocation5 + $0x1b78] sm:$0xff]
    %v1328 = vld [vmem:[#allocation5 + $0x1b80] sm:$0xff]
    %v1329 = vld [vmem:[#allocation5 + $0x1b88] sm:$0xff]
    %v1330 = vld [vmem:[#allocation5 + $0x1b90] sm:$0xff]
    %v1331 = vld [vmem:[#allocation5 + $0x1b98] sm:$0xff]
    %v1332 = vld [vmem:[#allocation5 + $0x1ba0] sm:$0xff]
    %v1333 = vld [vmem:[#allocation5 + $0x1ba8] sm:$0xff]
    %v1334 = vld [vmem:[#allocation5 + $0x1bb0] sm:$0xff]
    %v1335 = vld [vmem:[#allocation5 + $0x1bb8] sm:$0xff]
    %v1336 = vld [vmem:[#allocation5 + $0x1bc0] sm:$0xff]
    %v1337 = vld [vmem:[#allocation5 + $0x1bc8] sm:$0xff]
    %v1338 = vld [vmem:[#allocation5 + $0x1bd0] sm:$0xff]
    %v1339 = vld [vmem:[#allocation5 + $0x1bd8] sm:$0xff]
    %v1340 = vld [vmem:[#allocation5 + $0x1be0] sm:$0xff]
    %v1341 = vld [vmem:[#allocation5 + $0x1be8] sm:$0xff]
    %v1342 = vld [vmem:[#allocation5 + $0x1bf0] sm:$0xff]
    %v1343 = vld [vmem:[#allocation5 + $0x1bf8] sm:$0xff]
    %v1344 = vld [vmem:[#allocation5 + $0x1c00] sm:$0xff]
    %v1345 = vld [vmem:[#allocation5 + $0x1c08] sm:$0xff]
    %v1346 = vld [vmem:[#allocation5 + $0x1c10] sm:$0xff]
    %v1347 = vld [vmem:[#allocation5 + $0x1c18] sm:$0xff]
    %v1348 = vld [vmem:[#allocation5 + $0x1c20] sm:$0xff]
    %v1349 = vld [vmem:[#allocation5 + $0x1c28] sm:$0xff]
    %v1350 = vld [vmem:[#allocation5 + $0x1c30] sm:$0xff]
    %v1351 = vld [vmem:[#allocation5 + $0x1c38] sm:$0xff]
    %v1352 = vld [vmem:[#allocation5 + $0x1c40] sm:$0xff]
    %v1353 = vld [vmem:[#allocation5 + $0x1c48] sm:$0xff]
    %v1354 = vld [vmem:[#allocation5 + $0x1c50] sm:$0xff]
    %v1355 = vld [vmem:[#allocation5 + $0x1c58] sm:$0xff]
    %v1356 = vld [vmem:[#allocation5 + $0x1c60] sm:$0xff]
    %v1357 = vld [vmem:[#allocation5 + $0x1c68] sm:$0xff]
    %v1358 = vld [vmem:[#allocation5 + $0x1c70] sm:$0xff]
    %v1359 = vld [vmem:[#allocation5 + $0x1c78] sm:$0xff]
    %v1360 = vld [vmem:[#allocation5 + $0x1c80] sm:$0xff]
    %v1361 = vld [vmem:[#allocation5 + $0x1c88] sm:$0xff]
    %v1362 = vld [vmem:[#allocation5 + $0x1c90] sm:$0xff]
    %v1363 = vld [vmem:[#allocation5 + $0x1c98] sm:$0xff]
    %v1364 = vld [vmem:[#allocation5 + $0x1ca0] sm:$0xff]
    %v1365 = vld [vmem:[#allocation5 + $0x1ca8] sm:$0xff]
    %v1366 = vld [vmem:[#allocation5 + $0x1cb0] sm:$0xff]
    %v1367 = vld [vmem:[#allocation5 + $0x1cb8] sm:$0xff]
    %v1368 = vld [vmem:[#allocation5 + $0x1cc0] sm:$0xff]
    %v1369 = vld [vmem:[#allocation5 + $0x1cc8] sm:$0xff]
    %v1370 = vld [vmem:[#allocation5 + $0x1cd0] sm:$0xff]
    %v1371 = vld [vmem:[#allocation5 + $0x1cd8] sm:$0xff]
    %v1372 = vld [vmem:[#allocation5 + $0x1ce0] sm:$0xff]
    %v1373 = vld [vmem:[#allocation5 + $0x1ce8] sm:$0xff]
    %v1374 = vld [vmem:[#allocation5 + $0x1cf0] sm:$0xff]
    %v1375 = vld [vmem:[#allocation5 + $0x1cf8] sm:$0xff]
    %v1376 = vld [vmem:[#allocation5 + $0x1d00] sm:$0xff]
    %v1377 = vld [vmem:[#allocation5 + $0x1d08] sm:$0xff]
    %v1378 = vld [vmem:[#allocation5 + $0x1d10] sm:$0xff]
    %v1379 = vld [vmem:[#allocation5 + $0x1d18] sm:$0xff]
    %v1380 = vld [vmem:[#allocation5 + $0x1d20] sm:$0xff]
    %v1381 = vld [vmem:[#allocation5 + $0x1d28] sm:$0xff]
    %v1382 = vld [vmem:[#allocation5 + $0x1d30] sm:$0xff]
    %v1383 = vld [vmem:[#allocation5 + $0x1d38] sm:$0xff]
    %v1384 = vld [vmem:[#allocation5 + $0x1d40] sm:$0xff]
    %v1385 = vld [vmem:[#allocation5 + $0x1d48] sm:$0xff]
    %v1386 = vld [vmem:[#allocation5 + $0x1d50] sm:$0xff]
    %v1387 = vld [vmem:[#allocation5 + $0x1d58] sm:$0xff]
    %v1388 = vld [vmem:[#allocation5 + $0x1d60] sm:$0xff]
    %v1389 = vld [vmem:[#allocation5 + $0x1d68] sm:$0xff]
    %v1390 = vld [vmem:[#allocation5 + $0x1d70] sm:$0xff]
    %v1391 = vld [vmem:[#allocation5 + $0x1d78] sm:$0xff]
    %v1392 = vld [vmem:[#allocation5 + $0x1d80] sm:$0xff]
    %v1393 = vld [vmem:[#allocation5 + $0x1d88] sm:$0xff]
    %v1394 = vld [vmem:[#allocation5 + $0x1d90] sm:$0xff]
    %v1395 = vld [vmem:[#allocation5 + $0x1d98] sm:$0xff]
    %v1396 = vld [vmem:[#allocation5 + $0x1da0] sm:$0xff]
    %v1397 = vld [vmem:[#allocation5 + $0x1da8] sm:$0xff]
    %v1398 = vld [vmem:[#allocation5 + $0x1db0] sm:$0xff]
    %v1399 = vld [vmem:[#allocation5 + $0x1db8] sm:$0xff]
    %v1400 = vld [vmem:[#allocation5 + $0x1dc0] sm:$0xff]
    %v1401 = vld [vmem:[#allocation5 + $0x1dc8] sm:$0xff]
    %v1402 = vld [vmem:[#allocation5 + $0x1dd0] sm:$0xff]
    %v1403 = vld [vmem:[#allocation5 + $0x1dd8] sm:$0xff]
    %v1404 = vld [vmem:[#allocation5 + $0x1de0] sm:$0xff]
    %v1405 = vld [vmem:[#allocation5 + $0x1de8] sm:$0xff]
    %v1406 = vld [vmem:[#allocation5 + $0x1df0] sm:$0xff]
    %v1407 = vld [vmem:[#allocation5 + $0x1df8] sm:$0xff]
    %v1408 = vld [vmem:[#allocation5 + $0x1e00] sm:$0xff]
    %v1409 = vld [vmem:[#allocation5 + $0x1e08] sm:$0xff]
    %v1410 = vld [vmem:[#allocation5 + $0x1e10] sm:$0xff]
    %v1411 = vld [vmem:[#allocation5 + $0x1e18] sm:$0xff]
    %v1412 = vld [vmem:[#allocation5 + $0x1e20] sm:$0xff]
    %v1413 = vld [vmem:[#allocation5 + $0x1e28] sm:$0xff]
    %v1414 = vld [vmem:[#allocation5 + $0x1e30] sm:$0xff]
    %v1415 = vld [vmem:[#allocation5 + $0x1e38] sm:$0xff]
    %v1416 = vld [vmem:[#allocation5 + $0x1e40] sm:$0xff]
    %v1417 = vld [vmem:[#allocation5 + $0x1e48] sm:$0xff]
    %v1418 = vld [vmem:[#allocation5 + $0x1e50] sm:$0xff]
    %v1419 = vld [vmem:[#allocation5 + $0x1e58] sm:$0xff]
    %v1420 = vld [vmem:[#allocation5 + $0x1e60] sm:$0xff]
    %v1421 = vld [vmem:[#allocation5 + $0x1e68] sm:$0xff]
    %v1422 = vld [vmem:[#allocation5 + $0x1e70] sm:$0xff]
    %v1423 = vld [vmem:[#allocation5 + $0x1e78] sm:$0xff]
    %v1424 = vld [vmem:[#allocation5 + $0x1e80] sm:$0xff]
    %v1425 = vld [vmem:[#allocation5 + $0x1e88] sm:$0xff]
    %v1426 = vld [vmem:[#allocation5 + $0x1e90] sm:$0xff]
    %v1427 = vld [vmem:[#allocation5 + $0x1e98] sm:$0xff]
    %v1428 = vld [vmem:[#allocation5 + $0x1ea0] sm:$0xff]
    %v1429 = vld [vmem:[#allocation5 + $0x1ea8] sm:$0xff]
    %v1430 = vld [vmem:[#allocation5 + $0x1eb0] sm:$0xff]
    %v1431 = vld [vmem:[#allocation5 + $0x1eb8] sm:$0xff]
    %v1432 = vld [vmem:[#allocation5 + $0x1ec0] sm:$0xff]
    %v1433 = vld [vmem:[#allocation5 + $0x1ec8] sm:$0xff]
    %v1434 = vld [vmem:[#allocation5 + $0x1ed0] sm:$0xff]
    %v1435 = vld [vmem:[#allocation5 + $0x1ed8] sm:$0xff]
    %v1436 = vld [vmem:[#allocation5 + $0x1ee0] sm:$0xff]
    %v1437 = vld [vmem:[#allocation5 + $0x1ee8] sm:$0xff]
    %v1438 = vld [vmem:[#allocation5 + $0x1ef0] sm:$0xff]
    %v1439 = vld [vmem:[#allocation5 + $0x1ef8] sm:$0xff]
    %v1440 = vld [vmem:[#allocation5 + $0x1f00] sm:$0xff]
    %v1441 = vld [vmem:[#allocation5 + $0x1f08] sm:$0xff]
    %v1442 = vld [vmem:[#allocation5 + $0x1f10] sm:$0xff]
    %v1443 = vld [vmem:[#allocation5 + $0x1f18] sm:$0xff]
    %v1444 = vld [vmem:[#allocation5 + $0x1f20] sm:$0xff]
    %v1445 = vld [vmem:[#allocation5 + $0x1f28] sm:$0xff]
    %v1446 = vld [vmem:[#allocation5 + $0x1f30] sm:$0xff]
    %v1447 = vld [vmem:[#allocation5 + $0x1f38] sm:$0xff]
    %v1448 = vld [vmem:[#allocation5 + $0x1f40] sm:$0xff]
    %v1449 = vld [vmem:[#allocation5 + $0x1f48] sm:$0xff]
    %v1450 = vld [vmem:[#allocation5 + $0x1f50] sm:$0xff]
    %v1451 = vld [vmem:[#allocation5 + $0x1f58] sm:$0xff]
    %v1452 = vld [vmem:[#allocation5 + $0x1f60] sm:$0xff]
    %v1453 = vld [vmem:[#allocation5 + $0x1f68] sm:$0xff]
    %v1454 = vld [vmem:[#allocation5 + $0x1f70] sm:$0xff]
    %v1455 = vld [vmem:[#allocation5 + $0x1f78] sm:$0xff]
    %v1456 = vld [vmem:[#allocation5 + $0x1f80] sm:$0xff]
    %v1457 = vld [vmem:[#allocation5 + $0x1f88] sm:$0xff]
    %v1458 = vld [vmem:[#allocation5 + $0x1f90] sm:$0xff]
    %v1459 = vld [vmem:[#allocation5 + $0x1f98] sm:$0xff]
    %v1460 = vld [vmem:[#allocation5 + $0x1fa0] sm:$0xff]
    %v1461 = vld [vmem:[#allocation5 + $0x1fa8] sm:$0xff]
    %v1462 = vld [vmem:[#allocation5 + $0x1fb0] sm:$0xff]
    %v1463 = vld [vmem:[#allocation5 + $0x1fb8] sm:$0xff]
    %v1464 = vld [vmem:[#allocation5 + $0x1fc0] sm:$0xff]
    %v1465 = vld [vmem:[#allocation5 + $0x1fc8] sm:$0xff]
    %v1466 = vld [vmem:[#allocation5 + $0x1fd0] sm:$0xff]
    %v1467 = vld [vmem:[#allocation5 + $0x1fd8] sm:$0xff]
    %v1468 = vld [vmem:[#allocation5 + $0x1fe0] sm:$0xff]
    %v1469 = vld [vmem:[#allocation5 + $0x1fe8] sm:$0xff]
    %v1470 = vld [vmem:[#allocation5 + $0x1ff0] sm:$0xff]
    %v1471 = vld [vmem:[#allocation5 + $0x1ff8] sm:$0xff]
    %v1472 = vld [vmem:[#allocation7] sm:$0xff]
    %v1474 = vlaneseq
    %v1475 = vshrl.u32 %v1474, 7
    %v1476 = vsub.s32 0, %v1475
    %v1477 = vrot.slane %v1472, %v1476
    %v1478 = vlaneseq
    %v1479 = vshrl.u32 %v1478, 7
    %v1480 = vsub.s32 1, %v1479
    %v1481 = vrot.slane %v1472, %v1480
    %v1482 = vlaneseq
    %v1483 = vshrl.u32 %v1482, 7
    %v1484 = vsub.s32 2, %v1483
    %v1485 = vrot.slane %v1472, %v1484
    %v1486 = vlaneseq
    %v1487 = vshrl.u32 %v1486, 7
    %v1488 = vsub.s32 3, %v1487
    %v1489 = vrot.slane %v1472, %v1488
    %v1490 = vlaneseq
    %v1491 = vshrl.u32 %v1490, 7
    %v1492 = vsub.s32 4, %v1491
    %v1493 = vrot.slane %v1472, %v1492
    %v1494 = vlaneseq
    %v1495 = vshrl.u32 %v1494, 7
    %v1496 = vsub.s32 5, %v1495
    %v1497 = vrot.slane %v1472, %v1496
    %v1498 = vlaneseq
    %v1499 = vshrl.u32 %v1498, 7
    %v1500 = vsub.s32 6, %v1499
    %v1501 = vrot.slane %v1472, %v1500
    %v1502 = vlaneseq
    %v1503 = vshrl.u32 %v1502, 7
    %v1504 = vsub.s32 7, %v1503
    %v1505 = vrot.slane %v1472, %v1504
    %v1546 = vunpack.c.l.b16 %v416
    %v1547 = vunpack.c.l.b16 %v417
    %v1548 = vunpack.c.l.b16 %v418
    %v1549 = vunpack.c.l.b16 %v419
    %v1550 = vunpack.c.l.b16 %v420
    %v1551 = vunpack.c.l.b16 %v421
    %v1552 = vunpack.c.l.b16 %v422
    %v1553 = vunpack.c.l.b16 %v423
    %v1554 = vunpack.c.l.b16 %v424
    %v1555 = vunpack.c.l.b16 %v425
    %v1556 = vunpack.c.l.b16 %v426
    %v1557 = vunpack.c.l.b16 %v427
    %v1558 = vunpack.c.l.b16 %v428
    %v1559 = vunpack.c.l.b16 %v429
    %v1560 = vunpack.c.l.b16 %v430
    %v1561 = vunpack.c.l.b16 %v431
    %v1562 = vunpack.c.l.b16 %v432
    %v1563 = vunpack.c.l.b16 %v433
    %v1564 = vunpack.c.l.b16 %v434
    %v1565 = vunpack.c.l.b16 %v435
    %v1566 = vunpack.c.l.b16 %v436
    %v1567 = vunpack.c.l.b16 %v437
    %v1568 = vunpack.c.l.b16 %v438
    %v1569 = vunpack.c.l.b16 %v439
    %v1570 = vunpack.c.l.b16 %v440
    %v1571 = vunpack.c.l.b16 %v441
    %v1572 = vunpack.c.l.b16 %v442
    %v1573 = vunpack.c.l.b16 %v443
    %v1574 = vunpack.c.l.b16 %v444
    %v1575 = vunpack.c.l.b16 %v445
    %v1576 = vunpack.c.l.b16 %v446
    %v1577 = vunpack.c.l.b16 %v447
    %vm1578 = vcmask 1041409
    %v1579 = vsel %vm1578, %v1562, %v1546
    %v1580 = vsel %vm1578, %v1563, %v1547
    %v1581 = vsel %vm1578, %v1564, %v1548
    %v1582 = vsel %vm1578, %v1565, %v1549
    %v1583 = vsel %vm1578, %v1566, %v1550
    %v1584 = vsel %vm1578, %v1567, %v1551
    %v1585 = vsel %vm1578, %v1568, %v1552
    %v1586 = vsel %vm1578, %v1569, %v1553
    %v1587 = vsel %vm1578, %v1570, %v1554
    %v1588 = vsel %vm1578, %v1571, %v1555
    %v1589 = vsel %vm1578, %v1572, %v1556
    %v1590 = vsel %vm1578, %v1573, %v1557
    %v1591 = vsel %vm1578, %v1574, %v1558
    %v1592 = vsel %vm1578, %v1575, %v1559
    %v1593 = vsel %vm1578, %v1576, %v1560
    %v1594 = vsel %vm1578, %v1577, %v1561
    %v1595 = vpack.c.b16 %v1579, %v1579
    %v1596 = vpack.c.b16 %v1580, %v1580
    %v1597 = vpack.c.b16 %v1581, %v1581
    %v1598 = vpack.c.b16 %v1582, %v1582
    %v1599 = vpack.c.b16 %v1583, %v1583
    %v1600 = vpack.c.b16 %v1584, %v1584
    %v1601 = vpack.c.b16 %v1585, %v1585
    %v1602 = vpack.c.b16 %v1586, %v1586
    %v1603 = vpack.c.b16 %v1587, %v1587
    %v1604 = vpack.c.b16 %v1588, %v1588
    %v1605 = vpack.c.b16 %v1589, %v1589
    %v1606 = vpack.c.b16 %v1590, %v1590
    %v1607 = vpack.c.b16 %v1591, %v1591
    %v1608 = vpack.c.b16 %v1592, %v1592
    %v1609 = vpack.c.b16 %v1593, %v1593
    %v1610 = vpack.c.b16 %v1594, %v1594
    %v2651 = vunpack.c.l.b16 %v448
    %v2652 = vunpack.c.h.b16 %v448
    %v2653 = vunpack.c.l.b16 %v449
    %v2654 = vunpack.c.h.b16 %v449
    %v2655 = vunpack.c.l.b16 %v450
    %v2656 = vunpack.c.h.b16 %v450
    %v2657 = vunpack.c.l.b16 %v451
    %v2658 = vunpack.c.h.b16 %v451
    %v2659 = vunpack.c.l.b16 %v452
    %v2660 = vunpack.c.h.b16 %v452
    %v2661 = vunpack.c.l.b16 %v453
    %v2662 = vunpack.c.h.b16 %v453
    %v2663 = vunpack.c.l.b16 %v454
    %v2664 = vunpack.c.h.b16 %v454
    %v2665 = vunpack.c.l.b16 %v455
    %v2666 = vunpack.c.h.b16 %v455
    %v2667 = vunpack.c.l.b16 %v456
    %v2668 = vunpack.c.h.b16 %v456
    %v2669 = vunpack.c.l.b16 %v457
    %v2670 = vunpack.c.h.b16 %v457
    %v2671 = vunpack.c.l.b16 %v458
    %v2672 = vunpack.c.h.b16 %v458
    %v2673 = vunpack.c.l.b16 %v459
    %v2674 = vunpack.c.h.b16 %v459
    %v2675 = vunpack.c.l.b16 %v460
    %v2676 = vunpack.c.h.b16 %v460
    %v2677 = vunpack.c.l.b16 %v461
    %v2678 = vunpack.c.h.b16 %v461
    %v2679 = vunpack.c.l.b16 %v462
    %v2680 = vunpack.c.h.b16 %v462
    %v2681 = vunpack.c.l.b16 %v463
    %v2682 = vunpack.c.h.b16 %v463
    %v2683 = vunpack.c.l.b16 %v464
    %v2684 = vunpack.c.h.b16 %v464
    %v2685 = vunpack.c.l.b16 %v465
    %v2686 = vunpack.c.h.b16 %v465
    %v2687 = vunpack.c.l.b16 %v466
    %v2688 = vunpack.c.h.b16 %v466
    %v2689 = vunpack.c.l.b16 %v467
    %v2690 = vunpack.c.h.b16 %v467
    %v2691 = vunpack.c.l.b16 %v468
    %v2692 = vunpack.c.h.b16 %v468
    %v2693 = vunpack.c.l.b16 %v469
    %v2694 = vunpack.c.h.b16 %v469
    %v2695 = vunpack.c.l.b16 %v470
    %v2696 = vunpack.c.h.b16 %v470
    %v2697 = vunpack.c.l.b16 %v471
    %v2698 = vunpack.c.h.b16 %v471
    %v2699 = vunpack.c.l.b16 %v472
    %v2700 = vunpack.c.h.b16 %v472
    %v2701 = vunpack.c.l.b16 %v473
    %v2702 = vunpack.c.h.b16 %v473
    %v2703 = vunpack.c.l.b16 %v474
    %v2704 = vunpack.c.h.b16 %v474
    %v2705 = vunpack.c.l.b16 %v475
    %v2706 = vunpack.c.h.b16 %v475
    %v2707 = vunpack.c.l.b16 %v476
    %v2708 = vunpack.c.h.b16 %v476
    %v2709 = vunpack.c.l.b16 %v477
    %v2710 = vunpack.c.h.b16 %v477
    %v2711 = vunpack.c.l.b16 %v478
    %v2712 = vunpack.c.h.b16 %v478
    %v2713 = vunpack.c.l.b16 %v479
    %v2714 = vunpack.c.h.b16 %v479
    %v2715 = vunpack.c.l.b16 %v480
    %v2716 = vunpack.c.h.b16 %v480
    %v2717 = vunpack.c.l.b16 %v481
    %v2718 = vunpack.c.h.b16 %v481
    %v2719 = vunpack.c.l.b16 %v482
    %v2720 = vunpack.c.h.b16 %v482
    %v2721 = vunpack.c.l.b16 %v483
    %v2722 = vunpack.c.h.b16 %v483
    %v2723 = vunpack.c.l.b16 %v484
    %v2724 = vunpack.c.h.b16 %v484
    %v2725 = vunpack.c.l.b16 %v485
    %v2726 = vunpack.c.h.b16 %v485
    %v2727 = vunpack.c.l.b16 %v486
    %v2728 = vunpack.c.h.b16 %v486
    %v2729 = vunpack.c.l.b16 %v487
    %v2730 = vunpack.c.h.b16 %v487
    %v2731 = vunpack.c.l.b16 %v488
    %v2732 = vunpack.c.h.b16 %v488
    %v2733 = vunpack.c.l.b16 %v489
    %v2734 = vunpack.c.h.b16 %v489
    %v2735 = vunpack.c.l.b16 %v490
    %v2736 = vunpack.c.h.b16 %v490
    %v2737 = vunpack.c.l.b16 %v491
    %v2738 = vunpack.c.h.b16 %v491
    %v2739 = vunpack.c.l.b16 %v492
    %v2740 = vunpack.c.h.b16 %v492
    %v2741 = vunpack.c.l.b16 %v493
    %v2742 = vunpack.c.h.b16 %v493
    %v2743 = vunpack.c.l.b16 %v494
    %v2744 = vunpack.c.h.b16 %v494
    %v2745 = vunpack.c.l.b16 %v495
    %v2746 = vunpack.c.h.b16 %v495
    %v2747 = vunpack.c.l.b16 %v496
    %v2748 = vunpack.c.h.b16 %v496
    %v2749 = vunpack.c.l.b16 %v497
    %v2750 = vunpack.c.h.b16 %v497
    %v2751 = vunpack.c.l.b16 %v498
    %v2752 = vunpack.c.h.b16 %v498
    %v2753 = vunpack.c.l.b16 %v499
    %v2754 = vunpack.c.h.b16 %v499
    %v2755 = vunpack.c.l.b16 %v500
    %v2756 = vunpack.c.h.b16 %v500
    %v2757 = vunpack.c.l.b16 %v501
    %v2758 = vunpack.c.h.b16 %v501
    %v2759 = vunpack.c.l.b16 %v502
    %v2760 = vunpack.c.h.b16 %v502
    %v2761 = vunpack.c.l.b16 %v503
    %v2762 = vunpack.c.h.b16 %v503
    %v2763 = vunpack.c.l.b16 %v504
    %v2764 = vunpack.c.h.b16 %v504
    %v2765 = vunpack.c.l.b16 %v505
    %v2766 = vunpack.c.h.b16 %v505
    %v2767 = vunpack.c.l.b16 %v506
    %v2768 = vunpack.c.h.b16 %v506
    %v2769 = vunpack.c.l.b16 %v507
    %v2770 = vunpack.c.h.b16 %v507
    %v2771 = vunpack.c.l.b16 %v508
    %v2772 = vunpack.c.h.b16 %v508
    %v2773 = vunpack.c.l.b16 %v509
    %v2774 = vunpack.c.h.b16 %v509
    %v2775 = vunpack.c.l.b16 %v510
    %v2776 = vunpack.c.h.b16 %v510
    %v2777 = vunpack.c.l.b16 %v511
    %v2778 = vunpack.c.h.b16 %v511
    %v2779 = vunpack.c.l.b16 %v512
    %v2780 = vunpack.c.h.b16 %v512
    %v2781 = vunpack.c.l.b16 %v513
    %v2782 = vunpack.c.h.b16 %v513
    %v2783 = vunpack.c.l.b16 %v514
    %v2784 = vunpack.c.h.b16 %v514
    %v2785 = vunpack.c.l.b16 %v515
    %v2786 = vunpack.c.h.b16 %v515
    %v2787 = vunpack.c.l.b16 %v516
    %v2788 = vunpack.c.h.b16 %v516
    %v2789 = vunpack.c.l.b16 %v517
    %v2790 = vunpack.c.h.b16 %v517
    %v2791 = vunpack.c.l.b16 %v518
    %v2792 = vunpack.c.h.b16 %v518
    %v2793 = vunpack.c.l.b16 %v519
    %v2794 = vunpack.c.h.b16 %v519
    %v2795 = vunpack.c.l.b16 %v520
    %v2796 = vunpack.c.h.b16 %v520
    %v2797 = vunpack.c.l.b16 %v521
    %v2798 = vunpack.c.h.b16 %v521
    %v2799 = vunpack.c.l.b16 %v522
    %v2800 = vunpack.c.h.b16 %v522
    %v2801 = vunpack.c.l.b16 %v523
    %v2802 = vunpack.c.h.b16 %v523
    %v2803 = vunpack.c.l.b16 %v524
    %v2804 = vunpack.c.h.b16 %v524
    %v2805 = vunpack.c.l.b16 %v525
    %v2806 = vunpack.c.h.b16 %v525
    %v2807 = vunpack.c.l.b16 %v526
    %v2808 = vunpack.c.h.b16 %v526
    %v2809 = vunpack.c.l.b16 %v527
    %v2810 = vunpack.c.h.b16 %v527
    %v2811 = vunpack.c.l.b16 %v528
    %v2812 = vunpack.c.h.b16 %v528
    %v2813 = vunpack.c.l.b16 %v529
    %v2814 = vunpack.c.h.b16 %v529
    %v2815 = vunpack.c.l.b16 %v530
    %v2816 = vunpack.c.h.b16 %v530
    %v2817 = vunpack.c.l.b16 %v531
    %v2818 = vunpack.c.h.b16 %v531
    %v2819 = vunpack.c.l.b16 %v532
    %v2820 = vunpack.c.h.b16 %v532
    %v2821 = vunpack.c.l.b16 %v533
    %v2822 = vunpack.c.h.b16 %v533
    %v2823 = vunpack.c.l.b16 %v534
    %v2824 = vunpack.c.h.b16 %v534
    %v2825 = vunpack.c.l.b16 %v535
    %v2826 = vunpack.c.h.b16 %v535
    %v2827 = vunpack.c.l.b16 %v536
    %v2828 = vunpack.c.h.b16 %v536
    %v2829 = vunpack.c.l.b16 %v537
    %v2830 = vunpack.c.h.b16 %v537
    %v2831 = vunpack.c.l.b16 %v538
    %v2832 = vunpack.c.h.b16 %v538
    %v2833 = vunpack.c.l.b16 %v539
    %v2834 = vunpack.c.h.b16 %v539
    %v2835 = vunpack.c.l.b16 %v540
    %v2836 = vunpack.c.h.b16 %v540
    %v2837 = vunpack.c.l.b16 %v541
    %v2838 = vunpack.c.h.b16 %v541
    %v2839 = vunpack.c.l.b16 %v542
    %v2840 = vunpack.c.h.b16 %v542
    %v2841 = vunpack.c.l.b16 %v543
    %v2842 = vunpack.c.h.b16 %v543
    %v2843 = vunpack.c.l.b16 %v544
    %v2844 = vunpack.c.h.b16 %v544
    %v2845 = vunpack.c.l.b16 %v545
    %v2846 = vunpack.c.h.b16 %v545
    %v2847 = vunpack.c.l.b16 %v546
    %v2848 = vunpack.c.h.b16 %v546
    %v2849 = vunpack.c.l.b16 %v547
    %v2850 = vunpack.c.h.b16 %v547
    %v2851 = vunpack.c.l.b16 %v548
    %v2852 = vunpack.c.h.b16 %v548
    %v2853 = vunpack.c.l.b16 %v549
    %v2854 = vunpack.c.h.b16 %v549
    %v2855 = vunpack.c.l.b16 %v550
    %v2856 = vunpack.c.h.b16 %v550
    %v2857 = vunpack.c.l.b16 %v551
    %v2858 = vunpack.c.h.b16 %v551
    %v2859 = vunpack.c.l.b16 %v552
    %v2860 = vunpack.c.h.b16 %v552
    %v2861 = vunpack.c.l.b16 %v553
    %v2862 = vunpack.c.h.b16 %v553
    %v2863 = vunpack.c.l.b16 %v554
    %v2864 = vunpack.c.h.b16 %v554
    %v2865 = vunpack.c.l.b16 %v555
    %v2866 = vunpack.c.h.b16 %v555
    %v2867 = vunpack.c.l.b16 %v556
    %v2868 = vunpack.c.h.b16 %v556
    %v2869 = vunpack.c.l.b16 %v557
    %v2870 = vunpack.c.h.b16 %v557
    %v2871 = vunpack.c.l.b16 %v558
    %v2872 = vunpack.c.h.b16 %v558
    %v2873 = vunpack.c.l.b16 %v559
    %v2874 = vunpack.c.h.b16 %v559
    %v2875 = vunpack.c.l.b16 %v560
    %v2876 = vunpack.c.h.b16 %v560
    %v2877 = vunpack.c.l.b16 %v561
    %v2878 = vunpack.c.h.b16 %v561
    %v2879 = vunpack.c.l.b16 %v562
    %v2880 = vunpack.c.h.b16 %v562
    %v2881 = vunpack.c.l.b16 %v563
    %v2882 = vunpack.c.h.b16 %v563
    %v2883 = vunpack.c.l.b16 %v564
    %v2884 = vunpack.c.h.b16 %v564
    %v2885 = vunpack.c.l.b16 %v565
    %v2886 = vunpack.c.h.b16 %v565
    %v2887 = vunpack.c.l.b16 %v566
    %v2888 = vunpack.c.h.b16 %v566
    %v2889 = vunpack.c.l.b16 %v567
    %v2890 = vunpack.c.h.b16 %v567
    %v2891 = vunpack.c.l.b16 %v568
    %v2892 = vunpack.c.h.b16 %v568
    %v2893 = vunpack.c.l.b16 %v569
    %v2894 = vunpack.c.h.b16 %v569
    %v2895 = vunpack.c.l.b16 %v570
    %v2896 = vunpack.c.h.b16 %v570
    %v2897 = vunpack.c.l.b16 %v571
    %v2898 = vunpack.c.h.b16 %v571
    %v2899 = vunpack.c.l.b16 %v572
    %v2900 = vunpack.c.h.b16 %v572
    %v2901 = vunpack.c.l.b16 %v573
    %v2902 = vunpack.c.h.b16 %v573
    %v2903 = vunpack.c.l.b16 %v574
    %v2904 = vunpack.c.h.b16 %v574
    %v2905 = vunpack.c.l.b16 %v575
    %v2906 = vunpack.c.h.b16 %v575
    %v2907 = vunpack.c.l.b16 %v576
    %v2908 = vunpack.c.h.b16 %v576
    %v2909 = vunpack.c.l.b16 %v577
    %v2910 = vunpack.c.h.b16 %v577
    %v2911 = vunpack.c.l.b16 %v578
    %v2912 = vunpack.c.h.b16 %v578
    %v2913 = vunpack.c.l.b16 %v579
    %v2914 = vunpack.c.h.b16 %v579
    %v2915 = vunpack.c.l.b16 %v580
    %v2916 = vunpack.c.h.b16 %v580
    %v2917 = vunpack.c.l.b16 %v581
    %v2918 = vunpack.c.h.b16 %v581
    %v2919 = vunpack.c.l.b16 %v582
    %v2920 = vunpack.c.h.b16 %v582
    %v2921 = vunpack.c.l.b16 %v583
    %v2922 = vunpack.c.h.b16 %v583
    %v2923 = vunpack.c.l.b16 %v584
    %v2924 = vunpack.c.h.b16 %v584
    %v2925 = vunpack.c.l.b16 %v585
    %v2926 = vunpack.c.h.b16 %v585
    %v2927 = vunpack.c.l.b16 %v586
    %v2928 = vunpack.c.h.b16 %v586
    %v2929 = vunpack.c.l.b16 %v587
    %v2930 = vunpack.c.h.b16 %v587
    %v2931 = vunpack.c.l.b16 %v588
    %v2932 = vunpack.c.h.b16 %v588
    %v2933 = vunpack.c.l.b16 %v589
    %v2934 = vunpack.c.h.b16 %v589
    %v2935 = vunpack.c.l.b16 %v590
    %v2936 = vunpack.c.h.b16 %v590
    %v2937 = vunpack.c.l.b16 %v591
    %v2938 = vunpack.c.h.b16 %v591
    %v2939 = vunpack.c.l.b16 %v592
    %v2940 = vunpack.c.h.b16 %v592
    %v2941 = vunpack.c.l.b16 %v593
    %v2942 = vunpack.c.h.b16 %v593
    %v2943 = vunpack.c.l.b16 %v594
    %v2944 = vunpack.c.h.b16 %v594
    %v2945 = vunpack.c.l.b16 %v595
    %v2946 = vunpack.c.h.b16 %v595
    %v2947 = vunpack.c.l.b16 %v596
    %v2948 = vunpack.c.h.b16 %v596
    %v2949 = vunpack.c.l.b16 %v597
    %v2950 = vunpack.c.h.b16 %v597
    %v2951 = vunpack.c.l.b16 %v598
    %v2952 = vunpack.c.h.b16 %v598
    %v2953 = vunpack.c.l.b16 %v599
    %v2954 = vunpack.c.h.b16 %v599
    %v2955 = vunpack.c.l.b16 %v600
    %v2956 = vunpack.c.h.b16 %v600
    %v2957 = vunpack.c.l.b16 %v601
    %v2958 = vunpack.c.h.b16 %v601
    %v2959 = vunpack.c.l.b16 %v602
    %v2960 = vunpack.c.h.b16 %v602
    %v2961 = vunpack.c.l.b16 %v603
    %v2962 = vunpack.c.h.b16 %v603
    %v2963 = vunpack.c.l.b16 %v604
    %v2964 = vunpack.c.h.b16 %v604
    %v2965 = vunpack.c.l.b16 %v605
    %v2966 = vunpack.c.h.b16 %v605
    %v2967 = vunpack.c.l.b16 %v606
    %v2968 = vunpack.c.h.b16 %v606
    %v2969 = vunpack.c.l.b16 %v607
    %v2970 = vunpack.c.h.b16 %v607
    %v2971 = vunpack.c.l.b16 %v608
    %v2972 = vunpack.c.h.b16 %v608
    %v2973 = vunpack.c.l.b16 %v609
    %v2974 = vunpack.c.h.b16 %v609
    %v2975 = vunpack.c.l.b16 %v610
    %v2976 = vunpack.c.h.b16 %v610
    %v2977 = vunpack.c.l.b16 %v611
    %v2978 = vunpack.c.h.b16 %v611
    %v2979 = vunpack.c.l.b16 %v612
    %v2980 = vunpack.c.h.b16 %v612
    %v2981 = vunpack.c.l.b16 %v613
    %v2982 = vunpack.c.h.b16 %v613
    %v2983 = vunpack.c.l.b16 %v614
    %v2984 = vunpack.c.h.b16 %v614
    %v2985 = vunpack.c.l.b16 %v615
    %v2986 = vunpack.c.h.b16 %v615
    %v2987 = vunpack.c.l.b16 %v616
    %v2988 = vunpack.c.h.b16 %v616
    %v2989 = vunpack.c.l.b16 %v617
    %v2990 = vunpack.c.h.b16 %v617
    %v2991 = vunpack.c.l.b16 %v618
    %v2992 = vunpack.c.h.b16 %v618
    %v2993 = vunpack.c.l.b16 %v619
    %v2994 = vunpack.c.h.b16 %v619
    %v2995 = vunpack.c.l.b16 %v620
    %v2996 = vunpack.c.h.b16 %v620
    %v2997 = vunpack.c.l.b16 %v621
    %v2998 = vunpack.c.h.b16 %v621
    %v2999 = vunpack.c.l.b16 %v622
    %v3000 = vunpack.c.h.b16 %v622
    %v3001 = vunpack.c.l.b16 %v623
    %v3002 = vunpack.c.h.b16 %v623
    %v3003 = vunpack.c.l.b16 %v624
    %v3004 = vunpack.c.h.b16 %v624
    %v3005 = vunpack.c.l.b16 %v625
    %v3006 = vunpack.c.h.b16 %v625
    %v3007 = vunpack.c.l.b16 %v626
    %v3008 = vunpack.c.h.b16 %v626
    %v3009 = vunpack.c.l.b16 %v627
    %v3010 = vunpack.c.h.b16 %v627
    %v3011 = vunpack.c.l.b16 %v628
    %v3012 = vunpack.c.h.b16 %v628
    %v3013 = vunpack.c.l.b16 %v629
    %v3014 = vunpack.c.h.b16 %v629
    %v3015 = vunpack.c.l.b16 %v630
    %v3016 = vunpack.c.h.b16 %v630
    %v3017 = vunpack.c.l.b16 %v631
    %v3018 = vunpack.c.h.b16 %v631
    %v3019 = vunpack.c.l.b16 %v632
    %v3020 = vunpack.c.h.b16 %v632
    %v3021 = vunpack.c.l.b16 %v633
    %v3022 = vunpack.c.h.b16 %v633
    %v3023 = vunpack.c.l.b16 %v634
    %v3024 = vunpack.c.h.b16 %v634
    %v3025 = vunpack.c.l.b16 %v635
    %v3026 = vunpack.c.h.b16 %v635
    %v3027 = vunpack.c.l.b16 %v636
    %v3028 = vunpack.c.h.b16 %v636
    %v3029 = vunpack.c.l.b16 %v637
    %v3030 = vunpack.c.h.b16 %v637
    %v3031 = vunpack.c.l.b16 %v638
    %v3032 = vunpack.c.h.b16 %v638
    %v3033 = vunpack.c.l.b16 %v639
    %v3034 = vunpack.c.h.b16 %v639
    %v3035 = vunpack.c.l.b16 %v640
    %v3036 = vunpack.c.h.b16 %v640
    %v3037 = vunpack.c.l.b16 %v641
    %v3038 = vunpack.c.h.b16 %v641
    %v3039 = vunpack.c.l.b16 %v642
    %v3040 = vunpack.c.h.b16 %v642
    %v3041 = vunpack.c.l.b16 %v643
    %v3042 = vunpack.c.h.b16 %v643
    %v3043 = vunpack.c.l.b16 %v644
    %v3044 = vunpack.c.h.b16 %v644
    %v3045 = vunpack.c.l.b16 %v645
    %v3046 = vunpack.c.h.b16 %v645
    %v3047 = vunpack.c.l.b16 %v646
    %v3048 = vunpack.c.h.b16 %v646
    %v3049 = vunpack.c.l.b16 %v647
    %v3050 = vunpack.c.h.b16 %v647
    %v3051 = vunpack.c.l.b16 %v648
    %v3052 = vunpack.c.h.b16 %v648
    %v3053 = vunpack.c.l.b16 %v649
    %v3054 = vunpack.c.h.b16 %v649
    %v3055 = vunpack.c.l.b16 %v650
    %v3056 = vunpack.c.h.b16 %v650
    %v3057 = vunpack.c.l.b16 %v651
    %v3058 = vunpack.c.h.b16 %v651
    %v3059 = vunpack.c.l.b16 %v652
    %v3060 = vunpack.c.h.b16 %v652
    %v3061 = vunpack.c.l.b16 %v653
    %v3062 = vunpack.c.h.b16 %v653
    %v3063 = vunpack.c.l.b16 %v654
    %v3064 = vunpack.c.h.b16 %v654
    %v3065 = vunpack.c.l.b16 %v655
    %v3066 = vunpack.c.h.b16 %v655
    %v3067 = vunpack.c.l.b16 %v656
    %v3068 = vunpack.c.h.b16 %v656
    %v3069 = vunpack.c.l.b16 %v657
    %v3070 = vunpack.c.h.b16 %v657
    %v3071 = vunpack.c.l.b16 %v658
    %v3072 = vunpack.c.h.b16 %v658
    %v3073 = vunpack.c.l.b16 %v659
    %v3074 = vunpack.c.h.b16 %v659
    %v3075 = vunpack.c.l.b16 %v660
    %v3076 = vunpack.c.h.b16 %v660
    %v3077 = vunpack.c.l.b16 %v661
    %v3078 = vunpack.c.h.b16 %v661
    %v3079 = vunpack.c.l.b16 %v662
    %v3080 = vunpack.c.h.b16 %v662
    %v3081 = vunpack.c.l.b16 %v663
    %v3082 = vunpack.c.h.b16 %v663
    %v3083 = vunpack.c.l.b16 %v664
    %v3084 = vunpack.c.h.b16 %v664
    %v3085 = vunpack.c.l.b16 %v665
    %v3086 = vunpack.c.h.b16 %v665
    %v3087 = vunpack.c.l.b16 %v666
    %v3088 = vunpack.c.h.b16 %v666
    %v3089 = vunpack.c.l.b16 %v667
    %v3090 = vunpack.c.h.b16 %v667
    %v3091 = vunpack.c.l.b16 %v668
    %v3092 = vunpack.c.h.b16 %v668
    %v3093 = vunpack.c.l.b16 %v669
    %v3094 = vunpack.c.h.b16 %v669
    %v3095 = vunpack.c.l.b16 %v670
    %v3096 = vunpack.c.h.b16 %v670
    %v3097 = vunpack.c.l.b16 %v671
    %v3098 = vunpack.c.h.b16 %v671
    %v3099 = vunpack.c.l.b16 %v672
    %v3100 = vunpack.c.h.b16 %v672
    %v3101 = vunpack.c.l.b16 %v673
    %v3102 = vunpack.c.h.b16 %v673
    %v3103 = vunpack.c.l.b16 %v674
    %v3104 = vunpack.c.h.b16 %v674
    %v3105 = vunpack.c.l.b16 %v675
    %v3106 = vunpack.c.h.b16 %v675
    %v3107 = vunpack.c.l.b16 %v676
    %v3108 = vunpack.c.h.b16 %v676
    %v3109 = vunpack.c.l.b16 %v677
    %v3110 = vunpack.c.h.b16 %v677
    %v3111 = vunpack.c.l.b16 %v678
    %v3112 = vunpack.c.h.b16 %v678
    %v3113 = vunpack.c.l.b16 %v679
    %v3114 = vunpack.c.h.b16 %v679
    %v3115 = vunpack.c.l.b16 %v680
    %v3116 = vunpack.c.h.b16 %v680
    %v3117 = vunpack.c.l.b16 %v681
    %v3118 = vunpack.c.h.b16 %v681
    %v3119 = vunpack.c.l.b16 %v682
    %v3120 = vunpack.c.h.b16 %v682
    %v3121 = vunpack.c.l.b16 %v683
    %v3122 = vunpack.c.h.b16 %v683
    %v3123 = vunpack.c.l.b16 %v684
    %v3124 = vunpack.c.h.b16 %v684
    %v3125 = vunpack.c.l.b16 %v685
    %v3126 = vunpack.c.h.b16 %v685
    %v3127 = vunpack.c.l.b16 %v686
    %v3128 = vunpack.c.h.b16 %v686
    %v3129 = vunpack.c.l.b16 %v687
    %v3130 = vunpack.c.h.b16 %v687
    %v3131 = vunpack.c.l.b16 %v688
    %v3132 = vunpack.c.h.b16 %v688
    %v3133 = vunpack.c.l.b16 %v689
    %v3134 = vunpack.c.h.b16 %v689
    %v3135 = vunpack.c.l.b16 %v690
    %v3136 = vunpack.c.h.b16 %v690
    %v3137 = vunpack.c.l.b16 %v691
    %v3138 = vunpack.c.h.b16 %v691
    %v3139 = vunpack.c.l.b16 %v692
    %v3140 = vunpack.c.h.b16 %v692
    %v3141 = vunpack.c.l.b16 %v693
    %v3142 = vunpack.c.h.b16 %v693
    %v3143 = vunpack.c.l.b16 %v694
    %v3144 = vunpack.c.h.b16 %v694
    %v3145 = vunpack.c.l.b16 %v695
    %v3146 = vunpack.c.h.b16 %v695
    %v3147 = vunpack.c.l.b16 %v696
    %v3148 = vunpack.c.h.b16 %v696
    %v3149 = vunpack.c.l.b16 %v697
    %v3150 = vunpack.c.h.b16 %v697
    %v3151 = vunpack.c.l.b16 %v698
    %v3152 = vunpack.c.h.b16 %v698
    %v3153 = vunpack.c.l.b16 %v699
    %v3154 = vunpack.c.h.b16 %v699
    %v3155 = vunpack.c.l.b16 %v700
    %v3156 = vunpack.c.h.b16 %v700
    %v3157 = vunpack.c.l.b16 %v701
    %v3158 = vunpack.c.h.b16 %v701
    %v3159 = vunpack.c.l.b16 %v702
    %v3160 = vunpack.c.h.b16 %v702
    %v3161 = vunpack.c.l.b16 %v703
    %v3162 = vunpack.c.h.b16 %v703
    %v3163 = vunpack.c.l.b16 %v704
    %v3164 = vunpack.c.h.b16 %v704
    %v3165 = vunpack.c.l.b16 %v705
    %v3166 = vunpack.c.h.b16 %v705
    %v3167 = vunpack.c.l.b16 %v706
    %v3168 = vunpack.c.h.b16 %v706
    %v3169 = vunpack.c.l.b16 %v707
    %v3170 = vunpack.c.h.b16 %v707
    %v3171 = vunpack.c.l.b16 %v708
    %v3172 = vunpack.c.h.b16 %v708
    %v3173 = vunpack.c.l.b16 %v709
    %v3174 = vunpack.c.h.b16 %v709
    %v3175 = vunpack.c.l.b16 %v710
    %v3176 = vunpack.c.h.b16 %v710
    %v3177 = vunpack.c.l.b16 %v711
    %v3178 = vunpack.c.h.b16 %v711
    %v3179 = vunpack.c.l.b16 %v712
    %v3180 = vunpack.c.h.b16 %v712
    %v3181 = vunpack.c.l.b16 %v713
    %v3182 = vunpack.c.h.b16 %v713
    %v3183 = vunpack.c.l.b16 %v714
    %v3184 = vunpack.c.h.b16 %v714
    %v3185 = vunpack.c.l.b16 %v715
    %v3186 = vunpack.c.h.b16 %v715
    %v3187 = vunpack.c.l.b16 %v716
    %v3188 = vunpack.c.h.b16 %v716
    %v3189 = vunpack.c.l.b16 %v717
    %v3190 = vunpack.c.h.b16 %v717
    %v3191 = vunpack.c.l.b16 %v718
    %v3192 = vunpack.c.h.b16 %v718
    %v3193 = vunpack.c.l.b16 %v719
    %v3194 = vunpack.c.h.b16 %v719
    %v3195 = vunpack.c.l.b16 %v720
    %v3196 = vunpack.c.h.b16 %v720
    %v3197 = vunpack.c.l.b16 %v721
    %v3198 = vunpack.c.h.b16 %v721
    %v3199 = vunpack.c.l.b16 %v722
    %v3200 = vunpack.c.h.b16 %v722
    %v3201 = vunpack.c.l.b16 %v723
    %v3202 = vunpack.c.h.b16 %v723
    %v3203 = vunpack.c.l.b16 %v724
    %v3204 = vunpack.c.h.b16 %v724
    %v3205 = vunpack.c.l.b16 %v725
    %v3206 = vunpack.c.h.b16 %v725
    %v3207 = vunpack.c.l.b16 %v726
    %v3208 = vunpack.c.h.b16 %v726
    %v3209 = vunpack.c.l.b16 %v727
    %v3210 = vunpack.c.h.b16 %v727
    %v3211 = vunpack.c.l.b16 %v728
    %v3212 = vunpack.c.h.b16 %v728
    %v3213 = vunpack.c.l.b16 %v729
    %v3214 = vunpack.c.h.b16 %v729
    %v3215 = vunpack.c.l.b16 %v730
    %v3216 = vunpack.c.h.b16 %v730
    %v3217 = vunpack.c.l.b16 %v731
    %v3218 = vunpack.c.h.b16 %v731
    %v3219 = vunpack.c.l.b16 %v732
    %v3220 = vunpack.c.h.b16 %v732
    %v3221 = vunpack.c.l.b16 %v733
    %v3222 = vunpack.c.h.b16 %v733
    %v3223 = vunpack.c.l.b16 %v734
    %v3224 = vunpack.c.h.b16 %v734
    %v3225 = vunpack.c.l.b16 %v735
    %v3226 = vunpack.c.h.b16 %v735
    %v3227 = vunpack.c.l.b16 %v736
    %v3228 = vunpack.c.h.b16 %v736
    %v3229 = vunpack.c.l.b16 %v737
    %v3230 = vunpack.c.h.b16 %v737
    %v3231 = vunpack.c.l.b16 %v738
    %v3232 = vunpack.c.h.b16 %v738
    %v3233 = vunpack.c.l.b16 %v739
    %v3234 = vunpack.c.h.b16 %v739
    %v3235 = vunpack.c.l.b16 %v740
    %v3236 = vunpack.c.h.b16 %v740
    %v3237 = vunpack.c.l.b16 %v741
    %v3238 = vunpack.c.h.b16 %v741
    %v3239 = vunpack.c.l.b16 %v742
    %v3240 = vunpack.c.h.b16 %v742
    %v3241 = vunpack.c.l.b16 %v743
    %v3242 = vunpack.c.h.b16 %v743
    %v3243 = vunpack.c.l.b16 %v744
    %v3244 = vunpack.c.h.b16 %v744
    %v3245 = vunpack.c.l.b16 %v745
    %v3246 = vunpack.c.h.b16 %v745
    %v3247 = vunpack.c.l.b16 %v746
    %v3248 = vunpack.c.h.b16 %v746
    %v3249 = vunpack.c.l.b16 %v747
    %v3250 = vunpack.c.h.b16 %v747
    %v3251 = vunpack.c.l.b16 %v748
    %v3252 = vunpack.c.h.b16 %v748
    %v3253 = vunpack.c.l.b16 %v749
    %v3254 = vunpack.c.h.b16 %v749
    %v3255 = vunpack.c.l.b16 %v750
    %v3256 = vunpack.c.h.b16 %v750
    %v3257 = vunpack.c.l.b16 %v751
    %v3258 = vunpack.c.h.b16 %v751
    %v3259 = vunpack.c.l.b16 %v752
    %v3260 = vunpack.c.h.b16 %v752
    %v3261 = vunpack.c.l.b16 %v753
    %v3262 = vunpack.c.h.b16 %v753
    %v3263 = vunpack.c.l.b16 %v754
    %v3264 = vunpack.c.h.b16 %v754
    %v3265 = vunpack.c.l.b16 %v755
    %v3266 = vunpack.c.h.b16 %v755
    %v3267 = vunpack.c.l.b16 %v756
    %v3268 = vunpack.c.h.b16 %v756
    %v3269 = vunpack.c.l.b16 %v757
    %v3270 = vunpack.c.h.b16 %v757
    %v3271 = vunpack.c.l.b16 %v758
    %v3272 = vunpack.c.h.b16 %v758
    %v3273 = vunpack.c.l.b16 %v759
    %v3274 = vunpack.c.h.b16 %v759
    %v3275 = vunpack.c.l.b16 %v760
    %v3276 = vunpack.c.h.b16 %v760
    %v3277 = vunpack.c.l.b16 %v761
    %v3278 = vunpack.c.h.b16 %v761
    %v3279 = vunpack.c.l.b16 %v762
    %v3280 = vunpack.c.h.b16 %v762
    %v3281 = vunpack.c.l.b16 %v763
    %v3282 = vunpack.c.h.b16 %v763
    %v3283 = vunpack.c.l.b16 %v764
    %v3284 = vunpack.c.h.b16 %v764
    %v3285 = vunpack.c.l.b16 %v765
    %v3286 = vunpack.c.h.b16 %v765
    %v3287 = vunpack.c.l.b16 %v766
    %v3288 = vunpack.c.h.b16 %v766
    %v3289 = vunpack.c.l.b16 %v767
    %v3290 = vunpack.c.h.b16 %v767
    %v3291 = vunpack.c.l.b16 %v768
    %v3292 = vunpack.c.h.b16 %v768
    %v3293 = vunpack.c.l.b16 %v769
    %v3294 = vunpack.c.h.b16 %v769
    %v3295 = vunpack.c.l.b16 %v770
    %v3296 = vunpack.c.h.b16 %v770
    %v3297 = vunpack.c.l.b16 %v771
    %v3298 = vunpack.c.h.b16 %v771
    %v3299 = vunpack.c.l.b16 %v772
    %v3300 = vunpack.c.h.b16 %v772
    %v3301 = vunpack.c.l.b16 %v773
    %v3302 = vunpack.c.h.b16 %v773
    %v3303 = vunpack.c.l.b16 %v774
    %v3304 = vunpack.c.h.b16 %v774
    %v3305 = vunpack.c.l.b16 %v775
    %v3306 = vunpack.c.h.b16 %v775
    %v3307 = vunpack.c.l.b16 %v776
    %v3308 = vunpack.c.h.b16 %v776
    %v3309 = vunpack.c.l.b16 %v777
    %v3310 = vunpack.c.h.b16 %v777
    %v3311 = vunpack.c.l.b16 %v778
    %v3312 = vunpack.c.h.b16 %v778
    %v3313 = vunpack.c.l.b16 %v779
    %v3314 = vunpack.c.h.b16 %v779
    %v3315 = vunpack.c.l.b16 %v780
    %v3316 = vunpack.c.h.b16 %v780
    %v3317 = vunpack.c.l.b16 %v781
    %v3318 = vunpack.c.h.b16 %v781
    %v3319 = vunpack.c.l.b16 %v782
    %v3320 = vunpack.c.h.b16 %v782
    %v3321 = vunpack.c.l.b16 %v783
    %v3322 = vunpack.c.h.b16 %v783
    %v3323 = vunpack.c.l.b16 %v784
    %v3324 = vunpack.c.h.b16 %v784
    %v3325 = vunpack.c.l.b16 %v785
    %v3326 = vunpack.c.h.b16 %v785
    %v3327 = vunpack.c.l.b16 %v786
    %v3328 = vunpack.c.h.b16 %v786
    %v3329 = vunpack.c.l.b16 %v787
    %v3330 = vunpack.c.h.b16 %v787
    %v3331 = vunpack.c.l.b16 %v788
    %v3332 = vunpack.c.h.b16 %v788
    %v3333 = vunpack.c.l.b16 %v789
    %v3334 = vunpack.c.h.b16 %v789
    %v3335 = vunpack.c.l.b16 %v790
    %v3336 = vunpack.c.h.b16 %v790
    %v3337 = vunpack.c.l.b16 %v791
    %v3338 = vunpack.c.h.b16 %v791
    %v3339 = vunpack.c.l.b16 %v792
    %v3340 = vunpack.c.h.b16 %v792
    %v3341 = vunpack.c.l.b16 %v793
    %v3342 = vunpack.c.h.b16 %v793
    %v3343 = vunpack.c.l.b16 %v794
    %v3344 = vunpack.c.h.b16 %v794
    %v3345 = vunpack.c.l.b16 %v795
    %v3346 = vunpack.c.h.b16 %v795
    %v3347 = vunpack.c.l.b16 %v796
    %v3348 = vunpack.c.h.b16 %v796
    %v3349 = vunpack.c.l.b16 %v797
    %v3350 = vunpack.c.h.b16 %v797
    %v3351 = vunpack.c.l.b16 %v798
    %v3352 = vunpack.c.h.b16 %v798
    %v3353 = vunpack.c.l.b16 %v799
    %v3354 = vunpack.c.h.b16 %v799
    %v3355 = vunpack.c.l.b16 %v800
    %v3356 = vunpack.c.h.b16 %v800
    %v3357 = vunpack.c.l.b16 %v801
    %v3358 = vunpack.c.h.b16 %v801
    %v3359 = vunpack.c.l.b16 %v802
    %v3360 = vunpack.c.h.b16 %v802
    %v3361 = vunpack.c.l.b16 %v803
    %v3362 = vunpack.c.h.b16 %v803
    %v3363 = vunpack.c.l.b16 %v804
    %v3364 = vunpack.c.h.b16 %v804
    %v3365 = vunpack.c.l.b16 %v805
    %v3366 = vunpack.c.h.b16 %v805
    %v3367 = vunpack.c.l.b16 %v806
    %v3368 = vunpack.c.h.b16 %v806
    %v3369 = vunpack.c.l.b16 %v807
    %v3370 = vunpack.c.h.b16 %v807
    %v3371 = vunpack.c.l.b16 %v808
    %v3372 = vunpack.c.h.b16 %v808
    %v3373 = vunpack.c.l.b16 %v809
    %v3374 = vunpack.c.h.b16 %v809
    %v3375 = vunpack.c.l.b16 %v810
    %v3376 = vunpack.c.h.b16 %v810
    %v3377 = vunpack.c.l.b16 %v811
    %v3378 = vunpack.c.h.b16 %v811
    %v3379 = vunpack.c.l.b16 %v812
    %v3380 = vunpack.c.h.b16 %v812
    %v3381 = vunpack.c.l.b16 %v813
    %v3382 = vunpack.c.h.b16 %v813
    %v3383 = vunpack.c.l.b16 %v814
    %v3384 = vunpack.c.h.b16 %v814
    %v3385 = vunpack.c.l.b16 %v815
    %v3386 = vunpack.c.h.b16 %v815
    %v3387 = vunpack.c.l.b16 %v816
    %v3388 = vunpack.c.h.b16 %v816
    %v3389 = vunpack.c.l.b16 %v817
    %v3390 = vunpack.c.h.b16 %v817
    %v3391 = vunpack.c.l.b16 %v818
    %v3392 = vunpack.c.h.b16 %v818
    %v3393 = vunpack.c.l.b16 %v819
    %v3394 = vunpack.c.h.b16 %v819
    %v3395 = vunpack.c.l.b16 %v820
    %v3396 = vunpack.c.h.b16 %v820
    %v3397 = vunpack.c.l.b16 %v821
    %v3398 = vunpack.c.h.b16 %v821
    %v3399 = vunpack.c.l.b16 %v822
    %v3400 = vunpack.c.h.b16 %v822
    %v3401 = vunpack.c.l.b16 %v823
    %v3402 = vunpack.c.h.b16 %v823
    %v3403 = vunpack.c.l.b16 %v824
    %v3404 = vunpack.c.h.b16 %v824
    %v3405 = vunpack.c.l.b16 %v825
    %v3406 = vunpack.c.h.b16 %v825
    %v3407 = vunpack.c.l.b16 %v826
    %v3408 = vunpack.c.h.b16 %v826
    %v3409 = vunpack.c.l.b16 %v827
    %v3410 = vunpack.c.h.b16 %v827
    %v3411 = vunpack.c.l.b16 %v828
    %v3412 = vunpack.c.h.b16 %v828
    %v3413 = vunpack.c.l.b16 %v829
    %v3414 = vunpack.c.h.b16 %v829
    %v3415 = vunpack.c.l.b16 %v830
    %v3416 = vunpack.c.h.b16 %v830
    %v3417 = vunpack.c.l.b16 %v831
    %v3418 = vunpack.c.h.b16 %v831
    %v3419 = vunpack.c.l.b16 %v832
    %v3420 = vunpack.c.h.b16 %v832
    %v3421 = vunpack.c.l.b16 %v833
    %v3422 = vunpack.c.h.b16 %v833
    %v3423 = vunpack.c.l.b16 %v834
    %v3424 = vunpack.c.h.b16 %v834
    %v3425 = vunpack.c.l.b16 %v835
    %v3426 = vunpack.c.h.b16 %v835
    %v3427 = vunpack.c.l.b16 %v836
    %v3428 = vunpack.c.h.b16 %v836
    %v3429 = vunpack.c.l.b16 %v837
    %v3430 = vunpack.c.h.b16 %v837
    %v3431 = vunpack.c.l.b16 %v838
    %v3432 = vunpack.c.h.b16 %v838
    %v3433 = vunpack.c.l.b16 %v839
    %v3434 = vunpack.c.h.b16 %v839
    %v3435 = vunpack.c.l.b16 %v840
    %v3436 = vunpack.c.h.b16 %v840
    %v3437 = vunpack.c.l.b16 %v841
    %v3438 = vunpack.c.h.b16 %v841
    %v3439 = vunpack.c.l.b16 %v842
    %v3440 = vunpack.c.h.b16 %v842
    %v3441 = vunpack.c.l.b16 %v843
    %v3442 = vunpack.c.h.b16 %v843
    %v3443 = vunpack.c.l.b16 %v844
    %v3444 = vunpack.c.h.b16 %v844
    %v3445 = vunpack.c.l.b16 %v845
    %v3446 = vunpack.c.h.b16 %v845
    %v3447 = vunpack.c.l.b16 %v846
    %v3448 = vunpack.c.h.b16 %v846
    %v3449 = vunpack.c.l.b16 %v847
    %v3450 = vunpack.c.h.b16 %v847
    %v3451 = vunpack.c.l.b16 %v848
    %v3452 = vunpack.c.h.b16 %v848
    %v3453 = vunpack.c.l.b16 %v849
    %v3454 = vunpack.c.h.b16 %v849
    %v3455 = vunpack.c.l.b16 %v850
    %v3456 = vunpack.c.h.b16 %v850
    %v3457 = vunpack.c.l.b16 %v851
    %v3458 = vunpack.c.h.b16 %v851
    %v3459 = vunpack.c.l.b16 %v852
    %v3460 = vunpack.c.h.b16 %v852
    %v3461 = vunpack.c.l.b16 %v853
    %v3462 = vunpack.c.h.b16 %v853
    %v3463 = vunpack.c.l.b16 %v854
    %v3464 = vunpack.c.h.b16 %v854
    %v3465 = vunpack.c.l.b16 %v855
    %v3466 = vunpack.c.h.b16 %v855
    %v3467 = vunpack.c.l.b16 %v856
    %v3468 = vunpack.c.h.b16 %v856
    %v3469 = vunpack.c.l.b16 %v857
    %v3470 = vunpack.c.h.b16 %v857
    %v3471 = vunpack.c.l.b16 %v858
    %v3472 = vunpack.c.h.b16 %v858
    %v3473 = vunpack.c.l.b16 %v859
    %v3474 = vunpack.c.h.b16 %v859
    %v3475 = vunpack.c.l.b16 %v860
    %v3476 = vunpack.c.h.b16 %v860
    %v3477 = vunpack.c.l.b16 %v861
    %v3478 = vunpack.c.h.b16 %v861
    %v3479 = vunpack.c.l.b16 %v862
    %v3480 = vunpack.c.h.b16 %v862
    %v3481 = vunpack.c.l.b16 %v863
    %v3482 = vunpack.c.h.b16 %v863
    %v3483 = vunpack.c.l.b16 %v864
    %v3484 = vunpack.c.h.b16 %v864
    %v3485 = vunpack.c.l.b16 %v865
    %v3486 = vunpack.c.h.b16 %v865
    %v3487 = vunpack.c.l.b16 %v866
    %v3488 = vunpack.c.h.b16 %v866
    %v3489 = vunpack.c.l.b16 %v867
    %v3490 = vunpack.c.h.b16 %v867
    %v3491 = vunpack.c.l.b16 %v868
    %v3492 = vunpack.c.h.b16 %v868
    %v3493 = vunpack.c.l.b16 %v869
    %v3494 = vunpack.c.h.b16 %v869
    %v3495 = vunpack.c.l.b16 %v870
    %v3496 = vunpack.c.h.b16 %v870
    %v3497 = vunpack.c.l.b16 %v871
    %v3498 = vunpack.c.h.b16 %v871
    %v3499 = vunpack.c.l.b16 %v872
    %v3500 = vunpack.c.h.b16 %v872
    %v3501 = vunpack.c.l.b16 %v873
    %v3502 = vunpack.c.h.b16 %v873
    %v3503 = vunpack.c.l.b16 %v874
    %v3504 = vunpack.c.h.b16 %v874
    %v3505 = vunpack.c.l.b16 %v875
    %v3506 = vunpack.c.h.b16 %v875
    %v3507 = vunpack.c.l.b16 %v876
    %v3508 = vunpack.c.h.b16 %v876
    %v3509 = vunpack.c.l.b16 %v877
    %v3510 = vunpack.c.h.b16 %v877
    %v3511 = vunpack.c.l.b16 %v878
    %v3512 = vunpack.c.h.b16 %v878
    %v3513 = vunpack.c.l.b16 %v879
    %v3514 = vunpack.c.h.b16 %v879
    %v3515 = vunpack.c.l.b16 %v880
    %v3516 = vunpack.c.h.b16 %v880
    %v3517 = vunpack.c.l.b16 %v881
    %v3518 = vunpack.c.h.b16 %v881
    %v3519 = vunpack.c.l.b16 %v882
    %v3520 = vunpack.c.h.b16 %v882
    %v3521 = vunpack.c.l.b16 %v883
    %v3522 = vunpack.c.h.b16 %v883
    %v3523 = vunpack.c.l.b16 %v884
    %v3524 = vunpack.c.h.b16 %v884
    %v3525 = vunpack.c.l.b16 %v885
    %v3526 = vunpack.c.h.b16 %v885
    %v3527 = vunpack.c.l.b16 %v886
    %v3528 = vunpack.c.h.b16 %v886
    %v3529 = vunpack.c.l.b16 %v887
    %v3530 = vunpack.c.h.b16 %v887
    %v3531 = vunpack.c.l.b16 %v888
    %v3532 = vunpack.c.h.b16 %v888
    %v3533 = vunpack.c.l.b16 %v889
    %v3534 = vunpack.c.h.b16 %v889
    %v3535 = vunpack.c.l.b16 %v890
    %v3536 = vunpack.c.h.b16 %v890
    %v3537 = vunpack.c.l.b16 %v891
    %v3538 = vunpack.c.h.b16 %v891
    %v3539 = vunpack.c.l.b16 %v892
    %v3540 = vunpack.c.h.b16 %v892
    %v3541 = vunpack.c.l.b16 %v893
    %v3542 = vunpack.c.h.b16 %v893
    %v3543 = vunpack.c.l.b16 %v894
    %v3544 = vunpack.c.h.b16 %v894
    %v3545 = vunpack.c.l.b16 %v895
    %v3546 = vunpack.c.h.b16 %v895
    %v3547 = vunpack.c.l.b16 %v896
    %v3548 = vunpack.c.h.b16 %v896
    %v3549 = vunpack.c.l.b16 %v897
    %v3550 = vunpack.c.h.b16 %v897
    %v3551 = vunpack.c.l.b16 %v898
    %v3552 = vunpack.c.h.b16 %v898
    %v3553 = vunpack.c.l.b16 %v899
    %v3554 = vunpack.c.h.b16 %v899
    %v3555 = vunpack.c.l.b16 %v900
    %v3556 = vunpack.c.h.b16 %v900
    %v3557 = vunpack.c.l.b16 %v901
    %v3558 = vunpack.c.h.b16 %v901
    %v3559 = vunpack.c.l.b16 %v902
    %v3560 = vunpack.c.h.b16 %v902
    %v3561 = vunpack.c.l.b16 %v903
    %v3562 = vunpack.c.h.b16 %v903
    %v3563 = vunpack.c.l.b16 %v904
    %v3564 = vunpack.c.h.b16 %v904
    %v3565 = vunpack.c.l.b16 %v905
    %v3566 = vunpack.c.h.b16 %v905
    %v3567 = vunpack.c.l.b16 %v906
    %v3568 = vunpack.c.h.b16 %v906
    %v3569 = vunpack.c.l.b16 %v907
    %v3570 = vunpack.c.h.b16 %v907
    %v3571 = vunpack.c.l.b16 %v908
    %v3572 = vunpack.c.h.b16 %v908
    %v3573 = vunpack.c.l.b16 %v909
    %v3574 = vunpack.c.h.b16 %v909
    %v3575 = vunpack.c.l.b16 %v910
    %v3576 = vunpack.c.h.b16 %v910
    %v3577 = vunpack.c.l.b16 %v911
    %v3578 = vunpack.c.h.b16 %v911
    %v3579 = vunpack.c.l.b16 %v912
    %v3580 = vunpack.c.h.b16 %v912
    %v3581 = vunpack.c.l.b16 %v913
    %v3582 = vunpack.c.h.b16 %v913
    %v3583 = vunpack.c.l.b16 %v914
    %v3584 = vunpack.c.h.b16 %v914
    %v3585 = vunpack.c.l.b16 %v915
    %v3586 = vunpack.c.h.b16 %v915
    %v3587 = vunpack.c.l.b16 %v916
    %v3588 = vunpack.c.h.b16 %v916
    %v3589 = vunpack.c.l.b16 %v917
    %v3590 = vunpack.c.h.b16 %v917
    %v3591 = vunpack.c.l.b16 %v918
    %v3592 = vunpack.c.h.b16 %v918
    %v3593 = vunpack.c.l.b16 %v919
    %v3594 = vunpack.c.h.b16 %v919
    %v3595 = vunpack.c.l.b16 %v920
    %v3596 = vunpack.c.h.b16 %v920
    %v3597 = vunpack.c.l.b16 %v921
    %v3598 = vunpack.c.h.b16 %v921
    %v3599 = vunpack.c.l.b16 %v922
    %v3600 = vunpack.c.h.b16 %v922
    %v3601 = vunpack.c.l.b16 %v923
    %v3602 = vunpack.c.h.b16 %v923
    %v3603 = vunpack.c.l.b16 %v924
    %v3604 = vunpack.c.h.b16 %v924
    %v3605 = vunpack.c.l.b16 %v925
    %v3606 = vunpack.c.h.b16 %v925
    %v3607 = vunpack.c.l.b16 %v926
    %v3608 = vunpack.c.h.b16 %v926
    %v3609 = vunpack.c.l.b16 %v927
    %v3610 = vunpack.c.h.b16 %v927
    %v3611 = vunpack.c.l.b16 %v928
    %v3612 = vunpack.c.h.b16 %v928
    %v3613 = vunpack.c.l.b16 %v929
    %v3614 = vunpack.c.h.b16 %v929
    %v3615 = vunpack.c.l.b16 %v930
    %v3616 = vunpack.c.h.b16 %v930
    %v3617 = vunpack.c.l.b16 %v931
    %v3618 = vunpack.c.h.b16 %v931
    %v3619 = vunpack.c.l.b16 %v932
    %v3620 = vunpack.c.h.b16 %v932
    %v3621 = vunpack.c.l.b16 %v933
    %v3622 = vunpack.c.h.b16 %v933
    %v3623 = vunpack.c.l.b16 %v934
    %v3624 = vunpack.c.h.b16 %v934
    %v3625 = vunpack.c.l.b16 %v935
    %v3626 = vunpack.c.h.b16 %v935
    %v3627 = vunpack.c.l.b16 %v936
    %v3628 = vunpack.c.h.b16 %v936
    %v3629 = vunpack.c.l.b16 %v937
    %v3630 = vunpack.c.h.b16 %v937
    %v3631 = vunpack.c.l.b16 %v938
    %v3632 = vunpack.c.h.b16 %v938
    %v3633 = vunpack.c.l.b16 %v939
    %v3634 = vunpack.c.h.b16 %v939
    %v3635 = vunpack.c.l.b16 %v940
    %v3636 = vunpack.c.h.b16 %v940
    %v3637 = vunpack.c.l.b16 %v941
    %v3638 = vunpack.c.h.b16 %v941
    %v3639 = vunpack.c.l.b16 %v942
    %v3640 = vunpack.c.h.b16 %v942
    %v3641 = vunpack.c.l.b16 %v943
    %v3642 = vunpack.c.h.b16 %v943
    %v3643 = vunpack.c.l.b16 %v944
    %v3644 = vunpack.c.h.b16 %v944
    %v3645 = vunpack.c.l.b16 %v945
    %v3646 = vunpack.c.h.b16 %v945
    %v3647 = vunpack.c.l.b16 %v946
    %v3648 = vunpack.c.h.b16 %v946
    %v3649 = vunpack.c.l.b16 %v947
    %v3650 = vunpack.c.h.b16 %v947
    %v3651 = vunpack.c.l.b16 %v948
    %v3652 = vunpack.c.h.b16 %v948
    %v3653 = vunpack.c.l.b16 %v949
    %v3654 = vunpack.c.h.b16 %v949
    %v3655 = vunpack.c.l.b16 %v950
    %v3656 = vunpack.c.h.b16 %v950
    %v3657 = vunpack.c.l.b16 %v951
    %v3658 = vunpack.c.h.b16 %v951
    %v3659 = vunpack.c.l.b16 %v952
    %v3660 = vunpack.c.h.b16 %v952
    %v3661 = vunpack.c.l.b16 %v953
    %v3662 = vunpack.c.h.b16 %v953
    %v3663 = vunpack.c.l.b16 %v954
    %v3664 = vunpack.c.h.b16 %v954
    %v3665 = vunpack.c.l.b16 %v955
    %v3666 = vunpack.c.h.b16 %v955
    %v3667 = vunpack.c.l.b16 %v956
    %v3668 = vunpack.c.h.b16 %v956
    %v3669 = vunpack.c.l.b16 %v957
    %v3670 = vunpack.c.h.b16 %v957
    %v3671 = vunpack.c.l.b16 %v958
    %v3672 = vunpack.c.h.b16 %v958
    %v3673 = vunpack.c.l.b16 %v959
    %v3674 = vunpack.c.h.b16 %v959
    %v3675 = vunpack.c.l.b16 %v960
    %v3676 = vunpack.c.h.b16 %v960
    %v3677 = vunpack.c.l.b16 %v961
    %v3678 = vunpack.c.h.b16 %v961
    %v3679 = vunpack.c.l.b16 %v962
    %v3680 = vunpack.c.h.b16 %v962
    %v3681 = vunpack.c.l.b16 %v963
    %v3682 = vunpack.c.h.b16 %v963
    %v3683 = vunpack.c.l.b16 %v964
    %v3684 = vunpack.c.h.b16 %v964
    %v3685 = vunpack.c.l.b16 %v965
    %v3686 = vunpack.c.h.b16 %v965
    %v3687 = vunpack.c.l.b16 %v966
    %v3688 = vunpack.c.h.b16 %v966
    %v3689 = vunpack.c.l.b16 %v967
    %v3690 = vunpack.c.h.b16 %v967
    %v3691 = vunpack.c.l.b16 %v968
    %v3692 = vunpack.c.h.b16 %v968
    %v3693 = vunpack.c.l.b16 %v969
    %v3694 = vunpack.c.h.b16 %v969
    %v3695 = vunpack.c.l.b16 %v970
    %v3696 = vunpack.c.h.b16 %v970
    %v3697 = vunpack.c.l.b16 %v971
    %v3698 = vunpack.c.h.b16 %v971
    %v3699 = vunpack.c.l.b16 %v972
    %v3700 = vunpack.c.h.b16 %v972
    %v3701 = vunpack.c.l.b16 %v973
    %v3702 = vunpack.c.h.b16 %v973
    %v3703 = vunpack.c.l.b16 %v974
    %v3704 = vunpack.c.h.b16 %v974
    %v3705 = vunpack.c.l.b16 %v975
    %v3706 = vunpack.c.h.b16 %v975
    %v3707 = vunpack.c.l.b16 %v976
    %v3708 = vunpack.c.h.b16 %v976
    %v3709 = vunpack.c.l.b16 %v977
    %v3710 = vunpack.c.h.b16 %v977
    %v3711 = vunpack.c.l.b16 %v978
    %v3712 = vunpack.c.h.b16 %v978
    %v3713 = vunpack.c.l.b16 %v979
    %v3714 = vunpack.c.h.b16 %v979
    %v3715 = vunpack.c.l.b16 %v980
    %v3716 = vunpack.c.h.b16 %v980
    %v3717 = vunpack.c.l.b16 %v981
    %v3718 = vunpack.c.h.b16 %v981
    %v3719 = vunpack.c.l.b16 %v982
    %v3720 = vunpack.c.h.b16 %v982
    %v3721 = vunpack.c.l.b16 %v983
    %v3722 = vunpack.c.h.b16 %v983
    %v3723 = vunpack.c.l.b16 %v984
    %v3724 = vunpack.c.h.b16 %v984
    %v3725 = vunpack.c.l.b16 %v985
    %v3726 = vunpack.c.h.b16 %v985
    %v3727 = vunpack.c.l.b16 %v986
    %v3728 = vunpack.c.h.b16 %v986
    %v3729 = vunpack.c.l.b16 %v987
    %v3730 = vunpack.c.h.b16 %v987
    %v3731 = vunpack.c.l.b16 %v988
    %v3732 = vunpack.c.h.b16 %v988
    %v3733 = vunpack.c.l.b16 %v989
    %v3734 = vunpack.c.h.b16 %v989
    %v3735 = vunpack.c.l.b16 %v990
    %v3736 = vunpack.c.h.b16 %v990
    %v3737 = vunpack.c.l.b16 %v991
    %v3738 = vunpack.c.h.b16 %v991
    %v3739 = vunpack.c.l.b16 %v992
    %v3740 = vunpack.c.h.b16 %v992
    %v3741 = vunpack.c.l.b16 %v993
    %v3742 = vunpack.c.h.b16 %v993
    %v3743 = vunpack.c.l.b16 %v994
    %v3744 = vunpack.c.h.b16 %v994
    %v3745 = vunpack.c.l.b16 %v995
    %v3746 = vunpack.c.h.b16 %v995
    %v3747 = vunpack.c.l.b16 %v996
    %v3748 = vunpack.c.h.b16 %v996
    %v3749 = vunpack.c.l.b16 %v997
    %v3750 = vunpack.c.h.b16 %v997
    %v3751 = vunpack.c.l.b16 %v998
    %v3752 = vunpack.c.h.b16 %v998
    %v3753 = vunpack.c.l.b16 %v999
    %v3754 = vunpack.c.h.b16 %v999
    %v3755 = vunpack.c.l.b16 %v1000
    %v3756 = vunpack.c.h.b16 %v1000
    %v3757 = vunpack.c.l.b16 %v1001
    %v3758 = vunpack.c.h.b16 %v1001
    %v3759 = vunpack.c.l.b16 %v1002
    %v3760 = vunpack.c.h.b16 %v1002
    %v3761 = vunpack.c.l.b16 %v1003
    %v3762 = vunpack.c.h.b16 %v1003
    %v3763 = vunpack.c.l.b16 %v1004
    %v3764 = vunpack.c.h.b16 %v1004
    %v3765 = vunpack.c.l.b16 %v1005
    %v3766 = vunpack.c.h.b16 %v1005
    %v3767 = vunpack.c.l.b16 %v1006
    %v3768 = vunpack.c.h.b16 %v1006
    %v3769 = vunpack.c.l.b16 %v1007
    %v3770 = vunpack.c.h.b16 %v1007
    %v3771 = vunpack.c.l.b16 %v1008
    %v3772 = vunpack.c.h.b16 %v1008
    %v3773 = vunpack.c.l.b16 %v1009
    %v3774 = vunpack.c.h.b16 %v1009
    %v3775 = vunpack.c.l.b16 %v1010
    %v3776 = vunpack.c.h.b16 %v1010
    %v3777 = vunpack.c.l.b16 %v1011
    %v3778 = vunpack.c.h.b16 %v1011
    %v3779 = vunpack.c.l.b16 %v1012
    %v3780 = vunpack.c.h.b16 %v1012
    %v3781 = vunpack.c.l.b16 %v1013
    %v3782 = vunpack.c.h.b16 %v1013
    %v3783 = vunpack.c.l.b16 %v1014
    %v3784 = vunpack.c.h.b16 %v1014
    %v3785 = vunpack.c.l.b16 %v1015
    %v3786 = vunpack.c.h.b16 %v1015
    %v3787 = vunpack.c.l.b16 %v1016
    %v3788 = vunpack.c.h.b16 %v1016
    %v3789 = vunpack.c.l.b16 %v1017
    %v3790 = vunpack.c.h.b16 %v1017
    %v3791 = vunpack.c.l.b16 %v1018
    %v3792 = vunpack.c.h.b16 %v1018
    %v3793 = vunpack.c.l.b16 %v1019
    %v3794 = vunpack.c.h.b16 %v1019
    %v3795 = vunpack.c.l.b16 %v1020
    %v3796 = vunpack.c.h.b16 %v1020
    %v3797 = vunpack.c.l.b16 %v1021
    %v3798 = vunpack.c.h.b16 %v1021
    %v3799 = vunpack.c.l.b16 %v1022
    %v3800 = vunpack.c.h.b16 %v1022
    %v3801 = vunpack.c.l.b16 %v1023
    %v3802 = vunpack.c.h.b16 %v1023
    %v3803 = vunpack.c.l.b16 %v1024
    %v3804 = vunpack.c.h.b16 %v1024
    %v3805 = vunpack.c.l.b16 %v1025
    %v3806 = vunpack.c.h.b16 %v1025
    %v3807 = vunpack.c.l.b16 %v1026
    %v3808 = vunpack.c.h.b16 %v1026
    %v3809 = vunpack.c.l.b16 %v1027
    %v3810 = vunpack.c.h.b16 %v1027
    %v3811 = vunpack.c.l.b16 %v1028
    %v3812 = vunpack.c.h.b16 %v1028
    %v3813 = vunpack.c.l.b16 %v1029
    %v3814 = vunpack.c.h.b16 %v1029
    %v3815 = vunpack.c.l.b16 %v1030
    %v3816 = vunpack.c.h.b16 %v1030
    %v3817 = vunpack.c.l.b16 %v1031
    %v3818 = vunpack.c.h.b16 %v1031
    %v3819 = vunpack.c.l.b16 %v1032
    %v3820 = vunpack.c.h.b16 %v1032
    %v3821 = vunpack.c.l.b16 %v1033
    %v3822 = vunpack.c.h.b16 %v1033
    %v3823 = vunpack.c.l.b16 %v1034
    %v3824 = vunpack.c.h.b16 %v1034
    %v3825 = vunpack.c.l.b16 %v1035
    %v3826 = vunpack.c.h.b16 %v1035
    %v3827 = vunpack.c.l.b16 %v1036
    %v3828 = vunpack.c.h.b16 %v1036
    %v3829 = vunpack.c.l.b16 %v1037
    %v3830 = vunpack.c.h.b16 %v1037
    %v3831 = vunpack.c.l.b16 %v1038
    %v3832 = vunpack.c.h.b16 %v1038
    %v3833 = vunpack.c.l.b16 %v1039
    %v3834 = vunpack.c.h.b16 %v1039
    %v3835 = vunpack.c.l.b16 %v1040
    %v3836 = vunpack.c.h.b16 %v1040
    %v3837 = vunpack.c.l.b16 %v1041
    %v3838 = vunpack.c.h.b16 %v1041
    %v3839 = vunpack.c.l.b16 %v1042
    %v3840 = vunpack.c.h.b16 %v1042
    %v3841 = vunpack.c.l.b16 %v1043
    %v3842 = vunpack.c.h.b16 %v1043
    %v3843 = vunpack.c.l.b16 %v1044
    %v3844 = vunpack.c.h.b16 %v1044
    %v3845 = vunpack.c.l.b16 %v1045
    %v3846 = vunpack.c.h.b16 %v1045
    %v3847 = vunpack.c.l.b16 %v1046
    %v3848 = vunpack.c.h.b16 %v1046
    %v3849 = vunpack.c.l.b16 %v1047
    %v3850 = vunpack.c.h.b16 %v1047
    %v3851 = vunpack.c.l.b16 %v1048
    %v3852 = vunpack.c.h.b16 %v1048
    %v3853 = vunpack.c.l.b16 %v1049
    %v3854 = vunpack.c.h.b16 %v1049
    %v3855 = vunpack.c.l.b16 %v1050
    %v3856 = vunpack.c.h.b16 %v1050
    %v3857 = vunpack.c.l.b16 %v1051
    %v3858 = vunpack.c.h.b16 %v1051
    %v3859 = vunpack.c.l.b16 %v1052
    %v3860 = vunpack.c.h.b16 %v1052
    %v3861 = vunpack.c.l.b16 %v1053
    %v3862 = vunpack.c.h.b16 %v1053
    %v3863 = vunpack.c.l.b16 %v1054
    %v3864 = vunpack.c.h.b16 %v1054
    %v3865 = vunpack.c.l.b16 %v1055
    %v3866 = vunpack.c.h.b16 %v1055
    %v3867 = vunpack.c.l.b16 %v1056
    %v3868 = vunpack.c.h.b16 %v1056
    %v3869 = vunpack.c.l.b16 %v1057
    %v3870 = vunpack.c.h.b16 %v1057
    %v3871 = vunpack.c.l.b16 %v1058
    %v3872 = vunpack.c.h.b16 %v1058
    %v3873 = vunpack.c.l.b16 %v1059
    %v3874 = vunpack.c.h.b16 %v1059
    %v3875 = vunpack.c.l.b16 %v1060
    %v3876 = vunpack.c.h.b16 %v1060
    %v3877 = vunpack.c.l.b16 %v1061
    %v3878 = vunpack.c.h.b16 %v1061
    %v3879 = vunpack.c.l.b16 %v1062
    %v3880 = vunpack.c.h.b16 %v1062
    %v3881 = vunpack.c.l.b16 %v1063
    %v3882 = vunpack.c.h.b16 %v1063
    %v3883 = vunpack.c.l.b16 %v1064
    %v3884 = vunpack.c.h.b16 %v1064
    %v3885 = vunpack.c.l.b16 %v1065
    %v3886 = vunpack.c.h.b16 %v1065
    %v3887 = vunpack.c.l.b16 %v1066
    %v3888 = vunpack.c.h.b16 %v1066
    %v3889 = vunpack.c.l.b16 %v1067
    %v3890 = vunpack.c.h.b16 %v1067
    %v3891 = vunpack.c.l.b16 %v1068
    %v3892 = vunpack.c.h.b16 %v1068
    %v3893 = vunpack.c.l.b16 %v1069
    %v3894 = vunpack.c.h.b16 %v1069
    %v3895 = vunpack.c.l.b16 %v1070
    %v3896 = vunpack.c.h.b16 %v1070
    %v3897 = vunpack.c.l.b16 %v1071
    %v3898 = vunpack.c.h.b16 %v1071
    %v3899 = vunpack.c.l.b16 %v1072
    %v3900 = vunpack.c.h.b16 %v1072
    %v3901 = vunpack.c.l.b16 %v1073
    %v3902 = vunpack.c.h.b16 %v1073
    %v3903 = vunpack.c.l.b16 %v1074
    %v3904 = vunpack.c.h.b16 %v1074
    %v3905 = vunpack.c.l.b16 %v1075
    %v3906 = vunpack.c.h.b16 %v1075
    %v3907 = vunpack.c.l.b16 %v1076
    %v3908 = vunpack.c.h.b16 %v1076
    %v3909 = vunpack.c.l.b16 %v1077
    %v3910 = vunpack.c.h.b16 %v1077
    %v3911 = vunpack.c.l.b16 %v1078
    %v3912 = vunpack.c.h.b16 %v1078
    %v3913 = vunpack.c.l.b16 %v1079
    %v3914 = vunpack.c.h.b16 %v1079
    %v3915 = vunpack.c.l.b16 %v1080
    %v3916 = vunpack.c.h.b16 %v1080
    %v3917 = vunpack.c.l.b16 %v1081
    %v3918 = vunpack.c.h.b16 %v1081
    %v3919 = vunpack.c.l.b16 %v1082
    %v3920 = vunpack.c.h.b16 %v1082
    %v3921 = vunpack.c.l.b16 %v1083
    %v3922 = vunpack.c.h.b16 %v1083
    %v3923 = vunpack.c.l.b16 %v1084
    %v3924 = vunpack.c.h.b16 %v1084
    %v3925 = vunpack.c.l.b16 %v1085
    %v3926 = vunpack.c.h.b16 %v1085
    %v3927 = vunpack.c.l.b16 %v1086
    %v3928 = vunpack.c.h.b16 %v1086
    %v3929 = vunpack.c.l.b16 %v1087
    %v3930 = vunpack.c.h.b16 %v1087
    %v3931 = vunpack.c.l.b16 %v1088
    %v3932 = vunpack.c.h.b16 %v1088
    %v3933 = vunpack.c.l.b16 %v1089
    %v3934 = vunpack.c.h.b16 %v1089
    %v3935 = vunpack.c.l.b16 %v1090
    %v3936 = vunpack.c.h.b16 %v1090
    %v3937 = vunpack.c.l.b16 %v1091
    %v3938 = vunpack.c.h.b16 %v1091
    %v3939 = vunpack.c.l.b16 %v1092
    %v3940 = vunpack.c.h.b16 %v1092
    %v3941 = vunpack.c.l.b16 %v1093
    %v3942 = vunpack.c.h.b16 %v1093
    %v3943 = vunpack.c.l.b16 %v1094
    %v3944 = vunpack.c.h.b16 %v1094
    %v3945 = vunpack.c.l.b16 %v1095
    %v3946 = vunpack.c.h.b16 %v1095
    %v3947 = vunpack.c.l.b16 %v1096
    %v3948 = vunpack.c.h.b16 %v1096
    %v3949 = vunpack.c.l.b16 %v1097
    %v3950 = vunpack.c.h.b16 %v1097
    %v3951 = vunpack.c.l.b16 %v1098
    %v3952 = vunpack.c.h.b16 %v1098
    %v3953 = vunpack.c.l.b16 %v1099
    %v3954 = vunpack.c.h.b16 %v1099
    %v3955 = vunpack.c.l.b16 %v1100
    %v3956 = vunpack.c.h.b16 %v1100
    %v3957 = vunpack.c.l.b16 %v1101
    %v3958 = vunpack.c.h.b16 %v1101
    %v3959 = vunpack.c.l.b16 %v1102
    %v3960 = vunpack.c.h.b16 %v1102
    %v3961 = vunpack.c.l.b16 %v1103
    %v3962 = vunpack.c.h.b16 %v1103
    %v3963 = vunpack.c.l.b16 %v1104
    %v3964 = vunpack.c.h.b16 %v1104
    %v3965 = vunpack.c.l.b16 %v1105
    %v3966 = vunpack.c.h.b16 %v1105
    %v3967 = vunpack.c.l.b16 %v1106
    %v3968 = vunpack.c.h.b16 %v1106
    %v3969 = vunpack.c.l.b16 %v1107
    %v3970 = vunpack.c.h.b16 %v1107
    %v3971 = vunpack.c.l.b16 %v1108
    %v3972 = vunpack.c.h.b16 %v1108
    %v3973 = vunpack.c.l.b16 %v1109
    %v3974 = vunpack.c.h.b16 %v1109
    %v3975 = vunpack.c.l.b16 %v1110
    %v3976 = vunpack.c.h.b16 %v1110
    %v3977 = vunpack.c.l.b16 %v1111
    %v3978 = vunpack.c.h.b16 %v1111
    %v3979 = vunpack.c.l.b16 %v1112
    %v3980 = vunpack.c.h.b16 %v1112
    %v3981 = vunpack.c.l.b16 %v1113
    %v3982 = vunpack.c.h.b16 %v1113
    %v3983 = vunpack.c.l.b16 %v1114
    %v3984 = vunpack.c.h.b16 %v1114
    %v3985 = vunpack.c.l.b16 %v1115
    %v3986 = vunpack.c.h.b16 %v1115
    %v3987 = vunpack.c.l.b16 %v1116
    %v3988 = vunpack.c.h.b16 %v1116
    %v3989 = vunpack.c.l.b16 %v1117
    %v3990 = vunpack.c.h.b16 %v1117
    %v3991 = vunpack.c.l.b16 %v1118
    %v3992 = vunpack.c.h.b16 %v1118
    %v3993 = vunpack.c.l.b16 %v1119
    %v3994 = vunpack.c.h.b16 %v1119
    %v3995 = vunpack.c.l.b16 %v1120
    %v3996 = vunpack.c.h.b16 %v1120
    %v3997 = vunpack.c.l.b16 %v1121
    %v3998 = vunpack.c.h.b16 %v1121
    %v3999 = vunpack.c.l.b16 %v1122
    %v4000 = vunpack.c.h.b16 %v1122
    %v4001 = vunpack.c.l.b16 %v1123
    %v4002 = vunpack.c.h.b16 %v1123
    %v4003 = vunpack.c.l.b16 %v1124
    %v4004 = vunpack.c.h.b16 %v1124
    %v4005 = vunpack.c.l.b16 %v1125
    %v4006 = vunpack.c.h.b16 %v1125
    %v4007 = vunpack.c.l.b16 %v1126
    %v4008 = vunpack.c.h.b16 %v1126
    %v4009 = vunpack.c.l.b16 %v1127
    %v4010 = vunpack.c.h.b16 %v1127
    %v4011 = vunpack.c.l.b16 %v1128
    %v4012 = vunpack.c.h.b16 %v1128
    %v4013 = vunpack.c.l.b16 %v1129
    %v4014 = vunpack.c.h.b16 %v1129
    %v4015 = vunpack.c.l.b16 %v1130
    %v4016 = vunpack.c.h.b16 %v1130
    %v4017 = vunpack.c.l.b16 %v1131
    %v4018 = vunpack.c.h.b16 %v1131
    %v4019 = vunpack.c.l.b16 %v1132
    %v4020 = vunpack.c.h.b16 %v1132
    %v4021 = vunpack.c.l.b16 %v1133
    %v4022 = vunpack.c.h.b16 %v1133
    %v4023 = vunpack.c.l.b16 %v1134
    %v4024 = vunpack.c.h.b16 %v1134
    %v4025 = vunpack.c.l.b16 %v1135
    %v4026 = vunpack.c.h.b16 %v1135
    %v4027 = vunpack.c.l.b16 %v1136
    %v4028 = vunpack.c.h.b16 %v1136
    %v4029 = vunpack.c.l.b16 %v1137
    %v4030 = vunpack.c.h.b16 %v1137
    %v4031 = vunpack.c.l.b16 %v1138
    %v4032 = vunpack.c.h.b16 %v1138
    %v4033 = vunpack.c.l.b16 %v1139
    %v4034 = vunpack.c.h.b16 %v1139
    %v4035 = vunpack.c.l.b16 %v1140
    %v4036 = vunpack.c.h.b16 %v1140
    %v4037 = vunpack.c.l.b16 %v1141
    %v4038 = vunpack.c.h.b16 %v1141
    %v4039 = vunpack.c.l.b16 %v1142
    %v4040 = vunpack.c.h.b16 %v1142
    %v4041 = vunpack.c.l.b16 %v1143
    %v4042 = vunpack.c.h.b16 %v1143
    %v4043 = vunpack.c.l.b16 %v1144
    %v4044 = vunpack.c.h.b16 %v1144
    %v4045 = vunpack.c.l.b16 %v1145
    %v4046 = vunpack.c.h.b16 %v1145
    %v4047 = vunpack.c.l.b16 %v1146
    %v4048 = vunpack.c.h.b16 %v1146
    %v4049 = vunpack.c.l.b16 %v1147
    %v4050 = vunpack.c.h.b16 %v1147
    %v4051 = vunpack.c.l.b16 %v1148
    %v4052 = vunpack.c.h.b16 %v1148
    %v4053 = vunpack.c.l.b16 %v1149
    %v4054 = vunpack.c.h.b16 %v1149
    %v4055 = vunpack.c.l.b16 %v1150
    %v4056 = vunpack.c.h.b16 %v1150
    %v4057 = vunpack.c.l.b16 %v1151
    %v4058 = vunpack.c.h.b16 %v1151
    %v4059 = vunpack.c.l.b16 %v1152
    %v4060 = vunpack.c.h.b16 %v1152
    %v4061 = vunpack.c.l.b16 %v1153
    %v4062 = vunpack.c.h.b16 %v1153
    %v4063 = vunpack.c.l.b16 %v1154
    %v4064 = vunpack.c.h.b16 %v1154
    %v4065 = vunpack.c.l.b16 %v1155
    %v4066 = vunpack.c.h.b16 %v1155
    %v4067 = vunpack.c.l.b16 %v1156
    %v4068 = vunpack.c.h.b16 %v1156
    %v4069 = vunpack.c.l.b16 %v1157
    %v4070 = vunpack.c.h.b16 %v1157
    %v4071 = vunpack.c.l.b16 %v1158
    %v4072 = vunpack.c.h.b16 %v1158
    %v4073 = vunpack.c.l.b16 %v1159
    %v4074 = vunpack.c.h.b16 %v1159
    %v4075 = vunpack.c.l.b16 %v1160
    %v4076 = vunpack.c.h.b16 %v1160
    %v4077 = vunpack.c.l.b16 %v1161
    %v4078 = vunpack.c.h.b16 %v1161
    %v4079 = vunpack.c.l.b16 %v1162
    %v4080 = vunpack.c.h.b16 %v1162
    %v4081 = vunpack.c.l.b16 %v1163
    %v4082 = vunpack.c.h.b16 %v1163
    %v4083 = vunpack.c.l.b16 %v1164
    %v4084 = vunpack.c.h.b16 %v1164
    %v4085 = vunpack.c.l.b16 %v1165
    %v4086 = vunpack.c.h.b16 %v1165
    %v4087 = vunpack.c.l.b16 %v1166
    %v4088 = vunpack.c.h.b16 %v1166
    %v4089 = vunpack.c.l.b16 %v1167
    %v4090 = vunpack.c.h.b16 %v1167
    %v4091 = vunpack.c.l.b16 %v1168
    %v4092 = vunpack.c.h.b16 %v1168
    %v4093 = vunpack.c.l.b16 %v1169
    %v4094 = vunpack.c.h.b16 %v1169
    %v4095 = vunpack.c.l.b16 %v1170
    %v4096 = vunpack.c.h.b16 %v1170
    %v4097 = vunpack.c.l.b16 %v1171
    %v4098 = vunpack.c.h.b16 %v1171
    %v4099 = vunpack.c.l.b16 %v1172
    %v4100 = vunpack.c.h.b16 %v1172
    %v4101 = vunpack.c.l.b16 %v1173
    %v4102 = vunpack.c.h.b16 %v1173
    %v4103 = vunpack.c.l.b16 %v1174
    %v4104 = vunpack.c.h.b16 %v1174
    %v4105 = vunpack.c.l.b16 %v1175
    %v4106 = vunpack.c.h.b16 %v1175
    %v4107 = vunpack.c.l.b16 %v1176
    %v4108 = vunpack.c.h.b16 %v1176
    %v4109 = vunpack.c.l.b16 %v1177
    %v4110 = vunpack.c.h.b16 %v1177
    %v4111 = vunpack.c.l.b16 %v1178
    %v4112 = vunpack.c.h.b16 %v1178
    %v4113 = vunpack.c.l.b16 %v1179
    %v4114 = vunpack.c.h.b16 %v1179
    %v4115 = vunpack.c.l.b16 %v1180
    %v4116 = vunpack.c.h.b16 %v1180
    %v4117 = vunpack.c.l.b16 %v1181
    %v4118 = vunpack.c.h.b16 %v1181
    %v4119 = vunpack.c.l.b16 %v1182
    %v4120 = vunpack.c.h.b16 %v1182
    %v4121 = vunpack.c.l.b16 %v1183
    %v4122 = vunpack.c.h.b16 %v1183
    %v4123 = vunpack.c.l.b16 %v1184
    %v4124 = vunpack.c.h.b16 %v1184
    %v4125 = vunpack.c.l.b16 %v1185
    %v4126 = vunpack.c.h.b16 %v1185
    %v4127 = vunpack.c.l.b16 %v1186
    %v4128 = vunpack.c.h.b16 %v1186
    %v4129 = vunpack.c.l.b16 %v1187
    %v4130 = vunpack.c.h.b16 %v1187
    %v4131 = vunpack.c.l.b16 %v1188
    %v4132 = vunpack.c.h.b16 %v1188
    %v4133 = vunpack.c.l.b16 %v1189
    %v4134 = vunpack.c.h.b16 %v1189
    %v4135 = vunpack.c.l.b16 %v1190
    %v4136 = vunpack.c.h.b16 %v1190
    %v4137 = vunpack.c.l.b16 %v1191
    %v4138 = vunpack.c.h.b16 %v1191
    %v4139 = vunpack.c.l.b16 %v1192
    %v4140 = vunpack.c.h.b16 %v1192
    %v4141 = vunpack.c.l.b16 %v1193
    %v4142 = vunpack.c.h.b16 %v1193
    %v4143 = vunpack.c.l.b16 %v1194
    %v4144 = vunpack.c.h.b16 %v1194
    %v4145 = vunpack.c.l.b16 %v1195
    %v4146 = vunpack.c.h.b16 %v1195
    %v4147 = vunpack.c.l.b16 %v1196
    %v4148 = vunpack.c.h.b16 %v1196
    %v4149 = vunpack.c.l.b16 %v1197
    %v4150 = vunpack.c.h.b16 %v1197
    %v4151 = vunpack.c.l.b16 %v1198
    %v4152 = vunpack.c.h.b16 %v1198
    %v4153 = vunpack.c.l.b16 %v1199
    %v4154 = vunpack.c.h.b16 %v1199
    %v4155 = vunpack.c.l.b16 %v1200
    %v4156 = vunpack.c.h.b16 %v1200
    %v4157 = vunpack.c.l.b16 %v1201
    %v4158 = vunpack.c.h.b16 %v1201
    %v4159 = vunpack.c.l.b16 %v1202
    %v4160 = vunpack.c.h.b16 %v1202
    %v4161 = vunpack.c.l.b16 %v1203
    %v4162 = vunpack.c.h.b16 %v1203
    %v4163 = vunpack.c.l.b16 %v1204
    %v4164 = vunpack.c.h.b16 %v1204
    %v4165 = vunpack.c.l.b16 %v1205
    %v4166 = vunpack.c.h.b16 %v1205
    %v4167 = vunpack.c.l.b16 %v1206
    %v4168 = vunpack.c.h.b16 %v1206
    %v4169 = vunpack.c.l.b16 %v1207
    %v4170 = vunpack.c.h.b16 %v1207
    %v4171 = vunpack.c.l.b16 %v1208
    %v4172 = vunpack.c.h.b16 %v1208
    %v4173 = vunpack.c.l.b16 %v1209
    %v4174 = vunpack.c.h.b16 %v1209
    %v4175 = vunpack.c.l.b16 %v1210
    %v4176 = vunpack.c.h.b16 %v1210
    %v4177 = vunpack.c.l.b16 %v1211
    %v4178 = vunpack.c.h.b16 %v1211
    %v4179 = vunpack.c.l.b16 %v1212
    %v4180 = vunpack.c.h.b16 %v1212
    %v4181 = vunpack.c.l.b16 %v1213
    %v4182 = vunpack.c.h.b16 %v1213
    %v4183 = vunpack.c.l.b16 %v1214
    %v4184 = vunpack.c.h.b16 %v1214
    %v4185 = vunpack.c.l.b16 %v1215
    %v4186 = vunpack.c.h.b16 %v1215
    %v4187 = vunpack.c.l.b16 %v1216
    %v4188 = vunpack.c.h.b16 %v1216
    %v4189 = vunpack.c.l.b16 %v1217
    %v4190 = vunpack.c.h.b16 %v1217
    %v4191 = vunpack.c.l.b16 %v1218
    %v4192 = vunpack.c.h.b16 %v1218
    %v4193 = vunpack.c.l.b16 %v1219
    %v4194 = vunpack.c.h.b16 %v1219
    %v4195 = vunpack.c.l.b16 %v1220
    %v4196 = vunpack.c.h.b16 %v1220
    %v4197 = vunpack.c.l.b16 %v1221
    %v4198 = vunpack.c.h.b16 %v1221
    %v4199 = vunpack.c.l.b16 %v1222
    %v4200 = vunpack.c.h.b16 %v1222
    %v4201 = vunpack.c.l.b16 %v1223
    %v4202 = vunpack.c.h.b16 %v1223
    %v4203 = vunpack.c.l.b16 %v1224
    %v4204 = vunpack.c.h.b16 %v1224
    %v4205 = vunpack.c.l.b16 %v1225
    %v4206 = vunpack.c.h.b16 %v1225
    %v4207 = vunpack.c.l.b16 %v1226
    %v4208 = vunpack.c.h.b16 %v1226
    %v4209 = vunpack.c.l.b16 %v1227
    %v4210 = vunpack.c.h.b16 %v1227
    %v4211 = vunpack.c.l.b16 %v1228
    %v4212 = vunpack.c.h.b16 %v1228
    %v4213 = vunpack.c.l.b16 %v1229
    %v4214 = vunpack.c.h.b16 %v1229
    %v4215 = vunpack.c.l.b16 %v1230
    %v4216 = vunpack.c.h.b16 %v1230
    %v4217 = vunpack.c.l.b16 %v1231
    %v4218 = vunpack.c.h.b16 %v1231
    %v4219 = vunpack.c.l.b16 %v1232
    %v4220 = vunpack.c.h.b16 %v1232
    %v4221 = vunpack.c.l.b16 %v1233
    %v4222 = vunpack.c.h.b16 %v1233
    %v4223 = vunpack.c.l.b16 %v1234
    %v4224 = vunpack.c.h.b16 %v1234
    %v4225 = vunpack.c.l.b16 %v1235
    %v4226 = vunpack.c.h.b16 %v1235
    %v4227 = vunpack.c.l.b16 %v1236
    %v4228 = vunpack.c.h.b16 %v1236
    %v4229 = vunpack.c.l.b16 %v1237
    %v4230 = vunpack.c.h.b16 %v1237
    %v4231 = vunpack.c.l.b16 %v1238
    %v4232 = vunpack.c.h.b16 %v1238
    %v4233 = vunpack.c.l.b16 %v1239
    %v4234 = vunpack.c.h.b16 %v1239
    %v4235 = vunpack.c.l.b16 %v1240
    %v4236 = vunpack.c.h.b16 %v1240
    %v4237 = vunpack.c.l.b16 %v1241
    %v4238 = vunpack.c.h.b16 %v1241
    %v4239 = vunpack.c.l.b16 %v1242
    %v4240 = vunpack.c.h.b16 %v1242
    %v4241 = vunpack.c.l.b16 %v1243
    %v4242 = vunpack.c.h.b16 %v1243
    %v4243 = vunpack.c.l.b16 %v1244
    %v4244 = vunpack.c.h.b16 %v1244
    %v4245 = vunpack.c.l.b16 %v1245
    %v4246 = vunpack.c.h.b16 %v1245
    %v4247 = vunpack.c.l.b16 %v1246
    %v4248 = vunpack.c.h.b16 %v1246
    %v4249 = vunpack.c.l.b16 %v1247
    %v4250 = vunpack.c.h.b16 %v1247
    %v4251 = vunpack.c.l.b16 %v1248
    %v4252 = vunpack.c.h.b16 %v1248
    %v4253 = vunpack.c.l.b16 %v1249
    %v4254 = vunpack.c.h.b16 %v1249
    %v4255 = vunpack.c.l.b16 %v1250
    %v4256 = vunpack.c.h.b16 %v1250
    %v4257 = vunpack.c.l.b16 %v1251
    %v4258 = vunpack.c.h.b16 %v1251
    %v4259 = vunpack.c.l.b16 %v1252
    %v4260 = vunpack.c.h.b16 %v1252
    %v4261 = vunpack.c.l.b16 %v1253
    %v4262 = vunpack.c.h.b16 %v1253
    %v4263 = vunpack.c.l.b16 %v1254
    %v4264 = vunpack.c.h.b16 %v1254
    %v4265 = vunpack.c.l.b16 %v1255
    %v4266 = vunpack.c.h.b16 %v1255
    %v4267 = vunpack.c.l.b16 %v1256
    %v4268 = vunpack.c.h.b16 %v1256
    %v4269 = vunpack.c.l.b16 %v1257
    %v4270 = vunpack.c.h.b16 %v1257
    %v4271 = vunpack.c.l.b16 %v1258
    %v4272 = vunpack.c.h.b16 %v1258
    %v4273 = vunpack.c.l.b16 %v1259
    %v4274 = vunpack.c.h.b16 %v1259
    %v4275 = vunpack.c.l.b16 %v1260
    %v4276 = vunpack.c.h.b16 %v1260
    %v4277 = vunpack.c.l.b16 %v1261
    %v4278 = vunpack.c.h.b16 %v1261
    %v4279 = vunpack.c.l.b16 %v1262
    %v4280 = vunpack.c.h.b16 %v1262
    %v4281 = vunpack.c.l.b16 %v1263
    %v4282 = vunpack.c.h.b16 %v1263
    %v4283 = vunpack.c.l.b16 %v1264
    %v4284 = vunpack.c.h.b16 %v1264
    %v4285 = vunpack.c.l.b16 %v1265
    %v4286 = vunpack.c.h.b16 %v1265
    %v4287 = vunpack.c.l.b16 %v1266
    %v4288 = vunpack.c.h.b16 %v1266
    %v4289 = vunpack.c.l.b16 %v1267
    %v4290 = vunpack.c.h.b16 %v1267
    %v4291 = vunpack.c.l.b16 %v1268
    %v4292 = vunpack.c.h.b16 %v1268
    %v4293 = vunpack.c.l.b16 %v1269
    %v4294 = vunpack.c.h.b16 %v1269
    %v4295 = vunpack.c.l.b16 %v1270
    %v4296 = vunpack.c.h.b16 %v1270
    %v4297 = vunpack.c.l.b16 %v1271
    %v4298 = vunpack.c.h.b16 %v1271
    %v4299 = vunpack.c.l.b16 %v1272
    %v4300 = vunpack.c.h.b16 %v1272
    %v4301 = vunpack.c.l.b16 %v1273
    %v4302 = vunpack.c.h.b16 %v1273
    %v4303 = vunpack.c.l.b16 %v1274
    %v4304 = vunpack.c.h.b16 %v1274
    %v4305 = vunpack.c.l.b16 %v1275
    %v4306 = vunpack.c.h.b16 %v1275
    %v4307 = vunpack.c.l.b16 %v1276
    %v4308 = vunpack.c.h.b16 %v1276
    %v4309 = vunpack.c.l.b16 %v1277
    %v4310 = vunpack.c.h.b16 %v1277
    %v4311 = vunpack.c.l.b16 %v1278
    %v4312 = vunpack.c.h.b16 %v1278
    %v4313 = vunpack.c.l.b16 %v1279
    %v4314 = vunpack.c.h.b16 %v1279
    %v4315 = vunpack.c.l.b16 %v1280
    %v4316 = vunpack.c.h.b16 %v1280
    %v4317 = vunpack.c.l.b16 %v1281
    %v4318 = vunpack.c.h.b16 %v1281
    %v4319 = vunpack.c.l.b16 %v1282
    %v4320 = vunpack.c.h.b16 %v1282
    %v4321 = vunpack.c.l.b16 %v1283
    %v4322 = vunpack.c.h.b16 %v1283
    %v4323 = vunpack.c.l.b16 %v1284
    %v4324 = vunpack.c.h.b16 %v1284
    %v4325 = vunpack.c.l.b16 %v1285
    %v4326 = vunpack.c.h.b16 %v1285
    %v4327 = vunpack.c.l.b16 %v1286
    %v4328 = vunpack.c.h.b16 %v1286
    %v4329 = vunpack.c.l.b16 %v1287
    %v4330 = vunpack.c.h.b16 %v1287
    %v4331 = vunpack.c.l.b16 %v1288
    %v4332 = vunpack.c.h.b16 %v1288
    %v4333 = vunpack.c.l.b16 %v1289
    %v4334 = vunpack.c.h.b16 %v1289
    %v4335 = vunpack.c.l.b16 %v1290
    %v4336 = vunpack.c.h.b16 %v1290
    %v4337 = vunpack.c.l.b16 %v1291
    %v4338 = vunpack.c.h.b16 %v1291
    %v4339 = vunpack.c.l.b16 %v1292
    %v4340 = vunpack.c.h.b16 %v1292
    %v4341 = vunpack.c.l.b16 %v1293
    %v4342 = vunpack.c.h.b16 %v1293
    %v4343 = vunpack.c.l.b16 %v1294
    %v4344 = vunpack.c.h.b16 %v1294
    %v4345 = vunpack.c.l.b16 %v1295
    %v4346 = vunpack.c.h.b16 %v1295
    %v4347 = vunpack.c.l.b16 %v1296
    %v4348 = vunpack.c.h.b16 %v1296
    %v4349 = vunpack.c.l.b16 %v1297
    %v4350 = vunpack.c.h.b16 %v1297
    %v4351 = vunpack.c.l.b16 %v1298
    %v4352 = vunpack.c.h.b16 %v1298
    %v4353 = vunpack.c.l.b16 %v1299
    %v4354 = vunpack.c.h.b16 %v1299
    %v4355 = vunpack.c.l.b16 %v1300
    %v4356 = vunpack.c.h.b16 %v1300
    %v4357 = vunpack.c.l.b16 %v1301
    %v4358 = vunpack.c.h.b16 %v1301
    %v4359 = vunpack.c.l.b16 %v1302
    %v4360 = vunpack.c.h.b16 %v1302
    %v4361 = vunpack.c.l.b16 %v1303
    %v4362 = vunpack.c.h.b16 %v1303
    %v4363 = vunpack.c.l.b16 %v1304
    %v4364 = vunpack.c.h.b16 %v1304
    %v4365 = vunpack.c.l.b16 %v1305
    %v4366 = vunpack.c.h.b16 %v1305
    %v4367 = vunpack.c.l.b16 %v1306
    %v4368 = vunpack.c.h.b16 %v1306
    %v4369 = vunpack.c.l.b16 %v1307
    %v4370 = vunpack.c.h.b16 %v1307
    %v4371 = vunpack.c.l.b16 %v1308
    %v4372 = vunpack.c.h.b16 %v1308
    %v4373 = vunpack.c.l.b16 %v1309
    %v4374 = vunpack.c.h.b16 %v1309
    %v4375 = vunpack.c.l.b16 %v1310
    %v4376 = vunpack.c.h.b16 %v1310
    %v4377 = vunpack.c.l.b16 %v1311
    %v4378 = vunpack.c.h.b16 %v1311
    %v4379 = vunpack.c.l.b16 %v1312
    %v4380 = vunpack.c.h.b16 %v1312
    %v4381 = vunpack.c.l.b16 %v1313
    %v4382 = vunpack.c.h.b16 %v1313
    %v4383 = vunpack.c.l.b16 %v1314
    %v4384 = vunpack.c.h.b16 %v1314
    %v4385 = vunpack.c.l.b16 %v1315
    %v4386 = vunpack.c.h.b16 %v1315
    %v4387 = vunpack.c.l.b16 %v1316
    %v4388 = vunpack.c.h.b16 %v1316
    %v4389 = vunpack.c.l.b16 %v1317
    %v4390 = vunpack.c.h.b16 %v1317
    %v4391 = vunpack.c.l.b16 %v1318
    %v4392 = vunpack.c.h.b16 %v1318
    %v4393 = vunpack.c.l.b16 %v1319
    %v4394 = vunpack.c.h.b16 %v1319
    %v4395 = vunpack.c.l.b16 %v1320
    %v4396 = vunpack.c.h.b16 %v1320
    %v4397 = vunpack.c.l.b16 %v1321
    %v4398 = vunpack.c.h.b16 %v1321
    %v4399 = vunpack.c.l.b16 %v1322
    %v4400 = vunpack.c.h.b16 %v1322
    %v4401 = vunpack.c.l.b16 %v1323
    %v4402 = vunpack.c.h.b16 %v1323
    %v4403 = vunpack.c.l.b16 %v1324
    %v4404 = vunpack.c.h.b16 %v1324
    %v4405 = vunpack.c.l.b16 %v1325
    %v4406 = vunpack.c.h.b16 %v1325
    %v4407 = vunpack.c.l.b16 %v1326
    %v4408 = vunpack.c.h.b16 %v1326
    %v4409 = vunpack.c.l.b16 %v1327
    %v4410 = vunpack.c.h.b16 %v1327
    %v4411 = vunpack.c.l.b16 %v1328
    %v4412 = vunpack.c.h.b16 %v1328
    %v4413 = vunpack.c.l.b16 %v1329
    %v4414 = vunpack.c.h.b16 %v1329
    %v4415 = vunpack.c.l.b16 %v1330
    %v4416 = vunpack.c.h.b16 %v1330
    %v4417 = vunpack.c.l.b16 %v1331
    %v4418 = vunpack.c.h.b16 %v1331
    %v4419 = vunpack.c.l.b16 %v1332
    %v4420 = vunpack.c.h.b16 %v1332
    %v4421 = vunpack.c.l.b16 %v1333
    %v4422 = vunpack.c.h.b16 %v1333
    %v4423 = vunpack.c.l.b16 %v1334
    %v4424 = vunpack.c.h.b16 %v1334
    %v4425 = vunpack.c.l.b16 %v1335
    %v4426 = vunpack.c.h.b16 %v1335
    %v4427 = vunpack.c.l.b16 %v1336
    %v4428 = vunpack.c.h.b16 %v1336
    %v4429 = vunpack.c.l.b16 %v1337
    %v4430 = vunpack.c.h.b16 %v1337
    %v4431 = vunpack.c.l.b16 %v1338
    %v4432 = vunpack.c.h.b16 %v1338
    %v4433 = vunpack.c.l.b16 %v1339
    %v4434 = vunpack.c.h.b16 %v1339
    %v4435 = vunpack.c.l.b16 %v1340
    %v4436 = vunpack.c.h.b16 %v1340
    %v4437 = vunpack.c.l.b16 %v1341
    %v4438 = vunpack.c.h.b16 %v1341
    %v4439 = vunpack.c.l.b16 %v1342
    %v4440 = vunpack.c.h.b16 %v1342
    %v4441 = vunpack.c.l.b16 %v1343
    %v4442 = vunpack.c.h.b16 %v1343
    %v4443 = vunpack.c.l.b16 %v1344
    %v4444 = vunpack.c.h.b16 %v1344
    %v4445 = vunpack.c.l.b16 %v1345
    %v4446 = vunpack.c.h.b16 %v1345
    %v4447 = vunpack.c.l.b16 %v1346
    %v4448 = vunpack.c.h.b16 %v1346
    %v4449 = vunpack.c.l.b16 %v1347
    %v4450 = vunpack.c.h.b16 %v1347
    %v4451 = vunpack.c.l.b16 %v1348
    %v4452 = vunpack.c.h.b16 %v1348
    %v4453 = vunpack.c.l.b16 %v1349
    %v4454 = vunpack.c.h.b16 %v1349
    %v4455 = vunpack.c.l.b16 %v1350
    %v4456 = vunpack.c.h.b16 %v1350
    %v4457 = vunpack.c.l.b16 %v1351
    %v4458 = vunpack.c.h.b16 %v1351
    %v4459 = vunpack.c.l.b16 %v1352
    %v4460 = vunpack.c.h.b16 %v1352
    %v4461 = vunpack.c.l.b16 %v1353
    %v4462 = vunpack.c.h.b16 %v1353
    %v4463 = vunpack.c.l.b16 %v1354
    %v4464 = vunpack.c.h.b16 %v1354
    %v4465 = vunpack.c.l.b16 %v1355
    %v4466 = vunpack.c.h.b16 %v1355
    %v4467 = vunpack.c.l.b16 %v1356
    %v4468 = vunpack.c.h.b16 %v1356
    %v4469 = vunpack.c.l.b16 %v1357
    %v4470 = vunpack.c.h.b16 %v1357
    %v4471 = vunpack.c.l.b16 %v1358
    %v4472 = vunpack.c.h.b16 %v1358
    %v4473 = vunpack.c.l.b16 %v1359
    %v4474 = vunpack.c.h.b16 %v1359
    %v4475 = vunpack.c.l.b16 %v1360
    %v4476 = vunpack.c.h.b16 %v1360
    %v4477 = vunpack.c.l.b16 %v1361
    %v4478 = vunpack.c.h.b16 %v1361
    %v4479 = vunpack.c.l.b16 %v1362
    %v4480 = vunpack.c.h.b16 %v1362
    %v4481 = vunpack.c.l.b16 %v1363
    %v4482 = vunpack.c.h.b16 %v1363
    %v4483 = vunpack.c.l.b16 %v1364
    %v4484 = vunpack.c.h.b16 %v1364
    %v4485 = vunpack.c.l.b16 %v1365
    %v4486 = vunpack.c.h.b16 %v1365
    %v4487 = vunpack.c.l.b16 %v1366
    %v4488 = vunpack.c.h.b16 %v1366
    %v4489 = vunpack.c.l.b16 %v1367
    %v4490 = vunpack.c.h.b16 %v1367
    %v4491 = vunpack.c.l.b16 %v1368
    %v4492 = vunpack.c.h.b16 %v1368
    %v4493 = vunpack.c.l.b16 %v1369
    %v4494 = vunpack.c.h.b16 %v1369
    %v4495 = vunpack.c.l.b16 %v1370
    %v4496 = vunpack.c.h.b16 %v1370
    %v4497 = vunpack.c.l.b16 %v1371
    %v4498 = vunpack.c.h.b16 %v1371
    %v4499 = vunpack.c.l.b16 %v1372
    %v4500 = vunpack.c.h.b16 %v1372
    %v4501 = vunpack.c.l.b16 %v1373
    %v4502 = vunpack.c.h.b16 %v1373
    %v4503 = vunpack.c.l.b16 %v1374
    %v4504 = vunpack.c.h.b16 %v1374
    %v4505 = vunpack.c.l.b16 %v1375
    %v4506 = vunpack.c.h.b16 %v1375
    %v4507 = vunpack.c.l.b16 %v1376
    %v4508 = vunpack.c.h.b16 %v1376
    %v4509 = vunpack.c.l.b16 %v1377
    %v4510 = vunpack.c.h.b16 %v1377
    %v4511 = vunpack.c.l.b16 %v1378
    %v4512 = vunpack.c.h.b16 %v1378
    %v4513 = vunpack.c.l.b16 %v1379
    %v4514 = vunpack.c.h.b16 %v1379
    %v4515 = vunpack.c.l.b16 %v1380
    %v4516 = vunpack.c.h.b16 %v1380
    %v4517 = vunpack.c.l.b16 %v1381
    %v4518 = vunpack.c.h.b16 %v1381
    %v4519 = vunpack.c.l.b16 %v1382
    %v4520 = vunpack.c.h.b16 %v1382
    %v4521 = vunpack.c.l.b16 %v1383
    %v4522 = vunpack.c.h.b16 %v1383
    %v4523 = vunpack.c.l.b16 %v1384
    %v4524 = vunpack.c.h.b16 %v1384
    %v4525 = vunpack.c.l.b16 %v1385
    %v4526 = vunpack.c.h.b16 %v1385
    %v4527 = vunpack.c.l.b16 %v1386
    %v4528 = vunpack.c.h.b16 %v1386
    %v4529 = vunpack.c.l.b16 %v1387
    %v4530 = vunpack.c.h.b16 %v1387
    %v4531 = vunpack.c.l.b16 %v1388
    %v4532 = vunpack.c.h.b16 %v1388
    %v4533 = vunpack.c.l.b16 %v1389
    %v4534 = vunpack.c.h.b16 %v1389
    %v4535 = vunpack.c.l.b16 %v1390
    %v4536 = vunpack.c.h.b16 %v1390
    %v4537 = vunpack.c.l.b16 %v1391
    %v4538 = vunpack.c.h.b16 %v1391
    %v4539 = vunpack.c.l.b16 %v1392
    %v4540 = vunpack.c.h.b16 %v1392
    %v4541 = vunpack.c.l.b16 %v1393
    %v4542 = vunpack.c.h.b16 %v1393
    %v4543 = vunpack.c.l.b16 %v1394
    %v4544 = vunpack.c.h.b16 %v1394
    %v4545 = vunpack.c.l.b16 %v1395
    %v4546 = vunpack.c.h.b16 %v1395
    %v4547 = vunpack.c.l.b16 %v1396
    %v4548 = vunpack.c.h.b16 %v1396
    %v4549 = vunpack.c.l.b16 %v1397
    %v4550 = vunpack.c.h.b16 %v1397
    %v4551 = vunpack.c.l.b16 %v1398
    %v4552 = vunpack.c.h.b16 %v1398
    %v4553 = vunpack.c.l.b16 %v1399
    %v4554 = vunpack.c.h.b16 %v1399
    %v4555 = vunpack.c.l.b16 %v1400
    %v4556 = vunpack.c.h.b16 %v1400
    %v4557 = vunpack.c.l.b16 %v1401
    %v4558 = vunpack.c.h.b16 %v1401
    %v4559 = vunpack.c.l.b16 %v1402
    %v4560 = vunpack.c.h.b16 %v1402
    %v4561 = vunpack.c.l.b16 %v1403
    %v4562 = vunpack.c.h.b16 %v1403
    %v4563 = vunpack.c.l.b16 %v1404
    %v4564 = vunpack.c.h.b16 %v1404
    %v4565 = vunpack.c.l.b16 %v1405
    %v4566 = vunpack.c.h.b16 %v1405
    %v4567 = vunpack.c.l.b16 %v1406
    %v4568 = vunpack.c.h.b16 %v1406
    %v4569 = vunpack.c.l.b16 %v1407
    %v4570 = vunpack.c.h.b16 %v1407
    %v4571 = vunpack.c.l.b16 %v1408
    %v4572 = vunpack.c.h.b16 %v1408
    %v4573 = vunpack.c.l.b16 %v1409
    %v4574 = vunpack.c.h.b16 %v1409
    %v4575 = vunpack.c.l.b16 %v1410
    %v4576 = vunpack.c.h.b16 %v1410
    %v4577 = vunpack.c.l.b16 %v1411
    %v4578 = vunpack.c.h.b16 %v1411
    %v4579 = vunpack.c.l.b16 %v1412
    %v4580 = vunpack.c.h.b16 %v1412
    %v4581 = vunpack.c.l.b16 %v1413
    %v4582 = vunpack.c.h.b16 %v1413
    %v4583 = vunpack.c.l.b16 %v1414
    %v4584 = vunpack.c.h.b16 %v1414
    %v4585 = vunpack.c.l.b16 %v1415
    %v4586 = vunpack.c.h.b16 %v1415
    %v4587 = vunpack.c.l.b16 %v1416
    %v4588 = vunpack.c.h.b16 %v1416
    %v4589 = vunpack.c.l.b16 %v1417
    %v4590 = vunpack.c.h.b16 %v1417
    %v4591 = vunpack.c.l.b16 %v1418
    %v4592 = vunpack.c.h.b16 %v1418
    %v4593 = vunpack.c.l.b16 %v1419
    %v4594 = vunpack.c.h.b16 %v1419
    %v4595 = vunpack.c.l.b16 %v1420
    %v4596 = vunpack.c.h.b16 %v1420
    %v4597 = vunpack.c.l.b16 %v1421
    %v4598 = vunpack.c.h.b16 %v1421
    %v4599 = vunpack.c.l.b16 %v1422
    %v4600 = vunpack.c.h.b16 %v1422
    %v4601 = vunpack.c.l.b16 %v1423
    %v4602 = vunpack.c.h.b16 %v1423
    %v4603 = vunpack.c.l.b16 %v1424
    %v4604 = vunpack.c.h.b16 %v1424
    %v4605 = vunpack.c.l.b16 %v1425
    %v4606 = vunpack.c.h.b16 %v1425
    %v4607 = vunpack.c.l.b16 %v1426
    %v4608 = vunpack.c.h.b16 %v1426
    %v4609 = vunpack.c.l.b16 %v1427
    %v4610 = vunpack.c.h.b16 %v1427
    %v4611 = vunpack.c.l.b16 %v1428
    %v4612 = vunpack.c.h.b16 %v1428
    %v4613 = vunpack.c.l.b16 %v1429
    %v4614 = vunpack.c.h.b16 %v1429
    %v4615 = vunpack.c.l.b16 %v1430
    %v4616 = vunpack.c.h.b16 %v1430
    %v4617 = vunpack.c.l.b16 %v1431
    %v4618 = vunpack.c.h.b16 %v1431
    %v4619 = vunpack.c.l.b16 %v1432
    %v4620 = vunpack.c.h.b16 %v1432
    %v4621 = vunpack.c.l.b16 %v1433
    %v4622 = vunpack.c.h.b16 %v1433
    %v4623 = vunpack.c.l.b16 %v1434
    %v4624 = vunpack.c.h.b16 %v1434
    %v4625 = vunpack.c.l.b16 %v1435
    %v4626 = vunpack.c.h.b16 %v1435
    %v4627 = vunpack.c.l.b16 %v1436
    %v4628 = vunpack.c.h.b16 %v1436
    %v4629 = vunpack.c.l.b16 %v1437
    %v4630 = vunpack.c.h.b16 %v1437
    %v4631 = vunpack.c.l.b16 %v1438
    %v4632 = vunpack.c.h.b16 %v1438
    %v4633 = vunpack.c.l.b16 %v1439
    %v4634 = vunpack.c.h.b16 %v1439
    %v4635 = vunpack.c.l.b16 %v1440
    %v4636 = vunpack.c.h.b16 %v1440
    %v4637 = vunpack.c.l.b16 %v1441
    %v4638 = vunpack.c.h.b16 %v1441
    %v4639 = vunpack.c.l.b16 %v1442
    %v4640 = vunpack.c.h.b16 %v1442
    %v4641 = vunpack.c.l.b16 %v1443
    %v4642 = vunpack.c.h.b16 %v1443
    %v4643 = vunpack.c.l.b16 %v1444
    %v4644 = vunpack.c.h.b16 %v1444
    %v4645 = vunpack.c.l.b16 %v1445
    %v4646 = vunpack.c.h.b16 %v1445
    %v4647 = vunpack.c.l.b16 %v1446
    %v4648 = vunpack.c.h.b16 %v1446
    %v4649 = vunpack.c.l.b16 %v1447
    %v4650 = vunpack.c.h.b16 %v1447
    %v4651 = vunpack.c.l.b16 %v1448
    %v4652 = vunpack.c.h.b16 %v1448
    %v4653 = vunpack.c.l.b16 %v1449
    %v4654 = vunpack.c.h.b16 %v1449
    %v4655 = vunpack.c.l.b16 %v1450
    %v4656 = vunpack.c.h.b16 %v1450
    %v4657 = vunpack.c.l.b16 %v1451
    %v4658 = vunpack.c.h.b16 %v1451
    %v4659 = vunpack.c.l.b16 %v1452
    %v4660 = vunpack.c.h.b16 %v1452
    %v4661 = vunpack.c.l.b16 %v1453
    %v4662 = vunpack.c.h.b16 %v1453
    %v4663 = vunpack.c.l.b16 %v1454
    %v4664 = vunpack.c.h.b16 %v1454
    %v4665 = vunpack.c.l.b16 %v1455
    %v4666 = vunpack.c.h.b16 %v1455
    %v4667 = vunpack.c.l.b16 %v1456
    %v4668 = vunpack.c.h.b16 %v1456
    %v4669 = vunpack.c.l.b16 %v1457
    %v4670 = vunpack.c.h.b16 %v1457
    %v4671 = vunpack.c.l.b16 %v1458
    %v4672 = vunpack.c.h.b16 %v1458
    %v4673 = vunpack.c.l.b16 %v1459
    %v4674 = vunpack.c.h.b16 %v1459
    %v4675 = vunpack.c.l.b16 %v1460
    %v4676 = vunpack.c.h.b16 %v1460
    %v4677 = vunpack.c.l.b16 %v1461
    %v4678 = vunpack.c.h.b16 %v1461
    %v4679 = vunpack.c.l.b16 %v1462
    %v4680 = vunpack.c.h.b16 %v1462
    %v4681 = vunpack.c.l.b16 %v1463
    %v4682 = vunpack.c.h.b16 %v1463
    %v4683 = vunpack.c.l.b16 %v1464
    %v4684 = vunpack.c.h.b16 %v1464
    %v4685 = vunpack.c.l.b16 %v1465
    %v4686 = vunpack.c.h.b16 %v1465
    %v4687 = vunpack.c.l.b16 %v1466
    %v4688 = vunpack.c.h.b16 %v1466
    %v4689 = vunpack.c.l.b16 %v1467
    %v4690 = vunpack.c.h.b16 %v1467
    %v4691 = vunpack.c.l.b16 %v1468
    %v4692 = vunpack.c.h.b16 %v1468
    %v4693 = vunpack.c.l.b16 %v1469
    %v4694 = vunpack.c.h.b16 %v1469
    %v4695 = vunpack.c.l.b16 %v1470
    %v4696 = vunpack.c.h.b16 %v1470
    %v4697 = vunpack.c.l.b16 %v1471
    %v4698 = vunpack.c.h.b16 %v1471
    %v4699 = vpack.c.b16 %v2659, %v2651
    %v4700 = vpack.c.b16 %v2660, %v2652
    %v4701 = vpack.c.b16 %v2661, %v2653
    %v4702 = vpack.c.b16 %v2662, %v2654
    %v4703 = vpack.c.b16 %v2663, %v2655
    %v4704 = vpack.c.b16 %v2664, %v2656
    %v4705 = vpack.c.b16 %v2665, %v2657
    %v4706 = vpack.c.b16 %v2666, %v2658
    %v4707 = vpack.c.b16 %v2675, %v2667
    %v4708 = vpack.c.b16 %v2676, %v2668
    %v4709 = vpack.c.b16 %v2677, %v2669
    %v4710 = vpack.c.b16 %v2678, %v2670
    %v4711 = vpack.c.b16 %v2679, %v2671
    %v4712 = vpack.c.b16 %v2680, %v2672
    %v4713 = vpack.c.b16 %v2681, %v2673
    %v4714 = vpack.c.b16 %v2682, %v2674
    %v4715 = vpack.c.b16 %v2691, %v2683
    %v4716 = vpack.c.b16 %v2692, %v2684
    %v4717 = vpack.c.b16 %v2693, %v2685
    %v4718 = vpack.c.b16 %v2694, %v2686
    %v4719 = vpack.c.b16 %v2695, %v2687
    %v4720 = vpack.c.b16 %v2696, %v2688
    %v4721 = vpack.c.b16 %v2697, %v2689
    %v4722 = vpack.c.b16 %v2698, %v2690
    %v4723 = vpack.c.b16 %v2707, %v2699
    %v4724 = vpack.c.b16 %v2708, %v2700
    %v4725 = vpack.c.b16 %v2709, %v2701
    %v4726 = vpack.c.b16 %v2710, %v2702
    %v4727 = vpack.c.b16 %v2711, %v2703
    %v4728 = vpack.c.b16 %v2712, %v2704
    %v4729 = vpack.c.b16 %v2713, %v2705
    %v4730 = vpack.c.b16 %v2714, %v2706
    %v4731 = vpack.c.b16 %v2723, %v2715
    %v4732 = vpack.c.b16 %v2724, %v2716
    %v4733 = vpack.c.b16 %v2725, %v2717
    %v4734 = vpack.c.b16 %v2726, %v2718
    %v4735 = vpack.c.b16 %v2727, %v2719
    %v4736 = vpack.c.b16 %v2728, %v2720
    %v4737 = vpack.c.b16 %v2729, %v2721
    %v4738 = vpack.c.b16 %v2730, %v2722
    %v4739 = vpack.c.b16 %v2739, %v2731
    %v4740 = vpack.c.b16 %v2740, %v2732
    %v4741 = vpack.c.b16 %v2741, %v2733
    %v4742 = vpack.c.b16 %v2742, %v2734
    %v4743 = vpack.c.b16 %v2743, %v2735
    %v4744 = vpack.c.b16 %v2744, %v2736
    %v4745 = vpack.c.b16 %v2745, %v2737
    %v4746 = vpack.c.b16 %v2746, %v2738
    %v4747 = vpack.c.b16 %v2755, %v2747
    %v4748 = vpack.c.b16 %v2756, %v2748
    %v4749 = vpack.c.b16 %v2757, %v2749
    %v4750 = vpack.c.b16 %v2758, %v2750
    %v4751 = vpack.c.b16 %v2759, %v2751
    %v4752 = vpack.c.b16 %v2760, %v2752
    %v4753 = vpack.c.b16 %v2761, %v2753
    %v4754 = vpack.c.b16 %v2762, %v2754
    %v4755 = vpack.c.b16 %v2771, %v2763
    %v4756 = vpack.c.b16 %v2772, %v2764
    %v4757 = vpack.c.b16 %v2773, %v2765
    %v4758 = vpack.c.b16 %v2774, %v2766
    %v4759 = vpack.c.b16 %v2775, %v2767
    %v4760 = vpack.c.b16 %v2776, %v2768
    %v4761 = vpack.c.b16 %v2777, %v2769
    %v4762 = vpack.c.b16 %v2778, %v2770
    %v4763 = vpack.c.b16 %v2787, %v2779
    %v4764 = vpack.c.b16 %v2788, %v2780
    %v4765 = vpack.c.b16 %v2789, %v2781
    %v4766 = vpack.c.b16 %v2790, %v2782
    %v4767 = vpack.c.b16 %v2791, %v2783
    %v4768 = vpack.c.b16 %v2792, %v2784
    %v4769 = vpack.c.b16 %v2793, %v2785
    %v4770 = vpack.c.b16 %v2794, %v2786
    %v4771 = vpack.c.b16 %v2803, %v2795
    %v4772 = vpack.c.b16 %v2804, %v2796
    %v4773 = vpack.c.b16 %v2805, %v2797
    %v4774 = vpack.c.b16 %v2806, %v2798
    %v4775 = vpack.c.b16 %v2807, %v2799
    %v4776 = vpack.c.b16 %v2808, %v2800
    %v4777 = vpack.c.b16 %v2809, %v2801
    %v4778 = vpack.c.b16 %v2810, %v2802
    %v4779 = vpack.c.b16 %v2819, %v2811
    %v4780 = vpack.c.b16 %v2820, %v2812
    %v4781 = vpack.c.b16 %v2821, %v2813
    %v4782 = vpack.c.b16 %v2822, %v2814
    %v4783 = vpack.c.b16 %v2823, %v2815
    %v4784 = vpack.c.b16 %v2824, %v2816
    %v4785 = vpack.c.b16 %v2825, %v2817
    %v4786 = vpack.c.b16 %v2826, %v2818
    %v4787 = vpack.c.b16 %v2835, %v2827
    %v4788 = vpack.c.b16 %v2836, %v2828
    %v4789 = vpack.c.b16 %v2837, %v2829
    %v4790 = vpack.c.b16 %v2838, %v2830
    %v4791 = vpack.c.b16 %v2839, %v2831
    %v4792 = vpack.c.b16 %v2840, %v2832
    %v4793 = vpack.c.b16 %v2841, %v2833
    %v4794 = vpack.c.b16 %v2842, %v2834
    %v4795 = vpack.c.b16 %v2851, %v2843
    %v4796 = vpack.c.b16 %v2852, %v2844
    %v4797 = vpack.c.b16 %v2853, %v2845
    %v4798 = vpack.c.b16 %v2854, %v2846
    %v4799 = vpack.c.b16 %v2855, %v2847
    %v4800 = vpack.c.b16 %v2856, %v2848
    %v4801 = vpack.c.b16 %v2857, %v2849
    %v4802 = vpack.c.b16 %v2858, %v2850
    %v4803 = vpack.c.b16 %v2867, %v2859
    %v4804 = vpack.c.b16 %v2868, %v2860
    %v4805 = vpack.c.b16 %v2869, %v2861
    %v4806 = vpack.c.b16 %v2870, %v2862
    %v4807 = vpack.c.b16 %v2871, %v2863
    %v4808 = vpack.c.b16 %v2872, %v2864
    %v4809 = vpack.c.b16 %v2873, %v2865
    %v4810 = vpack.c.b16 %v2874, %v2866
    %v4811 = vpack.c.b16 %v2883, %v2875
    %v4812 = vpack.c.b16 %v2884, %v2876
    %v4813 = vpack.c.b16 %v2885, %v2877
    %v4814 = vpack.c.b16 %v2886, %v2878
    %v4815 = vpack.c.b16 %v2887, %v2879
    %v4816 = vpack.c.b16 %v2888, %v2880
    %v4817 = vpack.c.b16 %v2889, %v2881
    %v4818 = vpack.c.b16 %v2890, %v2882
    %v4819 = vpack.c.b16 %v2899, %v2891
    %v4820 = vpack.c.b16 %v2900, %v2892
    %v4821 = vpack.c.b16 %v2901, %v2893
    %v4822 = vpack.c.b16 %v2902, %v2894
    %v4823 = vpack.c.b16 %v2903, %v2895
    %v4824 = vpack.c.b16 %v2904, %v2896
    %v4825 = vpack.c.b16 %v2905, %v2897
    %v4826 = vpack.c.b16 %v2906, %v2898
    %v4827 = vpack.c.b16 %v2915, %v2907
    %v4828 = vpack.c.b16 %v2916, %v2908
    %v4829 = vpack.c.b16 %v2917, %v2909
    %v4830 = vpack.c.b16 %v2918, %v2910
    %v4831 = vpack.c.b16 %v2919, %v2911
    %v4832 = vpack.c.b16 %v2920, %v2912
    %v4833 = vpack.c.b16 %v2921, %v2913
    %v4834 = vpack.c.b16 %v2922, %v2914
    %v4835 = vpack.c.b16 %v2931, %v2923
    %v4836 = vpack.c.b16 %v2932, %v2924
    %v4837 = vpack.c.b16 %v2933, %v2925
    %v4838 = vpack.c.b16 %v2934, %v2926
    %v4839 = vpack.c.b16 %v2935, %v2927
    %v4840 = vpack.c.b16 %v2936, %v2928
    %v4841 = vpack.c.b16 %v2937, %v2929
    %v4842 = vpack.c.b16 %v2938, %v2930
    %v4843 = vpack.c.b16 %v2947, %v2939
    %v4844 = vpack.c.b16 %v2948, %v2940
    %v4845 = vpack.c.b16 %v2949, %v2941
    %v4846 = vpack.c.b16 %v2950, %v2942
    %v4847 = vpack.c.b16 %v2951, %v2943
    %v4848 = vpack.c.b16 %v2952, %v2944
    %v4849 = vpack.c.b16 %v2953, %v2945
    %v4850 = vpack.c.b16 %v2954, %v2946
    %v4851 = vpack.c.b16 %v2963, %v2955
    %v4852 = vpack.c.b16 %v2964, %v2956
    %v4853 = vpack.c.b16 %v2965, %v2957
    %v4854 = vpack.c.b16 %v2966, %v2958
    %v4855 = vpack.c.b16 %v2967, %v2959
    %v4856 = vpack.c.b16 %v2968, %v2960
    %v4857 = vpack.c.b16 %v2969, %v2961
    %v4858 = vpack.c.b16 %v2970, %v2962
    %v4859 = vpack.c.b16 %v2979, %v2971
    %v4860 = vpack.c.b16 %v2980, %v2972
    %v4861 = vpack.c.b16 %v2981, %v2973
    %v4862 = vpack.c.b16 %v2982, %v2974
    %v4863 = vpack.c.b16 %v2983, %v2975
    %v4864 = vpack.c.b16 %v2984, %v2976
    %v4865 = vpack.c.b16 %v2985, %v2977
    %v4866 = vpack.c.b16 %v2986, %v2978
    %v4867 = vpack.c.b16 %v2995, %v2987
    %v4868 = vpack.c.b16 %v2996, %v2988
    %v4869 = vpack.c.b16 %v2997, %v2989
    %v4870 = vpack.c.b16 %v2998, %v2990
    %v4871 = vpack.c.b16 %v2999, %v2991
    %v4872 = vpack.c.b16 %v3000, %v2992
    %v4873 = vpack.c.b16 %v3001, %v2993
    %v4874 = vpack.c.b16 %v3002, %v2994
    %v4875 = vpack.c.b16 %v3011, %v3003
    %v4876 = vpack.c.b16 %v3012, %v3004
    %v4877 = vpack.c.b16 %v3013, %v3005
    %v4878 = vpack.c.b16 %v3014, %v3006
    %v4879 = vpack.c.b16 %v3015, %v3007
    %v4880 = vpack.c.b16 %v3016, %v3008
    %v4881 = vpack.c.b16 %v3017, %v3009
    %v4882 = vpack.c.b16 %v3018, %v3010
    %v4883 = vpack.c.b16 %v3027, %v3019
    %v4884 = vpack.c.b16 %v3028, %v3020
    %v4885 = vpack.c.b16 %v3029, %v3021
    %v4886 = vpack.c.b16 %v3030, %v3022
    %v4887 = vpack.c.b16 %v3031, %v3023
    %v4888 = vpack.c.b16 %v3032, %v3024
    %v4889 = vpack.c.b16 %v3033, %v3025
    %v4890 = vpack.c.b16 %v3034, %v3026
    %v4891 = vpack.c.b16 %v3043, %v3035
    %v4892 = vpack.c.b16 %v3044, %v3036
    %v4893 = vpack.c.b16 %v3045, %v3037
    %v4894 = vpack.c.b16 %v3046, %v3038
    %v4895 = vpack.c.b16 %v3047, %v3039
    %v4896 = vpack.c.b16 %v3048, %v3040
    %v4897 = vpack.c.b16 %v3049, %v3041
    %v4898 = vpack.c.b16 %v3050, %v3042
    %v4899 = vpack.c.b16 %v3059, %v3051
    %v4900 = vpack.c.b16 %v3060, %v3052
    %v4901 = vpack.c.b16 %v3061, %v3053
    %v4902 = vpack.c.b16 %v3062, %v3054
    %v4903 = vpack.c.b16 %v3063, %v3055
    %v4904 = vpack.c.b16 %v3064, %v3056
    %v4905 = vpack.c.b16 %v3065, %v3057
    %v4906 = vpack.c.b16 %v3066, %v3058
    %v4907 = vpack.c.b16 %v3075, %v3067
    %v4908 = vpack.c.b16 %v3076, %v3068
    %v4909 = vpack.c.b16 %v3077, %v3069
    %v4910 = vpack.c.b16 %v3078, %v3070
    %v4911 = vpack.c.b16 %v3079, %v3071
    %v4912 = vpack.c.b16 %v3080, %v3072
    %v4913 = vpack.c.b16 %v3081, %v3073
    %v4914 = vpack.c.b16 %v3082, %v3074
    %v4915 = vpack.c.b16 %v3091, %v3083
    %v4916 = vpack.c.b16 %v3092, %v3084
    %v4917 = vpack.c.b16 %v3093, %v3085
    %v4918 = vpack.c.b16 %v3094, %v3086
    %v4919 = vpack.c.b16 %v3095, %v3087
    %v4920 = vpack.c.b16 %v3096, %v3088
    %v4921 = vpack.c.b16 %v3097, %v3089
    %v4922 = vpack.c.b16 %v3098, %v3090
    %v4923 = vpack.c.b16 %v3107, %v3099
    %v4924 = vpack.c.b16 %v3108, %v3100
    %v4925 = vpack.c.b16 %v3109, %v3101
    %v4926 = vpack.c.b16 %v3110, %v3102
    %v4927 = vpack.c.b16 %v3111, %v3103
    %v4928 = vpack.c.b16 %v3112, %v3104
    %v4929 = vpack.c.b16 %v3113, %v3105
    %v4930 = vpack.c.b16 %v3114, %v3106
    %v4931 = vpack.c.b16 %v3123, %v3115
    %v4932 = vpack.c.b16 %v3124, %v3116
    %v4933 = vpack.c.b16 %v3125, %v3117
    %v4934 = vpack.c.b16 %v3126, %v3118
    %v4935 = vpack.c.b16 %v3127, %v3119
    %v4936 = vpack.c.b16 %v3128, %v3120
    %v4937 = vpack.c.b16 %v3129, %v3121
    %v4938 = vpack.c.b16 %v3130, %v3122
    %v4939 = vpack.c.b16 %v3139, %v3131
    %v4940 = vpack.c.b16 %v3140, %v3132
    %v4941 = vpack.c.b16 %v3141, %v3133
    %v4942 = vpack.c.b16 %v3142, %v3134
    %v4943 = vpack.c.b16 %v3143, %v3135
    %v4944 = vpack.c.b16 %v3144, %v3136
    %v4945 = vpack.c.b16 %v3145, %v3137
    %v4946 = vpack.c.b16 %v3146, %v3138
    %v4947 = vpack.c.b16 %v3155, %v3147
    %v4948 = vpack.c.b16 %v3156, %v3148
    %v4949 = vpack.c.b16 %v3157, %v3149
    %v4950 = vpack.c.b16 %v3158, %v3150
    %v4951 = vpack.c.b16 %v3159, %v3151
    %v4952 = vpack.c.b16 %v3160, %v3152
    %v4953 = vpack.c.b16 %v3161, %v3153
    %v4954 = vpack.c.b16 %v3162, %v3154
    %v4955 = vpack.c.b16 %v3171, %v3163
    %v4956 = vpack.c.b16 %v3172, %v3164
    %v4957 = vpack.c.b16 %v3173, %v3165
    %v4958 = vpack.c.b16 %v3174, %v3166
    %v4959 = vpack.c.b16 %v3175, %v3167
    %v4960 = vpack.c.b16 %v3176, %v3168
    %v4961 = vpack.c.b16 %v3177, %v3169
    %v4962 = vpack.c.b16 %v3178, %v3170
    %v4963 = vpack.c.b16 %v3187, %v3179
    %v4964 = vpack.c.b16 %v3188, %v3180
    %v4965 = vpack.c.b16 %v3189, %v3181
    %v4966 = vpack.c.b16 %v3190, %v3182
    %v4967 = vpack.c.b16 %v3191, %v3183
    %v4968 = vpack.c.b16 %v3192, %v3184
    %v4969 = vpack.c.b16 %v3193, %v3185
    %v4970 = vpack.c.b16 %v3194, %v3186
    %v4971 = vpack.c.b16 %v3203, %v3195
    %v4972 = vpack.c.b16 %v3204, %v3196
    %v4973 = vpack.c.b16 %v3205, %v3197
    %v4974 = vpack.c.b16 %v3206, %v3198
    %v4975 = vpack.c.b16 %v3207, %v3199
    %v4976 = vpack.c.b16 %v3208, %v3200
    %v4977 = vpack.c.b16 %v3209, %v3201
    %v4978 = vpack.c.b16 %v3210, %v3202
    %v4979 = vpack.c.b16 %v3219, %v3211
    %v4980 = vpack.c.b16 %v3220, %v3212
    %v4981 = vpack.c.b16 %v3221, %v3213
    %v4982 = vpack.c.b16 %v3222, %v3214
    %v4983 = vpack.c.b16 %v3223, %v3215
    %v4984 = vpack.c.b16 %v3224, %v3216
    %v4985 = vpack.c.b16 %v3225, %v3217
    %v4986 = vpack.c.b16 %v3226, %v3218
    %v4987 = vpack.c.b16 %v3235, %v3227
    %v4988 = vpack.c.b16 %v3236, %v3228
    %v4989 = vpack.c.b16 %v3237, %v3229
    %v4990 = vpack.c.b16 %v3238, %v3230
    %v4991 = vpack.c.b16 %v3239, %v3231
    %v4992 = vpack.c.b16 %v3240, %v3232
    %v4993 = vpack.c.b16 %v3241, %v3233
    %v4994 = vpack.c.b16 %v3242, %v3234
    %v4995 = vpack.c.b16 %v3251, %v3243
    %v4996 = vpack.c.b16 %v3252, %v3244
    %v4997 = vpack.c.b16 %v3253, %v3245
    %v4998 = vpack.c.b16 %v3254, %v3246
    %v4999 = vpack.c.b16 %v3255, %v3247
    %v5000 = vpack.c.b16 %v3256, %v3248
    %v5001 = vpack.c.b16 %v3257, %v3249
    %v5002 = vpack.c.b16 %v3258, %v3250
    %v5003 = vpack.c.b16 %v3267, %v3259
    %v5004 = vpack.c.b16 %v3268, %v3260
    %v5005 = vpack.c.b16 %v3269, %v3261
    %v5006 = vpack.c.b16 %v3270, %v3262
    %v5007 = vpack.c.b16 %v3271, %v3263
    %v5008 = vpack.c.b16 %v3272, %v3264
    %v5009 = vpack.c.b16 %v3273, %v3265
    %v5010 = vpack.c.b16 %v3274, %v3266
    %v5011 = vpack.c.b16 %v3283, %v3275
    %v5012 = vpack.c.b16 %v3284, %v3276
    %v5013 = vpack.c.b16 %v3285, %v3277
    %v5014 = vpack.c.b16 %v3286, %v3278
    %v5015 = vpack.c.b16 %v3287, %v3279
    %v5016 = vpack.c.b16 %v3288, %v3280
    %v5017 = vpack.c.b16 %v3289, %v3281
    %v5018 = vpack.c.b16 %v3290, %v3282
    %v5019 = vpack.c.b16 %v3299, %v3291
    %v5020 = vpack.c.b16 %v3300, %v3292
    %v5021 = vpack.c.b16 %v3301, %v3293
    %v5022 = vpack.c.b16 %v3302, %v3294
    %v5023 = vpack.c.b16 %v3303, %v3295
    %v5024 = vpack.c.b16 %v3304, %v3296
    %v5025 = vpack.c.b16 %v3305, %v3297
    %v5026 = vpack.c.b16 %v3306, %v3298
    %v5027 = vpack.c.b16 %v3315, %v3307
    %v5028 = vpack.c.b16 %v3316, %v3308
    %v5029 = vpack.c.b16 %v3317, %v3309
    %v5030 = vpack.c.b16 %v3318, %v3310
    %v5031 = vpack.c.b16 %v3319, %v3311
    %v5032 = vpack.c.b16 %v3320, %v3312
    %v5033 = vpack.c.b16 %v3321, %v3313
    %v5034 = vpack.c.b16 %v3322, %v3314
    %v5035 = vpack.c.b16 %v3331, %v3323
    %v5036 = vpack.c.b16 %v3332, %v3324
    %v5037 = vpack.c.b16 %v3333, %v3325
    %v5038 = vpack.c.b16 %v3334, %v3326
    %v5039 = vpack.c.b16 %v3335, %v3327
    %v5040 = vpack.c.b16 %v3336, %v3328
    %v5041 = vpack.c.b16 %v3337, %v3329
    %v5042 = vpack.c.b16 %v3338, %v3330
    %v5043 = vpack.c.b16 %v3347, %v3339
    %v5044 = vpack.c.b16 %v3348, %v3340
    %v5045 = vpack.c.b16 %v3349, %v3341
    %v5046 = vpack.c.b16 %v3350, %v3342
    %v5047 = vpack.c.b16 %v3351, %v3343
    %v5048 = vpack.c.b16 %v3352, %v3344
    %v5049 = vpack.c.b16 %v3353, %v3345
    %v5050 = vpack.c.b16 %v3354, %v3346
    %v5051 = vpack.c.b16 %v3363, %v3355
    %v5052 = vpack.c.b16 %v3364, %v3356
    %v5053 = vpack.c.b16 %v3365, %v3357
    %v5054 = vpack.c.b16 %v3366, %v3358
    %v5055 = vpack.c.b16 %v3367, %v3359
    %v5056 = vpack.c.b16 %v3368, %v3360
    %v5057 = vpack.c.b16 %v3369, %v3361
    %v5058 = vpack.c.b16 %v3370, %v3362
    %v5059 = vpack.c.b16 %v3379, %v3371
    %v5060 = vpack.c.b16 %v3380, %v3372
    %v5061 = vpack.c.b16 %v3381, %v3373
    %v5062 = vpack.c.b16 %v3382, %v3374
    %v5063 = vpack.c.b16 %v3383, %v3375
    %v5064 = vpack.c.b16 %v3384, %v3376
    %v5065 = vpack.c.b16 %v3385, %v3377
    %v5066 = vpack.c.b16 %v3386, %v3378
    %v5067 = vpack.c.b16 %v3395, %v3387
    %v5068 = vpack.c.b16 %v3396, %v3388
    %v5069 = vpack.c.b16 %v3397, %v3389
    %v5070 = vpack.c.b16 %v3398, %v3390
    %v5071 = vpack.c.b16 %v3399, %v3391
    %v5072 = vpack.c.b16 %v3400, %v3392
    %v5073 = vpack.c.b16 %v3401, %v3393
    %v5074 = vpack.c.b16 %v3402, %v3394
    %v5075 = vpack.c.b16 %v3411, %v3403
    %v5076 = vpack.c.b16 %v3412, %v3404
    %v5077 = vpack.c.b16 %v3413, %v3405
    %v5078 = vpack.c.b16 %v3414, %v3406
    %v5079 = vpack.c.b16 %v3415, %v3407
    %v5080 = vpack.c.b16 %v3416, %v3408
    %v5081 = vpack.c.b16 %v3417, %v3409
    %v5082 = vpack.c.b16 %v3418, %v3410
    %v5083 = vpack.c.b16 %v3427, %v3419
    %v5084 = vpack.c.b16 %v3428, %v3420
    %v5085 = vpack.c.b16 %v3429, %v3421
    %v5086 = vpack.c.b16 %v3430, %v3422
    %v5087 = vpack.c.b16 %v3431, %v3423
    %v5088 = vpack.c.b16 %v3432, %v3424
    %v5089 = vpack.c.b16 %v3433, %v3425
    %v5090 = vpack.c.b16 %v3434, %v3426
    %v5091 = vpack.c.b16 %v3443, %v3435
    %v5092 = vpack.c.b16 %v3444, %v3436
    %v5093 = vpack.c.b16 %v3445, %v3437
    %v5094 = vpack.c.b16 %v3446, %v3438
    %v5095 = vpack.c.b16 %v3447, %v3439
    %v5096 = vpack.c.b16 %v3448, %v3440
    %v5097 = vpack.c.b16 %v3449, %v3441
    %v5098 = vpack.c.b16 %v3450, %v3442
    %v5099 = vpack.c.b16 %v3459, %v3451
    %v5100 = vpack.c.b16 %v3460, %v3452
    %v5101 = vpack.c.b16 %v3461, %v3453
    %v5102 = vpack.c.b16 %v3462, %v3454
    %v5103 = vpack.c.b16 %v3463, %v3455
    %v5104 = vpack.c.b16 %v3464, %v3456
    %v5105 = vpack.c.b16 %v3465, %v3457
    %v5106 = vpack.c.b16 %v3466, %v3458
    %v5107 = vpack.c.b16 %v3475, %v3467
    %v5108 = vpack.c.b16 %v3476, %v3468
    %v5109 = vpack.c.b16 %v3477, %v3469
    %v5110 = vpack.c.b16 %v3478, %v3470
    %v5111 = vpack.c.b16 %v3479, %v3471
    %v5112 = vpack.c.b16 %v3480, %v3472
    %v5113 = vpack.c.b16 %v3481, %v3473
    %v5114 = vpack.c.b16 %v3482, %v3474
    %v5115 = vpack.c.b16 %v3491, %v3483
    %v5116 = vpack.c.b16 %v3492, %v3484
    %v5117 = vpack.c.b16 %v3493, %v3485
    %v5118 = vpack.c.b16 %v3494, %v3486
    %v5119 = vpack.c.b16 %v3495, %v3487
    %v5120 = vpack.c.b16 %v3496, %v3488
    %v5121 = vpack.c.b16 %v3497, %v3489
    %v5122 = vpack.c.b16 %v3498, %v3490
    %v5123 = vpack.c.b16 %v3507, %v3499
    %v5124 = vpack.c.b16 %v3508, %v3500
    %v5125 = vpack.c.b16 %v3509, %v3501
    %v5126 = vpack.c.b16 %v3510, %v3502
    %v5127 = vpack.c.b16 %v3511, %v3503
    %v5128 = vpack.c.b16 %v3512, %v3504
    %v5129 = vpack.c.b16 %v3513, %v3505
    %v5130 = vpack.c.b16 %v3514, %v3506
    %v5131 = vpack.c.b16 %v3523, %v3515
    %v5132 = vpack.c.b16 %v3524, %v3516
    %v5133 = vpack.c.b16 %v3525, %v3517
    %v5134 = vpack.c.b16 %v3526, %v3518
    %v5135 = vpack.c.b16 %v3527, %v3519
    %v5136 = vpack.c.b16 %v3528, %v3520
    %v5137 = vpack.c.b16 %v3529, %v3521
    %v5138 = vpack.c.b16 %v3530, %v3522
    %v5139 = vpack.c.b16 %v3539, %v3531
    %v5140 = vpack.c.b16 %v3540, %v3532
    %v5141 = vpack.c.b16 %v3541, %v3533
    %v5142 = vpack.c.b16 %v3542, %v3534
    %v5143 = vpack.c.b16 %v3543, %v3535
    %v5144 = vpack.c.b16 %v3544, %v3536
    %v5145 = vpack.c.b16 %v3545, %v3537
    %v5146 = vpack.c.b16 %v3546, %v3538
    %v5147 = vpack.c.b16 %v3555, %v3547
    %v5148 = vpack.c.b16 %v3556, %v3548
    %v5149 = vpack.c.b16 %v3557, %v3549
    %v5150 = vpack.c.b16 %v3558, %v3550
    %v5151 = vpack.c.b16 %v3559, %v3551
    %v5152 = vpack.c.b16 %v3560, %v3552
    %v5153 = vpack.c.b16 %v3561, %v3553
    %v5154 = vpack.c.b16 %v3562, %v3554
    %v5155 = vpack.c.b16 %v3571, %v3563
    %v5156 = vpack.c.b16 %v3572, %v3564
    %v5157 = vpack.c.b16 %v3573, %v3565
    %v5158 = vpack.c.b16 %v3574, %v3566
    %v5159 = vpack.c.b16 %v3575, %v3567
    %v5160 = vpack.c.b16 %v3576, %v3568
    %v5161 = vpack.c.b16 %v3577, %v3569
    %v5162 = vpack.c.b16 %v3578, %v3570
    %v5163 = vpack.c.b16 %v3587, %v3579
    %v5164 = vpack.c.b16 %v3588, %v3580
    %v5165 = vpack.c.b16 %v3589, %v3581
    %v5166 = vpack.c.b16 %v3590, %v3582
    %v5167 = vpack.c.b16 %v3591, %v3583
    %v5168 = vpack.c.b16 %v3592, %v3584
    %v5169 = vpack.c.b16 %v3593, %v3585
    %v5170 = vpack.c.b16 %v3594, %v3586
    %v5171 = vpack.c.b16 %v3603, %v3595
    %v5172 = vpack.c.b16 %v3604, %v3596
    %v5173 = vpack.c.b16 %v3605, %v3597
    %v5174 = vpack.c.b16 %v3606, %v3598
    %v5175 = vpack.c.b16 %v3607, %v3599
    %v5176 = vpack.c.b16 %v3608, %v3600
    %v5177 = vpack.c.b16 %v3609, %v3601
    %v5178 = vpack.c.b16 %v3610, %v3602
    %v5179 = vpack.c.b16 %v3619, %v3611
    %v5180 = vpack.c.b16 %v3620, %v3612
    %v5181 = vpack.c.b16 %v3621, %v3613
    %v5182 = vpack.c.b16 %v3622, %v3614
    %v5183 = vpack.c.b16 %v3623, %v3615
    %v5184 = vpack.c.b16 %v3624, %v3616
    %v5185 = vpack.c.b16 %v3625, %v3617
    %v5186 = vpack.c.b16 %v3626, %v3618
    %v5187 = vpack.c.b16 %v3635, %v3627
    %v5188 = vpack.c.b16 %v3636, %v3628
    %v5189 = vpack.c.b16 %v3637, %v3629
    %v5190 = vpack.c.b16 %v3638, %v3630
    %v5191 = vpack.c.b16 %v3639, %v3631
    %v5192 = vpack.c.b16 %v3640, %v3632
    %v5193 = vpack.c.b16 %v3641, %v3633
    %v5194 = vpack.c.b16 %v3642, %v3634
    %v5195 = vpack.c.b16 %v3651, %v3643
    %v5196 = vpack.c.b16 %v3652, %v3644
    %v5197 = vpack.c.b16 %v3653, %v3645
    %v5198 = vpack.c.b16 %v3654, %v3646
    %v5199 = vpack.c.b16 %v3655, %v3647
    %v5200 = vpack.c.b16 %v3656, %v3648
    %v5201 = vpack.c.b16 %v3657, %v3649
    %v5202 = vpack.c.b16 %v3658, %v3650
    %v5203 = vpack.c.b16 %v3667, %v3659
    %v5204 = vpack.c.b16 %v3668, %v3660
    %v5205 = vpack.c.b16 %v3669, %v3661
    %v5206 = vpack.c.b16 %v3670, %v3662
    %v5207 = vpack.c.b16 %v3671, %v3663
    %v5208 = vpack.c.b16 %v3672, %v3664
    %v5209 = vpack.c.b16 %v3673, %v3665
    %v5210 = vpack.c.b16 %v3674, %v3666
    %v5211 = vpack.c.b16 %v3683, %v3675
    %v5212 = vpack.c.b16 %v3684, %v3676
    %v5213 = vpack.c.b16 %v3685, %v3677
    %v5214 = vpack.c.b16 %v3686, %v3678
    %v5215 = vpack.c.b16 %v3687, %v3679
    %v5216 = vpack.c.b16 %v3688, %v3680
    %v5217 = vpack.c.b16 %v3689, %v3681
    %v5218 = vpack.c.b16 %v3690, %v3682
    %v5219 = vpack.c.b16 %v3699, %v3691
    %v5220 = vpack.c.b16 %v3700, %v3692
    %v5221 = vpack.c.b16 %v3701, %v3693
    %v5222 = vpack.c.b16 %v3702, %v3694
    %v5223 = vpack.c.b16 %v3703, %v3695
    %v5224 = vpack.c.b16 %v3704, %v3696
    %v5225 = vpack.c.b16 %v3705, %v3697
    %v5226 = vpack.c.b16 %v3706, %v3698
    %v5227 = vpack.c.b16 %v3715, %v3707
    %v5228 = vpack.c.b16 %v3716, %v3708
    %v5229 = vpack.c.b16 %v3717, %v3709
    %v5230 = vpack.c.b16 %v3718, %v3710
    %v5231 = vpack.c.b16 %v3719, %v3711
    %v5232 = vpack.c.b16 %v3720, %v3712
    %v5233 = vpack.c.b16 %v3721, %v3713
    %v5234 = vpack.c.b16 %v3722, %v3714
    %v5235 = vpack.c.b16 %v3731, %v3723
    %v5236 = vpack.c.b16 %v3732, %v3724
    %v5237 = vpack.c.b16 %v3733, %v3725
    %v5238 = vpack.c.b16 %v3734, %v3726
    %v5239 = vpack.c.b16 %v3735, %v3727
    %v5240 = vpack.c.b16 %v3736, %v3728
    %v5241 = vpack.c.b16 %v3737, %v3729
    %v5242 = vpack.c.b16 %v3738, %v3730
    %v5243 = vpack.c.b16 %v3747, %v3739
    %v5244 = vpack.c.b16 %v3748, %v3740
    %v5245 = vpack.c.b16 %v3749, %v3741
    %v5246 = vpack.c.b16 %v3750, %v3742
    %v5247 = vpack.c.b16 %v3751, %v3743
    %v5248 = vpack.c.b16 %v3752, %v3744
    %v5249 = vpack.c.b16 %v3753, %v3745
    %v5250 = vpack.c.b16 %v3754, %v3746
    %v5251 = vpack.c.b16 %v3763, %v3755
    %v5252 = vpack.c.b16 %v3764, %v3756
    %v5253 = vpack.c.b16 %v3765, %v3757
    %v5254 = vpack.c.b16 %v3766, %v3758
    %v5255 = vpack.c.b16 %v3767, %v3759
    %v5256 = vpack.c.b16 %v3768, %v3760
    %v5257 = vpack.c.b16 %v3769, %v3761
    %v5258 = vpack.c.b16 %v3770, %v3762
    %v5259 = vpack.c.b16 %v3779, %v3771
    %v5260 = vpack.c.b16 %v3780, %v3772
    %v5261 = vpack.c.b16 %v3781, %v3773
    %v5262 = vpack.c.b16 %v3782, %v3774
    %v5263 = vpack.c.b16 %v3783, %v3775
    %v5264 = vpack.c.b16 %v3784, %v3776
    %v5265 = vpack.c.b16 %v3785, %v3777
    %v5266 = vpack.c.b16 %v3786, %v3778
    %v5267 = vpack.c.b16 %v3795, %v3787
    %v5268 = vpack.c.b16 %v3796, %v3788
    %v5269 = vpack.c.b16 %v3797, %v3789
    %v5270 = vpack.c.b16 %v3798, %v3790
    %v5271 = vpack.c.b16 %v3799, %v3791
    %v5272 = vpack.c.b16 %v3800, %v3792
    %v5273 = vpack.c.b16 %v3801, %v3793
    %v5274 = vpack.c.b16 %v3802, %v3794
    %v5275 = vpack.c.b16 %v3811, %v3803
    %v5276 = vpack.c.b16 %v3812, %v3804
    %v5277 = vpack.c.b16 %v3813, %v3805
    %v5278 = vpack.c.b16 %v3814, %v3806
    %v5279 = vpack.c.b16 %v3815, %v3807
    %v5280 = vpack.c.b16 %v3816, %v3808
    %v5281 = vpack.c.b16 %v3817, %v3809
    %v5282 = vpack.c.b16 %v3818, %v3810
    %v5283 = vpack.c.b16 %v3827, %v3819
    %v5284 = vpack.c.b16 %v3828, %v3820
    %v5285 = vpack.c.b16 %v3829, %v3821
    %v5286 = vpack.c.b16 %v3830, %v3822
    %v5287 = vpack.c.b16 %v3831, %v3823
    %v5288 = vpack.c.b16 %v3832, %v3824
    %v5289 = vpack.c.b16 %v3833, %v3825
    %v5290 = vpack.c.b16 %v3834, %v3826
    %v5291 = vpack.c.b16 %v3843, %v3835
    %v5292 = vpack.c.b16 %v3844, %v3836
    %v5293 = vpack.c.b16 %v3845, %v3837
    %v5294 = vpack.c.b16 %v3846, %v3838
    %v5295 = vpack.c.b16 %v3847, %v3839
    %v5296 = vpack.c.b16 %v3848, %v3840
    %v5297 = vpack.c.b16 %v3849, %v3841
    %v5298 = vpack.c.b16 %v3850, %v3842
    %v5299 = vpack.c.b16 %v3859, %v3851
    %v5300 = vpack.c.b16 %v3860, %v3852
    %v5301 = vpack.c.b16 %v3861, %v3853
    %v5302 = vpack.c.b16 %v3862, %v3854
    %v5303 = vpack.c.b16 %v3863, %v3855
    %v5304 = vpack.c.b16 %v3864, %v3856
    %v5305 = vpack.c.b16 %v3865, %v3857
    %v5306 = vpack.c.b16 %v3866, %v3858
    %v5307 = vpack.c.b16 %v3875, %v3867
    %v5308 = vpack.c.b16 %v3876, %v3868
    %v5309 = vpack.c.b16 %v3877, %v3869
    %v5310 = vpack.c.b16 %v3878, %v3870
    %v5311 = vpack.c.b16 %v3879, %v3871
    %v5312 = vpack.c.b16 %v3880, %v3872
    %v5313 = vpack.c.b16 %v3881, %v3873
    %v5314 = vpack.c.b16 %v3882, %v3874
    %v5315 = vpack.c.b16 %v3891, %v3883
    %v5316 = vpack.c.b16 %v3892, %v3884
    %v5317 = vpack.c.b16 %v3893, %v3885
    %v5318 = vpack.c.b16 %v3894, %v3886
    %v5319 = vpack.c.b16 %v3895, %v3887
    %v5320 = vpack.c.b16 %v3896, %v3888
    %v5321 = vpack.c.b16 %v3897, %v3889
    %v5322 = vpack.c.b16 %v3898, %v3890
    %v5323 = vpack.c.b16 %v3907, %v3899
    %v5324 = vpack.c.b16 %v3908, %v3900
    %v5325 = vpack.c.b16 %v3909, %v3901
    %v5326 = vpack.c.b16 %v3910, %v3902
    %v5327 = vpack.c.b16 %v3911, %v3903
    %v5328 = vpack.c.b16 %v3912, %v3904
    %v5329 = vpack.c.b16 %v3913, %v3905
    %v5330 = vpack.c.b16 %v3914, %v3906
    %v5331 = vpack.c.b16 %v3923, %v3915
    %v5332 = vpack.c.b16 %v3924, %v3916
    %v5333 = vpack.c.b16 %v3925, %v3917
    %v5334 = vpack.c.b16 %v3926, %v3918
    %v5335 = vpack.c.b16 %v3927, %v3919
    %v5336 = vpack.c.b16 %v3928, %v3920
    %v5337 = vpack.c.b16 %v3929, %v3921
    %v5338 = vpack.c.b16 %v3930, %v3922
    %v5339 = vpack.c.b16 %v3939, %v3931
    %v5340 = vpack.c.b16 %v3940, %v3932
    %v5341 = vpack.c.b16 %v3941, %v3933
    %v5342 = vpack.c.b16 %v3942, %v3934
    %v5343 = vpack.c.b16 %v3943, %v3935
    %v5344 = vpack.c.b16 %v3944, %v3936
    %v5345 = vpack.c.b16 %v3945, %v3937
    %v5346 = vpack.c.b16 %v3946, %v3938
    %v5347 = vpack.c.b16 %v3955, %v3947
    %v5348 = vpack.c.b16 %v3956, %v3948
    %v5349 = vpack.c.b16 %v3957, %v3949
    %v5350 = vpack.c.b16 %v3958, %v3950
    %v5351 = vpack.c.b16 %v3959, %v3951
    %v5352 = vpack.c.b16 %v3960, %v3952
    %v5353 = vpack.c.b16 %v3961, %v3953
    %v5354 = vpack.c.b16 %v3962, %v3954
    %v5355 = vpack.c.b16 %v3971, %v3963
    %v5356 = vpack.c.b16 %v3972, %v3964
    %v5357 = vpack.c.b16 %v3973, %v3965
    %v5358 = vpack.c.b16 %v3974, %v3966
    %v5359 = vpack.c.b16 %v3975, %v3967
    %v5360 = vpack.c.b16 %v3976, %v3968
    %v5361 = vpack.c.b16 %v3977, %v3969
    %v5362 = vpack.c.b16 %v3978, %v3970
    %v5363 = vpack.c.b16 %v3987, %v3979
    %v5364 = vpack.c.b16 %v3988, %v3980
    %v5365 = vpack.c.b16 %v3989, %v3981
    %v5366 = vpack.c.b16 %v3990, %v3982
    %v5367 = vpack.c.b16 %v3991, %v3983
    %v5368 = vpack.c.b16 %v3992, %v3984
    %v5369 = vpack.c.b16 %v3993, %v3985
    %v5370 = vpack.c.b16 %v3994, %v3986
    %v5371 = vpack.c.b16 %v4003, %v3995
    %v5372 = vpack.c.b16 %v4004, %v3996
    %v5373 = vpack.c.b16 %v4005, %v3997
    %v5374 = vpack.c.b16 %v4006, %v3998
    %v5375 = vpack.c.b16 %v4007, %v3999
    %v5376 = vpack.c.b16 %v4008, %v4000
    %v5377 = vpack.c.b16 %v4009, %v4001
    %v5378 = vpack.c.b16 %v4010, %v4002
    %v5379 = vpack.c.b16 %v4019, %v4011
    %v5380 = vpack.c.b16 %v4020, %v4012
    %v5381 = vpack.c.b16 %v4021, %v4013
    %v5382 = vpack.c.b16 %v4022, %v4014
    %v5383 = vpack.c.b16 %v4023, %v4015
    %v5384 = vpack.c.b16 %v4024, %v4016
    %v5385 = vpack.c.b16 %v4025, %v4017
    %v5386 = vpack.c.b16 %v4026, %v4018
    %v5387 = vpack.c.b16 %v4035, %v4027
    %v5388 = vpack.c.b16 %v4036, %v4028
    %v5389 = vpack.c.b16 %v4037, %v4029
    %v5390 = vpack.c.b16 %v4038, %v4030
    %v5391 = vpack.c.b16 %v4039, %v4031
    %v5392 = vpack.c.b16 %v4040, %v4032
    %v5393 = vpack.c.b16 %v4041, %v4033
    %v5394 = vpack.c.b16 %v4042, %v4034
    %v5395 = vpack.c.b16 %v4051, %v4043
    %v5396 = vpack.c.b16 %v4052, %v4044
    %v5397 = vpack.c.b16 %v4053, %v4045
    %v5398 = vpack.c.b16 %v4054, %v4046
    %v5399 = vpack.c.b16 %v4055, %v4047
    %v5400 = vpack.c.b16 %v4056, %v4048
    %v5401 = vpack.c.b16 %v4057, %v4049
    %v5402 = vpack.c.b16 %v4058, %v4050
    %v5403 = vpack.c.b16 %v4067, %v4059
    %v5404 = vpack.c.b16 %v4068, %v4060
    %v5405 = vpack.c.b16 %v4069, %v4061
    %v5406 = vpack.c.b16 %v4070, %v4062
    %v5407 = vpack.c.b16 %v4071, %v4063
    %v5408 = vpack.c.b16 %v4072, %v4064
    %v5409 = vpack.c.b16 %v4073, %v4065
    %v5410 = vpack.c.b16 %v4074, %v4066
    %v5411 = vpack.c.b16 %v4083, %v4075
    %v5412 = vpack.c.b16 %v4084, %v4076
    %v5413 = vpack.c.b16 %v4085, %v4077
    %v5414 = vpack.c.b16 %v4086, %v4078
    %v5415 = vpack.c.b16 %v4087, %v4079
    %v5416 = vpack.c.b16 %v4088, %v4080
    %v5417 = vpack.c.b16 %v4089, %v4081
    %v5418 = vpack.c.b16 %v4090, %v4082
    %v5419 = vpack.c.b16 %v4099, %v4091
    %v5420 = vpack.c.b16 %v4100, %v4092
    %v5421 = vpack.c.b16 %v4101, %v4093
    %v5422 = vpack.c.b16 %v4102, %v4094
    %v5423 = vpack.c.b16 %v4103, %v4095
    %v5424 = vpack.c.b16 %v4104, %v4096
    %v5425 = vpack.c.b16 %v4105, %v4097
    %v5426 = vpack.c.b16 %v4106, %v4098
    %v5427 = vpack.c.b16 %v4115, %v4107
    %v5428 = vpack.c.b16 %v4116, %v4108
    %v5429 = vpack.c.b16 %v4117, %v4109
    %v5430 = vpack.c.b16 %v4118, %v4110
    %v5431 = vpack.c.b16 %v4119, %v4111
    %v5432 = vpack.c.b16 %v4120, %v4112
    %v5433 = vpack.c.b16 %v4121, %v4113
    %v5434 = vpack.c.b16 %v4122, %v4114
    %v5435 = vpack.c.b16 %v4131, %v4123
    %v5436 = vpack.c.b16 %v4132, %v4124
    %v5437 = vpack.c.b16 %v4133, %v4125
    %v5438 = vpack.c.b16 %v4134, %v4126
    %v5439 = vpack.c.b16 %v4135, %v4127
    %v5440 = vpack.c.b16 %v4136, %v4128
    %v5441 = vpack.c.b16 %v4137, %v4129
    %v5442 = vpack.c.b16 %v4138, %v4130
    %v5443 = vpack.c.b16 %v4147, %v4139
    %v5444 = vpack.c.b16 %v4148, %v4140
    %v5445 = vpack.c.b16 %v4149, %v4141
    %v5446 = vpack.c.b16 %v4150, %v4142
    %v5447 = vpack.c.b16 %v4151, %v4143
    %v5448 = vpack.c.b16 %v4152, %v4144
    %v5449 = vpack.c.b16 %v4153, %v4145
    %v5450 = vpack.c.b16 %v4154, %v4146
    %v5451 = vpack.c.b16 %v4163, %v4155
    %v5452 = vpack.c.b16 %v4164, %v4156
    %v5453 = vpack.c.b16 %v4165, %v4157
    %v5454 = vpack.c.b16 %v4166, %v4158
    %v5455 = vpack.c.b16 %v4167, %v4159
    %v5456 = vpack.c.b16 %v4168, %v4160
    %v5457 = vpack.c.b16 %v4169, %v4161
    %v5458 = vpack.c.b16 %v4170, %v4162
    %v5459 = vpack.c.b16 %v4179, %v4171
    %v5460 = vpack.c.b16 %v4180, %v4172
    %v5461 = vpack.c.b16 %v4181, %v4173
    %v5462 = vpack.c.b16 %v4182, %v4174
    %v5463 = vpack.c.b16 %v4183, %v4175
    %v5464 = vpack.c.b16 %v4184, %v4176
    %v5465 = vpack.c.b16 %v4185, %v4177
    %v5466 = vpack.c.b16 %v4186, %v4178
    %v5467 = vpack.c.b16 %v4195, %v4187
    %v5468 = vpack.c.b16 %v4196, %v4188
    %v5469 = vpack.c.b16 %v4197, %v4189
    %v5470 = vpack.c.b16 %v4198, %v4190
    %v5471 = vpack.c.b16 %v4199, %v4191
    %v5472 = vpack.c.b16 %v4200, %v4192
    %v5473 = vpack.c.b16 %v4201, %v4193
    %v5474 = vpack.c.b16 %v4202, %v4194
    %v5475 = vpack.c.b16 %v4211, %v4203
    %v5476 = vpack.c.b16 %v4212, %v4204
    %v5477 = vpack.c.b16 %v4213, %v4205
    %v5478 = vpack.c.b16 %v4214, %v4206
    %v5479 = vpack.c.b16 %v4215, %v4207
    %v5480 = vpack.c.b16 %v4216, %v4208
    %v5481 = vpack.c.b16 %v4217, %v4209
    %v5482 = vpack.c.b16 %v4218, %v4210
    %v5483 = vpack.c.b16 %v4227, %v4219
    %v5484 = vpack.c.b16 %v4228, %v4220
    %v5485 = vpack.c.b16 %v4229, %v4221
    %v5486 = vpack.c.b16 %v4230, %v4222
    %v5487 = vpack.c.b16 %v4231, %v4223
    %v5488 = vpack.c.b16 %v4232, %v4224
    %v5489 = vpack.c.b16 %v4233, %v4225
    %v5490 = vpack.c.b16 %v4234, %v4226
    %v5491 = vpack.c.b16 %v4243, %v4235
    %v5492 = vpack.c.b16 %v4244, %v4236
    %v5493 = vpack.c.b16 %v4245, %v4237
    %v5494 = vpack.c.b16 %v4246, %v4238
    %v5495 = vpack.c.b16 %v4247, %v4239
    %v5496 = vpack.c.b16 %v4248, %v4240
    %v5497 = vpack.c.b16 %v4249, %v4241
    %v5498 = vpack.c.b16 %v4250, %v4242
    %v5499 = vpack.c.b16 %v4259, %v4251
    %v5500 = vpack.c.b16 %v4260, %v4252
    %v5501 = vpack.c.b16 %v4261, %v4253
    %v5502 = vpack.c.b16 %v4262, %v4254
    %v5503 = vpack.c.b16 %v4263, %v4255
    %v5504 = vpack.c.b16 %v4264, %v4256
    %v5505 = vpack.c.b16 %v4265, %v4257
    %v5506 = vpack.c.b16 %v4266, %v4258
    %v5507 = vpack.c.b16 %v4275, %v4267
    %v5508 = vpack.c.b16 %v4276, %v4268
    %v5509 = vpack.c.b16 %v4277, %v4269
    %v5510 = vpack.c.b16 %v4278, %v4270
    %v5511 = vpack.c.b16 %v4279, %v4271
    %v5512 = vpack.c.b16 %v4280, %v4272
    %v5513 = vpack.c.b16 %v4281, %v4273
    %v5514 = vpack.c.b16 %v4282, %v4274
    %v5515 = vpack.c.b16 %v4291, %v4283
    %v5516 = vpack.c.b16 %v4292, %v4284
    %v5517 = vpack.c.b16 %v4293, %v4285
    %v5518 = vpack.c.b16 %v4294, %v4286
    %v5519 = vpack.c.b16 %v4295, %v4287
    %v5520 = vpack.c.b16 %v4296, %v4288
    %v5521 = vpack.c.b16 %v4297, %v4289
    %v5522 = vpack.c.b16 %v4298, %v4290
    %v5523 = vpack.c.b16 %v4307, %v4299
    %v5524 = vpack.c.b16 %v4308, %v4300
    %v5525 = vpack.c.b16 %v4309, %v4301
    %v5526 = vpack.c.b16 %v4310, %v4302
    %v5527 = vpack.c.b16 %v4311, %v4303
    %v5528 = vpack.c.b16 %v4312, %v4304
    %v5529 = vpack.c.b16 %v4313, %v4305
    %v5530 = vpack.c.b16 %v4314, %v4306
    %v5531 = vpack.c.b16 %v4323, %v4315
    %v5532 = vpack.c.b16 %v4324, %v4316
    %v5533 = vpack.c.b16 %v4325, %v4317
    %v5534 = vpack.c.b16 %v4326, %v4318
    %v5535 = vpack.c.b16 %v4327, %v4319
    %v5536 = vpack.c.b16 %v4328, %v4320
    %v5537 = vpack.c.b16 %v4329, %v4321
    %v5538 = vpack.c.b16 %v4330, %v4322
    %v5539 = vpack.c.b16 %v4339, %v4331
    %v5540 = vpack.c.b16 %v4340, %v4332
    %v5541 = vpack.c.b16 %v4341, %v4333
    %v5542 = vpack.c.b16 %v4342, %v4334
    %v5543 = vpack.c.b16 %v4343, %v4335
    %v5544 = vpack.c.b16 %v4344, %v4336
    %v5545 = vpack.c.b16 %v4345, %v4337
    %v5546 = vpack.c.b16 %v4346, %v4338
    %v5547 = vpack.c.b16 %v4355, %v4347
    %v5548 = vpack.c.b16 %v4356, %v4348
    %v5549 = vpack.c.b16 %v4357, %v4349
    %v5550 = vpack.c.b16 %v4358, %v4350
    %v5551 = vpack.c.b16 %v4359, %v4351
    %v5552 = vpack.c.b16 %v4360, %v4352
    %v5553 = vpack.c.b16 %v4361, %v4353
    %v5554 = vpack.c.b16 %v4362, %v4354
    %v5555 = vpack.c.b16 %v4371, %v4363
    %v5556 = vpack.c.b16 %v4372, %v4364
    %v5557 = vpack.c.b16 %v4373, %v4365
    %v5558 = vpack.c.b16 %v4374, %v4366
    %v5559 = vpack.c.b16 %v4375, %v4367
    %v5560 = vpack.c.b16 %v4376, %v4368
    %v5561 = vpack.c.b16 %v4377, %v4369
    %v5562 = vpack.c.b16 %v4378, %v4370
    %v5563 = vpack.c.b16 %v4387, %v4379
    %v5564 = vpack.c.b16 %v4388, %v4380
    %v5565 = vpack.c.b16 %v4389, %v4381
    %v5566 = vpack.c.b16 %v4390, %v4382
    %v5567 = vpack.c.b16 %v4391, %v4383
    %v5568 = vpack.c.b16 %v4392, %v4384
    %v5569 = vpack.c.b16 %v4393, %v4385
    %v5570 = vpack.c.b16 %v4394, %v4386
    %v5571 = vpack.c.b16 %v4403, %v4395
    %v5572 = vpack.c.b16 %v4404, %v4396
    %v5573 = vpack.c.b16 %v4405, %v4397
    %v5574 = vpack.c.b16 %v4406, %v4398
    %v5575 = vpack.c.b16 %v4407, %v4399
    %v5576 = vpack.c.b16 %v4408, %v4400
    %v5577 = vpack.c.b16 %v4409, %v4401
    %v5578 = vpack.c.b16 %v4410, %v4402
    %v5579 = vpack.c.b16 %v4419, %v4411
    %v5580 = vpack.c.b16 %v4420, %v4412
    %v5581 = vpack.c.b16 %v4421, %v4413
    %v5582 = vpack.c.b16 %v4422, %v4414
    %v5583 = vpack.c.b16 %v4423, %v4415
    %v5584 = vpack.c.b16 %v4424, %v4416
    %v5585 = vpack.c.b16 %v4425, %v4417
    %v5586 = vpack.c.b16 %v4426, %v4418
    %v5587 = vpack.c.b16 %v4435, %v4427
    %v5588 = vpack.c.b16 %v4436, %v4428
    %v5589 = vpack.c.b16 %v4437, %v4429
    %v5590 = vpack.c.b16 %v4438, %v4430
    %v5591 = vpack.c.b16 %v4439, %v4431
    %v5592 = vpack.c.b16 %v4440, %v4432
    %v5593 = vpack.c.b16 %v4441, %v4433
    %v5594 = vpack.c.b16 %v4442, %v4434
    %v5595 = vpack.c.b16 %v4451, %v4443
    %v5596 = vpack.c.b16 %v4452, %v4444
    %v5597 = vpack.c.b16 %v4453, %v4445
    %v5598 = vpack.c.b16 %v4454, %v4446
    %v5599 = vpack.c.b16 %v4455, %v4447
    %v5600 = vpack.c.b16 %v4456, %v4448
    %v5601 = vpack.c.b16 %v4457, %v4449
    %v5602 = vpack.c.b16 %v4458, %v4450
    %v5603 = vpack.c.b16 %v4467, %v4459
    %v5604 = vpack.c.b16 %v4468, %v4460
    %v5605 = vpack.c.b16 %v4469, %v4461
    %v5606 = vpack.c.b16 %v4470, %v4462
    %v5607 = vpack.c.b16 %v4471, %v4463
    %v5608 = vpack.c.b16 %v4472, %v4464
    %v5609 = vpack.c.b16 %v4473, %v4465
    %v5610 = vpack.c.b16 %v4474, %v4466
    %v5611 = vpack.c.b16 %v4483, %v4475
    %v5612 = vpack.c.b16 %v4484, %v4476
    %v5613 = vpack.c.b16 %v4485, %v4477
    %v5614 = vpack.c.b16 %v4486, %v4478
    %v5615 = vpack.c.b16 %v4487, %v4479
    %v5616 = vpack.c.b16 %v4488, %v4480
    %v5617 = vpack.c.b16 %v4489, %v4481
    %v5618 = vpack.c.b16 %v4490, %v4482
    %v5619 = vpack.c.b16 %v4499, %v4491
    %v5620 = vpack.c.b16 %v4500, %v4492
    %v5621 = vpack.c.b16 %v4501, %v4493
    %v5622 = vpack.c.b16 %v4502, %v4494
    %v5623 = vpack.c.b16 %v4503, %v4495
    %v5624 = vpack.c.b16 %v4504, %v4496
    %v5625 = vpack.c.b16 %v4505, %v4497
    %v5626 = vpack.c.b16 %v4506, %v4498
    %v5627 = vpack.c.b16 %v4515, %v4507
    %v5628 = vpack.c.b16 %v4516, %v4508
    %v5629 = vpack.c.b16 %v4517, %v4509
    %v5630 = vpack.c.b16 %v4518, %v4510
    %v5631 = vpack.c.b16 %v4519, %v4511
    %v5632 = vpack.c.b16 %v4520, %v4512
    %v5633 = vpack.c.b16 %v4521, %v4513
    %v5634 = vpack.c.b16 %v4522, %v4514
    %v5635 = vpack.c.b16 %v4531, %v4523
    %v5636 = vpack.c.b16 %v4532, %v4524
    %v5637 = vpack.c.b16 %v4533, %v4525
    %v5638 = vpack.c.b16 %v4534, %v4526
    %v5639 = vpack.c.b16 %v4535, %v4527
    %v5640 = vpack.c.b16 %v4536, %v4528
    %v5641 = vpack.c.b16 %v4537, %v4529
    %v5642 = vpack.c.b16 %v4538, %v4530
    %v5643 = vpack.c.b16 %v4547, %v4539
    %v5644 = vpack.c.b16 %v4548, %v4540
    %v5645 = vpack.c.b16 %v4549, %v4541
    %v5646 = vpack.c.b16 %v4550, %v4542
    %v5647 = vpack.c.b16 %v4551, %v4543
    %v5648 = vpack.c.b16 %v4552, %v4544
    %v5649 = vpack.c.b16 %v4553, %v4545
    %v5650 = vpack.c.b16 %v4554, %v4546
    %v5651 = vpack.c.b16 %v4563, %v4555
    %v5652 = vpack.c.b16 %v4564, %v4556
    %v5653 = vpack.c.b16 %v4565, %v4557
    %v5654 = vpack.c.b16 %v4566, %v4558
    %v5655 = vpack.c.b16 %v4567, %v4559
    %v5656 = vpack.c.b16 %v4568, %v4560
    %v5657 = vpack.c.b16 %v4569, %v4561
    %v5658 = vpack.c.b16 %v4570, %v4562
    %v5659 = vpack.c.b16 %v4579, %v4571
    %v5660 = vpack.c.b16 %v4580, %v4572
    %v5661 = vpack.c.b16 %v4581, %v4573
    %v5662 = vpack.c.b16 %v4582, %v4574
    %v5663 = vpack.c.b16 %v4583, %v4575
    %v5664 = vpack.c.b16 %v4584, %v4576
    %v5665 = vpack.c.b16 %v4585, %v4577
    %v5666 = vpack.c.b16 %v4586, %v4578
    %v5667 = vpack.c.b16 %v4595, %v4587
    %v5668 = vpack.c.b16 %v4596, %v4588
    %v5669 = vpack.c.b16 %v4597, %v4589
    %v5670 = vpack.c.b16 %v4598, %v4590
    %v5671 = vpack.c.b16 %v4599, %v4591
    %v5672 = vpack.c.b16 %v4600, %v4592
    %v5673 = vpack.c.b16 %v4601, %v4593
    %v5674 = vpack.c.b16 %v4602, %v4594
    %v5675 = vpack.c.b16 %v4611, %v4603
    %v5676 = vpack.c.b16 %v4612, %v4604
    %v5677 = vpack.c.b16 %v4613, %v4605
    %v5678 = vpack.c.b16 %v4614, %v4606
    %v5679 = vpack.c.b16 %v4615, %v4607
    %v5680 = vpack.c.b16 %v4616, %v4608
    %v5681 = vpack.c.b16 %v4617, %v4609
    %v5682 = vpack.c.b16 %v4618, %v4610
    %v5683 = vpack.c.b16 %v4627, %v4619
    %v5684 = vpack.c.b16 %v4628, %v4620
    %v5685 = vpack.c.b16 %v4629, %v4621
    %v5686 = vpack.c.b16 %v4630, %v4622
    %v5687 = vpack.c.b16 %v4631, %v4623
    %v5688 = vpack.c.b16 %v4632, %v4624
    %v5689 = vpack.c.b16 %v4633, %v4625
    %v5690 = vpack.c.b16 %v4634, %v4626
    %v5691 = vpack.c.b16 %v4643, %v4635
    %v5692 = vpack.c.b16 %v4644, %v4636
    %v5693 = vpack.c.b16 %v4645, %v4637
    %v5694 = vpack.c.b16 %v4646, %v4638
    %v5695 = vpack.c.b16 %v4647, %v4639
    %v5696 = vpack.c.b16 %v4648, %v4640
    %v5697 = vpack.c.b16 %v4649, %v4641
    %v5698 = vpack.c.b16 %v4650, %v4642
    %v5699 = vpack.c.b16 %v4659, %v4651
    %v5700 = vpack.c.b16 %v4660, %v4652
    %v5701 = vpack.c.b16 %v4661, %v4653
    %v5702 = vpack.c.b16 %v4662, %v4654
    %v5703 = vpack.c.b16 %v4663, %v4655
    %v5704 = vpack.c.b16 %v4664, %v4656
    %v5705 = vpack.c.b16 %v4665, %v4657
    %v5706 = vpack.c.b16 %v4666, %v4658
    %v5707 = vpack.c.b16 %v4675, %v4667
    %v5708 = vpack.c.b16 %v4676, %v4668
    %v5709 = vpack.c.b16 %v4677, %v4669
    %v5710 = vpack.c.b16 %v4678, %v4670
    %v5711 = vpack.c.b16 %v4679, %v4671
    %v5712 = vpack.c.b16 %v4680, %v4672
    %v5713 = vpack.c.b16 %v4681, %v4673
    %v5714 = vpack.c.b16 %v4682, %v4674
    %v5715 = vpack.c.b16 %v4691, %v4683
    %v5716 = vpack.c.b16 %v4692, %v4684
    %v5717 = vpack.c.b16 %v4693, %v4685
    %v5718 = vpack.c.b16 %v4694, %v4686
    %v5719 = vpack.c.b16 %v4695, %v4687
    %v5720 = vpack.c.b16 %v4696, %v4688
    %v5721 = vpack.c.b16 %v4697, %v4689
    %v5722 = vpack.c.b16 %v4698, %v4690
    %6747 = vmatprep.subr.bf16.mxu0 %v4700
    %6748 = vmatpush1.bf16.msra.mxu0 %v4699
    %6749 = vmatprep.subr.bf16.mxu0 %v4708
    %6750 = vmatpush1.bf16.msra.mxu0 %v4707
    %6751 = vmatprep.subr.bf16.mxu0 %v4716
    %6752 = vmatpush1.bf16.msra.mxu0 %v4715
    %6753 = vmatprep.subr.bf16.mxu0 %v4724
    %6754 = vmatpush1.bf16.msra.mxu0 %v4723
    %6755 = vmatprep.subr.bf16.mxu0 %v4732
    %6756 = vmatpush1.bf16.msra.mxu0 %v4731
    %6757 = vmatprep.subr.bf16.mxu0 %v4740
    %6758 = vmatpush1.bf16.msra.mxu0 %v4739
    %6759 = vmatprep.subr.bf16.mxu0 %v4748
    %6760 = vmatpush1.bf16.msra.mxu0 %v4747
    %6761 = vmatprep.subr.bf16.mxu0 %v4756
    %6762 = vmatpush1.bf16.msra.mxu0 %v4755
    %6763 = vmatprep.subr.bf16.mxu0 %v4764
    %6764 = vmatpush1.bf16.msra.mxu0 %v4763
    %6765 = vmatprep.subr.bf16.mxu0 %v4772
    %6766 = vmatpush1.bf16.msra.mxu0 %v4771
    %6767 = vmatprep.subr.bf16.mxu0 %v4780
    %6768 = vmatpush1.bf16.msra.mxu0 %v4779
    %6769 = vmatprep.subr.bf16.mxu0 %v4788
    %6770 = vmatpush1.bf16.msra.mxu0 %v4787
    %6771 = vmatprep.subr.bf16.mxu0 %v4796
    %6772 = vmatpush1.bf16.msra.mxu0 %v4795
    %6773 = vmatprep.subr.bf16.mxu0 %v4804
    %6774 = vmatpush1.bf16.msra.mxu0 %v4803
    %6775 = vmatprep.subr.bf16.mxu0 %v4812
    %6776 = vmatpush1.bf16.msra.mxu0 %v4811
    %6777 = vmatprep.subr.bf16.mxu0 %v4820
    %6778 = vmatpush1.bf16.msra.mxu0 %v4819
    %6779 = vmatprep.mubr.bf16.mxu0 %v1596
    %6780 = vmatmul.mubr.bf16.gmra.mrb[0].mxu0 %v1595
    %v6781 = vpop.f32.mrb[0].mxu0
    %v6782 = vadd.f32 %v1477, %v6781
    %v6783 = vpop.f32.mrb[0].mxu0
    %v6784 = vadd.f32 %v1481, %v6783
    %v6785 = vpop.f32.mrb[0].mxu0
    %v6786 = vpop.f32.mrb[0].mxu0
    %6787 = vdwg.mxu0
    %6788 = vmatprep.subr.bf16.mxu0 %v4828
    %6789 = vmatpush1.bf16.msra.mxu0 %v4827
    %6790 = vmatprep.subr.bf16.mxu0 %v4836
    %6791 = vmatpush1.bf16.msra.mxu0 %v4835
    %6792 = vmatprep.subr.bf16.mxu0 %v4844
    %6793 = vmatpush1.bf16.msra.mxu0 %v4843
    %6794 = vmatprep.subr.bf16.mxu0 %v4852
    %6795 = vmatpush1.bf16.msra.mxu0 %v4851
    %6796 = vmatprep.subr.bf16.mxu0 %v4860
    %6797 = vmatpush1.bf16.msra.mxu0 %v4859
    %6798 = vmatprep.subr.bf16.mxu0 %v4868
    %6799 = vmatpush1.bf16.msra.mxu0 %v4867
    %6800 = vmatprep.subr.bf16.mxu0 %v4876
    %6801 = vmatpush1.bf16.msra.mxu0 %v4875
    %6802 = vmatprep.subr.bf16.mxu0 %v4884
    %6803 = vmatpush1.bf16.msra.mxu0 %v4883
    %6804 = vmatprep.subr.bf16.mxu0 %v4892
    %6805 = vmatpush1.bf16.msra.mxu0 %v4891
    %6806 = vmatprep.subr.bf16.mxu0 %v4900
    %6807 = vmatpush1.bf16.msra.mxu0 %v4899
    %6808 = vmatprep.subr.bf16.mxu0 %v4908
    %6809 = vmatpush1.bf16.msra.mxu0 %v4907
    %6810 = vmatprep.subr.bf16.mxu0 %v4916
    %6811 = vmatpush1.bf16.msra.mxu0 %v4915
    %6812 = vmatprep.subr.bf16.mxu0 %v4924
    %6813 = vmatpush1.bf16.msra.mxu0 %v4923
    %6814 = vmatprep.subr.bf16.mxu0 %v4932
    %6815 = vmatpush1.bf16.msra.mxu0 %v4931
    %6816 = vmatprep.subr.bf16.mxu0 %v4940
    %6817 = vmatpush1.bf16.msra.mxu0 %v4939
    %6818 = vmatprep.subr.bf16.mxu0 %v4948
    %6819 = vmatpush1.bf16.msra.mxu0 %v4947
    %6820 = vmatprep.mubr.bf16.mxu0 %v1598
    %6821 = vmatmul.mubr.bf16.gmra.mrb[0].mxu0 %v1597
    %v6822 = vpop.f32.mrb[0].mxu0
    %v6823 = vadd.f32 %v6782, %v6822
    %v6824 = vpop.f32.mrb[0].mxu0
    %v6825 = vadd.f32 %v6784, %v6824
    %v6826 = vpop.f32.mrb[0].mxu0
    %v6827 = vpop.f32.mrb[0].mxu0
    %6828 = vdwg.mxu0
    %6829 = vmatprep.subr.bf16.mxu0 %v4956
    %6830 = vmatpush1.bf16.msra.mxu0 %v4955
    %6831 = vmatprep.subr.bf16.mxu0 %v4964
    %6832 = vmatpush1.bf16.msra.mxu0 %v4963
    %6833 = vmatprep.subr.bf16.mxu0 %v4972
    %6834 = vmatpush1.bf16.msra.mxu0 %v4971
    %6835 = vmatprep.subr.bf16.mxu0 %v4980
    %6836 = vmatpush1.bf16.msra.mxu0 %v4979
    %6837 = vmatprep.subr.bf16.mxu0 %v4988
    %6838 = vmatpush1.bf16.msra.mxu0 %v4987
    %6839 = vmatprep.subr.bf16.mxu0 %v4996
    %6840 = vmatpush1.bf16.msra.mxu0 %v4995
    %6841 = vmatprep.subr.bf16.mxu0 %v5004
    %6842 = vmatpush1.bf16.msra.mxu0 %v5003
    %6843 = vmatprep.subr.bf16.mxu0 %v5012
    %6844 = vmatpush1.bf16.msra.mxu0 %v5011
    %6845 = vmatprep.subr.bf16.mxu0 %v5020
    %6846 = vmatpush1.bf16.msra.mxu0 %v5019
    %6847 = vmatprep.subr.bf16.mxu0 %v5028
    %6848 = vmatpush1.bf16.msra.mxu0 %v5027
    %6849 = vmatprep.subr.bf16.mxu0 %v5036
    %6850 = vmatpush1.bf16.msra.mxu0 %v5035
    %6851 = vmatprep.subr.bf16.mxu0 %v5044
    %6852 = vmatpush1.bf16.msra.mxu0 %v5043
    %6853 = vmatprep.subr.bf16.mxu0 %v5052
    %6854 = vmatpush1.bf16.msra.mxu0 %v5051
    %6855 = vmatprep.subr.bf16.mxu0 %v5060
    %6856 = vmatpush1.bf16.msra.mxu0 %v5059
    %6857 = vmatprep.subr.bf16.mxu0 %v5068
    %6858 = vmatpush1.bf16.msra.mxu0 %v5067
    %6859 = vmatprep.subr.bf16.mxu0 %v5076
    %6860 = vmatpush1.bf16.msra.mxu0 %v5075
    %6861 = vmatprep.mubr.bf16.mxu0 %v1600
    %6862 = vmatmul.mubr.bf16.gmra.mrb[0].mxu0 %v1599
    %v6863 = vpop.f32.mrb[0].mxu0
    %v6864 = vadd.f32 %v6823, %v6863
    %v6865 = vpop.f32.mrb[0].mxu0
    %v6866 = vadd.f32 %v6825, %v6865
    %v6867 = vpop.f32.mrb[0].mxu0
    %v6868 = vpop.f32.mrb[0].mxu0
    %6869 = vdwg.mxu0
    %6870 = vmatprep.subr.bf16.mxu0 %v5084
    %6871 = vmatpush1.bf16.msra.mxu0 %v5083
    %6872 = vmatprep.subr.bf16.mxu0 %v5092
    %6873 = vmatpush1.bf16.msra.mxu0 %v5091
    %6874 = vmatprep.subr.bf16.mxu0 %v5100
    %6875 = vmatpush1.bf16.msra.mxu0 %v5099
    %6876 = vmatprep.subr.bf16.mxu0 %v5108
    %6877 = vmatpush1.bf16.msra.mxu0 %v5107
    %6878 = vmatprep.subr.bf16.mxu0 %v5116
    %6879 = vmatpush1.bf16.msra.mxu0 %v5115
    %6880 = vmatprep.subr.bf16.mxu0 %v5124
    %6881 = vmatpush1.bf16.msra.mxu0 %v5123
    %6882 = vmatprep.subr.bf16.mxu0 %v5132
    %6883 = vmatpush1.bf16.msra.mxu0 %v5131
    %6884 = vmatprep.subr.bf16.mxu0 %v5140
    %6885 = vmatpush1.bf16.msra.mxu0 %v5139
    %6886 = vmatprep.subr.bf16.mxu0 %v5148
    %6887 = vmatpush1.bf16.msra.mxu0 %v5147
    %6888 = vmatprep.subr.bf16.mxu0 %v5156
    %6889 = vmatpush1.bf16.msra.mxu0 %v5155
    %6890 = vmatprep.subr.bf16.mxu0 %v5164
    %6891 = vmatpush1.bf16.msra.mxu0 %v5163
    %6892 = vmatprep.subr.bf16.mxu0 %v5172
    %6893 = vmatpush1.bf16.msra.mxu0 %v5171
    %6894 = vmatprep.subr.bf16.mxu0 %v5180
    %6895 = vmatpush1.bf16.msra.mxu0 %v5179
    %6896 = vmatprep.subr.bf16.mxu0 %v5188
    %6897 = vmatpush1.bf16.msra.mxu0 %v5187
    %6898 = vmatprep.subr.bf16.mxu0 %v5196
    %6899 = vmatpush1.bf16.msra.mxu0 %v5195
    %6900 = vmatprep.subr.bf16.mxu0 %v5204
    %6901 = vmatpush1.bf16.msra.mxu0 %v5203
    %6902 = vmatprep.mubr.bf16.mxu0 %v1602
    %6903 = vmatmul.mubr.bf16.gmra.mrb[0].mxu0 %v1601
    %v6904 = vpop.f32.mrb[0].mxu0
    %v6905 = vadd.f32 %v6864, %v6904
    %v6906 = vpop.f32.mrb[0].mxu0
    %v6907 = vadd.f32 %v6866, %v6906
    %v6908 = vpop.f32.mrb[0].mxu0
    %v6909 = vpop.f32.mrb[0].mxu0
    %6910 = vdwg.mxu0
    %6911 = vmatprep.subr.bf16.mxu0 %v5212
    %6912 = vmatpush1.bf16.msra.mxu0 %v5211
    %6913 = vmatprep.subr.bf16.mxu0 %v5220
    %6914 = vmatpush1.bf16.msra.mxu0 %v5219
    %6915 = vmatprep.subr.bf16.mxu0 %v5228
    %6916 = vmatpush1.bf16.msra.mxu0 %v5227
    %6917 = vmatprep.subr.bf16.mxu0 %v5236
    %6918 = vmatpush1.bf16.msra.mxu0 %v5235
    %6919 = vmatprep.subr.bf16.mxu0 %v5244
    %6920 = vmatpush1.bf16.msra.mxu0 %v5243
    %6921 = vmatprep.subr.bf16.mxu0 %v5252
    %6922 = vmatpush1.bf16.msra.mxu0 %v5251
    %6923 = vmatprep.subr.bf16.mxu0 %v5260
    %6924 = vmatpush1.bf16.msra.mxu0 %v5259
    %6925 = vmatprep.subr.bf16.mxu0 %v5268
    %6926 = vmatpush1.bf16.msra.mxu0 %v5267
    %6927 = vmatprep.subr.bf16.mxu0 %v5276
    %6928 = vmatpush1.bf16.msra.mxu0 %v5275
    %6929 = vmatprep.subr.bf16.mxu0 %v5284
    %6930 = vmatpush1.bf16.msra.mxu0 %v5283
    %6931 = vmatprep.subr.bf16.mxu0 %v5292
    %6932 = vmatpush1.bf16.msra.mxu0 %v5291
    %6933 = vmatprep.subr.bf16.mxu0 %v5300
    %6934 = vmatpush1.bf16.msra.mxu0 %v5299
    %6935 = vmatprep.subr.bf16.mxu0 %v5308
    %6936 = vmatpush1.bf16.msra.mxu0 %v5307
    %6937 = vmatprep.subr.bf16.mxu0 %v5316
    %6938 = vmatpush1.bf16.msra.mxu0 %v5315
    %6939 = vmatprep.subr.bf16.mxu0 %v5324
    %6940 = vmatpush1.bf16.msra.mxu0 %v5323
    %6941 = vmatprep.subr.bf16.mxu0 %v5332
    %6942 = vmatpush1.bf16.msra.mxu0 %v5331
    %6943 = vmatprep.mubr.bf16.mxu0 %v1604
    %6944 = vmatmul.mubr.bf16.gmra.mrb[0].mxu0 %v1603
    %v6945 = vpop.f32.mrb[0].mxu0
    %v6946 = vadd.f32 %v6905, %v6945
    %v6947 = vpop.f32.mrb[0].mxu0
    %v6948 = vadd.f32 %v6907, %v6947
    %v6949 = vpop.f32.mrb[0].mxu0
    %v6950 = vpop.f32.mrb[0].mxu0
    %6951 = vdwg.mxu0
    %6952 = vmatprep.subr.bf16.mxu0 %v5340
    %6953 = vmatpush1.bf16.msra.mxu0 %v5339
    %6954 = vmatprep.subr.bf16.mxu0 %v5348
    %6955 = vmatpush1.bf16.msra.mxu0 %v5347
    %6956 = vmatprep.subr.bf16.mxu0 %v5356
    %6957 = vmatpush1.bf16.msra.mxu0 %v5355
    %6958 = vmatprep.subr.bf16.mxu0 %v5364
    %6959 = vmatpush1.bf16.msra.mxu0 %v5363
    %6960 = vmatprep.subr.bf16.mxu0 %v5372
    %6961 = vmatpush1.bf16.msra.mxu0 %v5371
    %6962 = vmatprep.subr.bf16.mxu0 %v5380
    %6963 = vmatpush1.bf16.msra.mxu0 %v5379
    %6964 = vmatprep.subr.bf16.mxu0 %v5388
    %6965 = vmatpush1.bf16.msra.mxu0 %v5387
    %6966 = vmatprep.subr.bf16.mxu0 %v5396
    %6967 = vmatpush1.bf16.msra.mxu0 %v5395
    %6968 = vmatprep.subr.bf16.mxu0 %v5404
    %6969 = vmatpush1.bf16.msra.mxu0 %v5403
    %6970 = vmatprep.subr.bf16.mxu0 %v5412
    %6971 = vmatpush1.bf16.msra.mxu0 %v5411
    %6972 = vmatprep.subr.bf16.mxu0 %v5420
    %6973 = vmatpush1.bf16.msra.mxu0 %v5419
    %6974 = vmatprep.subr.bf16.mxu0 %v5428
    %6975 = vmatpush1.bf16.msra.mxu0 %v5427
    %6976 = vmatprep.subr.bf16.mxu0 %v5436
    %6977 = vmatpush1.bf16.msra.mxu0 %v5435
    %6978 = vmatprep.subr.bf16.mxu0 %v5444
    %6979 = vmatpush1.bf16.msra.mxu0 %v5443
    %6980 = vmatprep.subr.bf16.mxu0 %v5452
    %6981 = vmatpush1.bf16.msra.mxu0 %v5451
    %6982 = vmatprep.subr.bf16.mxu0 %v5460
    %6983 = vmatpush1.bf16.msra.mxu0 %v5459
    %6984 = vmatprep.mubr.bf16.mxu0 %v1606
    %6985 = vmatmul.mubr.bf16.gmra.mrb[0].mxu0 %v1605
    %v6986 = vpop.f32.mrb[0].mxu0
    %v6987 = vadd.f32 %v6946, %v6986
    %v6988 = vpop.f32.mrb[0].mxu0
    %v6989 = vadd.f32 %v6948, %v6988
    %v6990 = vpop.f32.mrb[0].mxu0
    %v6991 = vpop.f32.mrb[0].mxu0
    %6992 = vdwg.mxu0
    %6993 = vmatprep.subr.bf16.mxu0 %v5468
    %6994 = vmatpush1.bf16.msra.mxu0 %v5467
    %6995 = vmatprep.subr.bf16.mxu0 %v5476
    %6996 = vmatpush1.bf16.msra.mxu0 %v5475
    %6997 = vmatprep.subr.bf16.mxu0 %v5484
    %6998 = vmatpush1.bf16.msra.mxu0 %v5483
    %6999 = vmatprep.subr.bf16.mxu0 %v5492
    %7000 = vmatpush1.bf16.msra.mxu0 %v5491
    %7001 = vmatprep.subr.bf16.mxu0 %v5500
    %7002 = vmatpush1.bf16.msra.mxu0 %v5499
    %7003 = vmatprep.subr.bf16.mxu0 %v5508
    %7004 = vmatpush1.bf16.msra.mxu0 %v5507
    %7005 = vmatprep.subr.bf16.mxu0 %v5516
    %7006 = vmatpush1.bf16.msra.mxu0 %v5515
    %7007 = vmatprep.subr.bf16.mxu0 %v5524
    %7008 = vmatpush1.bf16.msra.mxu0 %v5523
    %7009 = vmatprep.subr.bf16.mxu0 %v5532
    %7010 = vmatpush1.bf16.msra.mxu0 %v5531
    %7011 = vmatprep.subr.bf16.mxu0 %v5540
    %7012 = vmatpush1.bf16.msra.mxu0 %v5539
    %7013 = vmatprep.subr.bf16.mxu0 %v5548
    %7014 = vmatpush1.bf16.msra.mxu0 %v5547
    %7015 = vmatprep.subr.bf16.mxu0 %v5556
    %7016 = vmatpush1.bf16.msra.mxu0 %v5555
    %7017 = vmatprep.subr.bf16.mxu0 %v5564
    %7018 = vmatpush1.bf16.msra.mxu0 %v5563
    %7019 = vmatprep.subr.bf16.mxu0 %v5572
    %7020 = vmatpush1.bf16.msra.mxu0 %v5571
    %7021 = vmatprep.subr.bf16.mxu0 %v5580
    %7022 = vmatpush1.bf16.msra.mxu0 %v5579
    %7023 = vmatprep.subr.bf16.mxu0 %v5588
    %7024 = vmatpush1.bf16.msra.mxu0 %v5587
    %7025 = vmatprep.mubr.bf16.mxu0 %v1608
    %7026 = vmatmul.mubr.bf16.gmra.mrb[0].mxu0 %v1607
    %v7027 = vpop.f32.mrb[0].mxu0
    %v7028 = vadd.f32 %v6987, %v7027
    %v7029 = vpop.f32.mrb[0].mxu0
    %v7030 = vadd.f32 %v6989, %v7029
    %v7031 = vpop.f32.mrb[0].mxu0
    %v7032 = vpop.f32.mrb[0].mxu0
    %7033 = vdwg.mxu0
    %7034 = vmatprep.subr.bf16.mxu0 %v5596
    %7035 = vmatpush1.bf16.msra.mxu0 %v5595
    %7036 = vmatprep.subr.bf16.mxu0 %v5604
    %7037 = vmatpush1.bf16.msra.mxu0 %v5603
    %7038 = vmatprep.subr.bf16.mxu0 %v5612
    %7039 = vmatpush1.bf16.msra.mxu0 %v5611
    %7040 = vmatprep.subr.bf16.mxu0 %v5620
    %7041 = vmatpush1.bf16.msra.mxu0 %v5619
    %7042 = vmatprep.subr.bf16.mxu0 %v5628
    %7043 = vmatpush1.bf16.msra.mxu0 %v5627
    %7044 = vmatprep.subr.bf16.mxu0 %v5636
    %7045 = vmatpush1.bf16.msra.mxu0 %v5635
    %7046 = vmatprep.subr.bf16.mxu0 %v5644
    %7047 = vmatpush1.bf16.msra.mxu0 %v5643
    %7048 = vmatprep.subr.bf16.mxu0 %v5652
    %7049 = vmatpush1.bf16.msra.mxu0 %v5651
    %7050 = vmatprep.subr.bf16.mxu0 %v5660
    %7051 = vmatpush1.bf16.msra.mxu0 %v5659
    %7052 = vmatprep.subr.bf16.mxu0 %v5668
    %7053 = vmatpush1.bf16.msra.mxu0 %v5667
    %7054 = vmatprep.subr.bf16.mxu0 %v5676
    %7055 = vmatpush1.bf16.msra.mxu0 %v5675
    %7056 = vmatprep.subr.bf16.mxu0 %v5684
    %7057 = vmatpush1.bf16.msra.mxu0 %v5683
    %7058 = vmatprep.subr.bf16.mxu0 %v5692
    %7059 = vmatpush1.bf16.msra.mxu0 %v5691
    %7060 = vmatprep.subr.bf16.mxu0 %v5700
    %7061 = vmatpush1.bf16.msra.mxu0 %v5699
    %7062 = vmatprep.subr.bf16.mxu0 %v5708
    %7063 = vmatpush1.bf16.msra.mxu0 %v5707
    %7064 = vmatprep.subr.bf16.mxu0 %v5716
    %7065 = vmatpush1.bf16.msra.mxu0 %v5715
    %7066 = vmatprep.mubr.bf16.mxu0 %v1610
    %7067 = vmatmul.mubr.bf16.gmra.mrb[0].mxu0 %v1609
    %v7068 = vpop.f32.mrb[0].mxu0
    %v7069 = vadd.f32 %v7028, %v7068
    %v7070 = vpop.f32.mrb[0].mxu0
    %v7071 = vadd.f32 %v7030, %v7070
    %v7072 = vpop.f32.mrb[0].mxu0
    %v7073 = vpop.f32.mrb[0].mxu0
    %7074 = vdwg.mxu0
    %7075 = vmatprep.subr.bf16.mxu0 %v4702
    %7076 = vmatpush1.bf16.msra.mxu0 %v4701
    %7077 = vmatprep.subr.bf16.mxu0 %v4710
    %7078 = vmatpush1.bf16.msra.mxu0 %v4709
    %7079 = vmatprep.subr.bf16.mxu0 %v4718
    %7080 = vmatpush1.bf16.msra.mxu0 %v4717
    %7081 = vmatprep.subr.bf16.mxu0 %v4726
    %7082 = vmatpush1.bf16.msra.mxu0 %v4725
    %7083 = vmatprep.subr.bf16.mxu0 %v4734
    %7084 = vmatpush1.bf16.msra.mxu0 %v4733
    %7085 = vmatprep.subr.bf16.mxu0 %v4742
    %7086 = vmatpush1.bf16.msra.mxu0 %v4741
    %7087 = vmatprep.subr.bf16.mxu0 %v4750
    %7088 = vmatpush1.bf16.msra.mxu0 %v4749
    %7089 = vmatprep.subr.bf16.mxu0 %v4758
    %7090 = vmatpush1.bf16.msra.mxu0 %v4757
    %7091 = vmatprep.subr.bf16.mxu0 %v4766
    %7092 = vmatpush1.bf16.msra.mxu0 %v4765
    %7093 = vmatprep.subr.bf16.mxu0 %v4774
    %7094 = vmatpush1.bf16.msra.mxu0 %v4773
    %7095 = vmatprep.subr.bf16.mxu0 %v4782
    %7096 = vmatpush1.bf16.msra.mxu0 %v4781
    %7097 = vmatprep.subr.bf16.mxu0 %v4790
    %7098 = vmatpush1.bf16.msra.mxu0 %v4789
    %7099 = vmatprep.subr.bf16.mxu0 %v4798
    %7100 = vmatpush1.bf16.msra.mxu0 %v4797
    %7101 = vmatprep.subr.bf16.mxu0 %v4806
    %7102 = vmatpush1.bf16.msra.mxu0 %v4805
    %7103 = vmatprep.subr.bf16.mxu0 %v4814
    %7104 = vmatpush1.bf16.msra.mxu0 %v4813
    %7105 = vmatprep.subr.bf16.mxu0 %v4822
    %7106 = vmatpush1.bf16.msra.mxu0 %v4821
    %7107 = vmatprep.mubr.bf16.mxu0 %v1596
    %7108 = vmatmul.mubr.bf16.gmra.mrb[0].mxu0 %v1595
    %v7109 = vpop.f32.mrb[0].mxu0
    %v7110 = vadd.f32 %v1485, %v7109
    %v7111 = vpop.f32.mrb[0].mxu0
    %v7112 = vadd.f32 %v1489, %v7111
    %v7113 = vpop.f32.mrb[0].mxu0
    %v7114 = vpop.f32.mrb[0].mxu0
    %7115 = vdwg.mxu0
    %7116 = vmatprep.subr.bf16.mxu0 %v4830
    %7117 = vmatpush1.bf16.msra.mxu0 %v4829
    %7118 = vmatprep.subr.bf16.mxu0 %v4838
    %7119 = vmatpush1.bf16.msra.mxu0 %v4837
    %7120 = vmatprep.subr.bf16.mxu0 %v4846
    %7121 = vmatpush1.bf16.msra.mxu0 %v4845
    %7122 = vmatprep.subr.bf16.mxu0 %v4854
    %7123 = vmatpush1.bf16.msra.mxu0 %v4853
    %7124 = vmatprep.subr.bf16.mxu0 %v4862
    %7125 = vmatpush1.bf16.msra.mxu0 %v4861
    %7126 = vmatprep.subr.bf16.mxu0 %v4870
    %7127 = vmatpush1.bf16.msra.mxu0 %v4869
    %7128 = vmatprep.subr.bf16.mxu0 %v4878
    %7129 = vmatpush1.bf16.msra.mxu0 %v4877
    %7130 = vmatprep.subr.bf16.mxu0 %v4886
    %7131 = vmatpush1.bf16.msra.mxu0 %v4885
    %7132 = vmatprep.subr.bf16.mxu0 %v4894
    %7133 = vmatpush1.bf16.msra.mxu0 %v4893
    %7134 = vmatprep.subr.bf16.mxu0 %v4902
    %7135 = vmatpush1.bf16.msra.mxu0 %v4901
    %7136 = vmatprep.subr.bf16.mxu0 %v4910
    %7137 = vmatpush1.bf16.msra.mxu0 %v4909
    %7138 = vmatprep.subr.bf16.mxu0 %v4918
    %7139 = vmatpush1.bf16.msra.mxu0 %v4917
    %7140 = vmatprep.subr.bf16.mxu0 %v4926
    %7141 = vmatpush1.bf16.msra.mxu0 %v4925
    %7142 = vmatprep.subr.bf16.mxu0 %v4934
    %7143 = vmatpush1.bf16.msra.mxu0 %v4933
    %7144 = vmatprep.subr.bf16.mxu0 %v4942
    %7145 = vmatpush1.bf16.msra.mxu0 %v4941
    %7146 = vmatprep.subr.bf16.mxu0 %v4950
    %7147 = vmatpush1.bf16.msra.mxu0 %v4949
    %7148 = vmatprep.mubr.bf16.mxu0 %v1598
    %7149 = vmatmul.mubr.bf16.gmra.mrb[0].mxu0 %v1597
    %v7150 = vpop.f32.mrb[0].mxu0
    %v7151 = vadd.f32 %v7110, %v7150
    %v7152 = vpop.f32.mrb[0].mxu0
    %v7153 = vadd.f32 %v7112, %v7152
    %v7154 = vpop.f32.mrb[0].mxu0
    %v7155 = vpop.f32.mrb[0].mxu0
    %7156 = vdwg.mxu0
    %7157 = vmatprep.subr.bf16.mxu0 %v4958
    %7158 = vmatpush1.bf16.msra.mxu0 %v4957
    %7159 = vmatprep.subr.bf16.mxu0 %v4966
    %7160 = vmatpush1.bf16.msra.mxu0 %v4965
    %7161 = vmatprep.subr.bf16.mxu0 %v4974
    %7162 = vmatpush1.bf16.msra.mxu0 %v4973
    %7163 = vmatprep.subr.bf16.mxu0 %v4982
    %7164 = vmatpush1.bf16.msra.mxu0 %v4981
    %7165 = vmatprep.subr.bf16.mxu0 %v4990
    %7166 = vmatpush1.bf16.msra.mxu0 %v4989
    %7167 = vmatprep.subr.bf16.mxu0 %v4998
    %7168 = vmatpush1.bf16.msra.mxu0 %v4997
    %7169 = vmatprep.subr.bf16.mxu0 %v5006
    %7170 = vmatpush1.bf16.msra.mxu0 %v5005
    %7171 = vmatprep.subr.bf16.mxu0 %v5014
    %7172 = vmatpush1.bf16.msra.mxu0 %v5013
    %7173 = vmatprep.subr.bf16.mxu0 %v5022
    %7174 = vmatpush1.bf16.msra.mxu0 %v5021
    %7175 = vmatprep.subr.bf16.mxu0 %v5030
    %7176 = vmatpush1.bf16.msra.mxu0 %v5029
    %7177 = vmatprep.subr.bf16.mxu0 %v5038
    %7178 = vmatpush1.bf16.msra.mxu0 %v5037
    %7179 = vmatprep.subr.bf16.mxu0 %v5046
    %7180 = vmatpush1.bf16.msra.mxu0 %v5045
    %7181 = vmatprep.subr.bf16.mxu0 %v5054
    %7182 = vmatpush1.bf16.msra.mxu0 %v5053
    %7183 = vmatprep.subr.bf16.mxu0 %v5062
    %7184 = vmatpush1.bf16.msra.mxu0 %v5061
    %7185 = vmatprep.subr.bf16.mxu0 %v5070
    %7186 = vmatpush1.bf16.msra.mxu0 %v5069
    %7187 = vmatprep.subr.bf16.mxu0 %v5078
    %7188 = vmatpush1.bf16.msra.mxu0 %v5077
    %7189 = vmatprep.mubr.bf16.mxu0 %v1600
    %7190 = vmatmul.mubr.bf16.gmra.mrb[0].mxu0 %v1599
    %v7191 = vpop.f32.mrb[0].mxu0
    %v7192 = vadd.f32 %v7151, %v7191
    %v7193 = vpop.f32.mrb[0].mxu0
    %v7194 = vadd.f32 %v7153, %v7193
    %v7195 = vpop.f32.mrb[0].mxu0
    %v7196 = vpop.f32.mrb[0].mxu0
    %7197 = vdwg.mxu0
    %7198 = vmatprep.subr.bf16.mxu0 %v5086
    %7199 = vmatpush1.bf16.msra.mxu0 %v5085
    %7200 = vmatprep.subr.bf16.mxu0 %v5094
    %7201 = vmatpush1.bf16.msra.mxu0 %v5093
    %7202 = vmatprep.subr.bf16.mxu0 %v5102
    %7203 = vmatpush1.bf16.msra.mxu0 %v5101
    %7204 = vmatprep.subr.bf16.mxu0 %v5110
    %7205 = vmatpush1.bf16.msra.mxu0 %v5109
    %7206 = vmatprep.subr.bf16.mxu0 %v5118
    %7207 = vmatpush1.bf16.msra.mxu0 %v5117
    %7208 = vmatprep.subr.bf16.mxu0 %v5126
    %7209 = vmatpush1.bf16.msra.mxu0 %v5125
    %7210 = vmatprep.subr.bf16.mxu0 %v5134
    %7211 = vmatpush1.bf16.msra.mxu0 %v5133
    %7212 = vmatprep.subr.bf16.mxu0 %v5142
    %7213 = vmatpush1.bf16.msra.mxu0 %v5141
    %7214 = vmatprep.subr.bf16.mxu0 %v5150
    %7215 = vmatpush1.bf16.msra.mxu0 %v5149
    %7216 = vmatprep.subr.bf16.mxu0 %v5158
    %7217 = vmatpush1.bf16.msra.mxu0 %v5157
    %7218 = vmatprep.subr.bf16.mxu0 %v5166
    %7219 = vmatpush1.bf16.msra.mxu0 %v5165
    %7220 = vmatprep.subr.bf16.mxu0 %v5174
    %7221 = vmatpush1.bf16.msra.mxu0 %v5173
    %7222 = vmatprep.subr.bf16.mxu0 %v5182
    %7223 = vmatpush1.bf16.msra.mxu0 %v5181
    %7224 = vmatprep.subr.bf16.mxu0 %v5190
    %7225 = vmatpush1.bf16.msra.mxu0 %v5189
    %7226 = vmatprep.subr.bf16.mxu0 %v5198
    %7227 = vmatpush1.bf16.msra.mxu0 %v5197
    %7228 = vmatprep.subr.bf16.mxu0 %v5206
    %7229 = vmatpush1.bf16.msra.mxu0 %v5205
    %7230 = vmatprep.mubr.bf16.mxu0 %v1602
    %7231 = vmatmul.mubr.bf16.gmra.mrb[0].mxu0 %v1601
    %v7232 = vpop.f32.mrb[0].mxu0
    %v7233 = vadd.f32 %v7192, %v7232
    %v7234 = vpop.f32.mrb[0].mxu0
    %v7235 = vadd.f32 %v7194, %v7234
    %v7236 = vpop.f32.mrb[0].mxu0
    %v7237 = vpop.f32.mrb[0].mxu0
    %7238 = vdwg.mxu0
    %7239 = vmatprep.subr.bf16.mxu0 %v5214
    %7240 = vmatpush1.bf16.msra.mxu0 %v5213
    %7241 = vmatprep.subr.bf16.mxu0 %v5222
    %7242 = vmatpush1.bf16.msra.mxu0 %v5221
    %7243 = vmatprep.subr.bf16.mxu0 %v5230
    %7244 = vmatpush1.bf16.msra.mxu0 %v5229
    %7245 = vmatprep.subr.bf16.mxu0 %v5238
    %7246 = vmatpush1.bf16.msra.mxu0 %v5237
    %7247 = vmatprep.subr.bf16.mxu0 %v5246
    %7248 = vmatpush1.bf16.msra.mxu0 %v5245
    %7249 = vmatprep.subr.bf16.mxu0 %v5254
    %7250 = vmatpush1.bf16.msra.mxu0 %v5253
    %7251 = vmatprep.subr.bf16.mxu0 %v5262
    %7252 = vmatpush1.bf16.msra.mxu0 %v5261
    %7253 = vmatprep.subr.bf16.mxu0 %v5270
    %7254 = vmatpush1.bf16.msra.mxu0 %v5269
    %7255 = vmatprep.subr.bf16.mxu0 %v5278
    %7256 = vmatpush1.bf16.msra.mxu0 %v5277
    %7257 = vmatprep.subr.bf16.mxu0 %v5286
    %7258 = vmatpush1.bf16.msra.mxu0 %v5285
    %7259 = vmatprep.subr.bf16.mxu0 %v5294
    %7260 = vmatpush1.bf16.msra.mxu0 %v5293
    %7261 = vmatprep.subr.bf16.mxu0 %v5302
    %7262 = vmatpush1.bf16.msra.mxu0 %v5301
    %7263 = vmatprep.subr.bf16.mxu0 %v5310
    %7264 = vmatpush1.bf16.msra.mxu0 %v5309
    %7265 = vmatprep.subr.bf16.mxu0 %v5318
    %7266 = vmatpush1.bf16.msra.mxu0 %v5317
    %7267 = vmatprep.subr.bf16.mxu0 %v5326
    %7268 = vmatpush1.bf16.msra.mxu0 %v5325
    %7269 = vmatprep.subr.bf16.mxu0 %v5334
    %7270 = vmatpush1.bf16.msra.mxu0 %v5333
    %7271 = vmatprep.mubr.bf16.mxu0 %v1604
    %7272 = vmatmul.mubr.bf16.gmra.mrb[0].mxu0 %v1603
    %v7273 = vpop.f32.mrb[0].mxu0
    %v7274 = vadd.f32 %v7233, %v7273
    %v7275 = vpop.f32.mrb[0].mxu0
    %v7276 = vadd.f32 %v7235, %v7275
    %v7277 = vpop.f32.mrb[0].mxu0
    %v7278 = vpop.f32.mrb[0].mxu0
    %7279 = vdwg.mxu0
    %7280 = vmatprep.subr.bf16.mxu0 %v5342
    %7281 = vmatpush1.bf16.msra.mxu0 %v5341
    %7282 = vmatprep.subr.bf16.mxu0 %v5350
    %7283 = vmatpush1.bf16.msra.mxu0 %v5349
    %7284 = vmatprep.subr.bf16.mxu0 %v5358
    %7285 = vmatpush1.bf16.msra.mxu0 %v5357
    %7286 = vmatprep.subr.bf16.mxu0 %v5366
    %7287 = vmatpush1.bf16.msra.mxu0 %v5365
    %7288 = vmatprep.subr.bf16.mxu0 %v5374
    %7289 = vmatpush1.bf16.msra.mxu0 %v5373
    %7290 = vmatprep.subr.bf16.mxu0 %v5382
    %7291 = vmatpush1.bf16.msra.mxu0 %v5381
    %7292 = vmatprep.subr.bf16.mxu0 %v5390
    %7293 = vmatpush1.bf16.msra.mxu0 %v5389
    %7294 = vmatprep.subr.bf16.mxu0 %v5398
    %7295 = vmatpush1.bf16.msra.mxu0 %v5397
    %7296 = vmatprep.subr.bf16.mxu0 %v5406
    %7297 = vmatpush1.bf16.msra.mxu0 %v5405
    %7298 = vmatprep.subr.bf16.mxu0 %v5414
    %7299 = vmatpush1.bf16.msra.mxu0 %v5413
    %7300 = vmatprep.subr.bf16.mxu0 %v5422
    %7301 = vmatpush1.bf16.msra.mxu0 %v5421
    %7302 = vmatprep.subr.bf16.mxu0 %v5430
    %7303 = vmatpush1.bf16.msra.mxu0 %v5429
    %7304 = vmatprep.subr.bf16.mxu0 %v5438
    %7305 = vmatpush1.bf16.msra.mxu0 %v5437
    %7306 = vmatprep.subr.bf16.mxu0 %v5446
    %7307 = vmatpush1.bf16.msra.mxu0 %v5445
    %7308 = vmatprep.subr.bf16.mxu0 %v5454
    %7309 = vmatpush1.bf16.msra.mxu0 %v5453
    %7310 = vmatprep.subr.bf16.mxu0 %v5462
    %7311 = vmatpush1.bf16.msra.mxu0 %v5461
    %7312 = vmatprep.mubr.bf16.mxu0 %v1606
    %7313 = vmatmul.mubr.bf16.gmra.mrb[0].mxu0 %v1605
    %v7314 = vpop.f32.mrb[0].mxu0
    %v7315 = vadd.f32 %v7274, %v7314
    %v7316 = vpop.f32.mrb[0].mxu0
    %v7317 = vadd.f32 %v7276, %v7316
    %v7318 = vpop.f32.mrb[0].mxu0
    %v7319 = vpop.f32.mrb[0].mxu0
    %7320 = vdwg.mxu0
    %7321 = vmatprep.subr.bf16.mxu0 %v5470
    %7322 = vmatpush1.bf16.msra.mxu0 %v5469
    %7323 = vmatprep.subr.bf16.mxu0 %v5478
    %7324 = vmatpush1.bf16.msra.mxu0 %v5477
    %7325 = vmatprep.subr.bf16.mxu0 %v5486
    %7326 = vmatpush1.bf16.msra.mxu0 %v5485
    %7327 = vmatprep.subr.bf16.mxu0 %v5494
    %7328 = vmatpush1.bf16.msra.mxu0 %v5493
    %7329 = vmatprep.subr.bf16.mxu0 %v5502
    %7330 = vmatpush1.bf16.msra.mxu0 %v5501
    %7331 = vmatprep.subr.bf16.mxu0 %v5510
    %7332 = vmatpush1.bf16.msra.mxu0 %v5509
    %7333 = vmatprep.subr.bf16.mxu0 %v5518
    %7334 = vmatpush1.bf16.msra.mxu0 %v5517
    %7335 = vmatprep.subr.bf16.mxu0 %v5526
    %7336 = vmatpush1.bf16.msra.mxu0 %v5525
    %7337 = vmatprep.subr.bf16.mxu0 %v5534
    %7338 = vmatpush1.bf16.msra.mxu0 %v5533
    %7339 = vmatprep.subr.bf16.mxu0 %v5542
    %7340 = vmatpush1.bf16.msra.mxu0 %v5541
    %7341 = vmatprep.subr.bf16.mxu0 %v5550
    %7342 = vmatpush1.bf16.msra.mxu0 %v5549
    %7343 = vmatprep.subr.bf16.mxu0 %v5558
    %7344 = vmatpush1.bf16.msra.mxu0 %v5557
    %7345 = vmatprep.subr.bf16.mxu0 %v5566
    %7346 = vmatpush1.bf16.msra.mxu0 %v5565
    %7347 = vmatprep.subr.bf16.mxu0 %v5574
    %7348 = vmatpush1.bf16.msra.mxu0 %v5573
    %7349 = vmatprep.subr.bf16.mxu0 %v5582
    %7350 = vmatpush1.bf16.msra.mxu0 %v5581
    %7351 = vmatprep.subr.bf16.mxu0 %v5590
    %7352 = vmatpush1.bf16.msra.mxu0 %v5589
    %7353 = vmatprep.mubr.bf16.mxu0 %v1608
    %7354 = vmatmul.mubr.bf16.gmra.mrb[0].mxu0 %v1607
    %v7355 = vpop.f32.mrb[0].mxu0
    %v7356 = vadd.f32 %v7315, %v7355
    %v7357 = vpop.f32.mrb[0].mxu0
    %v7358 = vadd.f32 %v7317, %v7357
    %v7359 = vpop.f32.mrb[0].mxu0
    %v7360 = vpop.f32.mrb[0].mxu0
    %7361 = vdwg.mxu0
    %7362 = vmatprep.subr.bf16.mxu0 %v5598
    %7363 = vmatpush1.bf16.msra.mxu0 %v5597
    %7364 = vmatprep.subr.bf16.mxu0 %v5606
    %7365 = vmatpush1.bf16.msra.mxu0 %v5605
    %7366 = vmatprep.subr.bf16.mxu0 %v5614
    %7367 = vmatpush1.bf16.msra.mxu0 %v5613
    %7368 = vmatprep.subr.bf16.mxu0 %v5622
    %7369 = vmatpush1.bf16.msra.mxu0 %v5621
    %7370 = vmatprep.subr.bf16.mxu0 %v5630
    %7371 = vmatpush1.bf16.msra.mxu0 %v5629
    %7372 = vmatprep.subr.bf16.mxu0 %v5638
    %7373 = vmatpush1.bf16.msra.mxu0 %v5637
    %7374 = vmatprep.subr.bf16.mxu0 %v5646
    %7375 = vmatpush1.bf16.msra.mxu0 %v5645
    %7376 = vmatprep.subr.bf16.mxu0 %v5654
    %7377 = vmatpush1.bf16.msra.mxu0 %v5653
    %7378 = vmatprep.subr.bf16.mxu0 %v5662
    %7379 = vmatpush1.bf16.msra.mxu0 %v5661
    %7380 = vmatprep.subr.bf16.mxu0 %v5670
    %7381 = vmatpush1.bf16.msra.mxu0 %v5669
    %7382 = vmatprep.subr.bf16.mxu0 %v5678
    %7383 = vmatpush1.bf16.msra.mxu0 %v5677
    %7384 = vmatprep.subr.bf16.mxu0 %v5686
    %7385 = vmatpush1.bf16.msra.mxu0 %v5685
    %7386 = vmatprep.subr.bf16.mxu0 %v5694
    %7387 = vmatpush1.bf16.msra.mxu0 %v5693
    %7388 = vmatprep.subr.bf16.mxu0 %v5702
    %7389 = vmatpush1.bf16.msra.mxu0 %v5701
    %7390 = vmatprep.subr.bf16.mxu0 %v5710
    %7391 = vmatpush1.bf16.msra.mxu0 %v5709
    %7392 = vmatprep.subr.bf16.mxu0 %v5718
    %7393 = vmatpush1.bf16.msra.mxu0 %v5717
    %7394 = vmatprep.mubr.bf16.mxu0 %v1610
    %7395 = vmatmul.mubr.bf16.gmra.mrb[0].mxu0 %v1609
    %v7396 = vpop.f32.mrb[0].mxu0
    %v7397 = vadd.f32 %v7356, %v7396
    %v7398 = vpop.f32.mrb[0].mxu0
    %v7399 = vadd.f32 %v7358, %v7398
    %v7400 = vpop.f32.mrb[0].mxu0
    %v7401 = vpop.f32.mrb[0].mxu0
    %7402 = vdwg.mxu0
    %7403 = vmatprep.subr.bf16.mxu0 %v4704
    %7404 = vmatpush1.bf16.msra.mxu0 %v4703
    %7405 = vmatprep.subr.bf16.mxu0 %v4712
    %7406 = vmatpush1.bf16.msra.mxu0 %v4711
    %7407 = vmatprep.subr.bf16.mxu0 %v4720
    %7408 = vmatpush1.bf16.msra.mxu0 %v4719
    %7409 = vmatprep.subr.bf16.mxu0 %v4728
    %7410 = vmatpush1.bf16.msra.mxu0 %v4727
    %7411 = vmatprep.subr.bf16.mxu0 %v4736
    %7412 = vmatpush1.bf16.msra.mxu0 %v4735
    %7413 = vmatprep.subr.bf16.mxu0 %v4744
    %7414 = vmatpush1.bf16.msra.mxu0 %v4743
    %7415 = vmatprep.subr.bf16.mxu0 %v4752
    %7416 = vmatpush1.bf16.msra.mxu0 %v4751
    %7417 = vmatprep.subr.bf16.mxu0 %v4760
    %7418 = vmatpush1.bf16.msra.mxu0 %v4759
    %7419 = vmatprep.subr.bf16.mxu0 %v4768
    %7420 = vmatpush1.bf16.msra.mxu0 %v4767
    %7421 = vmatprep.subr.bf16.mxu0 %v4776
    %7422 = vmatpush1.bf16.msra.mxu0 %v4775
    %7423 = vmatprep.subr.bf16.mxu0 %v4784
    %7424 = vmatpush1.bf16.msra.mxu0 %v4783
    %7425 = vmatprep.subr.bf16.mxu0 %v4792
    %7426 = vmatpush1.bf16.msra.mxu0 %v4791
    %7427 = vmatprep.subr.bf16.mxu0 %v4800
    %7428 = vmatpush1.bf16.msra.mxu0 %v4799
    %7429 = vmatprep.subr.bf16.mxu0 %v4808
    %7430 = vmatpush1.bf16.msra.mxu0 %v4807
    %7431 = vmatprep.subr.bf16.mxu0 %v4816
    %7432 = vmatpush1.bf16.msra.mxu0 %v4815
    %7433 = vmatprep.subr.bf16.mxu0 %v4824
    %7434 = vmatpush1.bf16.msra.mxu0 %v4823
    %7435 = vmatprep.mubr.bf16.mxu0 %v1596
    %7436 = vmatmul.mubr.bf16.gmra.mrb[0].mxu0 %v1595
    %v7437 = vpop.f32.mrb[0].mxu0
    %v7438 = vadd.f32 %v1493, %v7437
    %v7439 = vpop.f32.mrb[0].mxu0
    %v7440 = vadd.f32 %v1497, %v7439
    %v7441 = vpop.f32.mrb[0].mxu0
    %v7442 = vpop.f32.mrb[0].mxu0
    %7443 = vdwg.mxu0
    %7444 = vmatprep.subr.bf16.mxu0 %v4832
    %7445 = vmatpush1.bf16.msra.mxu0 %v4831
    %7446 = vmatprep.subr.bf16.mxu0 %v4840
    %7447 = vmatpush1.bf16.msra.mxu0 %v4839
    %7448 = vmatprep.subr.bf16.mxu0 %v4848
    %7449 = vmatpush1.bf16.msra.mxu0 %v4847
    %7450 = vmatprep.subr.bf16.mxu0 %v4856
    %7451 = vmatpush1.bf16.msra.mxu0 %v4855
    %7452 = vmatprep.subr.bf16.mxu0 %v4864
    %7453 = vmatpush1.bf16.msra.mxu0 %v4863
    %7454 = vmatprep.subr.bf16.mxu0 %v4872
    %7455 = vmatpush1.bf16.msra.mxu0 %v4871
    %7456 = vmatprep.subr.bf16.mxu0 %v4880
    %7457 = vmatpush1.bf16.msra.mxu0 %v4879
    %7458 = vmatprep.subr.bf16.mxu0 %v4888
    %7459 = vmatpush1.bf16.msra.mxu0 %v4887
    %7460 = vmatprep.subr.bf16.mxu0 %v4896
    %7461 = vmatpush1.bf16.msra.mxu0 %v4895
    %7462 = vmatprep.subr.bf16.mxu0 %v4904
    %7463 = vmatpush1.bf16.msra.mxu0 %v4903
    %7464 = vmatprep.subr.bf16.mxu0 %v4912
    %7465 = vmatpush1.bf16.msra.mxu0 %v4911
    %7466 = vmatprep.subr.bf16.mxu0 %v4920
    %7467 = vmatpush1.bf16.msra.mxu0 %v4919
    %7468 = vmatprep.subr.bf16.mxu0 %v4928
    %7469 = vmatpush1.bf16.msra.mxu0 %v4927
    %7470 = vmatprep.subr.bf16.mxu0 %v4936
    %7471 = vmatpush1.bf16.msra.mxu0 %v4935
    %7472 = vmatprep.subr.bf16.mxu0 %v4944
    %7473 = vmatpush1.bf16.msra.mxu0 %v4943
    %7474 = vmatprep.subr.bf16.mxu0 %v4952
    %7475 = vmatpush1.bf16.msra.mxu0 %v4951
    %7476 = vmatprep.mubr.bf16.mxu0 %v1598
    %7477 = vmatmul.mubr.bf16.gmra.mrb[0].mxu0 %v1597
    %v7478 = vpop.f32.mrb[0].mxu0
    %v7479 = vadd.f32 %v7438, %v7478
    %v7480 = vpop.f32.mrb[0].mxu0
    %v7481 = vadd.f32 %v7440, %v7480
    %v7482 = vpop.f32.mrb[0].mxu0
    %v7483 = vpop.f32.mrb[0].mxu0
    %7484 = vdwg.mxu0
    %7485 = vmatprep.subr.bf16.mxu0 %v4960
    %7486 = vmatpush1.bf16.msra.mxu0 %v4959
    %7487 = vmatprep.subr.bf16.mxu0 %v4968
    %7488 = vmatpush1.bf16.msra.mxu0 %v4967
    %7489 = vmatprep.subr.bf16.mxu0 %v4976
    %7490 = vmatpush1.bf16.msra.mxu0 %v4975
    %7491 = vmatprep.subr.bf16.mxu0 %v4984
    %7492 = vmatpush1.bf16.msra.mxu0 %v4983
    %7493 = vmatprep.subr.bf16.mxu0 %v4992
    %7494 = vmatpush1.bf16.msra.mxu0 %v4991
    %7495 = vmatprep.subr.bf16.mxu0 %v5000
    %7496 = vmatpush1.bf16.msra.mxu0 %v4999
    %7497 = vmatprep.subr.bf16.mxu0 %v5008
    %7498 = vmatpush1.bf16.msra.mxu0 %v5007
    %7499 = vmatprep.subr.bf16.mxu0 %v5016
    %7500 = vmatpush1.bf16.msra.mxu0 %v5015
    %7501 = vmatprep.subr.bf16.mxu0 %v5024
    %7502 = vmatpush1.bf16.msra.mxu0 %v5023
    %7503 = vmatprep.subr.bf16.mxu0 %v5032
    %7504 = vmatpush1.bf16.msra.mxu0 %v5031
    %7505 = vmatprep.subr.bf16.mxu0 %v5040
    %7506 = vmatpush1.bf16.msra.mxu0 %v5039
    %7507 = vmatprep.subr.bf16.mxu0 %v5048
    %7508 = vmatpush1.bf16.msra.mxu0 %v5047
    %7509 = vmatprep.subr.bf16.mxu0 %v5056
    %7510 = vmatpush1.bf16.msra.mxu0 %v5055
    %7511 = vmatprep.subr.bf16.mxu0 %v5064
    %7512 = vmatpush1.bf16.msra.mxu0 %v5063
    %7513 = vmatprep.subr.bf16.mxu0 %v5072
    %7514 = vmatpush1.bf16.msra.mxu0 %v5071
    %7515 = vmatprep.subr.bf16.mxu0 %v5080
    %7516 = vmatpush1.bf16.msra.mxu0 %v5079
    %7517 = vmatprep.mubr.bf16.mxu0 %v1600
    %7518 = vmatmul.mubr.bf16.gmra.mrb[0].mxu0 %v1599
    %v7519 = vpop.f32.mrb[0].mxu0
    %v7520 = vadd.f32 %v7479, %v7519
    %v7521 = vpop.f32.mrb[0].mxu0
    %v7522 = vadd.f32 %v7481, %v7521
    %v7523 = vpop.f32.mrb[0].mxu0
    %v7524 = vpop.f32.mrb[0].mxu0
    %7525 = vdwg.mxu0
    %7526 = vmatprep.subr.bf16.mxu0 %v5088
    %7527 = vmatpush1.bf16.msra.mxu0 %v5087
    %7528 = vmatprep.subr.bf16.mxu0 %v5096
    %7529 = vmatpush1.bf16.msra.mxu0 %v5095
    %7530 = vmatprep.subr.bf16.mxu0 %v5104
    %7531 = vmatpush1.bf16.msra.mxu0 %v5103
    %7532 = vmatprep.subr.bf16.mxu0 %v5112
    %7533 = vmatpush1.bf16.msra.mxu0 %v5111
    %7534 = vmatprep.subr.bf16.mxu0 %v5120
    %7535 = vmatpush1.bf16.msra.mxu0 %v5119
    %7536 = vmatprep.subr.bf16.mxu0 %v5128
    %7537 = vmatpush1.bf16.msra.mxu0 %v5127
    %7538 = vmatprep.subr.bf16.mxu0 %v5136
    %7539 = vmatpush1.bf16.msra.mxu0 %v5135
    %7540 = vmatprep.subr.bf16.mxu0 %v5144
    %7541 = vmatpush1.bf16.msra.mxu0 %v5143
    %7542 = vmatprep.subr.bf16.mxu0 %v5152
    %7543 = vmatpush1.bf16.msra.mxu0 %v5151
    %7544 = vmatprep.subr.bf16.mxu0 %v5160
    %7545 = vmatpush1.bf16.msra.mxu0 %v5159
    %7546 = vmatprep.subr.bf16.mxu0 %v5168
    %7547 = vmatpush1.bf16.msra.mxu0 %v5167
    %7548 = vmatprep.subr.bf16.mxu0 %v5176
    %7549 = vmatpush1.bf16.msra.mxu0 %v5175
    %7550 = vmatprep.subr.bf16.mxu0 %v5184
    %7551 = vmatpush1.bf16.msra.mxu0 %v5183
    %7552 = vmatprep.subr.bf16.mxu0 %v5192
    %7553 = vmatpush1.bf16.msra.mxu0 %v5191
    %7554 = vmatprep.subr.bf16.mxu0 %v5200
    %7555 = vmatpush1.bf16.msra.mxu0 %v5199
    %7556 = vmatprep.subr.bf16.mxu0 %v5208
    %7557 = vmatpush1.bf16.msra.mxu0 %v5207
    %7558 = vmatprep.mubr.bf16.mxu0 %v1602
    %7559 = vmatmul.mubr.bf16.gmra.mrb[0].mxu0 %v1601
    %v7560 = vpop.f32.mrb[0].mxu0
    %v7561 = vadd.f32 %v7520, %v7560
    %v7562 = vpop.f32.mrb[0].mxu0
    %v7563 = vadd.f32 %v7522, %v7562
    %v7564 = vpop.f32.mrb[0].mxu0
    %v7565 = vpop.f32.mrb[0].mxu0
    %7566 = vdwg.mxu0
    %7567 = vmatprep.subr.bf16.mxu0 %v5216
    %7568 = vmatpush1.bf16.msra.mxu0 %v5215
    %7569 = vmatprep.subr.bf16.mxu0 %v5224
    %7570 = vmatpush1.bf16.msra.mxu0 %v5223
    %7571 = vmatprep.subr.bf16.mxu0 %v5232
    %7572 = vmatpush1.bf16.msra.mxu0 %v5231
    %7573 = vmatprep.subr.bf16.mxu0 %v5240
    %7574 = vmatpush1.bf16.msra.mxu0 %v5239
    %7575 = vmatprep.subr.bf16.mxu0 %v5248
    %7576 = vmatpush1.bf16.msra.mxu0 %v5247
    %7577 = vmatprep.subr.bf16.mxu0 %v5256
    %7578 = vmatpush1.bf16.msra.mxu0 %v5255
    %7579 = vmatprep.subr.bf16.mxu0 %v5264
    %7580 = vmatpush1.bf16.msra.mxu0 %v5263
    %7581 = vmatprep.subr.bf16.mxu0 %v5272
    %7582 = vmatpush1.bf16.msra.mxu0 %v5271
    %7583 = vmatprep.subr.bf16.mxu0 %v5280
    %7584 = vmatpush1.bf16.msra.mxu0 %v5279
    %7585 = vmatprep.subr.bf16.mxu0 %v5288
    %7586 = vmatpush1.bf16.msra.mxu0 %v5287
    %7587 = vmatprep.subr.bf16.mxu0 %v5296
    %7588 = vmatpush1.bf16.msra.mxu0 %v5295
    %7589 = vmatprep.subr.bf16.mxu0 %v5304
    %7590 = vmatpush1.bf16.msra.mxu0 %v5303
    %7591 = vmatprep.subr.bf16.mxu0 %v5312
    %7592 = vmatpush1.bf16.msra.mxu0 %v5311
    %7593 = vmatprep.subr.bf16.mxu0 %v5320
    %7594 = vmatpush1.bf16.msra.mxu0 %v5319
    %7595 = vmatprep.subr.bf16.mxu0 %v5328
    %7596 = vmatpush1.bf16.msra.mxu0 %v5327
    %7597 = vmatprep.subr.bf16.mxu0 %v5336
    %7598 = vmatpush1.bf16.msra.mxu0 %v5335
    %7599 = vmatprep.mubr.bf16.mxu0 %v1604
    %7600 = vmatmul.mubr.bf16.gmra.mrb[0].mxu0 %v1603
    %v7601 = vpop.f32.mrb[0].mxu0
    %v7602 = vadd.f32 %v7561, %v7601
    %v7603 = vpop.f32.mrb[0].mxu0
    %v7604 = vadd.f32 %v7563, %v7603
    %v7605 = vpop.f32.mrb[0].mxu0
    %v7606 = vpop.f32.mrb[0].mxu0
    %7607 = vdwg.mxu0
    %7608 = vmatprep.subr.bf16.mxu0 %v5344
    %7609 = vmatpush1.bf16.msra.mxu0 %v5343
    %7610 = vmatprep.subr.bf16.mxu0 %v5352
    %7611 = vmatpush1.bf16.msra.mxu0 %v5351
    %7612 = vmatprep.subr.bf16.mxu0 %v5360
    %7613 = vmatpush1.bf16.msra.mxu0 %v5359
    %7614 = vmatprep.subr.bf16.mxu0 %v5368
    %7615 = vmatpush1.bf16.msra.mxu0 %v5367
    %7616 = vmatprep.subr.bf16.mxu0 %v5376
    %7617 = vmatpush1.bf16.msra.mxu0 %v5375
    %7618 = vmatprep.subr.bf16.mxu0 %v5384
    %7619 = vmatpush1.bf16.msra.mxu0 %v5383
    %7620 = vmatprep.subr.bf16.mxu0 %v5392
    %7621 = vmatpush1.bf16.msra.mxu0 %v5391
    %7622 = vmatprep.subr.bf16.mxu0 %v5400
    %7623 = vmatpush1.bf16.msra.mxu0 %v5399
    %7624 = vmatprep.subr.bf16.mxu0 %v5408
    %7625 = vmatpush1.bf16.msra.mxu0 %v5407
    %7626 = vmatprep.subr.bf16.mxu0 %v5416
    %7627 = vmatpush1.bf16.msra.mxu0 %v5415
    %7628 = vmatprep.subr.bf16.mxu0 %v5424
    %7629 = vmatpush1.bf16.msra.mxu0 %v5423
    %7630 = vmatprep.subr.bf16.mxu0 %v5432
    %7631 = vmatpush1.bf16.msra.mxu0 %v5431
    %7632 = vmatprep.subr.bf16.mxu0 %v5440
    %7633 = vmatpush1.bf16.msra.mxu0 %v5439
    %7634 = vmatprep.subr.bf16.mxu0 %v5448
    %7635 = vmatpush1.bf16.msra.mxu0 %v5447
    %7636 = vmatprep.subr.bf16.mxu0 %v5456
    %7637 = vmatpush1.bf16.msra.mxu0 %v5455
    %7638 = vmatprep.subr.bf16.mxu0 %v5464
    %7639 = vmatpush1.bf16.msra.mxu0 %v5463
    %7640 = vmatprep.mubr.bf16.mxu0 %v1606
    %7641 = vmatmul.mubr.bf16.gmra.mrb[0].mxu0 %v1605
    %v7642 = vpop.f32.mrb[0].mxu0
    %v7643 = vadd.f32 %v7602, %v7642
    %v7644 = vpop.f32.mrb[0].mxu0
    %v7645 = vadd.f32 %v7604, %v7644
    %v7646 = vpop.f32.mrb[0].mxu0
    %v7647 = vpop.f32.mrb[0].mxu0
    %7648 = vdwg.mxu0
    %7649 = vmatprep.subr.bf16.mxu0 %v5472
    %7650 = vmatpush1.bf16.msra.mxu0 %v5471
    %7651 = vmatprep.subr.bf16.mxu0 %v5480
    %7652 = vmatpush1.bf16.msra.mxu0 %v5479
    %7653 = vmatprep.subr.bf16.mxu0 %v5488
    %7654 = vmatpush1.bf16.msra.mxu0 %v5487
    %7655 = vmatprep.subr.bf16.mxu0 %v5496
    %7656 = vmatpush1.bf16.msra.mxu0 %v5495
    %7657 = vmatprep.subr.bf16.mxu0 %v5504
    %7658 = vmatpush1.bf16.msra.mxu0 %v5503
    %7659 = vmatprep.subr.bf16.mxu0 %v5512
    %7660 = vmatpush1.bf16.msra.mxu0 %v5511
    %7661 = vmatprep.subr.bf16.mxu0 %v5520
    %7662 = vmatpush1.bf16.msra.mxu0 %v5519
    %7663 = vmatprep.subr.bf16.mxu0 %v5528
    %7664 = vmatpush1.bf16.msra.mxu0 %v5527
    %7665 = vmatprep.subr.bf16.mxu0 %v5536
    %7666 = vmatpush1.bf16.msra.mxu0 %v5535
    %7667 = vmatprep.subr.bf16.mxu0 %v5544
    %7668 = vmatpush1.bf16.msra.mxu0 %v5543
    %7669 = vmatprep.subr.bf16.mxu0 %v5552
    %7670 = vmatpush1.bf16.msra.mxu0 %v5551
    %7671 = vmatprep.subr.bf16.mxu0 %v5560
    %7672 = vmatpush1.bf16.msra.mxu0 %v5559
    %7673 = vmatprep.subr.bf16.mxu0 %v5568
    %7674 = vmatpush1.bf16.msra.mxu0 %v5567
    %7675 = vmatprep.subr.bf16.mxu0 %v5576
    %7676 = vmatpush1.bf16.msra.mxu0 %v5575
    %7677 = vmatprep.subr.bf16.mxu0 %v5584
    %7678 = vmatpush1.bf16.msra.mxu0 %v5583
    %7679 = vmatprep.subr.bf16.mxu0 %v5592
    %7680 = vmatpush1.bf16.msra.mxu0 %v5591
    %7681 = vmatprep.mubr.bf16.mxu0 %v1608
    %7682 = vmatmul.mubr.bf16.gmra.mrb[0].mxu0 %v1607
    %v7683 = vpop.f32.mrb[0].mxu0
    %v7684 = vadd.f32 %v7643, %v7683
    %v7685 = vpop.f32.mrb[0].mxu0
    %v7686 = vadd.f32 %v7645, %v7685
    %v7687 = vpop.f32.mrb[0].mxu0
    %v7688 = vpop.f32.mrb[0].mxu0
    %7689 = vdwg.mxu0
    %7690 = vmatprep.subr.bf16.mxu0 %v5600
    %7691 = vmatpush1.bf16.msra.mxu0 %v5599
    %7692 = vmatprep.subr.bf16.mxu0 %v5608
    %7693 = vmatpush1.bf16.msra.mxu0 %v5607
    %7694 = vmatprep.subr.bf16.mxu0 %v5616
    %7695 = vmatpush1.bf16.msra.mxu0 %v5615
    %7696 = vmatprep.subr.bf16.mxu0 %v5624
    %7697 = vmatpush1.bf16.msra.mxu0 %v5623
    %7698 = vmatprep.subr.bf16.mxu0 %v5632
    %7699 = vmatpush1.bf16.msra.mxu0 %v5631
    %7700 = vmatprep.subr.bf16.mxu0 %v5640
    %7701 = vmatpush1.bf16.msra.mxu0 %v5639
    %7702 = vmatprep.subr.bf16.mxu0 %v5648
    %7703 = vmatpush1.bf16.msra.mxu0 %v5647
    %7704 = vmatprep.subr.bf16.mxu0 %v5656
    %7705 = vmatpush1.bf16.msra.mxu0 %v5655
    %7706 = vmatprep.subr.bf16.mxu0 %v5664
    %7707 = vmatpush1.bf16.msra.mxu0 %v5663
    %7708 = vmatprep.subr.bf16.mxu0 %v5672
    %7709 = vmatpush1.bf16.msra.mxu0 %v5671
    %7710 = vmatprep.subr.bf16.mxu0 %v5680
    %7711 = vmatpush1.bf16.msra.mxu0 %v5679
    %7712 = vmatprep.subr.bf16.mxu0 %v5688
    %7713 = vmatpush1.bf16.msra.mxu0 %v5687
    %7714 = vmatprep.subr.bf16.mxu0 %v5696
    %7715 = vmatpush1.bf16.msra.mxu0 %v5695
    %7716 = vmatprep.subr.bf16.mxu0 %v5704
    %7717 = vmatpush1.bf16.msra.mxu0 %v5703
    %7718 = vmatprep.subr.bf16.mxu0 %v5712
    %7719 = vmatpush1.bf16.msra.mxu0 %v5711
    %7720 = vmatprep.subr.bf16.mxu0 %v5720
    %7721 = vmatpush1.bf16.msra.mxu0 %v5719
    %7722 = vmatprep.mubr.bf16.mxu0 %v1610
    %7723 = vmatmul.mubr.bf16.gmra.mrb[0].mxu0 %v1609
    %v7724 = vpop.f32.mrb[0].mxu0
    %v7725 = vadd.f32 %v7684, %v7724
    %v7726 = vpop.f32.mrb[0].mxu0
    %v7727 = vadd.f32 %v7686, %v7726
    %v7728 = vpop.f32.mrb[0].mxu0
    %v7729 = vpop.f32.mrb[0].mxu0
    %7730 = vdwg.mxu0
    %7731 = vmatprep.subr.bf16.mxu0 %v4706
    %7732 = vmatpush1.bf16.msra.mxu0 %v4705
    %7733 = vmatprep.subr.bf16.mxu0 %v4714
    %7734 = vmatpush1.bf16.msra.mxu0 %v4713
    %7735 = vmatprep.subr.bf16.mxu0 %v4722
    %7736 = vmatpush1.bf16.msra.mxu0 %v4721
    %7737 = vmatprep.subr.bf16.mxu0 %v4730
    %7738 = vmatpush1.bf16.msra.mxu0 %v4729
    %7739 = vmatprep.subr.bf16.mxu0 %v4738
    %7740 = vmatpush1.bf16.msra.mxu0 %v4737
    %7741 = vmatprep.subr.bf16.mxu0 %v4746
    %7742 = vmatpush1.bf16.msra.mxu0 %v4745
    %7743 = vmatprep.subr.bf16.mxu0 %v4754
    %7744 = vmatpush1.bf16.msra.mxu0 %v4753
    %7745 = vmatprep.subr.bf16.mxu0 %v4762
    %7746 = vmatpush1.bf16.msra.mxu0 %v4761
    %7747 = vmatprep.subr.bf16.mxu0 %v4770
    %7748 = vmatpush1.bf16.msra.mxu0 %v4769
    %7749 = vmatprep.subr.bf16.mxu0 %v4778
    %7750 = vmatpush1.bf16.msra.mxu0 %v4777
    %7751 = vmatprep.subr.bf16.mxu0 %v4786
    %7752 = vmatpush1.bf16.msra.mxu0 %v4785
    %7753 = vmatprep.subr.bf16.mxu0 %v4794
    %7754 = vmatpush1.bf16.msra.mxu0 %v4793
    %7755 = vmatprep.subr.bf16.mxu0 %v4802
    %7756 = vmatpush1.bf16.msra.mxu0 %v4801
    %7757 = vmatprep.subr.bf16.mxu0 %v4810
    %7758 = vmatpush1.bf16.msra.mxu0 %v4809
    %7759 = vmatprep.subr.bf16.mxu0 %v4818
    %7760 = vmatpush1.bf16.msra.mxu0 %v4817
    %7761 = vmatprep.subr.bf16.mxu0 %v4826
    %7762 = vmatpush1.bf16.msra.mxu0 %v4825
    %7763 = vmatprep.mubr.bf16.mxu0 %v1596
    %7764 = vmatmul.mubr.bf16.gmra.mrb[0].mxu0 %v1595
    %v7765 = vpop.f32.mrb[0].mxu0
    %v7766 = vadd.f32 %v1501, %v7765
    %v7767 = vpop.f32.mrb[0].mxu0
    %v7768 = vadd.f32 %v1505, %v7767
    %v7769 = vpop.f32.mrb[0].mxu0
    %v7770 = vpop.f32.mrb[0].mxu0
    %7771 = vdwg.mxu0
    %7772 = vmatprep.subr.bf16.mxu0 %v4834
    %7773 = vmatpush1.bf16.msra.mxu0 %v4833
    %7774 = vmatprep.subr.bf16.mxu0 %v4842
    %7775 = vmatpush1.bf16.msra.mxu0 %v4841
    %7776 = vmatprep.subr.bf16.mxu0 %v4850
    %7777 = vmatpush1.bf16.msra.mxu0 %v4849
    %7778 = vmatprep.subr.bf16.mxu0 %v4858
    %7779 = vmatpush1.bf16.msra.mxu0 %v4857
    %7780 = vmatprep.subr.bf16.mxu0 %v4866
    %7781 = vmatpush1.bf16.msra.mxu0 %v4865
    %7782 = vmatprep.subr.bf16.mxu0 %v4874
    %7783 = vmatpush1.bf16.msra.mxu0 %v4873
    %7784 = vmatprep.subr.bf16.mxu0 %v4882
    %7785 = vmatpush1.bf16.msra.mxu0 %v4881
    %7786 = vmatprep.subr.bf16.mxu0 %v4890
    %7787 = vmatpush1.bf16.msra.mxu0 %v4889
    %7788 = vmatprep.subr.bf16.mxu0 %v4898
    %7789 = vmatpush1.bf16.msra.mxu0 %v4897
    %7790 = vmatprep.subr.bf16.mxu0 %v4906
    %7791 = vmatpush1.bf16.msra.mxu0 %v4905
    %7792 = vmatprep.subr.bf16.mxu0 %v4914
    %7793 = vmatpush1.bf16.msra.mxu0 %v4913
    %7794 = vmatprep.subr.bf16.mxu0 %v4922
    %7795 = vmatpush1.bf16.msra.mxu0 %v4921
    %7796 = vmatprep.subr.bf16.mxu0 %v4930
    %7797 = vmatpush1.bf16.msra.mxu0 %v4929
    %7798 = vmatprep.subr.bf16.mxu0 %v4938
    %7799 = vmatpush1.bf16.msra.mxu0 %v4937
    %7800 = vmatprep.subr.bf16.mxu0 %v4946
    %7801 = vmatpush1.bf16.msra.mxu0 %v4945
    %7802 = vmatprep.subr.bf16.mxu0 %v4954
    %7803 = vmatpush1.bf16.msra.mxu0 %v4953
    %7804 = vmatprep.mubr.bf16.mxu0 %v1598
    %7805 = vmatmul.mubr.bf16.gmra.mrb[0].mxu0 %v1597
    %v7806 = vpop.f32.mrb[0].mxu0
    %v7807 = vadd.f32 %v7766, %v7806
    %v7808 = vpop.f32.mrb[0].mxu0
    %v7809 = vadd.f32 %v7768, %v7808
    %v7810 = vpop.f32.mrb[0].mxu0
    %v7811 = vpop.f32.mrb[0].mxu0
    %7812 = vdwg.mxu0
    %7813 = vmatprep.subr.bf16.mxu0 %v4962
    %7814 = vmatpush1.bf16.msra.mxu0 %v4961
    %7815 = vmatprep.subr.bf16.mxu0 %v4970
    %7816 = vmatpush1.bf16.msra.mxu0 %v4969
    %7817 = vmatprep.subr.bf16.mxu0 %v4978
    %7818 = vmatpush1.bf16.msra.mxu0 %v4977
    %7819 = vmatprep.subr.bf16.mxu0 %v4986
    %7820 = vmatpush1.bf16.msra.mxu0 %v4985
    %7821 = vmatprep.subr.bf16.mxu0 %v4994
    %7822 = vmatpush1.bf16.msra.mxu0 %v4993
    %7823 = vmatprep.subr.bf16.mxu0 %v5002
    %7824 = vmatpush1.bf16.msra.mxu0 %v5001
    %7825 = vmatprep.subr.bf16.mxu0 %v5010
    %7826 = vmatpush1.bf16.msra.mxu0 %v5009
    %7827 = vmatprep.subr.bf16.mxu0 %v5018
    %7828 = vmatpush1.bf16.msra.mxu0 %v5017
    %7829 = vmatprep.subr.bf16.mxu0 %v5026
    %7830 = vmatpush1.bf16.msra.mxu0 %v5025
    %7831 = vmatprep.subr.bf16.mxu0 %v5034
    %7832 = vmatpush1.bf16.msra.mxu0 %v5033
    %7833 = vmatprep.subr.bf16.mxu0 %v5042
    %7834 = vmatpush1.bf16.msra.mxu0 %v5041
    %7835 = vmatprep.subr.bf16.mxu0 %v5050
    %7836 = vmatpush1.bf16.msra.mxu0 %v5049
    %7837 = vmatprep.subr.bf16.mxu0 %v5058
    %7838 = vmatpush1.bf16.msra.mxu0 %v5057
    %7839 = vmatprep.subr.bf16.mxu0 %v5066
    %7840 = vmatpush1.bf16.msra.mxu0 %v5065
    %7841 = vmatprep.subr.bf16.mxu0 %v5074
    %7842 = vmatpush1.bf16.msra.mxu0 %v5073
    %7843 = vmatprep.subr.bf16.mxu0 %v5082
    %7844 = vmatpush1.bf16.msra.mxu0 %v5081
    %7845 = vmatprep.mubr.bf16.mxu0 %v1600
    %7846 = vmatmul.mubr.bf16.gmra.mrb[0].mxu0 %v1599
    %v7847 = vpop.f32.mrb[0].mxu0
    %v7848 = vadd.f32 %v7807, %v7847
    %v7849 = vpop.f32.mrb[0].mxu0
    %v7850 = vadd.f32 %v7809, %v7849
    %v7851 = vpop.f32.mrb[0].mxu0
    %v7852 = vpop.f32.mrb[0].mxu0
    %7853 = vdwg.mxu0
    %7854 = vmatprep.subr.bf16.mxu0 %v5090
    %7855 = vmatpush1.bf16.msra.mxu0 %v5089
    %7856 = vmatprep.subr.bf16.mxu0 %v5098
    %7857 = vmatpush1.bf16.msra.mxu0 %v5097
    %7858 = vmatprep.subr.bf16.mxu0 %v5106
    %7859 = vmatpush1.bf16.msra.mxu0 %v5105
    %7860 = vmatprep.subr.bf16.mxu0 %v5114
    %7861 = vmatpush1.bf16.msra.mxu0 %v5113
    %7862 = vmatprep.subr.bf16.mxu0 %v5122
    %7863 = vmatpush1.bf16.msra.mxu0 %v5121
    %7864 = vmatprep.subr.bf16.mxu0 %v5130
    %7865 = vmatpush1.bf16.msra.mxu0 %v5129
    %7866 = vmatprep.subr.bf16.mxu0 %v5138
    %7867 = vmatpush1.bf16.msra.mxu0 %v5137
    %7868 = vmatprep.subr.bf16.mxu0 %v5146
    %7869 = vmatpush1.bf16.msra.mxu0 %v5145
    %7870 = vmatprep.subr.bf16.mxu0 %v5154
    %7871 = vmatpush1.bf16.msra.mxu0 %v5153
    %7872 = vmatprep.subr.bf16.mxu0 %v5162
    %7873 = vmatpush1.bf16.msra.mxu0 %v5161
    %7874 = vmatprep.subr.bf16.mxu0 %v5170
    %7875 = vmatpush1.bf16.msra.mxu0 %v5169
    %7876 = vmatprep.subr.bf16.mxu0 %v5178
    %7877 = vmatpush1.bf16.msra.mxu0 %v5177
    %7878 = vmatprep.subr.bf16.mxu0 %v5186
    %7879 = vmatpush1.bf16.msra.mxu0 %v5185
    %7880 = vmatprep.subr.bf16.mxu0 %v5194
    %7881 = vmatpush1.bf16.msra.mxu0 %v5193
    %7882 = vmatprep.subr.bf16.mxu0 %v5202
    %7883 = vmatpush1.bf16.msra.mxu0 %v5201
    %7884 = vmatprep.subr.bf16.mxu0 %v5210
    %7885 = vmatpush1.bf16.msra.mxu0 %v5209
    %7886 = vmatprep.mubr.bf16.mxu0 %v1602
    %7887 = vmatmul.mubr.bf16.gmra.mrb[0].mxu0 %v1601
    %v7888 = vpop.f32.mrb[0].mxu0
    %v7889 = vadd.f32 %v7848, %v7888
    %v7890 = vpop.f32.mrb[0].mxu0
    %v7891 = vadd.f32 %v7850, %v7890
    %v7892 = vpop.f32.mrb[0].mxu0
    %v7893 = vpop.f32.mrb[0].mxu0
    %7894 = vdwg.mxu0
    %7895 = vmatprep.subr.bf16.mxu0 %v5218
    %7896 = vmatpush1.bf16.msra.mxu0 %v5217
    %7897 = vmatprep.subr.bf16.mxu0 %v5226
    %7898 = vmatpush1.bf16.msra.mxu0 %v5225
    %7899 = vmatprep.subr.bf16.mxu0 %v5234
    %7900 = vmatpush1.bf16.msra.mxu0 %v5233
    %7901 = vmatprep.subr.bf16.mxu0 %v5242
    %7902 = vmatpush1.bf16.msra.mxu0 %v5241
    %7903 = vmatprep.subr.bf16.mxu0 %v5250
    %7904 = vmatpush1.bf16.msra.mxu0 %v5249
    %7905 = vmatprep.subr.bf16.mxu0 %v5258
    %7906 = vmatpush1.bf16.msra.mxu0 %v5257
    %7907 = vmatprep.subr.bf16.mxu0 %v5266
    %7908 = vmatpush1.bf16.msra.mxu0 %v5265
    %7909 = vmatprep.subr.bf16.mxu0 %v5274
    %7910 = vmatpush1.bf16.msra.mxu0 %v5273
    %7911 = vmatprep.subr.bf16.mxu0 %v5282
    %7912 = vmatpush1.bf16.msra.mxu0 %v5281
    %7913 = vmatprep.subr.bf16.mxu0 %v5290
    %7914 = vmatpush1.bf16.msra.mxu0 %v5289
    %7915 = vmatprep.subr.bf16.mxu0 %v5298
    %7916 = vmatpush1.bf16.msra.mxu0 %v5297
    %7917 = vmatprep.subr.bf16.mxu0 %v5306
    %7918 = vmatpush1.bf16.msra.mxu0 %v5305
    %7919 = vmatprep.subr.bf16.mxu0 %v5314
    %7920 = vmatpush1.bf16.msra.mxu0 %v5313
    %7921 = vmatprep.subr.bf16.mxu0 %v5322
    %7922 = vmatpush1.bf16.msra.mxu0 %v5321
    %7923 = vmatprep.subr.bf16.mxu0 %v5330
    %7924 = vmatpush1.bf16.msra.mxu0 %v5329
    %7925 = vmatprep.subr.bf16.mxu0 %v5338
    %7926 = vmatpush1.bf16.msra.mxu0 %v5337
    %7927 = vmatprep.mubr.bf16.mxu0 %v1604
    %7928 = vmatmul.mubr.bf16.gmra.mrb[0].mxu0 %v1603
    %v7929 = vpop.f32.mrb[0].mxu0
    %v7930 = vadd.f32 %v7889, %v7929
    %v7931 = vpop.f32.mrb[0].mxu0
    %v7932 = vadd.f32 %v7891, %v7931
    %v7933 = vpop.f32.mrb[0].mxu0
    %v7934 = vpop.f32.mrb[0].mxu0
    %7935 = vdwg.mxu0
    %7936 = vmatprep.subr.bf16.mxu0 %v5346
    %7937 = vmatpush1.bf16.msra.mxu0 %v5345
    %7938 = vmatprep.subr.bf16.mxu0 %v5354
    %7939 = vmatpush1.bf16.msra.mxu0 %v5353
    %7940 = vmatprep.subr.bf16.mxu0 %v5362
    %7941 = vmatpush1.bf16.msra.mxu0 %v5361
    %7942 = vmatprep.subr.bf16.mxu0 %v5370
    %7943 = vmatpush1.bf16.msra.mxu0 %v5369
    %7944 = vmatprep.subr.bf16.mxu0 %v5378
    %7945 = vmatpush1.bf16.msra.mxu0 %v5377
    %7946 = vmatprep.subr.bf16.mxu0 %v5386
    %7947 = vmatpush1.bf16.msra.mxu0 %v5385
    %7948 = vmatprep.subr.bf16.mxu0 %v5394
    %7949 = vmatpush1.bf16.msra.mxu0 %v5393
    %7950 = vmatprep.subr.bf16.mxu0 %v5402
    %7951 = vmatpush1.bf16.msra.mxu0 %v5401
    %7952 = vmatprep.subr.bf16.mxu0 %v5410
    %7953 = vmatpush1.bf16.msra.mxu0 %v5409
    %7954 = vmatprep.subr.bf16.mxu0 %v5418
    %7955 = vmatpush1.bf16.msra.mxu0 %v5417
    %7956 = vmatprep.subr.bf16.mxu0 %v5426
    %7957 = vmatpush1.bf16.msra.mxu0 %v5425
    %7958 = vmatprep.subr.bf16.mxu0 %v5434
    %7959 = vmatpush1.bf16.msra.mxu0 %v5433
    %7960 = vmatprep.subr.bf16.mxu0 %v5442
    %7961 = vmatpush1.bf16.msra.mxu0 %v5441
    %7962 = vmatprep.subr.bf16.mxu0 %v5450
    %7963 = vmatpush1.bf16.msra.mxu0 %v5449
    %7964 = vmatprep.subr.bf16.mxu0 %v5458
    %7965 = vmatpush1.bf16.msra.mxu0 %v5457
    %7966 = vmatprep.subr.bf16.mxu0 %v5466
    %7967 = vmatpush1.bf16.msra.mxu0 %v5465
    %7968 = vmatprep.mubr.bf16.mxu0 %v1606
    %7969 = vmatmul.mubr.bf16.gmra.mrb[0].mxu0 %v1605
    %v7970 = vpop.f32.mrb[0].mxu0
    %v7971 = vadd.f32 %v7930, %v7970
    %v7972 = vpop.f32.mrb[0].mxu0
    %v7973 = vadd.f32 %v7932, %v7972
    %v7974 = vpop.f32.mrb[0].mxu0
    %v7975 = vpop.f32.mrb[0].mxu0
    %7976 = vdwg.mxu0
    %7977 = vmatprep.subr.bf16.mxu0 %v5474
    %7978 = vmatpush1.bf16.msra.mxu0 %v5473
    %7979 = vmatprep.subr.bf16.mxu0 %v5482
    %7980 = vmatpush1.bf16.msra.mxu0 %v5481
    %7981 = vmatprep.subr.bf16.mxu0 %v5490
    %7982 = vmatpush1.bf16.msra.mxu0 %v5489
    %7983 = vmatprep.subr.bf16.mxu0 %v5498
    %7984 = vmatpush1.bf16.msra.mxu0 %v5497
    %7985 = vmatprep.subr.bf16.mxu0 %v5506
    %7986 = vmatpush1.bf16.msra.mxu0 %v5505
    %7987 = vmatprep.subr.bf16.mxu0 %v5514
    %7988 = vmatpush1.bf16.msra.mxu0 %v5513
    %7989 = vmatprep.subr.bf16.mxu0 %v5522
    %7990 = vmatpush1.bf16.msra.mxu0 %v5521
    %7991 = vmatprep.subr.bf16.mxu0 %v5530
    %7992 = vmatpush1.bf16.msra.mxu0 %v5529
    %7993 = vmatprep.subr.bf16.mxu0 %v5538
    %7994 = vmatpush1.bf16.msra.mxu0 %v5537
    %7995 = vmatprep.subr.bf16.mxu0 %v5546
    %7996 = vmatpush1.bf16.msra.mxu0 %v5545
    %7997 = vmatprep.subr.bf16.mxu0 %v5554
    %7998 = vmatpush1.bf16.msra.mxu0 %v5553
    %7999 = vmatprep.subr.bf16.mxu0 %v5562
    %8000 = vmatpush1.bf16.msra.mxu0 %v5561
    %8001 = vmatprep.subr.bf16.mxu0 %v5570
    %8002 = vmatpush1.bf16.msra.mxu0 %v5569
    %8003 = vmatprep.subr.bf16.mxu0 %v5578
    %8004 = vmatpush1.bf16.msra.mxu0 %v5577
    %8005 = vmatprep.subr.bf16.mxu0 %v5586
    %8006 = vmatpush1.bf16.msra.mxu0 %v5585
    %8007 = vmatprep.subr.bf16.mxu0 %v5594
    %8008 = vmatpush1.bf16.msra.mxu0 %v5593
    %8009 = vmatprep.mubr.bf16.mxu0 %v1608
    %8010 = vmatmul.mubr.bf16.gmra.mrb[0].mxu0 %v1607
    %v8011 = vpop.f32.mrb[0].mxu0
    %v8012 = vadd.f32 %v7971, %v8011
    %v8013 = vpop.f32.mrb[0].mxu0
    %v8014 = vadd.f32 %v7973, %v8013
    %v8015 = vpop.f32.mrb[0].mxu0
    %v8016 = vpop.f32.mrb[0].mxu0
    %8017 = vdwg.mxu0
    %8018 = vmatprep.subr.bf16.mxu0 %v5602
    %8019 = vmatpush1.bf16.msra.mxu0 %v5601
    %8020 = vmatprep.subr.bf16.mxu0 %v5610
    %8021 = vmatpush1.bf16.msra.mxu0 %v5609
    %8022 = vmatprep.subr.bf16.mxu0 %v5618
    %8023 = vmatpush1.bf16.msra.mxu0 %v5617
    %8024 = vmatprep.subr.bf16.mxu0 %v5626
    %8025 = vmatpush1.bf16.msra.mxu0 %v5625
    %8026 = vmatprep.subr.bf16.mxu0 %v5634
    %8027 = vmatpush1.bf16.msra.mxu0 %v5633
    %8028 = vmatprep.subr.bf16.mxu0 %v5642
    %8029 = vmatpush1.bf16.msra.mxu0 %v5641
    %8030 = vmatprep.subr.bf16.mxu0 %v5650
    %8031 = vmatpush1.bf16.msra.mxu0 %v5649
    %8032 = vmatprep.subr.bf16.mxu0 %v5658
    %8033 = vmatpush1.bf16.msra.mxu0 %v5657
    %8034 = vmatprep.subr.bf16.mxu0 %v5666
    %8035 = vmatpush1.bf16.msra.mxu0 %v5665
    %8036 = vmatprep.subr.bf16.mxu0 %v5674
    %8037 = vmatpush1.bf16.msra.mxu0 %v5673
    %8038 = vmatprep.subr.bf16.mxu0 %v5682
    %8039 = vmatpush1.bf16.msra.mxu0 %v5681
    %8040 = vmatprep.subr.bf16.mxu0 %v5690
    %8041 = vmatpush1.bf16.msra.mxu0 %v5689
    %8042 = vmatprep.subr.bf16.mxu0 %v5698
    %8043 = vmatpush1.bf16.msra.mxu0 %v5697
    %8044 = vmatprep.subr.bf16.mxu0 %v5706
    %8045 = vmatpush1.bf16.msra.mxu0 %v5705
    %8046 = vmatprep.subr.bf16.mxu0 %v5714
    %8047 = vmatpush1.bf16.msra.mxu0 %v5713
    %8048 = vmatprep.subr.bf16.mxu0 %v5722
    %8049 = vmatpush1.bf16.msra.mxu0 %v5721
    %8050 = vmatprep.mubr.bf16.mxu0 %v1610
    %8051 = vmatmul.mubr.bf16.gmra.mrb[0].mxu0 %v1609
    %v8052 = vpop.f32.mrb[0].mxu0
    %v8053 = vadd.f32 %v8012, %v8052
    %v8054 = vpop.f32.mrb[0].mxu0
    %v8055 = vadd.f32 %v8014, %v8054
    %v8056 = vpop.f32.mrb[0].mxu0
    %v8057 = vpop.f32.mrb[0].mxu0
    %8058 = vdwg.mxu0
    %v8059 = vmax.f32 %v7069, 0.0
    %v8060 = vmax.f32 %v7071, 0.0
    %v8061 = vmax.f32 %v7397, 0.0
    %v8062 = vmax.f32 %v7399, 0.0
    %v8063 = vmax.f32 %v7725, 0.0
    %v8064 = vmax.f32 %v7727, 0.0
    %v8065 = vmax.f32 %v8053, 0.0
    %v8066 = vmax.f32 %v8055, 0.0
    %v8067 = vpack.c.bf16 %v8059, %v8059
    %v8068 = vpack.c.bf16 %v8060, %v8060
    %v8069 = vpack.c.bf16 %v8061, %v8061
    %v8070 = vpack.c.bf16 %v8062, %v8062
    %v8071 = vpack.c.bf16 %v8063, %v8063
    %v8072 = vpack.c.bf16 %v8064, %v8064
    %v8073 = vpack.c.bf16 %v8065, %v8065
    %v8074 = vpack.c.bf16 %v8066, %v8066
    %v8075 = vld [vmem:[#allocation8] sm:$0xf]
    %v8076 = vld [vmem:[#allocation8 + $0x4] sm:$0xf]
    %v8077 = vld [vmem:[#allocation8 + $0x8] sm:$0xf]
    %v8078 = vld [vmem:[#allocation8 + $0xc] sm:$0xf]
    %v8079 = vld [vmem:[#allocation8 + $0x10] sm:$0xf]
    %v8080 = vld [vmem:[#allocation8 + $0x14] sm:$0xf]
    %v8081 = vld [vmem:[#allocation8 + $0x18] sm:$0xf]
    %v8082 = vld [vmem:[#allocation8 + $0x1c] sm:$0xf]
    %v8083 = vld [vmem:[#allocation8 + $0x20] sm:$0xf]
    %v8084 = vld [vmem:[#allocation8 + $0x24] sm:$0xf]
    %v8085 = vld [vmem:[#allocation8 + $0x28] sm:$0xf]
    %v8086 = vld [vmem:[#allocation8 + $0x2c] sm:$0xf]
    %v8087 = vld [vmem:[#allocation8 + $0x30] sm:$0xf]
    %v8088 = vld [vmem:[#allocation8 + $0x34] sm:$0xf]
    %v8089 = vld [vmem:[#allocation8 + $0x38] sm:$0xf]
    %v8090 = vld [vmem:[#allocation8 + $0x3c] sm:$0xf]
    %v8091 = vld [vmem:[#allocation8 + $0x40] sm:$0xf]
    %v8092 = vld [vmem:[#allocation8 + $0x44] sm:$0xf]
    %v8093 = vld [vmem:[#allocation8 + $0x48] sm:$0xf]
    %v8094 = vld [vmem:[#allocation8 + $0x4c] sm:$0xf]
    %v8095 = vld [vmem:[#allocation8 + $0x50] sm:$0xf]
    %v8096 = vld [vmem:[#allocation8 + $0x54] sm:$0xf]
    %v8097 = vld [vmem:[#allocation8 + $0x58] sm:$0xf]
    %v8098 = vld [vmem:[#allocation8 + $0x5c] sm:$0xf]
    %v8099 = vld [vmem:[#allocation8 + $0x60] sm:$0xf]
    %v8100 = vld [vmem:[#allocation8 + $0x64] sm:$0xf]
    %v8101 = vld [vmem:[#allocation8 + $0x68] sm:$0xf]
    %v8102 = vld [vmem:[#allocation8 + $0x6c] sm:$0xf]
    %v8103 = vld [vmem:[#allocation8 + $0x70] sm:$0xf]
    %v8104 = vld [vmem:[#allocation8 + $0x74] sm:$0xf]
    %v8105 = vld [vmem:[#allocation8 + $0x78] sm:$0xf]
    %v8106 = vld [vmem:[#allocation8 + $0x7c] sm:$0xf]
    %v8107 = vld [vmem:[#allocation8 + $0x80] sm:$0xf]
    %v8108 = vld [vmem:[#allocation8 + $0x84] sm:$0xf]
    %v8109 = vld [vmem:[#allocation8 + $0x88] sm:$0xf]
    %v8110 = vld [vmem:[#allocation8 + $0x8c] sm:$0xf]
    %v8111 = vld [vmem:[#allocation8 + $0x90] sm:$0xf]
    %v8112 = vld [vmem:[#allocation8 + $0x94] sm:$0xf]
    %v8113 = vld [vmem:[#allocation8 + $0x98] sm:$0xf]
    %v8114 = vld [vmem:[#allocation8 + $0x9c] sm:$0xf]
    %v8115 = vld [vmem:[#allocation8 + $0xa0] sm:$0xf]
    %v8116 = vld [vmem:[#allocation8 + $0xa4] sm:$0xf]
    %v8117 = vld [vmem:[#allocation8 + $0xa8] sm:$0xf]
    %v8118 = vld [vmem:[#allocation8 + $0xac] sm:$0xf]
    %v8119 = vld [vmem:[#allocation8 + $0xb0] sm:$0xf]
    %v8120 = vld [vmem:[#allocation8 + $0xb4] sm:$0xf]
    %v8121 = vld [vmem:[#allocation8 + $0xb8] sm:$0xf]
    %v8122 = vld [vmem:[#allocation8 + $0xbc] sm:$0xf]
    %v8123 = vld [vmem:[#allocation8 + $0xc0] sm:$0xf]
    %v8124 = vld [vmem:[#allocation8 + $0xc4] sm:$0xf]
    %v8125 = vld [vmem:[#allocation8 + $0xc8] sm:$0xf]
    %v8126 = vld [vmem:[#allocation8 + $0xcc] sm:$0xf]
    %v8127 = vld [vmem:[#allocation8 + $0xd0] sm:$0xf]
    %v8128 = vld [vmem:[#allocation8 + $0xd4] sm:$0xf]
    %v8129 = vld [vmem:[#allocation8 + $0xd8] sm:$0xf]
    %v8130 = vld [vmem:[#allocation8 + $0xdc] sm:$0xf]
    %v8131 = vld [vmem:[#allocation8 + $0xe0] sm:$0xf]
    %v8132 = vld [vmem:[#allocation8 + $0xe4] sm:$0xf]
    %v8133 = vld [vmem:[#allocation8 + $0xe8] sm:$0xf]
    %v8134 = vld [vmem:[#allocation8 + $0xec] sm:$0xf]
    %v8135 = vld [vmem:[#allocation8 + $0xf0] sm:$0xf]
    %v8136 = vld [vmem:[#allocation8 + $0xf4] sm:$0xf]
    %v8137 = vld [vmem:[#allocation8 + $0xf8] sm:$0xf]
    %v8138 = vld [vmem:[#allocation8 + $0xfc] sm:$0xf]
    %v8139 = vld [vmem:[#allocation8 + $0x100] sm:$0xf]
    %v8140 = vld [vmem:[#allocation8 + $0x104] sm:$0xf]
    %v8141 = vld [vmem:[#allocation8 + $0x108] sm:$0xf]
    %v8142 = vld [vmem:[#allocation8 + $0x10c] sm:$0xf]
    %v8143 = vld [vmem:[#allocation8 + $0x110] sm:$0xf]
    %v8144 = vld [vmem:[#allocation8 + $0x114] sm:$0xf]
    %v8145 = vld [vmem:[#allocation8 + $0x118] sm:$0xf]
    %v8146 = vld [vmem:[#allocation8 + $0x11c] sm:$0xf]
    %v8147 = vld [vmem:[#allocation8 + $0x120] sm:$0xf]
    %v8148 = vld [vmem:[#allocation8 + $0x124] sm:$0xf]
    %v8149 = vld [vmem:[#allocation8 + $0x128] sm:$0xf]
    %v8150 = vld [vmem:[#allocation8 + $0x12c] sm:$0xf]
    %v8151 = vld [vmem:[#allocation8 + $0x130] sm:$0xf]
    %v8152 = vld [vmem:[#allocation8 + $0x134] sm:$0xf]
    %v8153 = vld [vmem:[#allocation8 + $0x138] sm:$0xf]
    %v8154 = vld [vmem:[#allocation8 + $0x13c] sm:$0xf]
    %v8155 = vld [vmem:[#allocation8 + $0x140] sm:$0xf]
    %v8156 = vld [vmem:[#allocation8 + $0x144] sm:$0xf]
    %v8157 = vld [vmem:[#allocation8 + $0x148] sm:$0xf]
    %v8158 = vld [vmem:[#allocation8 + $0x14c] sm:$0xf]
    %v8159 = vld [vmem:[#allocation8 + $0x150] sm:$0xf]
    %v8160 = vld [vmem:[#allocation8 + $0x154] sm:$0xf]
    %v8161 = vld [vmem:[#allocation8 + $0x158] sm:$0xf]
    %v8162 = vld [vmem:[#allocation8 + $0x15c] sm:$0xf]
    %v8163 = vld [vmem:[#allocation8 + $0x160] sm:$0xf]
    %v8164 = vld [vmem:[#allocation8 + $0x164] sm:$0xf]
    %v8165 = vld [vmem:[#allocation8 + $0x168] sm:$0xf]
    %v8166 = vld [vmem:[#allocation8 + $0x16c] sm:$0xf]
    %v8167 = vld [vmem:[#allocation8 + $0x170] sm:$0xf]
    %v8168 = vld [vmem:[#allocation8 + $0x174] sm:$0xf]
    %v8169 = vld [vmem:[#allocation8 + $0x178] sm:$0xf]
    %v8170 = vld [vmem:[#allocation8 + $0x17c] sm:$0xf]
    %v8171 = vld [vmem:[#allocation8 + $0x180] sm:$0xf]
    %v8172 = vld [vmem:[#allocation8 + $0x184] sm:$0xf]
    %v8173 = vld [vmem:[#allocation8 + $0x188] sm:$0xf]
    %v8174 = vld [vmem:[#allocation8 + $0x18c] sm:$0xf]
    %v8175 = vld [vmem:[#allocation8 + $0x190] sm:$0xf]
    %v8176 = vld [vmem:[#allocation8 + $0x194] sm:$0xf]
    %v8177 = vld [vmem:[#allocation8 + $0x198] sm:$0xf]
    %v8178 = vld [vmem:[#allocation8 + $0x19c] sm:$0xf]
    %v8179 = vld [vmem:[#allocation8 + $0x1a0] sm:$0xf]
    %v8180 = vld [vmem:[#allocation8 + $0x1a4] sm:$0xf]
    %v8181 = vld [vmem:[#allocation8 + $0x1a8] sm:$0xf]
    %v8182 = vld [vmem:[#allocation8 + $0x1ac] sm:$0xf]
    %v8183 = vld [vmem:[#allocation8 + $0x1b0] sm:$0xf]
    %v8184 = vld [vmem:[#allocation8 + $0x1b4] sm:$0xf]
    %v8185 = vld [vmem:[#allocation8 + $0x1b8] sm:$0xf]
    %v8186 = vld [vmem:[#allocation8 + $0x1bc] sm:$0xf]
    %v8187 = vld [vmem:[#allocation8 + $0x1c0] sm:$0xf]
    %v8188 = vld [vmem:[#allocation8 + $0x1c4] sm:$0xf]
    %v8189 = vld [vmem:[#allocation8 + $0x1c8] sm:$0xf]
    %v8190 = vld [vmem:[#allocation8 + $0x1cc] sm:$0xf]
    %v8191 = vld [vmem:[#allocation8 + $0x1d0] sm:$0xf]
    %v8192 = vld [vmem:[#allocation8 + $0x1d4] sm:$0xf]
    %v8193 = vld [vmem:[#allocation8 + $0x1d8] sm:$0xf]
    %v8194 = vld [vmem:[#allocation8 + $0x1dc] sm:$0xf]
    %v8195 = vld [vmem:[#allocation8 + $0x1e0] sm:$0xf]
    %v8196 = vld [vmem:[#allocation8 + $0x1e4] sm:$0xf]
    %v8197 = vld [vmem:[#allocation8 + $0x1e8] sm:$0xf]
    %v8198 = vld [vmem:[#allocation8 + $0x1ec] sm:$0xf]
    %v8199 = vld [vmem:[#allocation8 + $0x1f0] sm:$0xf]
    %v8200 = vld [vmem:[#allocation8 + $0x1f4] sm:$0xf]
    %v8201 = vld [vmem:[#allocation8 + $0x1f8] sm:$0xf]
    %v8202 = vld [vmem:[#allocation8 + $0x1fc] sm:$0xf]
    %v8203 = vld [vmem:[#allocation10] sm:$0x1]
    %v8205 = vlaneseq
    %v8206 = vshrl.u32 %v8205, 7
    %v8207 = vsub.s32 0, %v8206
    %v8208 = vrot.slane %v8203, %v8207
    %v8338 = vunpack.c.l.b16 %v8075
    %v8339 = vunpack.c.l.b16 %v8076
    %v8340 = vunpack.c.l.b16 %v8077
    %v8341 = vunpack.c.l.b16 %v8078
    %v8342 = vunpack.c.l.b16 %v8079
    %v8343 = vunpack.c.l.b16 %v8080
    %v8344 = vunpack.c.l.b16 %v8081
    %v8345 = vunpack.c.l.b16 %v8082
    %v8346 = vunpack.c.l.b16 %v8083
    %v8347 = vunpack.c.l.b16 %v8084
    %v8348 = vunpack.c.l.b16 %v8085
    %v8349 = vunpack.c.l.b16 %v8086
    %v8350 = vunpack.c.l.b16 %v8087
    %v8351 = vunpack.c.l.b16 %v8088
    %v8352 = vunpack.c.l.b16 %v8089
    %v8353 = vunpack.c.l.b16 %v8090
    %v8354 = vunpack.c.l.b16 %v8091
    %v8355 = vunpack.c.l.b16 %v8092
    %v8356 = vunpack.c.l.b16 %v8093
    %v8357 = vunpack.c.l.b16 %v8094
    %v8358 = vunpack.c.l.b16 %v8095
    %v8359 = vunpack.c.l.b16 %v8096
    %v8360 = vunpack.c.l.b16 %v8097
    %v8361 = vunpack.c.l.b16 %v8098
    %v8362 = vunpack.c.l.b16 %v8099
    %v8363 = vunpack.c.l.b16 %v8100
    %v8364 = vunpack.c.l.b16 %v8101
    %v8365 = vunpack.c.l.b16 %v8102
    %v8366 = vunpack.c.l.b16 %v8103
    %v8367 = vunpack.c.l.b16 %v8104
    %v8368 = vunpack.c.l.b16 %v8105
    %v8369 = vunpack.c.l.b16 %v8106
    %v8370 = vunpack.c.l.b16 %v8107
    %v8371 = vunpack.c.l.b16 %v8108
    %v8372 = vunpack.c.l.b16 %v8109
    %v8373 = vunpack.c.l.b16 %v8110
    %v8374 = vunpack.c.l.b16 %v8111
    %v8375 = vunpack.c.l.b16 %v8112
    %v8376 = vunpack.c.l.b16 %v8113
    %v8377 = vunpack.c.l.b16 %v8114
    %v8378 = vunpack.c.l.b16 %v8115
    %v8379 = vunpack.c.l.b16 %v8116
    %v8380 = vunpack.c.l.b16 %v8117
    %v8381 = vunpack.c.l.b16 %v8118
    %v8382 = vunpack.c.l.b16 %v8119
    %v8383 = vunpack.c.l.b16 %v8120
    %v8384 = vunpack.c.l.b16 %v8121
    %v8385 = vunpack.c.l.b16 %v8122
    %v8386 = vunpack.c.l.b16 %v8123
    %v8387 = vunpack.c.l.b16 %v8124
    %v8388 = vunpack.c.l.b16 %v8125
    %v8389 = vunpack.c.l.b16 %v8126
    %v8390 = vunpack.c.l.b16 %v8127
    %v8391 = vunpack.c.l.b16 %v8128
    %v8392 = vunpack.c.l.b16 %v8129
    %v8393 = vunpack.c.l.b16 %v8130
    %v8394 = vunpack.c.l.b16 %v8131
    %v8395 = vunpack.c.l.b16 %v8132
    %v8396 = vunpack.c.l.b16 %v8133
    %v8397 = vunpack.c.l.b16 %v8134
    %v8398 = vunpack.c.l.b16 %v8135
    %v8399 = vunpack.c.l.b16 %v8136
    %v8400 = vunpack.c.l.b16 %v8137
    %v8401 = vunpack.c.l.b16 %v8138
    %v8402 = vunpack.c.l.b16 %v8139
    %v8403 = vunpack.c.l.b16 %v8140
    %v8404 = vunpack.c.l.b16 %v8141
    %v8405 = vunpack.c.l.b16 %v8142
    %v8406 = vunpack.c.l.b16 %v8143
    %v8407 = vunpack.c.l.b16 %v8144
    %v8408 = vunpack.c.l.b16 %v8145
    %v8409 = vunpack.c.l.b16 %v8146
    %v8410 = vunpack.c.l.b16 %v8147
    %v8411 = vunpack.c.l.b16 %v8148
    %v8412 = vunpack.c.l.b16 %v8149
    %v8413 = vunpack.c.l.b16 %v8150
    %v8414 = vunpack.c.l.b16 %v8151
    %v8415 = vunpack.c.l.b16 %v8152
    %v8416 = vunpack.c.l.b16 %v8153
    %v8417 = vunpack.c.l.b16 %v8154
    %v8418 = vunpack.c.l.b16 %v8155
    %v8419 = vunpack.c.l.b16 %v8156
    %v8420 = vunpack.c.l.b16 %v8157
    %v8421 = vunpack.c.l.b16 %v8158
    %v8422 = vunpack.c.l.b16 %v8159
    %v8423 = vunpack.c.l.b16 %v8160
    %v8424 = vunpack.c.l.b16 %v8161
    %v8425 = vunpack.c.l.b16 %v8162
    %v8426 = vunpack.c.l.b16 %v8163
    %v8427 = vunpack.c.l.b16 %v8164
    %v8428 = vunpack.c.l.b16 %v8165
    %v8429 = vunpack.c.l.b16 %v8166
    %v8430 = vunpack.c.l.b16 %v8167
    %v8431 = vunpack.c.l.b16 %v8168
    %v8432 = vunpack.c.l.b16 %v8169
    %v8433 = vunpack.c.l.b16 %v8170
    %v8434 = vunpack.c.l.b16 %v8171
    %v8435 = vunpack.c.l.b16 %v8172
    %v8436 = vunpack.c.l.b16 %v8173
    %v8437 = vunpack.c.l.b16 %v8174
    %v8438 = vunpack.c.l.b16 %v8175
    %v8439 = vunpack.c.l.b16 %v8176
    %v8440 = vunpack.c.l.b16 %v8177
    %v8441 = vunpack.c.l.b16 %v8178
    %v8442 = vunpack.c.l.b16 %v8179
    %v8443 = vunpack.c.l.b16 %v8180
    %v8444 = vunpack.c.l.b16 %v8181
    %v8445 = vunpack.c.l.b16 %v8182
    %v8446 = vunpack.c.l.b16 %v8183
    %v8447 = vunpack.c.l.b16 %v8184
    %v8448 = vunpack.c.l.b16 %v8185
    %v8449 = vunpack.c.l.b16 %v8186
    %v8450 = vunpack.c.l.b16 %v8187
    %v8451 = vunpack.c.l.b16 %v8188
    %v8452 = vunpack.c.l.b16 %v8189
    %v8453 = vunpack.c.l.b16 %v8190
    %v8454 = vunpack.c.l.b16 %v8191
    %v8455 = vunpack.c.l.b16 %v8192
    %v8456 = vunpack.c.l.b16 %v8193
    %v8457 = vunpack.c.l.b16 %v8194
    %v8458 = vunpack.c.l.b16 %v8195
    %v8459 = vunpack.c.l.b16 %v8196
    %v8460 = vunpack.c.l.b16 %v8197
    %v8461 = vunpack.c.l.b16 %v8198
    %v8462 = vunpack.c.l.b16 %v8199
    %v8463 = vunpack.c.l.b16 %v8200
    %v8464 = vunpack.c.l.b16 %v8201
    %v8465 = vunpack.c.l.b16 %v8202
    %v8466 = vpack.c.b16 %v8339, %v8338
    %v8467 = vpack.c.b16 %v8341, %v8340
    %v8468 = vpack.c.b16 %v8343, %v8342
    %v8469 = vpack.c.b16 %v8345, %v8344
    %v8470 = vpack.c.b16 %v8347, %v8346
    %v8471 = vpack.c.b16 %v8349, %v8348
    %v8472 = vpack.c.b16 %v8351, %v8350
    %v8473 = vpack.c.b16 %v8353, %v8352
    %v8474 = vpack.c.b16 %v8355, %v8354
    %v8475 = vpack.c.b16 %v8357, %v8356
    %v8476 = vpack.c.b16 %v8359, %v8358
    %v8477 = vpack.c.b16 %v8361, %v8360
    %v8478 = vpack.c.b16 %v8363, %v8362
    %v8479 = vpack.c.b16 %v8365, %v8364
    %v8480 = vpack.c.b16 %v8367, %v8366
    %v8481 = vpack.c.b16 %v8369, %v8368
    %v8482 = vpack.c.b16 %v8371, %v8370
    %v8483 = vpack.c.b16 %v8373, %v8372
    %v8484 = vpack.c.b16 %v8375, %v8374
    %v8485 = vpack.c.b16 %v8377, %v8376
    %v8486 = vpack.c.b16 %v8379, %v8378
    %v8487 = vpack.c.b16 %v8381, %v8380
    %v8488 = vpack.c.b16 %v8383, %v8382
    %v8489 = vpack.c.b16 %v8385, %v8384
    %v8490 = vpack.c.b16 %v8387, %v8386
    %v8491 = vpack.c.b16 %v8389, %v8388
    %v8492 = vpack.c.b16 %v8391, %v8390
    %v8493 = vpack.c.b16 %v8393, %v8392
    %v8494 = vpack.c.b16 %v8395, %v8394
    %v8495 = vpack.c.b16 %v8397, %v8396
    %v8496 = vpack.c.b16 %v8399, %v8398
    %v8497 = vpack.c.b16 %v8401, %v8400
    %v8498 = vpack.c.b16 %v8403, %v8402
    %v8499 = vpack.c.b16 %v8405, %v8404
    %v8500 = vpack.c.b16 %v8407, %v8406
    %v8501 = vpack.c.b16 %v8409, %v8408
    %v8502 = vpack.c.b16 %v8411, %v8410
    %v8503 = vpack.c.b16 %v8413, %v8412
    %v8504 = vpack.c.b16 %v8415, %v8414
    %v8505 = vpack.c.b16 %v8417, %v8416
    %v8506 = vpack.c.b16 %v8419, %v8418
    %v8507 = vpack.c.b16 %v8421, %v8420
    %v8508 = vpack.c.b16 %v8423, %v8422
    %v8509 = vpack.c.b16 %v8425, %v8424
    %v8510 = vpack.c.b16 %v8427, %v8426
    %v8511 = vpack.c.b16 %v8429, %v8428
    %v8512 = vpack.c.b16 %v8431, %v8430
    %v8513 = vpack.c.b16 %v8433, %v8432
    %v8514 = vpack.c.b16 %v8435, %v8434
    %v8515 = vpack.c.b16 %v8437, %v8436
    %v8516 = vpack.c.b16 %v8439, %v8438
    %v8517 = vpack.c.b16 %v8441, %v8440
    %v8518 = vpack.c.b16 %v8443, %v8442
    %v8519 = vpack.c.b16 %v8445, %v8444
    %v8520 = vpack.c.b16 %v8447, %v8446
    %v8521 = vpack.c.b16 %v8449, %v8448
    %v8522 = vpack.c.b16 %v8451, %v8450
    %v8523 = vpack.c.b16 %v8453, %v8452
    %v8524 = vpack.c.b16 %v8455, %v8454
    %v8525 = vpack.c.b16 %v8457, %v8456
    %v8526 = vpack.c.b16 %v8459, %v8458
    %v8527 = vpack.c.b16 %v8461, %v8460
    %v8528 = vpack.c.b16 %v8463, %v8462
    %v8529 = vpack.c.b16 %v8465, %v8464
    %8594 = vmatprep.subr.bf16.mxu0 0
    %8595 = vmatpush1.bf16.msra.mxu0 %v8466
    %8596 = vmatprep.subr.bf16.mxu0 0
    %8597 = vmatpush1.bf16.msra.mxu0 %v8467
    %8598 = vmatprep.subr.bf16.mxu0 0
    %8599 = vmatpush1.bf16.msra.mxu0 %v8468
    %8600 = vmatprep.subr.bf16.mxu0 0
    %8601 = vmatpush1.bf16.msra.mxu0 %v8469
    %8602 = vmatprep.subr.bf16.mxu0 0
    %8603 = vmatpush1.bf16.msra.mxu0 %v8470
    %8604 = vmatprep.subr.bf16.mxu0 0
    %8605 = vmatpush1.bf16.msra.mxu0 %v8471
    %8606 = vmatprep.subr.bf16.mxu0 0
    %8607 = vmatpush1.bf16.msra.mxu0 %v8472
    %8608 = vmatprep.subr.bf16.mxu0 0
    %8609 = vmatpush1.bf16.msra.mxu0 %v8473
    %8610 = vmatprep.subr.bf16.mxu0 0
    %8611 = vmatpush1.bf16.msra.mxu0 %v8474
    %8612 = vmatprep.subr.bf16.mxu0 0
    %8613 = vmatpush1.bf16.msra.mxu0 %v8475
    %8614 = vmatprep.subr.bf16.mxu0 0
    %8615 = vmatpush1.bf16.msra.mxu0 %v8476
    %8616 = vmatprep.subr.bf16.mxu0 0
    %8617 = vmatpush1.bf16.msra.mxu0 %v8477
    %8618 = vmatprep.subr.bf16.mxu0 0
    %8619 = vmatpush1.bf16.msra.mxu0 %v8478
    %8620 = vmatprep.subr.bf16.mxu0 0
    %8621 = vmatpush1.bf16.msra.mxu0 %v8479
    %8622 = vmatprep.subr.bf16.mxu0 0
    %8623 = vmatpush1.bf16.msra.mxu0 %v8480
    %8624 = vmatprep.subr.bf16.mxu0 0
    %8625 = vmatpush1.bf16.msra.mxu0 %v8481
    %8626 = vmatprep.mubr.bf16.mxu0 %v8068
    %8627 = vmatmul.mubr.bf16.gmra.mrb[0].mxu0 %v8067
    %v8628 = vpop.f32.mrb[0].mxu0
    %v8629 = vadd.f32 %v8208, %v8628
    %v8630 = vpop.f32.mrb[0].mxu0
    %v8631 = vpop.f32.mrb[0].mxu0
    %v8632 = vpop.f32.mrb[0].mxu0
    %8633 = vdwg.mxu0
    %8634 = vmatprep.subr.bf16.mxu0 0
    %8635 = vmatpush1.bf16.msra.mxu0 %v8482
    %8636 = vmatprep.subr.bf16.mxu0 0
    %8637 = vmatpush1.bf16.msra.mxu0 %v8483
    %8638 = vmatprep.subr.bf16.mxu0 0
    %8639 = vmatpush1.bf16.msra.mxu0 %v8484
    %8640 = vmatprep.subr.bf16.mxu0 0
    %8641 = vmatpush1.bf16.msra.mxu0 %v8485
    %8642 = vmatprep.subr.bf16.mxu0 0
    %8643 = vmatpush1.bf16.msra.mxu0 %v8486
    %8644 = vmatprep.subr.bf16.mxu0 0
    %8645 = vmatpush1.bf16.msra.mxu0 %v8487
    %8646 = vmatprep.subr.bf16.mxu0 0
    %8647 = vmatpush1.bf16.msra.mxu0 %v8488
    %8648 = vmatprep.subr.bf16.mxu0 0
    %8649 = vmatpush1.bf16.msra.mxu0 %v8489
    %8650 = vmatprep.subr.bf16.mxu0 0
    %8651 = vmatpush1.bf16.msra.mxu0 %v8490
    %8652 = vmatprep.subr.bf16.mxu0 0
    %8653 = vmatpush1.bf16.msra.mxu0 %v8491
    %8654 = vmatprep.subr.bf16.mxu0 0
    %8655 = vmatpush1.bf16.msra.mxu0 %v8492
    %8656 = vmatprep.subr.bf16.mxu0 0
    %8657 = vmatpush1.bf16.msra.mxu0 %v8493
    %8658 = vmatprep.subr.bf16.mxu0 0
    %8659 = vmatpush1.bf16.msra.mxu0 %v8494
    %8660 = vmatprep.subr.bf16.mxu0 0
    %8661 = vmatpush1.bf16.msra.mxu0 %v8495
    %8662 = vmatprep.subr.bf16.mxu0 0
    %8663 = vmatpush1.bf16.msra.mxu0 %v8496
    %8664 = vmatprep.subr.bf16.mxu0 0
    %8665 = vmatpush1.bf16.msra.mxu0 %v8497
    %8666 = vmatprep.mubr.bf16.mxu0 %v8070
    %8667 = vmatmul.mubr.bf16.gmra.mrb[0].mxu0 %v8069
    %v8668 = vpop.f32.mrb[0].mxu0
    %v8669 = vadd.f32 %v8629, %v8668
    %v8670 = vpop.f32.mrb[0].mxu0
    %v8671 = vpop.f32.mrb[0].mxu0
    %v8672 = vpop.f32.mrb[0].mxu0
    %8673 = vdwg.mxu0
    %8674 = vmatprep.subr.bf16.mxu0 0
    %8675 = vmatpush1.bf16.msra.mxu0 %v8498
    %8676 = vmatprep.subr.bf16.mxu0 0
    %8677 = vmatpush1.bf16.msra.mxu0 %v8499
    %8678 = vmatprep.subr.bf16.mxu0 0
    %8679 = vmatpush1.bf16.msra.mxu0 %v8500
    %8680 = vmatprep.subr.bf16.mxu0 0
    %8681 = vmatpush1.bf16.msra.mxu0 %v8501
    %8682 = vmatprep.subr.bf16.mxu0 0
    %8683 = vmatpush1.bf16.msra.mxu0 %v8502
    %8684 = vmatprep.subr.bf16.mxu0 0
    %8685 = vmatpush1.bf16.msra.mxu0 %v8503
    %8686 = vmatprep.subr.bf16.mxu0 0
    %8687 = vmatpush1.bf16.msra.mxu0 %v8504
    %8688 = vmatprep.subr.bf16.mxu0 0
    %8689 = vmatpush1.bf16.msra.mxu0 %v8505
    %8690 = vmatprep.subr.bf16.mxu0 0
    %8691 = vmatpush1.bf16.msra.mxu0 %v8506
    %8692 = vmatprep.subr.bf16.mxu0 0
    %8693 = vmatpush1.bf16.msra.mxu0 %v8507
    %8694 = vmatprep.subr.bf16.mxu0 0
    %8695 = vmatpush1.bf16.msra.mxu0 %v8508
    %8696 = vmatprep.subr.bf16.mxu0 0
    %8697 = vmatpush1.bf16.msra.mxu0 %v8509
    %8698 = vmatprep.subr.bf16.mxu0 0
    %8699 = vmatpush1.bf16.msra.mxu0 %v8510
    %8700 = vmatprep.subr.bf16.mxu0 0
    %8701 = vmatpush1.bf16.msra.mxu0 %v8511
    %8702 = vmatprep.subr.bf16.mxu0 0
    %8703 = vmatpush1.bf16.msra.mxu0 %v8512
    %8704 = vmatprep.subr.bf16.mxu0 0
    %8705 = vmatpush1.bf16.msra.mxu0 %v8513
    %8706 = vmatprep.mubr.bf16.mxu0 %v8072
    %8707 = vmatmul.mubr.bf16.gmra.mrb[0].mxu0 %v8071
    %v8708 = vpop.f32.mrb[0].mxu0
    %v8709 = vadd.f32 %v8669, %v8708
    %v8710 = vpop.f32.mrb[0].mxu0
    %v8711 = vpop.f32.mrb[0].mxu0
    %v8712 = vpop.f32.mrb[0].mxu0
    %8713 = vdwg.mxu0
    %8714 = vmatprep.subr.bf16.mxu0 0
    %8715 = vmatpush1.bf16.msra.mxu0 %v8514
    %8716 = vmatprep.subr.bf16.mxu0 0
    %8717 = vmatpush1.bf16.msra.mxu0 %v8515
    %8718 = vmatprep.subr.bf16.mxu0 0
    %8719 = vmatpush1.bf16.msra.mxu0 %v8516
    %8720 = vmatprep.subr.bf16.mxu0 0
    %8721 = vmatpush1.bf16.msra.mxu0 %v8517
    %8722 = vmatprep.subr.bf16.mxu0 0
    %8723 = vmatpush1.bf16.msra.mxu0 %v8518
    %8724 = vmatprep.subr.bf16.mxu0 0
    %8725 = vmatpush1.bf16.msra.mxu0 %v8519
    %8726 = vmatprep.subr.bf16.mxu0 0
    %8727 = vmatpush1.bf16.msra.mxu0 %v8520
    %8728 = vmatprep.subr.bf16.mxu0 0
    %8729 = vmatpush1.bf16.msra.mxu0 %v8521
    %8730 = vmatprep.subr.bf16.mxu0 0
    %8731 = vmatpush1.bf16.msra.mxu0 %v8522
    %8732 = vmatprep.subr.bf16.mxu0 0
    %8733 = vmatpush1.bf16.msra.mxu0 %v8523
    %8734 = vmatprep.subr.bf16.mxu0 0
    %8735 = vmatpush1.bf16.msra.mxu0 %v8524
    %8736 = vmatprep.subr.bf16.mxu0 0
    %8737 = vmatpush1.bf16.msra.mxu0 %v8525
    %8738 = vmatprep.subr.bf16.mxu0 0
    %8739 = vmatpush1.bf16.msra.mxu0 %v8526
    %8740 = vmatprep.subr.bf16.mxu0 0
    %8741 = vmatpush1.bf16.msra.mxu0 %v8527
    %8742 = vmatprep.subr.bf16.mxu0 0
    %8743 = vmatpush1.bf16.msra.mxu0 %v8528
    %8744 = vmatprep.subr.bf16.mxu0 0
    %8745 = vmatpush1.bf16.msra.mxu0 %v8529
    %8746 = vmatprep.mubr.bf16.mxu0 %v8074
    %8747 = vmatmul.mubr.bf16.gmra.mrb[0].mxu0 %v8073
    %v8748 = vpop.f32.mrb[0].mxu0
    %v8749 = vadd.f32 %v8709, %v8748
    %v8750 = vpop.f32.mrb[0].mxu0
    %v8751 = vpop.f32.mrb[0].mxu0
    %v8752 = vpop.f32.mrb[0].mxu0
    %8753 = vdwg.mxu0
    %v8754 = vxor.u32 %v8749, 2147483648
    %v8755 = vmul.f32 %v8754, 1.442695
    %v8756 = vpow.pop %v8755
    %v8757 = vadd.f32 %v8756, 1.0
    %v8758 = vrcp.pop %v8757
    %v8759 = vmul.f32 1.0, %v8758
    %8760 = vst [vmem:[#allocation11] sm:$0x3] %v8759
    // Predicated region
    $region42: #{tpu_custom_call.1} parent=1 // pred_check
      _
    $region43: #{tpu_custom_call.1} parent=1 // pred_check_branch
      %8762 = sbr.rel (0) target = $region45
    $region44: #{tpu_custom_call.1} parent=1 // pred_region
      %s8764 = ssub.s32 32, 32
      %8765 = vsyncadd [#allocation4], %s8764
      %s8767 = sshll.u32 [#allocation11], 4
      %s8768 = int_to_ptr.vmem [resolvable:$true] %s8767
      %8770 = dma.vmem_to_hbm [thread:$0]  %s8768, 32, %s5, [#allocation4]
    $region45: #{tpu_custom_call.1} parent=1 // pred_fallthru
      _
    // Predicated region
    $region46: #{tpu_custom_call.1} parent=1 // pred_check
      _
    $region47: #{tpu_custom_call.1} parent=1 // pred_check_branch
      %8772 = sbr.rel (0) target = $region49
    $region48: #{tpu_custom_call.1} parent=1 // pred_region
      %8773 = dma.done [#allocation4], 32
    $region49: #{tpu_custom_call.1} parent=1 // pred_fallthru
      _
    %8774 = vsyncpa [#allocation3], 1
    %8775 = vsyncpa [#allocation6], 1
    %8776 = vsyncpa [#allocation9], 1
    %8777 = vsyncpa [#allocation4], 1

</llo_original>
